<compile_context>
chip_gen: v7x
topology: tpu7x:2x2x1
jax: 0.10.0
libtpu: 0.0.40
codegen_flags: <defaults>
</compile_context>

<pallas_src>
import jax
import jax.numpy as jnp
from jax import lax
from jax.experimental import pallas as pl
from jax.experimental.pallas import tpu as pltpu


def _round_up(n, m):
    return ((n + m - 1) // m) * m


# ----------------------------- Pallas kernels -----------------------------

def _conv1_relu_kernel(x_ref, w_ref, b_ref, o_ref):
    # x: (784, 9) bf16   w: (9, 32) bf16   b: (1, 32) f32   o: (784, 32) bf16
    y = jnp.dot(x_ref[...], w_ref[...], preferred_element_type=jnp.float32)
    o_ref[...] = jnp.maximum(y + b_ref[...], 0.0).astype(o_ref.dtype)


def _conv2_relu_pool_kernel(x_ref, w_ref, b_ref, o_ref):
    # x: (4, 196, 288) bf16 — one im2col slab per 2x2-pool parity class (a,b)
    # w: (288, 64) bf16   b: (1, 64) f32   o: (196, 64) bf16  (pooled, NHWC-flat rows)
    bias = b_ref[...]

    def tap(p):  # conv output at positions (2h'+a, 2w'+b) for parity class p=(a,b)
        y = jnp.dot(x_ref[p], w_ref[...], preferred_element_type=jnp.float32)
        return jnp.maximum(y + bias, 0.0)

    # max over the 4 window positions == maxpool(relu(conv2(x)))  (relu is monotone)
    m = jnp.maximum(jnp.maximum(tap(0), tap(1)), jnp.maximum(tap(2), tap(3)))
    o_ref[...] = m.astype(o_ref.dtype)


def _mlp_kernel(x_ref, w1_ref, b1_ref, w2_ref, b2_ref, o_ref):
    # x: (TM, 12544) bf16   w1: (12544, 128) bf16   w2: (128, 128) bf16 (N zero-padded)
    h = jnp.dot(x_ref[...], w1_ref[...], preferred_element_type=jnp.float32) + b1_ref[...]
    h = jnp.maximum(h, 0.0)
    o_ref[...] = (jnp.dot(h.astype(jnp.bfloat16), w2_ref[...],
                          preferred_element_type=jnp.float32) + b2_ref[...])


# ------------------------------ wrappers ----------------------------------

def _conv1_relu(x1col, w, b):
    B = x1col.shape[0]
    return pl.pallas_call(
        _conv1_relu_kernel,
        out_shape=jax.ShapeDtypeStruct((B, 784, 32), jnp.bfloat16),
        grid_spec=pltpu.PrefetchScalarGridSpec(
            num_scalar_prefetch=0,
            grid=(B,),
            in_specs=[
                pl.BlockSpec((None, 784, 9), lambda i: (i, 0, 0)),
                pl.BlockSpec((9, 32), lambda i: (0, 0)),
                pl.BlockSpec((1, 32), lambda i: (0, 0)),
            ],
            out_specs=pl.BlockSpec((None, 784, 32), lambda i: (i, 0, 0)),
        ),
        compiler_params=pltpu.CompilerParams(dimension_semantics=("parallel",)),
        cost_estimate=pl.CostEstimate(
            flops=2 * B * 784 * 9 * 32, transcendentals=0,
            bytes_accessed=B * 784 * 9 * 2 + 9 * 32 * 2 + B * 784 * 32 * 2),
    )(x1col, w, b)


def _conv2_relu_pool(x4, w, b):
    B = x4.shape[0]
    return pl.pallas_call(
        _conv2_relu_pool_kernel,
        out_shape=jax.ShapeDtypeStruct((B, 196, 64), jnp.bfloat16),
        grid_spec=pltpu.PrefetchScalarGridSpec(
            num_scalar_prefetch=0,
            grid=(B,),
            in_specs=[
                pl.BlockSpec((None, 4, 196, 288), lambda i: (i, 0, 0, 0)),
                pl.BlockSpec((288, 64), lambda i: (0, 0)),
                pl.BlockSpec((1, 64), lambda i: (0, 0)),
            ],
            out_specs=pl.BlockSpec((None, 196, 64), lambda i: (i, 0, 0)),
        ),
        compiler_params=pltpu.CompilerParams(dimension_semantics=("parallel",)),
        cost_estimate=pl.CostEstimate(
            flops=2 * B * 4 * 196 * 288 * 64, transcendentals=0,
            bytes_accessed=B * 4 * 196 * 288 * 2 + 288 * 64 * 2 + B * 196 * 64 * 2),
    )(x4, w, b)


def _mlp(x_flat, w1, b1, w2, b2):
    """fc1 + relu + fc2 fused; batch-tiled grid with resident (pinned) weights."""
    B, K = x_flat.shape
    N = w2.shape[1]                        # 128 (zero-padded from 10)
    TM = 128 if B >= 128 else _round_up(max(B, 1), 8)
    Bp = _round_up(B, TM)
    if Bp != B:
        x_flat = jnp.pad(x_flat, ((0, Bp - B), (0, 0)))
    out = pl.pallas_call(
        _mlp_kernel,
        out_shape=jax.ShapeDtypeStruct((Bp, N), jnp.float32),
        grid_spec=pltpu.PrefetchScalarGridSpec(
            num_scalar_prefetch=0,
            grid=(Bp // TM,),
            in_specs=[
                pl.BlockSpec((TM, K), lambda i: (i, 0)),
                pl.BlockSpec((K, 128), lambda i: (0, 0)),   # w1 resident across tiles
                pl.BlockSpec((1, 128), lambda i: (0, 0)),
                pl.BlockSpec((128, N), lambda i: (0, 0)),   # w2 resident
                pl.BlockSpec((1, N), lambda i: (0, 0)),
            ],
            out_specs=pl.BlockSpec((TM, N), lambda i: (i, 0)),
        ),
        compiler_params=pltpu.CompilerParams(dimension_semantics=("parallel",)),
        cost_estimate=pl.CostEstimate(
            flops=2 * Bp * K * 128 + 2 * Bp * 128 * N, transcendentals=0,
            bytes_accessed=Bp * K * 2 + K * 128 * 2 + 128 * N * 2 + Bp * N * 4),
    )(x_flat, w1, b1, w2, b2)
    return out[:B]


# --------------------- one-time parameter preparation ----------------------

def prepare_params(params):
    """Done ONCE, outside the per-call jit path: PyTorch layouts -> kernel layouts + bf16."""
    w1c = jnp.transpose(params["conv1_w"], (2, 3, 1, 0)).reshape(9, 32).astype(jnp.bfloat16)
    b1c = params["conv1_b"].reshape(1, 32).astype(jnp.float32)
    w2c = jnp.transpose(params["conv2_w"], (2, 3, 1, 0)).reshape(288, 64).astype(jnp.bfloat16)
    b2c = params["conv2_b"].reshape(1, 64).astype(jnp.float32)
    # fc1 expects NCHW (c,h,w) flatten order; our pooled activation is NHWC (h,w,c)-flat.
    wf1 = (params["fc1_w"].reshape(128, 64, 14, 14)
           .transpose(0, 2, 3, 1).reshape(128, 14 * 14 * 64).T).astype(jnp.bfloat16)
    bf1 = params["fc1_b"].reshape(1, 128).astype(jnp.float32)
    # fc2: pad N 10 -> 128 for lane-dense output stores; sliced back to 10 in glue.
    wf2 = jnp.zeros((128, 128), jnp.float32).at[:, :10].set(params["fc2_w"].T).astype(jnp.bfloat16)
    bf2 = jnp.zeros((1, 128), jnp.float32).at[0, :10].set(params["fc2_b"])
    return {"w1c": w1c, "b1c": b1c, "w2c": w2c, "b2c": b2c,
            "wf1": wf1, "bf1": bf1, "wf2": wf2, "bf2": bf2}


# ------------------------------- forward -----------------------------------

def cnn_forward(x_nchw, prep):
    """Dropout layers are identity at inference (PyTorch eval semantics)."""
    B = x_nchw.shape[0]
    x = jnp.transpose(x_nchw, (0, 2, 3, 1)).astype(jnp.float32)         # NCHW -> NHWC

    # --- conv1: im2col is tiny for Cin=1 (784 x 9), built in glue, bf16.
    xp0 = jnp.pad(x[..., 0], ((0, 0), (1, 1), (1, 1)))                  # (B,30,30)
    taps1 = [xp0[:, dy:dy + 28, dx:dx + 28] for dy in range(3) for dx in range(3)]
    x1col = jnp.stack(taps1, axis=-1).reshape(B, 784, 9).astype(jnp.bfloat16)
    a1 = _conv1_relu(x1col, prep["w1c"], prep["b1c"])                   # (B,784,32) bf16
    a1 = a1.reshape(B, 28, 28, 32)

    # --- conv2 im2col, grouped by 2x2 maxpool parity (a,b) so the kernel can fuse
    #     conv + relu + pool without any HBM round-trip of the 28x28x64 activation.
    ap = jnp.pad(a1, ((0, 0), (1, 1), (1, 1), (0, 0)))                  # (B,30,30,32) bf16
    slabs = []
    for a in range(2):
        for b in range(2):
            cols = [ap[:, a + dy: a + dy + 28: 2, b + dx: b + dx + 28: 2, :]
                    for dy in range(3) for dx in range(3)]
            slabs.append(jnp.concatenate(cols, axis=-1).reshape(B, 196, 288))
    x4 = jnp.stack(slabs, axis=1)                                       # (B,4,196,288) bf16

    pooled = _conv2_relu_pool(x4, prep["w2c"], prep["b2c"])             # (B,196,64) bf16
    x_flat = pooled.reshape(B, 14 * 14 * 64)                            # NHWC flatten order

    logits = _mlp(x_flat, prep["wf1"], prep["bf1"], prep["wf2"], prep["bf2"])  # (B,128) f32
    return logits[:, :10]


# --------------------------- params & reference ----------------------------

def init_params(key):
    ks = jax.random.split(key, 8)
    return {
        "conv1_w": 0.10 * jax.random.normal(ks[0], (32, 1, 3, 3), jnp.float32),
        "conv1_b": 0.05 * jax.random.normal(ks[1], (32,), jnp.float32),
        "conv2_w": 0.05 * jax.random.normal(ks[2], (64, 32, 3, 3), jnp.float32),
        "conv2_b": 0.05 * jax.random.normal(ks[3], (64,), jnp.float32),
        "fc1_w": 0.02 * jax.random.normal(ks[4], (128, 64 * 14 * 14), jnp.float32),
        "fc1_b": 0.05 * jax.random.normal(ks[5], (128,), jnp.float32),
        "fc2_w": 0.05 * jax.random.normal(ks[6], (10, 128), jnp.float32),
        "fc2_b": 0.05 * jax.random.normal(ks[7], (10,), jnp.float32),
    }


def cnn_reference(x_nchw, p):
    """Pure-JAX/XLA f32 reference mirroring the PyTorch forward exactly (NCHW)."""
    dn = ("NCHW", "OIHW", "NCHW")
    y = lax.conv_general_dilated(x_nchw, p["conv1_w"], (1, 1), "SAME", dimension_numbers=dn)
    y = jnp.maximum(y + p["conv1_b"][None, :, None, None], 0.0)
    y = lax.conv_general_dilated(y, p["conv2_w"], (1, 1), "SAME", dimension_numbers=dn)
    y = jnp.maximum(y + p["conv2_b"][None, :, None, None], 0.0)
    y = lax.reduce_window(y, -jnp.inf, lax.max, (1, 1, 2, 2), (1, 1, 2, 2), "VALID")
    y = y.reshape(y.shape[0], -1)                                      # PyTorch .view order
    y = jnp.maximum(y @ p["fc1_w"].T + p["fc1_b"], 0.0)
    return y @ p["fc2_w"].T + p["fc2_b"]


if __name__ == "__main__":
    key = jax.random.PRNGKey(0)
    kx, kp = jax.random.split(key)
    x = jax.random.normal(kx, (2, 1, 28, 28), jnp.float32)   # MNIST-like NCHW input
    params = init_params(kp)

    prep = prepare_params(params)            # one-time weight prep (outside per-call path)
    fwd = jax.jit(cnn_forward)
    out = jax.block_until_ready(fwd(x, prep))

    ref = cnn_reference(x, params)
    assert out.shape == (2, 10), out.shape
    max_err = float(jnp.max(jnp.abs(out - ref)))
    # bf16 matmul operands with f32 accumulation -> loosened (but still tight) tolerance.
    assert jnp.allclose(out, ref, rtol=1e-2, atol=1e-2), max_err
    print("KERNEL_OK")
</pallas_src>

<mosaic_0001>
module attributes {stable_mosaic.version = 11 : i64} {
  func.func @_conv1_relu_kernel(%arg0: i32, %arg1: memref<1x784x9xbf16, #tpu.memory_space<vmem>>, %arg2: memref<9x32xbf16, #tpu.memory_space<vmem>>, %arg3: memref<1x32xf32, #tpu.memory_space<vmem>>, %arg4: memref<1x784x32xbf16, #tpu.memory_space<vmem>>) attributes {dimension_semantics = [#tpu.dimension_semantics<parallel>], iteration_bounds = array<i64: 2>, scalar_prefetch = 0 : i64, scratch_operands = 0 : i64, tpu.core_type = #tpu.core_type<tc>, window_params = [{transform_indices = @transform_0, window_bounds = array<i64: 1, 784, 9>}, {pipeline_mode = #tpu.pipeline_mode<synchronous>, transform_indices = @transform_1, window_bounds = array<i64: 9, 32>}, {pipeline_mode = #tpu.pipeline_mode<synchronous>, transform_indices = @transform_2, window_bounds = array<i64: 1, 32>}, {transform_indices = @transform_3, window_bounds = array<i64: 1, 784, 32>}]} {
    %c0 = arith.constant 0 : index
    %c0_0 = arith.constant 0 : index
    %c0_1 = arith.constant 0 : index
    %0 = vector.load %arg1[%c0, %c0_0, %c0_1] : memref<1x784x9xbf16, #tpu.memory_space<vmem>>, vector<1x784x9xbf16>
    %1 = vector.shape_cast %0 : vector<1x784x9xbf16> to vector<784x9xbf16>
    %c0_2 = arith.constant 0 : index
    %c0_3 = arith.constant 0 : index
    %2 = vector.load %arg2[%c0_2, %c0_3] : memref<9x32xbf16, #tpu.memory_space<vmem>>, vector<9x32xbf16>
    %cst = arith.constant dense<0.000000e+00> : vector<784x32xf32>
    %3 = tpu.matmul %1, %2, %cst {dimension_numbers = #tpu.dot_dimension_numbers<[1], [0], [0], [1], [0, 0, 1, 1], [], []>} : vector<784x9xbf16>, vector<9x32xbf16>, vector<784x32xf32> -> vector<784x32xf32>
    %c0_4 = arith.constant 0 : index
    %c0_5 = arith.constant 0 : index
    %4 = vector.load %arg3[%c0_4, %c0_5] : memref<1x32xf32, #tpu.memory_space<vmem>>, vector<1x32xf32>
    %5 = vector.broadcast %4 : vector<1x32xf32> to vector<784x32xf32>
    %6 = arith.addf %3, %5 : vector<784x32xf32>
    %cst_6 = arith.constant 0.000000e+00 : f32
    %7 = vector.broadcast %cst_6 : f32 to vector<784x32xf32>
    %8 = arith.maximumf %6, %7 : vector<784x32xf32>
    %9 = arith.truncf %8 : vector<784x32xf32> to vector<784x32xbf16>
    %c0_7 = arith.constant 0 : index
    %c0_8 = arith.constant 0 : index
    %c0_9 = arith.constant 0 : index
    %10 = vector.load %arg4[%c0_7, %c0_8, %c0_9] : memref<1x784x32xbf16, #tpu.memory_space<vmem>>, vector<1x784x32xbf16>
    %11 = vector.shape_cast %10 : vector<1x784x32xbf16> to vector<784x32xbf16>
    %12 = vector.shape_cast %9 : vector<784x32xbf16> to vector<1x784x32xbf16>
    tpu.vector_store %arg4[%c0_7, %c0_8, %c0_9], %12 {strides = array<i32>} : memref<1x784x32xbf16, #tpu.memory_space<vmem>>, vector<1x784x32xbf16>,
    return
  }
  func.func @transform_0(%arg0: i32) -> (i32, i32, i32) {
    %c0_i32 = arith.constant 0 : i32
    %c0_i32_0 = arith.constant 0 : i32
    %c0_i32_1 = arith.constant 0 : i32
    return %arg0, %c0_i32, %c0_i32_0 : i32, i32, i32
  }
  func.func @transform_1(%arg0: i32) -> (i32, i32) {
    %c0_i32 = arith.constant 0 : i32
    %c0_i32_0 = arith.constant 0 : i32
    %c0_i32_1 = arith.constant 0 : i32
    return %c0_i32, %c0_i32_0 : i32, i32
  }
  func.func @transform_2(%arg0: i32) -> (i32, i32) {
    %c0_i32 = arith.constant 0 : i32
    %c0_i32_0 = arith.constant 0 : i32
    %c0_i32_1 = arith.constant 0 : i32
    return %c0_i32, %c0_i32_0 : i32, i32
  }
  func.func @transform_3(%arg0: i32) -> (i32, i32, i32) {
    %c0_i32 = arith.constant 0 : i32
    %c0_i32_0 = arith.constant 0 : i32
    %c0_i32_1 = arith.constant 0 : i32
    return %arg0, %c0_i32, %c0_i32_0 : i32, i32, i32
  }
}

module attributes {stable_mosaic.version = 11 : i64} {
  func.func @_conv2_relu_pool_kernel(%arg0: i32, %arg1: memref<1x4x196x288xbf16, #tpu.memory_space<vmem>>, %arg2: memref<288x64xbf16, #tpu.memory_space<vmem>>, %arg3: memref<1x64xf32, #tpu.memory_space<vmem>>, %arg4: memref<1x196x64xbf16, #tpu.memory_space<vmem>>) attributes {dimension_semantics = [#tpu.dimension_semantics<parallel>], iteration_bounds = array<i64: 2>, scalar_prefetch = 0 : i64, scratch_operands = 0 : i64, tpu.core_type = #tpu.core_type<tc>, window_params = [{transform_indices = @transform_0, window_bounds = array<i64: 1, 4, 196, 288>}, {pipeline_mode = #tpu.pipeline_mode<synchronous>, transform_indices = @transform_1, window_bounds = array<i64: 288, 64>}, {pipeline_mode = #tpu.pipeline_mode<synchronous>, transform_indices = @transform_2, window_bounds = array<i64: 1, 64>}, {transform_indices = @transform_3, window_bounds = array<i64: 1, 196, 64>}]} {
    %c0 = arith.constant 0 : index
    %c0_0 = arith.constant 0 : index
    %0 = vector.load %arg3[%c0, %c0_0] : memref<1x64xf32, #tpu.memory_space<vmem>>, vector<1x64xf32>
    %c0_1 = arith.constant 0 : index
    %c0_2 = arith.constant 0 : index
    %c0_3 = arith.constant 0 : index
    %c0_4 = arith.constant 0 : index
    %1 = vector.load %arg1[%c0_1, %c0_2, %c0_3, %c0_4] : memref<1x4x196x288xbf16, #tpu.memory_space<vmem>>, vector<1x1x196x288xbf16>
    %2 = vector.shape_cast %1 : vector<1x1x196x288xbf16> to vector<196x288xbf16>
    %c0_5 = arith.constant 0 : index
    %c0_6 = arith.constant 0 : index
    %3 = vector.load %arg2[%c0_5, %c0_6] : memref<288x64xbf16, #tpu.memory_space<vmem>>, vector<288x64xbf16>
    %cst = arith.constant dense<0.000000e+00> : vector<196x64xf32>
    %4 = tpu.matmul %2, %3, %cst {dimension_numbers = #tpu.dot_dimension_numbers<[1], [0], [0], [1], [0, 0, 1, 1], [], []>} : vector<196x288xbf16>, vector<288x64xbf16>, vector<196x64xf32> -> vector<196x64xf32>
    %5 = vector.broadcast %0 : vector<1x64xf32> to vector<196x64xf32>
    %6 = arith.addf %4, %5 : vector<196x64xf32>
    %cst_7 = arith.constant 0.000000e+00 : f32
    %7 = vector.broadcast %cst_7 : f32 to vector<196x64xf32>
    %8 = arith.maximumf %6, %7 : vector<196x64xf32>
    %c0_8 = arith.constant 0 : index
    %c1 = arith.constant 1 : index
    %c0_9 = arith.constant 0 : index
    %c0_10 = arith.constant 0 : index
    %9 = vector.load %arg1[%c0_8, %c1, %c0_9, %c0_10] : memref<1x4x196x288xbf16, #tpu.memory_space<vmem>>, vector<1x1x196x288xbf16>
    %10 = vector.shape_cast %9 : vector<1x1x196x288xbf16> to vector<196x288xbf16>
    %c0_11 = arith.constant 0 : index
    %c0_12 = arith.constant 0 : index
    %11 = vector.load %arg2[%c0_11, %c0_12] : memref<288x64xbf16, #tpu.memory_space<vmem>>, vector<288x64xbf16>
    %cst_13 = arith.constant dense<0.000000e+00> : vector<196x64xf32>
    %12 = tpu.matmul %10, %11, %cst_13 {dimension_numbers = #tpu.dot_dimension_numbers<[1], [0], [0], [1], [0, 0, 1, 1], [], []>} : vector<196x288xbf16>, vector<288x64xbf16>, vector<196x64xf32> -> vector<196x64xf32>
    %13 = vector.broadcast %0 : vector<1x64xf32> to vector<196x64xf32>
    %14 = arith.addf %12, %13 : vector<196x64xf32>
    %cst_14 = arith.constant 0.000000e+00 : f32
    %15 = vector.broadcast %cst_14 : f32 to vector<196x64xf32>
    %16 = arith.maximumf %14, %15 : vector<196x64xf32>
    %17 = arith.maximumf %8, %16 : vector<196x64xf32>
    %c0_15 = arith.constant 0 : index
    %c2 = arith.constant 2 : index
    %c0_16 = arith.constant 0 : index
    %c0_17 = arith.constant 0 : index
    %18 = vector.load %arg1[%c0_15, %c2, %c0_16, %c0_17] : memref<1x4x196x288xbf16, #tpu.memory_space<vmem>>, vector<1x1x196x288xbf16>
    %19 = vector.shape_cast %18 : vector<1x1x196x288xbf16> to vector<196x288xbf16>
    %c0_18 = arith.constant 0 : index
    %c0_19 = arith.constant 0 : index
    %20 = vector.load %arg2[%c0_18, %c0_19] : memref<288x64xbf16, #tpu.memory_space<vmem>>, vector<288x64xbf16>
    %cst_20 = arith.constant dense<0.000000e+00> : vector<196x64xf32>
    %21 = tpu.matmul %19, %20, %cst_20 {dimension_numbers = #tpu.dot_dimension_numbers<[1], [0], [0], [1], [0, 0, 1, 1], [], []>} : vector<196x288xbf16>, vector<288x64xbf16>, vector<196x64xf32> -> vector<196x64xf32>
    %22 = vector.broadcast %0 : vector<1x64xf32> to vector<196x64xf32>
    %23 = arith.addf %21, %22 : vector<196x64xf32>
    %cst_21 = arith.constant 0.000000e+00 : f32
    %24 = vector.broadcast %cst_21 : f32 to vector<196x64xf32>
    %25 = arith.maximumf %23, %24 : vector<196x64xf32>
    %c0_22 = arith.constant 0 : index
    %c3 = arith.constant 3 : index
    %c0_23 = arith.constant 0 : index
    %c0_24 = arith.constant 0 : index
    %26 = vector.load %arg1[%c0_22, %c3, %c0_23, %c0_24] : memref<1x4x196x288xbf16, #tpu.memory_space<vmem>>, vector<1x1x196x288xbf16>
    %27 = vector.shape_cast %26 : vector<1x1x196x288xbf16> to vector<196x288xbf16>
    %c0_25 = arith.constant 0 : index
    %c0_26 = arith.constant 0 : index
    %28 = vector.load %arg2[%c0_25, %c0_26] : memref<288x64xbf16, #tpu.memory_space<vmem>>, vector<288x64xbf16>
    %cst_27 = arith.constant dense<0.000000e+00> : vector<196x64xf32>
    %29 = tpu.matmul %27, %28, %cst_27 {dimension_numbers = #tpu.dot_dimension_numbers<[1], [0], [0], [1], [0, 0, 1, 1], [], []>} : vector<196x288xbf16>, vector<288x64xbf16>, vector<196x64xf32> -> vector<196x64xf32>
    %30 = vector.broadcast %0 : vector<1x64xf32> to vector<196x64xf32>
    %31 = arith.addf %29, %30 : vector<196x64xf32>
    %cst_28 = arith.constant 0.000000e+00 : f32
    %32 = vector.broadcast %cst_28 : f32 to vector<196x64xf32>
    %33 = arith.maximumf %31, %32 : vector<196x64xf32>
    %34 = arith.maximumf %25, %33 : vector<196x64xf32>
    %35 = arith.maximumf %17, %34 : vector<196x64xf32>
    %36 = arith.truncf %35 : vector<196x64xf32> to vector<196x64xbf16>
    %c0_29 = arith.constant 0 : index
    %c0_30 = arith.constant 0 : index
    %c0_31 = arith.constant 0 : index
    %37 = vector.load %arg4[%c0_29, %c0_30, %c0_31] : memref<1x196x64xbf16, #tpu.memory_space<vmem>>, vector<1x196x64xbf16>
    %38 = vector.shape_cast %37 : vector<1x196x64xbf16> to vector<196x64xbf16>
    %39 = vector.shape_cast %36 : vector<196x64xbf16> to vector<1x196x64xbf16>
    tpu.vector_store %arg4[%c0_29, %c0_30, %c0_31], %39 {strides = array<i32>} : memref<1x196x64xbf16, #tpu.memory_space<vmem>>, vector<1x196x64xbf16>,
    return
  }
  func.func @transform_0(%arg0: i32) -> (i32, i32, i32, i32) {
    %c0_i32 = arith.constant 0 : i32
    %c0_i32_0 = arith.constant 0 : i32
    %c0_i32_1 = arith.constant 0 : i32
    %c0_i32_2 = arith.constant 0 : i32
    return %arg0, %c0_i32, %c0_i32_0, %c0_i32_1 : i32, i32, i32, i32
  }
  func.func @transform_1(%arg0: i32) -> (i32, i32) {
    %c0_i32 = arith.constant 0 : i32
    %c0_i32_0 = arith.constant 0 : i32
    %c0_i32_1 = arith.constant 0 : i32
    return %c0_i32, %c0_i32_0 : i32, i32
  }
  func.func @transform_2(%arg0: i32) -> (i32, i32) {
    %c0_i32 = arith.constant 0 : i32
    %c0_i32_0 = arith.constant 0 : i32
    %c0_i32_1 = arith.constant 0 : i32
    return %c0_i32, %c0_i32_0 : i32, i32
  }
  func.func @transform_3(%arg0: i32) -> (i32, i32, i32) {
    %c0_i32 = arith.constant 0 : i32
    %c0_i32_0 = arith.constant 0 : i32
    %c0_i32_1 = arith.constant 0 : i32
    return %arg0, %c0_i32, %c0_i32_0 : i32, i32, i32
  }
}

module attributes {stable_mosaic.version = 11 : i64} {
  func.func @_mlp_kernel(%arg0: i32, %arg1: memref<8x12544xbf16, #tpu.memory_space<vmem>>, %arg2: memref<12544x128xbf16, #tpu.memory_space<vmem>>, %arg3: memref<1x128xf32, #tpu.memory_space<vmem>>, %arg4: memref<128x128xbf16, #tpu.memory_space<vmem>>, %arg5: memref<1x128xf32, #tpu.memory_space<vmem>>, %arg6: memref<8x128xf32, #tpu.memory_space<vmem>>) attributes {dimension_semantics = [#tpu.dimension_semantics<parallel>], iteration_bounds = array<i64: 1>, scalar_prefetch = 0 : i64, scratch_operands = 0 : i64, tpu.core_type = #tpu.core_type<tc>, window_params = [{transform_indices = @transform_0, window_bounds = array<i64: 8, 12544>}, {pipeline_mode = #tpu.pipeline_mode<synchronous>, transform_indices = @transform_1, window_bounds = array<i64: 12544, 128>}, {pipeline_mode = #tpu.pipeline_mode<synchronous>, transform_indices = @transform_2, window_bounds = array<i64: 1, 128>}, {pipeline_mode = #tpu.pipeline_mode<synchronous>, transform_indices = @transform_3, window_bounds = array<i64: 128, 128>}, {pipeline_mode = #tpu.pipeline_mode<synchronous>, transform_indices = @transform_4, window_bounds = array<i64: 1, 128>}, {transform_indices = @transform_5, window_bounds = array<i64: 8, 128>}]} {
    %c0 = arith.constant 0 : index
    %c0_0 = arith.constant 0 : index
    %0 = vector.load %arg1[%c0, %c0_0] : memref<8x12544xbf16, #tpu.memory_space<vmem>>, vector<8x12544xbf16>
    %c0_1 = arith.constant 0 : index
    %c0_2 = arith.constant 0 : index
    %1 = vector.load %arg2[%c0_1, %c0_2] : memref<12544x128xbf16, #tpu.memory_space<vmem>>, vector<12544x128xbf16>
    %cst = arith.constant dense<0.000000e+00> : vector<8x128xf32>
    %2 = tpu.matmul %0, %1, %cst {dimension_numbers = #tpu.dot_dimension_numbers<[1], [0], [0], [1], [0, 0, 1, 1], [], []>} : vector<8x12544xbf16>, vector<12544x128xbf16>, vector<8x128xf32> -> vector<8x128xf32>
    %c0_3 = arith.constant 0 : index
    %c0_4 = arith.constant 0 : index
    %3 = vector.load %arg3[%c0_3, %c0_4] : memref<1x128xf32, #tpu.memory_space<vmem>>, vector<1x128xf32>
    %4 = vector.broadcast %3 : vector<1x128xf32> to vector<8x128xf32>
    %5 = arith.addf %2, %4 : vector<8x128xf32>
    %cst_5 = arith.constant 0.000000e+00 : f32
    %6 = vector.broadcast %cst_5 : f32 to vector<8x128xf32>
    %7 = arith.maximumf %5, %6 : vector<8x128xf32>
    %8 = arith.truncf %7 : vector<8x128xf32> to vector<8x128xbf16>
    %c0_6 = arith.constant 0 : index
    %c0_7 = arith.constant 0 : index
    %9 = vector.load %arg4[%c0_6, %c0_7] : memref<128x128xbf16, #tpu.memory_space<vmem>>, vector<128x128xbf16>
    %cst_8 = arith.constant dense<0.000000e+00> : vector<8x128xf32>
    %10 = tpu.matmul %8, %9, %cst_8 {dimension_numbers = #tpu.dot_dimension_numbers<[1], [0], [0], [1], [0, 0, 1, 1], [], []>} : vector<8x128xbf16>, vector<128x128xbf16>, vector<8x128xf32> -> vector<8x128xf32>
    %c0_9 = arith.constant 0 : index
    %c0_10 = arith.constant 0 : index
    %11 = vector.load %arg5[%c0_9, %c0_10] : memref<1x128xf32, #tpu.memory_space<vmem>>, vector<1x128xf32>
    %12 = vector.broadcast %11 : vector<1x128xf32> to vector<8x128xf32>
    %13 = arith.addf %10, %12 : vector<8x128xf32>
    %c0_11 = arith.constant 0 : index
    %c0_12 = arith.constant 0 : index
    %14 = vector.load %arg6[%c0_11, %c0_12] : memref<8x128xf32, #tpu.memory_space<vmem>>, vector<8x128xf32>
    tpu.vector_store %arg6[%c0_11, %c0_12], %13 {strides = array<i32>} : memref<8x128xf32, #tpu.memory_space<vmem>>, vector<8x128xf32>,
    return
  }
  func.func @transform_0(%arg0: i32) -> (i32, i32) {
    %c0_i32 = arith.constant 0 : i32
    %c0_i32_0 = arith.constant 0 : i32
    return %arg0, %c0_i32 : i32, i32
  }
  func.func @transform_1(%arg0: i32) -> (i32, i32) {
    %c0_i32 = arith.constant 0 : i32
    %c0_i32_0 = arith.constant 0 : i32
    %c0_i32_1 = arith.constant 0 : i32
    return %c0_i32, %c0_i32_0 : i32, i32
  }
  func.func @transform_2(%arg0: i32) -> (i32, i32) {
    %c0_i32 = arith.constant 0 : i32
    %c0_i32_0 = arith.constant 0 : i32
    %c0_i32_1 = arith.constant 0 : i32
    return %c0_i32, %c0_i32_0 : i32, i32
  }
  func.func @transform_3(%arg0: i32) -> (i32, i32) {
    %c0_i32 = arith.constant 0 : i32
    %c0_i32_0 = arith.constant 0 : i32
    %c0_i32_1 = arith.constant 0 : i32
    return %c0_i32, %c0_i32_0 : i32, i32
  }
  func.func @transform_4(%arg0: i32) -> (i32, i32) {
    %c0_i32 = arith.constant 0 : i32
    %c0_i32_0 = arith.constant 0 : i32
    %c0_i32_1 = arith.constant 0 : i32
    return %c0_i32, %c0_i32_0 : i32, i32
  }
  func.func @transform_5(%arg0: i32) -> (i32, i32) {
    %c0_i32 = arith.constant 0 : i32
    %c0_i32_0 = arith.constant 0 : i32
    return %arg0, %c0_i32 : i32, i32
  }
}

</mosaic_0001>

<llo_original>
// kernel: cnn_forward.3
$region0: #{cnn_forward.3}
  #allocation0 [shape = 'u32[]', space=smem, size = 0x4, offset = 0x4, fixed_abs, tag = 'smem constant byte address 0x4 - core index']
  #allocation1 [shape = 'u32[144,128]{1,0:T(1,128)}', space=vmem, size = 0x12000, scoped, tag = 'internal scratch']
  %s0 = inlined_call_operand.vmem [shape: bf16[2,784,9], index: 0, kind: input, shape index: {}]
  %s1 = inlined_call_operand.vmem [shape: bf16[9,32], index: 1, kind: input, shape index: {}]
  %s2 = inlined_call_operand.vmem [shape: f32[1,32], index: 2, kind: input, shape index: {}]
  %s3 = inlined_call_operand.vmem [shape: bf16[2,784,32], index: 3, kind: output, shape index: {}]
  %s4 = sld [smem:[#allocation0]]
  $region45: #{cnn_forward.3} parent=0
    _
  %s6 = ssub.s32 1, %s4
  %s7 = scalar_select 0, %s6, %s4
  loop: start=0, step=1, limit=4
  $region2: #{cnn_forward.3} parent=0 // loop_pre_header
    _
  $region3: #{cnn_forward.3} parent=0 // loop_header
    %s9 = sphi 0, %s13
    %p10 = scmp.ge.s32.totalorder %s9, 4
    %s19 = sphi 0, %s21
    %s22 = sphi 0, %s19
    %s23 = sphi 0, %s22
    %s39 = sphi 0, %s23
    %s43 = sphi 0, %s43
    %s45 = sphi 0, %s43
    %s46 = sphi 0, %s45
    %s60 = sphi 0, %s46
    %s64 = sphi 0, %s64
    %s66 = sphi 0, %s64
    %s67 = sphi 0, %s66
    %s81 = sphi 0, %s67
    %s87 = sphi 0, %s89
    %s90 = sphi 0, %s87
    %s91 = sphi 0, %s90
    %s107 = sphi 0, %s91
  $region4: #{cnn_forward.3} parent=0 // loop_header_branch
    %12 = sbr.rel (%p10) target = $region8
  $region5: #{cnn_forward.3} parent=0 // loop_body
    %s14 = ssub.s32 %s9, 1
    %s15 = ssub.s32 %s9, 2
    %s16 = sadd.s32 %s9, 1
    %s17 = ssub.s32 %s9, %s16
    %p18 = scmp.eq.s32.totalorder %s17, 0
    %s20 = sadd.s32 %s19, 1
    %s21 = scalar_select %p18, %s19, %s20
    %p24 = pneg %p18
    %p25 = scmp.eq.s32.totalorder %s9, 1
    %p26 = por %p24, %p25
    %p27 = scmp.ne.s32.totalorder %s19, %s22
    %p28 = scmp.eq.s32.totalorder %s9, 0
    %p29 = por %p27, %p28
    %p30 = scmp.ne.s32.totalorder %s19, %s22
    %p31 = scmp.eq.s32.totalorder %s14, 1
    %p32 = por %p30, %p31
    %p33 = scmp.ne.s32.totalorder %s22, %s23
    %p34 = scmp.eq.s32.totalorder %s14, 0
    %p35 = por %p33, %p34
    %p36 = scmp.ne.s32.totalorder %s22, %s23
    %p37 = scmp.eq.s32.totalorder %s15, 1
    %p38 = por %p36, %p37
    %p40 = scmp.ne.s32.totalorder %s23, %s39
    %p41 = scmp.eq.s32.totalorder %s15, 0
    %p42 = por %p40, %p41
    %s44 = sadd.s32 %s43, 1
    %p47 = scmp.eq.s32.totalorder %s9, 1
    %p48 = scmp.ne.s32.totalorder %s43, %s45
    %p49 = scmp.eq.s32.totalorder %s9, 0
    %p50 = por %p48, %p49
    %p51 = scmp.ne.s32.totalorder %s43, %s45
    %p52 = scmp.eq.s32.totalorder %s14, 1
    %p53 = por %p51, %p52
    %p54 = scmp.ne.s32.totalorder %s45, %s46
    %p55 = scmp.eq.s32.totalorder %s14, 0
    %p56 = por %p54, %p55
    %p57 = scmp.ne.s32.totalorder %s45, %s46
    %p58 = scmp.eq.s32.totalorder %s15, 1
    %p59 = por %p57, %p58
    %p61 = scmp.ne.s32.totalorder %s46, %s60
    %p62 = scmp.eq.s32.totalorder %s15, 0
    %p63 = por %p61, %p62
    %s65 = sadd.s32 %s64, 1
    %p68 = scmp.eq.s32.totalorder %s9, 1
    %p69 = scmp.ne.s32.totalorder %s64, %s66
    %p70 = scmp.eq.s32.totalorder %s9, 0
    %p71 = por %p69, %p70
    %p72 = scmp.ne.s32.totalorder %s64, %s66
    %p73 = scmp.eq.s32.totalorder %s14, 1
    %p74 = por %p72, %p73
    %p75 = scmp.ne.s32.totalorder %s66, %s67
    %p76 = scmp.eq.s32.totalorder %s14, 0
    %p77 = por %p75, %p76
    %p78 = scmp.ne.s32.totalorder %s66, %s67
    %p79 = scmp.eq.s32.totalorder %s15, 1
    %p80 = por %p78, %p79
    %p82 = scmp.ne.s32.totalorder %s67, %s81
    %p83 = scmp.eq.s32.totalorder %s15, 0
    %p84 = por %p82, %p83
    %s85 = ssub.s32 %s9, %s16
    %p86 = scmp.eq.s32.totalorder %s85, 0
    %s88 = sadd.s32 %s87, 1
    %s89 = scalar_select %p86, %s87, %s88
    %p92 = pneg %p86
    %p93 = scmp.eq.s32.totalorder %s9, 1
    %p94 = por %p92, %p93
    %p95 = scmp.ne.s32.totalorder %s87, %s90
    %p96 = scmp.eq.s32.totalorder %s9, 0
    %p97 = por %p95, %p96
    %p98 = scmp.ne.s32.totalorder %s87, %s90
    %p99 = scmp.eq.s32.totalorder %s14, 1
    %p100 = por %p98, %p99
    %p101 = scmp.ne.s32.totalorder %s90, %s91
    %p102 = scmp.eq.s32.totalorder %s14, 0
    %p103 = por %p101, %p102
    %p104 = scmp.ne.s32.totalorder %s90, %s91
    %p105 = scmp.eq.s32.totalorder %s15, 1
    %p106 = por %p104, %p105
    %p108 = scmp.ne.s32.totalorder %s91, %s107
    %p109 = scmp.eq.s32.totalorder %s15, 0
    %p110 = por %p108, %p109
    %p111 = scmp.le.s32.totalorder 1, %s9
    %p112 = scmp.lt.s32.totalorder %s9, 3
    %p113 = pnand %p111, %p112
    %p114 = pneg %p113
    // Predicated region
    $region9: #{cnn_forward.3} parent=5 // pred_check
      _
    $region10: #{cnn_forward.3} parent=5 // pred_check_branch
      %116 = sbr.rel (%p113) target = $region12
    $region11: #{cnn_forward.3} parent=5 // pred_region
      %s117 = ssub.s32 %s9, 1
      // Predicated region
      $region13: #{cnn_forward.3} parent=11 // pred_check
        %p118 = pneg %p56
      $region14: #{cnn_forward.3} parent=11 // pred_check_branch
        %120 = sbr.rel (%p118) target = $region16
      $region15: #{cnn_forward.3} parent=11 // pred_region
        _
      $region16: #{cnn_forward.3} parent=11 // pred_fallthru
        _
      // Predicated region
      $region17: #{cnn_forward.3} parent=11 // pred_check
        %p121 = pneg %p77
      $region18: #{cnn_forward.3} parent=11 // pred_check_branch
        %123 = sbr.rel (%p121) target = $region20
      $region19: #{cnn_forward.3} parent=11 // pred_region
        _
      $region20: #{cnn_forward.3} parent=11 // pred_fallthru
        _
    $region12: #{cnn_forward.3} parent=5 // pred_fallthru
      _
    %p124 = scmp.lt.s32.totalorder %s9, 2
    // Predicated region
    $region21: #{cnn_forward.3} parent=5 // pred_check
      %p125 = pneg %p124
    $region22: #{cnn_forward.3} parent=5 // pred_check_branch
      %127 = sbr.rel (%p125) target = $region24
    $region23: #{cnn_forward.3} parent=5 // pred_region
      // Predicated region
      $region25: #{cnn_forward.3} parent=23 // pred_check
        %p128 = pneg %p29
      $region26: #{cnn_forward.3} parent=23 // pred_check_branch
        %130 = sbr.rel (%p128) target = $region28
      $region27: #{cnn_forward.3} parent=23 // pred_region
        %p131 = scmp.lt.s32.totalorder %s9, 1
        %s132 = scalar_select %p131, %s9, 1
        %s133 = smul.addr %s132, 98
        %s134 = smul.addr %s133, 4
        %s135 = scalar_lea.vmem %s0, %s134
      $region28: #{cnn_forward.3} parent=23 // pred_fallthru
        _
    $region24: #{cnn_forward.3} parent=5 // pred_fallthru
      _
    %p136 = scmp.le.s32.totalorder 1, %s9
    %p137 = scmp.lt.s32.totalorder %s9, 3
    %p138 = pnand %p136, %p137
    %p139 = pneg %p138
    // Predicated region
    $region29: #{cnn_forward.3} parent=5 // pred_check
      _
    $region30: #{cnn_forward.3} parent=5 // pred_check_branch
      %141 = sbr.rel (%p138) target = $region32
    $region31: #{cnn_forward.3} parent=5 // pred_region
      %s142 = ssub.s32 %s9, 1
      %p143 = scmp.lt.s32.totalorder %s14, 1
      %s144 = scalar_select %p143, %s14, 1
      %s145 = smul.addr %s144, 98
      %s146 = smul.addr %s145, 4
      %s147 = scalar_lea.vmem %s0, %s146
      %p148 = pneg %p35
      %p149 = pneg %p32
      %p150 = pneg %p56
      %p151 = pneg %p53
      %p152 = pneg %p77
      %p153 = pneg %p74
      %p154 = pneg %p103
      %p155 = pneg %p100
      %p156 = scmp.lt.s32.totalorder %s14, 1
      %s157 = scalar_select %p156, %s14, 1
      %s158 = smul.addr %s157, 98
      %s159 = smul.addr %s158, 4
      %s160 = scalar_lea.vmem %s3, %s159
      %p161 = scmp.lt.s32.totalorder %s14, 1
      %s162 = scalar_select %p161, %s14, 1
      %s163 = smul.addr %s162, 98
      %s164 = smul.addr %s163, 4
      %s165 = scalar_lea.vmem %s0, %s164
      %p166 = scmp.lt.s32.totalorder %s14, 1
      %s167 = scalar_select %p166, %s14, 1
      %s168 = smul.addr %s167, 98
      %s169 = smul.addr %s168, 4
      %s170 = scalar_lea.vmem %s3, %s169
      %v172 = vld [vmem:[%s165] sm:$0xf]
      %v173 = vld [vmem:[%s165 + $0x4] sm:$0xf]
      %v174 = vld [vmem:[%s165 + $0x8] sm:$0xf]
      %v175 = vld [vmem:[%s165 + $0xc] sm:$0xf]
      %v176 = vld [vmem:[%s165 + $0x10] sm:$0xf]
      %v177 = vld [vmem:[%s165 + $0x14] sm:$0xf]
      %v178 = vld [vmem:[%s165 + $0x18] sm:$0xf]
      %v179 = vld [vmem:[%s165 + $0x1c] sm:$0xf]
      %v180 = vld [vmem:[%s165 + $0x20] sm:$0xf]
      %v181 = vld [vmem:[%s165 + $0x24] sm:$0xf]
      %v182 = vld [vmem:[%s165 + $0x28] sm:$0xf]
      %v183 = vld [vmem:[%s165 + $0x2c] sm:$0xf]
      %v184 = vld [vmem:[%s165 + $0x30] sm:$0xf]
      %v185 = vld [vmem:[%s165 + $0x34] sm:$0xf]
      %v186 = vld [vmem:[%s165 + $0x38] sm:$0xf]
      %v187 = vld [vmem:[%s165 + $0x3c] sm:$0xf]
      %v188 = vld [vmem:[%s165 + $0x40] sm:$0xf]
      %v189 = vld [vmem:[%s165 + $0x44] sm:$0xf]
      %v190 = vld [vmem:[%s165 + $0x48] sm:$0xf]
      %v191 = vld [vmem:[%s165 + $0x4c] sm:$0xf]
      %v192 = vld [vmem:[%s165 + $0x50] sm:$0xf]
      %v193 = vld [vmem:[%s165 + $0x54] sm:$0xf]
      %v194 = vld [vmem:[%s165 + $0x58] sm:$0xf]
      %v195 = vld [vmem:[%s165 + $0x5c] sm:$0xf]
      %v196 = vld [vmem:[%s165 + $0x60] sm:$0xf]
      %v197 = vld [vmem:[%s165 + $0x64] sm:$0xf]
      %v198 = vld [vmem:[%s165 + $0x68] sm:$0xf]
      %v199 = vld [vmem:[%s165 + $0x6c] sm:$0xf]
      %v200 = vld [vmem:[%s165 + $0x70] sm:$0xf]
      %v201 = vld [vmem:[%s165 + $0x74] sm:$0xf]
      %v202 = vld [vmem:[%s165 + $0x78] sm:$0xf]
      %v203 = vld [vmem:[%s165 + $0x7c] sm:$0xf]
      %v204 = vld [vmem:[%s165 + $0x80] sm:$0xf]
      %v205 = vld [vmem:[%s165 + $0x84] sm:$0xf]
      %v206 = vld [vmem:[%s165 + $0x88] sm:$0xf]
      %v207 = vld [vmem:[%s165 + $0x8c] sm:$0xf]
      %v208 = vld [vmem:[%s165 + $0x90] sm:$0xf]
      %v209 = vld [vmem:[%s165 + $0x94] sm:$0xf]
      %v210 = vld [vmem:[%s165 + $0x98] sm:$0xf]
      %v211 = vld [vmem:[%s165 + $0x9c] sm:$0xf]
      %v212 = vld [vmem:[%s165 + $0xa0] sm:$0xf]
      %v213 = vld [vmem:[%s165 + $0xa4] sm:$0xf]
      %v214 = vld [vmem:[%s165 + $0xa8] sm:$0xf]
      %v215 = vld [vmem:[%s165 + $0xac] sm:$0xf]
      %v216 = vld [vmem:[%s165 + $0xb0] sm:$0xf]
      %v217 = vld [vmem:[%s165 + $0xb4] sm:$0xf]
      %v218 = vld [vmem:[%s165 + $0xb8] sm:$0xf]
      %v219 = vld [vmem:[%s165 + $0xbc] sm:$0xf]
      %v220 = vld [vmem:[%s165 + $0xc0] sm:$0xf]
      %v221 = vld [vmem:[%s165 + $0xc4] sm:$0xf]
      %v222 = vld [vmem:[%s165 + $0xc8] sm:$0xf]
      %v223 = vld [vmem:[%s165 + $0xcc] sm:$0xf]
      %v224 = vld [vmem:[%s165 + $0xd0] sm:$0xf]
      %v225 = vld [vmem:[%s165 + $0xd4] sm:$0xf]
      %v226 = vld [vmem:[%s165 + $0xd8] sm:$0xf]
      %v227 = vld [vmem:[%s165 + $0xdc] sm:$0xf]
      %v228 = vld [vmem:[%s165 + $0xe0] sm:$0xf]
      %v229 = vld [vmem:[%s165 + $0xe4] sm:$0xf]
      %v230 = vld [vmem:[%s165 + $0xe8] sm:$0xf]
      %v231 = vld [vmem:[%s165 + $0xec] sm:$0xf]
      %v232 = vld [vmem:[%s165 + $0xf0] sm:$0xf]
      %v233 = vld [vmem:[%s165 + $0xf4] sm:$0xf]
      %v234 = vld [vmem:[%s165 + $0xf8] sm:$0xf]
      %v235 = vld [vmem:[%s165 + $0xfc] sm:$0xf]
      %v236 = vld [vmem:[%s165 + $0x100] sm:$0xf]
      %v237 = vld [vmem:[%s165 + $0x104] sm:$0xf]
      %v238 = vld [vmem:[%s165 + $0x108] sm:$0xf]
      %v239 = vld [vmem:[%s165 + $0x10c] sm:$0xf]
      %v240 = vld [vmem:[%s165 + $0x110] sm:$0xf]
      %v241 = vld [vmem:[%s165 + $0x114] sm:$0xf]
      %v242 = vld [vmem:[%s165 + $0x118] sm:$0xf]
      %v243 = vld [vmem:[%s165 + $0x11c] sm:$0xf]
      %v244 = vld [vmem:[%s165 + $0x120] sm:$0xf]
      %v245 = vld [vmem:[%s165 + $0x124] sm:$0xf]
      %v246 = vld [vmem:[%s165 + $0x128] sm:$0xf]
      %v247 = vld [vmem:[%s165 + $0x12c] sm:$0xf]
      %v248 = vld [vmem:[%s165 + $0x130] sm:$0xf]
      %v249 = vld [vmem:[%s165 + $0x134] sm:$0xf]
      %v250 = vld [vmem:[%s165 + $0x138] sm:$0xf]
      %v251 = vld [vmem:[%s165 + $0x13c] sm:$0xf]
      %v252 = vld [vmem:[%s165 + $0x140] sm:$0xf]
      %v253 = vld [vmem:[%s165 + $0x144] sm:$0xf]
      %v254 = vld [vmem:[%s165 + $0x148] sm:$0xf]
      %v255 = vld [vmem:[%s165 + $0x14c] sm:$0xf]
      %v256 = vld [vmem:[%s165 + $0x150] sm:$0xf]
      %v257 = vld [vmem:[%s165 + $0x154] sm:$0xf]
      %v258 = vld [vmem:[%s165 + $0x158] sm:$0xf]
      %v259 = vld [vmem:[%s165 + $0x15c] sm:$0xf]
      %v260 = vld [vmem:[%s165 + $0x160] sm:$0xf]
      %v261 = vld [vmem:[%s165 + $0x164] sm:$0xf]
      %v262 = vld [vmem:[%s165 + $0x168] sm:$0xf]
      %v263 = vld [vmem:[%s165 + $0x16c] sm:$0xf]
      %v264 = vld [vmem:[%s165 + $0x170] sm:$0xf]
      %v265 = vld [vmem:[%s165 + $0x174] sm:$0xf]
      %v266 = vld [vmem:[%s165 + $0x178] sm:$0xf]
      %v267 = vld [vmem:[%s165 + $0x17c] sm:$0xf]
      %v268 = vld [vmem:[%s165 + $0x180] sm:$0xf]
      %v269 = vld [vmem:[%s165 + $0x184] sm:$0xf]
      %v270 = vld [vmem:[%s1] sm:$0xf]
      %v271 = vld [vmem:[%s1 + $0x4] sm:$0x1]
      %v272 = vld [vmem:[%s2] sm:$0x1]
      %v274 = vlaneseq
      %v275 = vshrl.u32 %v274, 7
      %v276 = vsub.s32 0, %v275
      %v277 = vrot.slane %v272, %v276
      %v377 = vunpack.c.l.b16 %v172
      %v378 = vunpack.c.l.b16 %v173
      %v379 = vunpack.c.l.b16 %v174
      %v380 = vunpack.c.l.b16 %v175
      %v381 = vunpack.c.l.b16 %v176
      %v382 = vunpack.c.l.b16 %v177
      %v383 = vunpack.c.l.b16 %v178
      %v384 = vunpack.c.l.b16 %v179
      %v385 = vunpack.c.l.b16 %v180
      %v386 = vunpack.c.l.b16 %v181
      %v387 = vunpack.c.l.b16 %v182
      %v388 = vunpack.c.l.b16 %v183
      %v389 = vunpack.c.l.b16 %v184
      %v390 = vunpack.c.l.b16 %v185
      %v391 = vunpack.c.l.b16 %v186
      %v392 = vunpack.c.l.b16 %v187
      %v393 = vunpack.c.l.b16 %v188
      %v394 = vunpack.c.l.b16 %v189
      %v395 = vunpack.c.l.b16 %v190
      %v396 = vunpack.c.l.b16 %v191
      %v397 = vunpack.c.l.b16 %v192
      %v398 = vunpack.c.l.b16 %v193
      %v399 = vunpack.c.l.b16 %v194
      %v400 = vunpack.c.l.b16 %v195
      %v401 = vunpack.c.l.b16 %v196
      %v402 = vunpack.c.l.b16 %v197
      %v403 = vunpack.c.l.b16 %v198
      %v404 = vunpack.c.l.b16 %v199
      %v405 = vunpack.c.l.b16 %v200
      %v406 = vunpack.c.l.b16 %v201
      %v407 = vunpack.c.l.b16 %v202
      %v408 = vunpack.c.l.b16 %v203
      %v409 = vunpack.c.l.b16 %v204
      %v410 = vunpack.c.l.b16 %v205
      %v411 = vunpack.c.l.b16 %v206
      %v412 = vunpack.c.l.b16 %v207
      %v413 = vunpack.c.l.b16 %v208
      %v414 = vunpack.c.l.b16 %v209
      %v415 = vunpack.c.l.b16 %v210
      %v416 = vunpack.c.l.b16 %v211
      %v417 = vunpack.c.l.b16 %v212
      %v418 = vunpack.c.l.b16 %v213
      %v419 = vunpack.c.l.b16 %v214
      %v420 = vunpack.c.l.b16 %v215
      %v421 = vunpack.c.l.b16 %v216
      %v422 = vunpack.c.l.b16 %v217
      %v423 = vunpack.c.l.b16 %v218
      %v424 = vunpack.c.l.b16 %v219
      %v425 = vunpack.c.l.b16 %v220
      %v426 = vunpack.c.l.b16 %v221
      %v427 = vunpack.c.l.b16 %v222
      %v428 = vunpack.c.l.b16 %v223
      %v429 = vunpack.c.l.b16 %v224
      %v430 = vunpack.c.l.b16 %v225
      %v431 = vunpack.c.l.b16 %v226
      %v432 = vunpack.c.l.b16 %v227
      %v433 = vunpack.c.l.b16 %v228
      %v434 = vunpack.c.l.b16 %v229
      %v435 = vunpack.c.l.b16 %v230
      %v436 = vunpack.c.l.b16 %v231
      %v437 = vunpack.c.l.b16 %v232
      %v438 = vunpack.c.l.b16 %v233
      %v439 = vunpack.c.l.b16 %v234
      %v440 = vunpack.c.l.b16 %v235
      %v441 = vunpack.c.l.b16 %v236
      %v442 = vunpack.c.l.b16 %v237
      %v443 = vunpack.c.l.b16 %v238
      %v444 = vunpack.c.l.b16 %v239
      %v445 = vunpack.c.l.b16 %v240
      %v446 = vunpack.c.l.b16 %v241
      %v447 = vunpack.c.l.b16 %v242
      %v448 = vunpack.c.l.b16 %v243
      %v449 = vunpack.c.l.b16 %v244
      %v450 = vunpack.c.l.b16 %v245
      %v451 = vunpack.c.l.b16 %v246
      %v452 = vunpack.c.l.b16 %v247
      %v453 = vunpack.c.l.b16 %v248
      %v454 = vunpack.c.l.b16 %v249
      %v455 = vunpack.c.l.b16 %v250
      %v456 = vunpack.c.l.b16 %v251
      %v457 = vunpack.c.l.b16 %v252
      %v458 = vunpack.c.l.b16 %v253
      %v459 = vunpack.c.l.b16 %v254
      %v460 = vunpack.c.l.b16 %v255
      %v461 = vunpack.c.l.b16 %v256
      %v462 = vunpack.c.l.b16 %v257
      %v463 = vunpack.c.l.b16 %v258
      %v464 = vunpack.c.l.b16 %v259
      %v465 = vunpack.c.l.b16 %v260
      %v466 = vunpack.c.l.b16 %v261
      %v467 = vunpack.c.l.b16 %v262
      %v468 = vunpack.c.l.b16 %v263
      %v469 = vunpack.c.l.b16 %v264
      %v470 = vunpack.c.l.b16 %v265
      %v471 = vunpack.c.l.b16 %v266
      %v472 = vunpack.c.l.b16 %v267
      %v473 = vunpack.c.l.b16 %v268
      %v474 = vunpack.c.l.b16 %v269
      %v475 = vpack.c.b16 %v378, %v377
      %v476 = vpack.c.b16 %v380, %v379
      %v477 = vpack.c.b16 %v382, %v381
      %v478 = vpack.c.b16 %v384, %v383
      %v479 = vpack.c.b16 %v386, %v385
      %v480 = vpack.c.b16 %v388, %v387
      %v481 = vpack.c.b16 %v390, %v389
      %v482 = vpack.c.b16 %v392, %v391
      %v483 = vpack.c.b16 %v394, %v393
      %v484 = vpack.c.b16 %v396, %v395
      %v485 = vpack.c.b16 %v398, %v397
      %v486 = vpack.c.b16 %v400, %v399
      %v487 = vpack.c.b16 %v402, %v401
      %v488 = vpack.c.b16 %v404, %v403
      %v489 = vpack.c.b16 %v406, %v405
      %v490 = vpack.c.b16 %v408, %v407
      %v491 = vpack.c.b16 %v410, %v409
      %v492 = vpack.c.b16 %v412, %v411
      %v493 = vpack.c.b16 %v414, %v413
      %v494 = vpack.c.b16 %v416, %v415
      %v495 = vpack.c.b16 %v418, %v417
      %v496 = vpack.c.b16 %v420, %v419
      %v497 = vpack.c.b16 %v422, %v421
      %v498 = vpack.c.b16 %v424, %v423
      %v499 = vpack.c.b16 %v426, %v425
      %v500 = vpack.c.b16 %v428, %v427
      %v501 = vpack.c.b16 %v430, %v429
      %v502 = vpack.c.b16 %v432, %v431
      %v503 = vpack.c.b16 %v434, %v433
      %v504 = vpack.c.b16 %v436, %v435
      %v505 = vpack.c.b16 %v438, %v437
      %v506 = vpack.c.b16 %v440, %v439
      %v507 = vpack.c.b16 %v442, %v441
      %v508 = vpack.c.b16 %v444, %v443
      %v509 = vpack.c.b16 %v446, %v445
      %v510 = vpack.c.b16 %v448, %v447
      %v511 = vpack.c.b16 %v450, %v449
      %v512 = vpack.c.b16 %v452, %v451
      %v513 = vpack.c.b16 %v454, %v453
      %v514 = vpack.c.b16 %v456, %v455
      %v515 = vpack.c.b16 %v458, %v457
      %v516 = vpack.c.b16 %v460, %v459
      %v517 = vpack.c.b16 %v462, %v461
      %v518 = vpack.c.b16 %v464, %v463
      %v519 = vpack.c.b16 %v466, %v465
      %v520 = vpack.c.b16 %v468, %v467
      %v521 = vpack.c.b16 %v470, %v469
      %v522 = vpack.c.b16 %v472, %v471
      %v523 = vpack.c.b16 %v474, %v473
      %v526 = vunpack.c.l.b16 %v270
      %v527 = vunpack.c.l.b16 %v271
      %v528 = vpack.c.b16 %v527, %v526
      %vm529 = vcmask 72704
      %v531 = vsel %vm529, %v475, 0
      %v534 = vsel %vm529, %v476, 0
      %v537 = vsel %vm529, %v477, 0
      %v540 = vsel %vm529, %v478, 0
      %v543 = vsel %vm529, %v479, 0
      %v546 = vsel %vm529, %v480, 0
      %v549 = vsel %vm529, %v481, 0
      %v552 = vsel %vm529, %v482, 0
      %v555 = vsel %vm529, %v483, 0
      %v558 = vsel %vm529, %v484, 0
      %v561 = vsel %vm529, %v485, 0
      %v564 = vsel %vm529, %v486, 0
      %v567 = vsel %vm529, %v487, 0
      %v570 = vsel %vm529, %v488, 0
      %v573 = vsel %vm529, %v489, 0
      %v576 = vsel %vm529, %v490, 0
      %v579 = vsel %vm529, %v491, 0
      %v582 = vsel %vm529, %v492, 0
      %v585 = vsel %vm529, %v493, 0
      %v588 = vsel %vm529, %v494, 0
      %v591 = vsel %vm529, %v495, 0
      %v594 = vsel %vm529, %v496, 0
      %v597 = vsel %vm529, %v497, 0
      %v600 = vsel %vm529, %v498, 0
      %v603 = vsel %vm529, %v499, 0
      %v606 = vsel %vm529, %v500, 0
      %v609 = vsel %vm529, %v501, 0
      %v612 = vsel %vm529, %v502, 0
      %v615 = vsel %vm529, %v503, 0
      %v618 = vsel %vm529, %v504, 0
      %v621 = vsel %vm529, %v505, 0
      %v624 = vsel %vm529, %v506, 0
      %v627 = vsel %vm529, %v507, 0
      %v630 = vsel %vm529, %v508, 0
      %v633 = vsel %vm529, %v509, 0
      %v636 = vsel %vm529, %v510, 0
      %v639 = vsel %vm529, %v511, 0
      %v642 = vsel %vm529, %v512, 0
      %v645 = vsel %vm529, %v513, 0
      %v648 = vsel %vm529, %v514, 0
      %v651 = vsel %vm529, %v515, 0
      %v654 = vsel %vm529, %v516, 0
      %v657 = vsel %vm529, %v517, 0
      %v660 = vsel %vm529, %v518, 0
      %v663 = vsel %vm529, %v519, 0
      %v666 = vsel %vm529, %v520, 0
      %v669 = vsel %vm529, %v521, 0
      %v672 = vsel %vm529, %v522, 0
      %v675 = vsel %vm529, %v523, 0
      %vm677 = vcmask 1043456
      %vm678 = vcmask 1044480
      %v679 = vsel %vm677, 4294967295, 65535
      %v680 = vsel %vm678, %v679, 0
      %v682 = vand.u32 %v528, %v680
      %684 = vmatprep.subr.bf16.mxu0 0
      %685 = vmatpush1.bf16.msra.mxu0 %v682
      %686 = vmatprep.subr.bf16.mxu0 0
      %687 = vmatpush1.bf16.msra.mxu0 0
      %688 = vmatprep.subr.bf16.mxu0 0
      %689 = vmatpush1.bf16.msra.mxu0 0
      %690 = vmatprep.subr.bf16.mxu0 0
      %691 = vmatpush1.bf16.msra.mxu0 0
      %692 = vmatprep.subr.bf16.mxu0 0
      %693 = vmatpush1.bf16.msra.mxu0 0
      %694 = vmatprep.subr.bf16.mxu0 0
      %695 = vmatpush1.bf16.msra.mxu0 0
      %696 = vmatprep.subr.bf16.mxu0 0
      %697 = vmatpush1.bf16.msra.mxu0 0
      %698 = vmatprep.subr.bf16.mxu0 0
      %699 = vmatpush1.bf16.msra.mxu0 0
      %700 = vmatprep.subr.bf16.mxu0 0
      %701 = vmatpush1.bf16.msra.mxu0 0
      %702 = vmatprep.subr.bf16.mxu0 0
      %703 = vmatpush1.bf16.msra.mxu0 0
      %704 = vmatprep.subr.bf16.mxu0 0
      %705 = vmatpush1.bf16.msra.mxu0 0
      %706 = vmatprep.subr.bf16.mxu0 0
      %707 = vmatpush1.bf16.msra.mxu0 0
      %708 = vmatprep.subr.bf16.mxu0 0
      %709 = vmatpush1.bf16.msra.mxu0 0
      %710 = vmatprep.subr.bf16.mxu0 0
      %711 = vmatpush1.bf16.msra.mxu0 0
      %712 = vmatprep.subr.bf16.mxu0 0
      %713 = vmatpush1.bf16.msra.mxu0 0
      %714 = vmatprep.subr.bf16.mxu0 0
      %715 = vmatpush1.bf16.msra.mxu0 0
      %716 = vmatprep.mubr.bf16.mxu0 0
      %717 = vmatmul.mubr.bf16.gmra.mrb[0].mxu0 %v531
      %v718 = vpop.f32.mrb[0].mxu0
      %v719 = vadd.f32 %v277, %v718
      %v720 = vpop.f32.mrb[0].mxu0
      %v721 = vpop.f32.mrb[0].mxu0
      %v722 = vadd.f32 %v277, %v721
      %v723 = vpop.f32.mrb[0].mxu0
      %724 = vmatprep.mubr.bf16.mxu0 0
      %725 = vmatmul.mubr.bf16.gmra.mrb[0].mxu0 %v534
      %v726 = vpop.f32.mrb[0].mxu0
      %v727 = vadd.f32 %v277, %v726
      %v728 = vpop.f32.mrb[0].mxu0
      %v729 = vpop.f32.mrb[0].mxu0
      %v730 = vadd.f32 %v277, %v729
      %v731 = vpop.f32.mrb[0].mxu0
      %732 = vmatprep.mubr.bf16.mxu0 0
      %733 = vmatmul.mubr.bf16.gmra.mrb[0].mxu0 %v537
      %v734 = vpop.f32.mrb[0].mxu0
      %v735 = vadd.f32 %v277, %v734
      %v736 = vpop.f32.mrb[0].mxu0
      %v737 = vpop.f32.mrb[0].mxu0
      %v738 = vadd.f32 %v277, %v737
      %v739 = vpop.f32.mrb[0].mxu0
      %740 = vmatprep.mubr.bf16.mxu0 0
      %741 = vmatmul.mubr.bf16.gmra.mrb[0].mxu0 %v540
      %v742 = vpop.f32.mrb[0].mxu0
      %v743 = vadd.f32 %v277, %v742
      %v744 = vpop.f32.mrb[0].mxu0
      %v745 = vpop.f32.mrb[0].mxu0
      %v746 = vadd.f32 %v277, %v745
      %v747 = vpop.f32.mrb[0].mxu0
      %748 = vmatprep.mubr.bf16.mxu0 0
      %749 = vmatmul.mubr.bf16.gmra.mrb[0].mxu0 %v543
      %v750 = vpop.f32.mrb[0].mxu0
      %v751 = vadd.f32 %v277, %v750
      %v752 = vpop.f32.mrb[0].mxu0
      %v753 = vpop.f32.mrb[0].mxu0
      %v754 = vadd.f32 %v277, %v753
      %v755 = vpop.f32.mrb[0].mxu0
      %756 = vmatprep.mubr.bf16.mxu0 0
      %757 = vmatmul.mubr.bf16.gmra.mrb[0].mxu0 %v546
      %v758 = vpop.f32.mrb[0].mxu0
      %v759 = vadd.f32 %v277, %v758
      %v760 = vpop.f32.mrb[0].mxu0
      %v761 = vpop.f32.mrb[0].mxu0
      %v762 = vadd.f32 %v277, %v761
      %v763 = vpop.f32.mrb[0].mxu0
      %764 = vmatprep.mubr.bf16.mxu0 0
      %765 = vmatmul.mubr.bf16.gmra.mrb[0].mxu0 %v549
      %v766 = vpop.f32.mrb[0].mxu0
      %v767 = vadd.f32 %v277, %v766
      %v768 = vpop.f32.mrb[0].mxu0
      %v769 = vpop.f32.mrb[0].mxu0
      %v770 = vadd.f32 %v277, %v769
      %v771 = vpop.f32.mrb[0].mxu0
      %772 = vmatprep.mubr.bf16.mxu0 0
      %773 = vmatmul.mubr.bf16.gmra.mrb[0].mxu0 %v552
      %v774 = vpop.f32.mrb[0].mxu0
      %v775 = vadd.f32 %v277, %v774
      %v776 = vpop.f32.mrb[0].mxu0
      %v777 = vpop.f32.mrb[0].mxu0
      %v778 = vadd.f32 %v277, %v777
      %v779 = vpop.f32.mrb[0].mxu0
      %780 = vmatprep.mubr.bf16.mxu0 0
      %781 = vmatmul.mubr.bf16.gmra.mrb[0].mxu0 %v555
      %v782 = vpop.f32.mrb[0].mxu0
      %v783 = vadd.f32 %v277, %v782
      %v784 = vpop.f32.mrb[0].mxu0
      %v785 = vpop.f32.mrb[0].mxu0
      %v786 = vadd.f32 %v277, %v785
      %v787 = vpop.f32.mrb[0].mxu0
      %788 = vmatprep.mubr.bf16.mxu0 0
      %789 = vmatmul.mubr.bf16.gmra.mrb[0].mxu0 %v558
      %v790 = vpop.f32.mrb[0].mxu0
      %v791 = vadd.f32 %v277, %v790
      %v792 = vpop.f32.mrb[0].mxu0
      %v793 = vpop.f32.mrb[0].mxu0
      %v794 = vadd.f32 %v277, %v793
      %v795 = vpop.f32.mrb[0].mxu0
      %796 = vmatprep.mubr.bf16.mxu0 0
      %797 = vmatmul.mubr.bf16.gmra.mrb[0].mxu0 %v561
      %v798 = vpop.f32.mrb[0].mxu0
      %v799 = vadd.f32 %v277, %v798
      %v800 = vpop.f32.mrb[0].mxu0
      %v801 = vpop.f32.mrb[0].mxu0
      %v802 = vadd.f32 %v277, %v801
      %v803 = vpop.f32.mrb[0].mxu0
      %804 = vmatprep.mubr.bf16.mxu0 0
      %805 = vmatmul.mubr.bf16.gmra.mrb[0].mxu0 %v564
      %v806 = vpop.f32.mrb[0].mxu0
      %v807 = vadd.f32 %v277, %v806
      %v808 = vpop.f32.mrb[0].mxu0
      %v809 = vpop.f32.mrb[0].mxu0
      %v810 = vadd.f32 %v277, %v809
      %v811 = vpop.f32.mrb[0].mxu0
      %812 = vmatprep.mubr.bf16.mxu0 0
      %813 = vmatmul.mubr.bf16.gmra.mrb[0].mxu0 %v567
      %v814 = vpop.f32.mrb[0].mxu0
      %v815 = vadd.f32 %v277, %v814
      %v816 = vpop.f32.mrb[0].mxu0
      %v817 = vpop.f32.mrb[0].mxu0
      %v818 = vadd.f32 %v277, %v817
      %v819 = vpop.f32.mrb[0].mxu0
      %820 = vmatprep.mubr.bf16.mxu0 0
      %821 = vmatmul.mubr.bf16.gmra.mrb[0].mxu0 %v570
      %v822 = vpop.f32.mrb[0].mxu0
      %v823 = vadd.f32 %v277, %v822
      %v824 = vpop.f32.mrb[0].mxu0
      %v825 = vpop.f32.mrb[0].mxu0
      %v826 = vadd.f32 %v277, %v825
      %v827 = vpop.f32.mrb[0].mxu0
      %828 = vmatprep.mubr.bf16.mxu0 0
      %829 = vmatmul.mubr.bf16.gmra.mrb[0].mxu0 %v573
      %v830 = vpop.f32.mrb[0].mxu0
      %v831 = vadd.f32 %v277, %v830
      %v832 = vpop.f32.mrb[0].mxu0
      %v833 = vpop.f32.mrb[0].mxu0
      %v834 = vadd.f32 %v277, %v833
      %v835 = vpop.f32.mrb[0].mxu0
      %836 = vmatprep.mubr.bf16.mxu0 0
      %837 = vmatmul.mubr.bf16.gmra.mrb[0].mxu0 %v576
      %v838 = vpop.f32.mrb[0].mxu0
      %v839 = vadd.f32 %v277, %v838
      %v840 = vpop.f32.mrb[0].mxu0
      %v841 = vpop.f32.mrb[0].mxu0
      %v842 = vadd.f32 %v277, %v841
      %v843 = vpop.f32.mrb[0].mxu0
      %844 = vmatprep.mubr.bf16.mxu0 0
      %845 = vmatmul.mubr.bf16.gmra.mrb[0].mxu0 %v579
      %v846 = vpop.f32.mrb[0].mxu0
      %v847 = vadd.f32 %v277, %v846
      %v848 = vpop.f32.mrb[0].mxu0
      %v849 = vpop.f32.mrb[0].mxu0
      %v850 = vadd.f32 %v277, %v849
      %v851 = vpop.f32.mrb[0].mxu0
      %852 = vmatprep.mubr.bf16.mxu0 0
      %853 = vmatmul.mubr.bf16.gmra.mrb[0].mxu0 %v582
      %v854 = vpop.f32.mrb[0].mxu0
      %v855 = vadd.f32 %v277, %v854
      %v856 = vpop.f32.mrb[0].mxu0
      %v857 = vpop.f32.mrb[0].mxu0
      %v858 = vadd.f32 %v277, %v857
      %v859 = vpop.f32.mrb[0].mxu0
      %860 = vmatprep.mubr.bf16.mxu0 0
      %861 = vmatmul.mubr.bf16.gmra.mrb[0].mxu0 %v585
      %v862 = vpop.f32.mrb[0].mxu0
      %v863 = vadd.f32 %v277, %v862
      %v864 = vpop.f32.mrb[0].mxu0
      %v865 = vpop.f32.mrb[0].mxu0
      %v866 = vadd.f32 %v277, %v865
      %v867 = vpop.f32.mrb[0].mxu0
      %868 = vmatprep.mubr.bf16.mxu0 0
      %869 = vmatmul.mubr.bf16.gmra.mrb[0].mxu0 %v588
      %v870 = vpop.f32.mrb[0].mxu0
      %v871 = vadd.f32 %v277, %v870
      %v872 = vpop.f32.mrb[0].mxu0
      %v873 = vpop.f32.mrb[0].mxu0
      %v874 = vadd.f32 %v277, %v873
      %v875 = vpop.f32.mrb[0].mxu0
      %876 = vmatprep.mubr.bf16.mxu0 0
      %877 = vmatmul.mubr.bf16.gmra.mrb[0].mxu0 %v591
      %v878 = vpop.f32.mrb[0].mxu0
      %v879 = vadd.f32 %v277, %v878
      %v880 = vpop.f32.mrb[0].mxu0
      %v881 = vpop.f32.mrb[0].mxu0
      %v882 = vadd.f32 %v277, %v881
      %v883 = vpop.f32.mrb[0].mxu0
      %884 = vmatprep.mubr.bf16.mxu0 0
      %885 = vmatmul.mubr.bf16.gmra.mrb[0].mxu0 %v594
      %v886 = vpop.f32.mrb[0].mxu0
      %v887 = vadd.f32 %v277, %v886
      %v888 = vpop.f32.mrb[0].mxu0
      %v889 = vpop.f32.mrb[0].mxu0
      %v890 = vadd.f32 %v277, %v889
      %v891 = vpop.f32.mrb[0].mxu0
      %892 = vmatprep.mubr.bf16.mxu0 0
      %893 = vmatmul.mubr.bf16.gmra.mrb[0].mxu0 %v597
      %v894 = vpop.f32.mrb[0].mxu0
      %v895 = vadd.f32 %v277, %v894
      %v896 = vpop.f32.mrb[0].mxu0
      %v897 = vpop.f32.mrb[0].mxu0
      %v898 = vadd.f32 %v277, %v897
      %v899 = vpop.f32.mrb[0].mxu0
      %900 = vmatprep.mubr.bf16.mxu0 0
      %901 = vmatmul.mubr.bf16.gmra.mrb[0].mxu0 %v600
      %v902 = vpop.f32.mrb[0].mxu0
      %v903 = vadd.f32 %v277, %v902
      %v904 = vpop.f32.mrb[0].mxu0
      %v905 = vpop.f32.mrb[0].mxu0
      %v906 = vadd.f32 %v277, %v905
      %v907 = vpop.f32.mrb[0].mxu0
      %908 = vmatprep.mubr.bf16.mxu0 0
      %909 = vmatmul.mubr.bf16.gmra.mrb[0].mxu0 %v603
      %v910 = vpop.f32.mrb[0].mxu0
      %v911 = vadd.f32 %v277, %v910
      %v912 = vpop.f32.mrb[0].mxu0
      %v913 = vpop.f32.mrb[0].mxu0
      %v914 = vadd.f32 %v277, %v913
      %v915 = vpop.f32.mrb[0].mxu0
      %916 = vmatprep.mubr.bf16.mxu0 0
      %917 = vmatmul.mubr.bf16.gmra.mrb[0].mxu0 %v606
      %v918 = vpop.f32.mrb[0].mxu0
      %v919 = vadd.f32 %v277, %v918
      %v920 = vpop.f32.mrb[0].mxu0
      %v921 = vpop.f32.mrb[0].mxu0
      %v922 = vadd.f32 %v277, %v921
      %v923 = vpop.f32.mrb[0].mxu0
      %924 = vmatprep.mubr.bf16.mxu0 0
      %925 = vmatmul.mubr.bf16.gmra.mrb[0].mxu0 %v609
      %v926 = vpop.f32.mrb[0].mxu0
      %v927 = vadd.f32 %v277, %v926
      %v928 = vpop.f32.mrb[0].mxu0
      %v929 = vpop.f32.mrb[0].mxu0
      %v930 = vadd.f32 %v277, %v929
      %v931 = vpop.f32.mrb[0].mxu0
      %932 = vmatprep.mubr.bf16.mxu0 0
      %933 = vmatmul.mubr.bf16.gmra.mrb[0].mxu0 %v612
      %v934 = vpop.f32.mrb[0].mxu0
      %v935 = vadd.f32 %v277, %v934
      %v936 = vpop.f32.mrb[0].mxu0
      %v937 = vpop.f32.mrb[0].mxu0
      %v938 = vadd.f32 %v277, %v937
      %v939 = vpop.f32.mrb[0].mxu0
      %940 = vmatprep.mubr.bf16.mxu0 0
      %941 = vmatmul.mubr.bf16.gmra.mrb[0].mxu0 %v615
      %v942 = vpop.f32.mrb[0].mxu0
      %v943 = vadd.f32 %v277, %v942
      %v944 = vpop.f32.mrb[0].mxu0
      %v945 = vpop.f32.mrb[0].mxu0
      %v946 = vadd.f32 %v277, %v945
      %v947 = vpop.f32.mrb[0].mxu0
      %948 = vmatprep.mubr.bf16.mxu0 0
      %949 = vmatmul.mubr.bf16.gmra.mrb[0].mxu0 %v618
      %v950 = vpop.f32.mrb[0].mxu0
      %v951 = vadd.f32 %v277, %v950
      %v952 = vpop.f32.mrb[0].mxu0
      %v953 = vpop.f32.mrb[0].mxu0
      %v954 = vadd.f32 %v277, %v953
      %v955 = vpop.f32.mrb[0].mxu0
      %956 = vmatprep.mubr.bf16.mxu0 0
      %957 = vmatmul.mubr.bf16.gmra.mrb[0].mxu0 %v621
      %v958 = vpop.f32.mrb[0].mxu0
      %v959 = vadd.f32 %v277, %v958
      %v960 = vpop.f32.mrb[0].mxu0
      %v961 = vpop.f32.mrb[0].mxu0
      %v962 = vadd.f32 %v277, %v961
      %v963 = vpop.f32.mrb[0].mxu0
      %964 = vmatprep.mubr.bf16.mxu0 0
      %965 = vmatmul.mubr.bf16.gmra.mrb[0].mxu0 %v624
      %v966 = vpop.f32.mrb[0].mxu0
      %v967 = vadd.f32 %v277, %v966
      %v968 = vpop.f32.mrb[0].mxu0
      %v969 = vpop.f32.mrb[0].mxu0
      %v970 = vadd.f32 %v277, %v969
      %v971 = vpop.f32.mrb[0].mxu0
      %972 = vmatprep.mubr.bf16.mxu0 0
      %973 = vmatmul.mubr.bf16.gmra.mrb[0].mxu0 %v627
      %v974 = vpop.f32.mrb[0].mxu0
      %v975 = vadd.f32 %v277, %v974
      %v976 = vpop.f32.mrb[0].mxu0
      %v977 = vpop.f32.mrb[0].mxu0
      %v978 = vadd.f32 %v277, %v977
      %v979 = vpop.f32.mrb[0].mxu0
      %980 = vmatprep.mubr.bf16.mxu0 0
      %981 = vmatmul.mubr.bf16.gmra.mrb[0].mxu0 %v630
      %v982 = vpop.f32.mrb[0].mxu0
      %v983 = vadd.f32 %v277, %v982
      %v984 = vpop.f32.mrb[0].mxu0
      %v985 = vpop.f32.mrb[0].mxu0
      %v986 = vadd.f32 %v277, %v985
      %v987 = vpop.f32.mrb[0].mxu0
      %988 = vmatprep.mubr.bf16.mxu0 0
      %989 = vmatmul.mubr.bf16.gmra.mrb[0].mxu0 %v633
      %v990 = vpop.f32.mrb[0].mxu0
      %v991 = vadd.f32 %v277, %v990
      %v992 = vpop.f32.mrb[0].mxu0
      %v993 = vpop.f32.mrb[0].mxu0
      %v994 = vadd.f32 %v277, %v993
      %v995 = vpop.f32.mrb[0].mxu0
      %996 = vmatprep.mubr.bf16.mxu0 0
      %997 = vmatmul.mubr.bf16.gmra.mrb[0].mxu0 %v636
      %v998 = vpop.f32.mrb[0].mxu0
      %v999 = vadd.f32 %v277, %v998
      %v1000 = vpop.f32.mrb[0].mxu0
      %v1001 = vpop.f32.mrb[0].mxu0
      %v1002 = vadd.f32 %v277, %v1001
      %v1003 = vpop.f32.mrb[0].mxu0
      %1004 = vmatprep.mubr.bf16.mxu0 0
      %1005 = vmatmul.mubr.bf16.gmra.mrb[0].mxu0 %v639
      %v1006 = vpop.f32.mrb[0].mxu0
      %v1007 = vadd.f32 %v277, %v1006
      %v1008 = vpop.f32.mrb[0].mxu0
      %v1009 = vpop.f32.mrb[0].mxu0
      %v1010 = vadd.f32 %v277, %v1009
      %v1011 = vpop.f32.mrb[0].mxu0
      %1012 = vmatprep.mubr.bf16.mxu0 0
      %1013 = vmatmul.mubr.bf16.gmra.mrb[0].mxu0 %v642
      %v1014 = vpop.f32.mrb[0].mxu0
      %v1015 = vadd.f32 %v277, %v1014
      %v1016 = vpop.f32.mrb[0].mxu0
      %v1017 = vpop.f32.mrb[0].mxu0
      %v1018 = vadd.f32 %v277, %v1017
      %v1019 = vpop.f32.mrb[0].mxu0
      %1020 = vmatprep.mubr.bf16.mxu0 0
      %1021 = vmatmul.mubr.bf16.gmra.mrb[0].mxu0 %v645
      %v1022 = vpop.f32.mrb[0].mxu0
      %v1023 = vadd.f32 %v277, %v1022
      %v1024 = vpop.f32.mrb[0].mxu0
      %v1025 = vpop.f32.mrb[0].mxu0
      %v1026 = vadd.f32 %v277, %v1025
      %v1027 = vpop.f32.mrb[0].mxu0
      %1028 = vmatprep.mubr.bf16.mxu0 0
      %1029 = vmatmul.mubr.bf16.gmra.mrb[0].mxu0 %v648
      %v1030 = vpop.f32.mrb[0].mxu0
      %v1031 = vadd.f32 %v277, %v1030
      %v1032 = vpop.f32.mrb[0].mxu0
      %v1033 = vpop.f32.mrb[0].mxu0
      %v1034 = vadd.f32 %v277, %v1033
      %v1035 = vpop.f32.mrb[0].mxu0
      %1036 = vmatprep.mubr.bf16.mxu0 0
      %1037 = vmatmul.mubr.bf16.gmra.mrb[0].mxu0 %v651
      %v1038 = vpop.f32.mrb[0].mxu0
      %v1039 = vadd.f32 %v277, %v1038
      %v1040 = vpop.f32.mrb[0].mxu0
      %v1041 = vpop.f32.mrb[0].mxu0
      %v1042 = vadd.f32 %v277, %v1041
      %v1043 = vpop.f32.mrb[0].mxu0
      %1044 = vmatprep.mubr.bf16.mxu0 0
      %1045 = vmatmul.mubr.bf16.gmra.mrb[0].mxu0 %v654
      %v1046 = vpop.f32.mrb[0].mxu0
      %v1047 = vadd.f32 %v277, %v1046
      %v1048 = vpop.f32.mrb[0].mxu0
      %v1049 = vpop.f32.mrb[0].mxu0
      %v1050 = vadd.f32 %v277, %v1049
      %v1051 = vpop.f32.mrb[0].mxu0
      %1052 = vmatprep.mubr.bf16.mxu0 0
      %1053 = vmatmul.mubr.bf16.gmra.mrb[0].mxu0 %v657
      %v1054 = vpop.f32.mrb[0].mxu0
      %v1055 = vadd.f32 %v277, %v1054
      %v1056 = vpop.f32.mrb[0].mxu0
      %v1057 = vpop.f32.mrb[0].mxu0
      %v1058 = vadd.f32 %v277, %v1057
      %v1059 = vpop.f32.mrb[0].mxu0
      %1060 = vmatprep.mubr.bf16.mxu0 0
      %1061 = vmatmul.mubr.bf16.gmra.mrb[0].mxu0 %v660
      %v1062 = vpop.f32.mrb[0].mxu0
      %v1063 = vadd.f32 %v277, %v1062
      %v1064 = vpop.f32.mrb[0].mxu0
      %v1065 = vpop.f32.mrb[0].mxu0
      %v1066 = vadd.f32 %v277, %v1065
      %v1067 = vpop.f32.mrb[0].mxu0
      %1068 = vmatprep.mubr.bf16.mxu0 0
      %1069 = vmatmul.mubr.bf16.gmra.mrb[0].mxu0 %v663
      %v1070 = vpop.f32.mrb[0].mxu0
      %v1071 = vadd.f32 %v277, %v1070
      %v1072 = vpop.f32.mrb[0].mxu0
      %v1073 = vpop.f32.mrb[0].mxu0
      %v1074 = vadd.f32 %v277, %v1073
      %v1075 = vpop.f32.mrb[0].mxu0
      %1076 = vmatprep.mubr.bf16.mxu0 0
      %1077 = vmatmul.mubr.bf16.gmra.mrb[0].mxu0 %v666
      %v1078 = vpop.f32.mrb[0].mxu0
      %v1079 = vadd.f32 %v277, %v1078
      %v1080 = vpop.f32.mrb[0].mxu0
      %v1081 = vpop.f32.mrb[0].mxu0
      %v1082 = vadd.f32 %v277, %v1081
      %v1083 = vpop.f32.mrb[0].mxu0
      %1084 = vmatprep.mubr.bf16.mxu0 0
      %1085 = vmatmul.mubr.bf16.gmra.mrb[0].mxu0 %v669
      %v1086 = vpop.f32.mrb[0].mxu0
      %v1087 = vadd.f32 %v277, %v1086
      %v1088 = vpop.f32.mrb[0].mxu0
      %v1089 = vpop.f32.mrb[0].mxu0
      %v1090 = vadd.f32 %v277, %v1089
      %v1091 = vpop.f32.mrb[0].mxu0
      %1092 = vmatprep.mubr.bf16.mxu0 0
      %1093 = vmatmul.mubr.bf16.gmra.mrb[0].mxu0 %v672
      %v1094 = vpop.f32.mrb[0].mxu0
      %v1095 = vadd.f32 %v277, %v1094
      %v1096 = vpop.f32.mrb[0].mxu0
      %v1097 = vpop.f32.mrb[0].mxu0
      %v1098 = vadd.f32 %v277, %v1097
      %v1099 = vpop.f32.mrb[0].mxu0
      %1100 = vmatprep.mubr.bf16.mxu0 0
      %1101 = vmatmul.mubr.bf16.gmra.mrb[0].mxu0 %v675
      %v1102 = vpop.f32.mrb[0].mxu0
      %v1103 = vadd.f32 %v277, %v1102
      %v1104 = vpop.f32.mrb[0].mxu0
      %v1105 = vpop.f32.mrb[0].mxu0
      %v1106 = vadd.f32 %v277, %v1105
      %v1107 = vpop.f32.mrb[0].mxu0
      %1108 = vdwg.mxu0
      %v1109 = vmax.f32 %v719, 0.0
      %v1110 = vmax.f32 %v722, 0.0
      %v1111 = vmax.f32 %v727, 0.0
      %v1112 = vmax.f32 %v730, 0.0
      %v1113 = vmax.f32 %v735, 0.0
      %v1114 = vmax.f32 %v738, 0.0
      %v1115 = vmax.f32 %v743, 0.0
      %v1116 = vmax.f32 %v746, 0.0
      %v1117 = vmax.f32 %v751, 0.0
      %v1118 = vmax.f32 %v754, 0.0
      %v1119 = vmax.f32 %v759, 0.0
      %v1120 = vmax.f32 %v762, 0.0
      %v1121 = vmax.f32 %v767, 0.0
      %v1122 = vmax.f32 %v770, 0.0
      %v1123 = vmax.f32 %v775, 0.0
      %v1124 = vmax.f32 %v778, 0.0
      %v1125 = vmax.f32 %v783, 0.0
      %v1126 = vmax.f32 %v786, 0.0
      %v1127 = vmax.f32 %v791, 0.0
      %v1128 = vmax.f32 %v794, 0.0
      %v1129 = vmax.f32 %v799, 0.0
      %v1130 = vmax.f32 %v802, 0.0
      %v1131 = vmax.f32 %v807, 0.0
      %v1132 = vmax.f32 %v810, 0.0
      %v1133 = vmax.f32 %v815, 0.0
      %v1134 = vmax.f32 %v818, 0.0
      %v1135 = vmax.f32 %v823, 0.0
      %v1136 = vmax.f32 %v826, 0.0
      %v1137 = vmax.f32 %v831, 0.0
      %v1138 = vmax.f32 %v834, 0.0
      %v1139 = vmax.f32 %v839, 0.0
      %v1140 = vmax.f32 %v842, 0.0
      %v1141 = vmax.f32 %v847, 0.0
      %v1142 = vmax.f32 %v850, 0.0
      %v1143 = vmax.f32 %v855, 0.0
      %v1144 = vmax.f32 %v858, 0.0
      %v1145 = vmax.f32 %v863, 0.0
      %v1146 = vmax.f32 %v866, 0.0
      %v1147 = vmax.f32 %v871, 0.0
      %v1148 = vmax.f32 %v874, 0.0
      %v1149 = vmax.f32 %v879, 0.0
      %v1150 = vmax.f32 %v882, 0.0
      %v1151 = vmax.f32 %v887, 0.0
      %v1152 = vmax.f32 %v890, 0.0
      %v1153 = vmax.f32 %v895, 0.0
      %v1154 = vmax.f32 %v898, 0.0
      %v1155 = vmax.f32 %v903, 0.0
      %v1156 = vmax.f32 %v906, 0.0
      %v1157 = vmax.f32 %v911, 0.0
      %v1158 = vmax.f32 %v914, 0.0
      %v1159 = vmax.f32 %v919, 0.0
      %v1160 = vmax.f32 %v922, 0.0
      %v1161 = vmax.f32 %v927, 0.0
      %v1162 = vmax.f32 %v930, 0.0
      %v1163 = vmax.f32 %v935, 0.0
      %v1164 = vmax.f32 %v938, 0.0
      %v1165 = vmax.f32 %v943, 0.0
      %v1166 = vmax.f32 %v946, 0.0
      %v1167 = vmax.f32 %v951, 0.0
      %v1168 = vmax.f32 %v954, 0.0
      %v1169 = vmax.f32 %v959, 0.0
      %v1170 = vmax.f32 %v962, 0.0
      %v1171 = vmax.f32 %v967, 0.0
      %v1172 = vmax.f32 %v970, 0.0
      %v1173 = vmax.f32 %v975, 0.0
      %v1174 = vmax.f32 %v978, 0.0
      %v1175 = vmax.f32 %v983, 0.0
      %v1176 = vmax.f32 %v986, 0.0
      %v1177 = vmax.f32 %v991, 0.0
      %v1178 = vmax.f32 %v994, 0.0
      %v1179 = vmax.f32 %v999, 0.0
      %v1180 = vmax.f32 %v1002, 0.0
      %v1181 = vmax.f32 %v1007, 0.0
      %v1182 = vmax.f32 %v1010, 0.0
      %v1183 = vmax.f32 %v1015, 0.0
      %v1184 = vmax.f32 %v1018, 0.0
      %v1185 = vmax.f32 %v1023, 0.0
      %v1186 = vmax.f32 %v1026, 0.0
      %v1187 = vmax.f32 %v1031, 0.0
      %v1188 = vmax.f32 %v1034, 0.0
      %v1189 = vmax.f32 %v1039, 0.0
      %v1190 = vmax.f32 %v1042, 0.0
      %v1191 = vmax.f32 %v1047, 0.0
      %v1192 = vmax.f32 %v1050, 0.0
      %v1193 = vmax.f32 %v1055, 0.0
      %v1194 = vmax.f32 %v1058, 0.0
      %v1195 = vmax.f32 %v1063, 0.0
      %v1196 = vmax.f32 %v1066, 0.0
      %v1197 = vmax.f32 %v1071, 0.0
      %v1198 = vmax.f32 %v1074, 0.0
      %v1199 = vmax.f32 %v1079, 0.0
      %v1200 = vmax.f32 %v1082, 0.0
      %v1201 = vmax.f32 %v1087, 0.0
      %v1202 = vmax.f32 %v1090, 0.0
      %v1203 = vmax.f32 %v1095, 0.0
      %v1204 = vmax.f32 %v1098, 0.0
      %v1205 = vmax.f32 %v1103, 0.0
      %v1206 = vmax.f32 %v1106, 0.0
      %v1207 = vpack.c.bf16 %v1110, %v1109
      %v1208 = vpack.c.bf16 %v1112, %v1111
      %v1209 = vpack.c.bf16 %v1114, %v1113
      %v1210 = vpack.c.bf16 %v1116, %v1115
      %v1211 = vpack.c.bf16 %v1118, %v1117
      %v1212 = vpack.c.bf16 %v1120, %v1119
      %v1213 = vpack.c.bf16 %v1122, %v1121
      %v1214 = vpack.c.bf16 %v1124, %v1123
      %v1215 = vpack.c.bf16 %v1126, %v1125
      %v1216 = vpack.c.bf16 %v1128, %v1127
      %v1217 = vpack.c.bf16 %v1130, %v1129
      %v1218 = vpack.c.bf16 %v1132, %v1131
      %v1219 = vpack.c.bf16 %v1134, %v1133
      %v1220 = vpack.c.bf16 %v1136, %v1135
      %v1221 = vpack.c.bf16 %v1138, %v1137
      %v1222 = vpack.c.bf16 %v1140, %v1139
      %v1223 = vpack.c.bf16 %v1142, %v1141
      %v1224 = vpack.c.bf16 %v1144, %v1143
      %v1225 = vpack.c.bf16 %v1146, %v1145
      %v1226 = vpack.c.bf16 %v1148, %v1147
      %v1227 = vpack.c.bf16 %v1150, %v1149
      %v1228 = vpack.c.bf16 %v1152, %v1151
      %v1229 = vpack.c.bf16 %v1154, %v1153
      %v1230 = vpack.c.bf16 %v1156, %v1155
      %v1231 = vpack.c.bf16 %v1158, %v1157
      %v1232 = vpack.c.bf16 %v1160, %v1159
      %v1233 = vpack.c.bf16 %v1162, %v1161
      %v1234 = vpack.c.bf16 %v1164, %v1163
      %v1235 = vpack.c.bf16 %v1166, %v1165
      %v1236 = vpack.c.bf16 %v1168, %v1167
      %v1237 = vpack.c.bf16 %v1170, %v1169
      %v1238 = vpack.c.bf16 %v1172, %v1171
      %v1239 = vpack.c.bf16 %v1174, %v1173
      %v1240 = vpack.c.bf16 %v1176, %v1175
      %v1241 = vpack.c.bf16 %v1178, %v1177
      %v1242 = vpack.c.bf16 %v1180, %v1179
      %v1243 = vpack.c.bf16 %v1182, %v1181
      %v1244 = vpack.c.bf16 %v1184, %v1183
      %v1245 = vpack.c.bf16 %v1186, %v1185
      %v1246 = vpack.c.bf16 %v1188, %v1187
      %v1247 = vpack.c.bf16 %v1190, %v1189
      %v1248 = vpack.c.bf16 %v1192, %v1191
      %v1249 = vpack.c.bf16 %v1194, %v1193
      %v1250 = vpack.c.bf16 %v1196, %v1195
      %v1251 = vpack.c.bf16 %v1198, %v1197
      %v1252 = vpack.c.bf16 %v1200, %v1199
      %v1253 = vpack.c.bf16 %v1202, %v1201
      %v1254 = vpack.c.bf16 %v1204, %v1203
      %v1255 = vpack.c.bf16 %v1206, %v1205
      %v1305 = vunpack.c.l.b16 %v1207
      %v1306 = vunpack.c.h.b16 %v1207
      %v1307 = vunpack.c.l.b16 %v1208
      %v1308 = vunpack.c.h.b16 %v1208
      %v1309 = vunpack.c.l.b16 %v1209
      %v1310 = vunpack.c.h.b16 %v1209
      %v1311 = vunpack.c.l.b16 %v1210
      %v1312 = vunpack.c.h.b16 %v1210
      %v1313 = vunpack.c.l.b16 %v1211
      %v1314 = vunpack.c.h.b16 %v1211
      %v1315 = vunpack.c.l.b16 %v1212
      %v1316 = vunpack.c.h.b16 %v1212
      %v1317 = vunpack.c.l.b16 %v1213
      %v1318 = vunpack.c.h.b16 %v1213
      %v1319 = vunpack.c.l.b16 %v1214
      %v1320 = vunpack.c.h.b16 %v1214
      %v1321 = vunpack.c.l.b16 %v1215
      %v1322 = vunpack.c.h.b16 %v1215
      %v1323 = vunpack.c.l.b16 %v1216
      %v1324 = vunpack.c.h.b16 %v1216
      %v1325 = vunpack.c.l.b16 %v1217
      %v1326 = vunpack.c.h.b16 %v1217
      %v1327 = vunpack.c.l.b16 %v1218
      %v1328 = vunpack.c.h.b16 %v1218
      %v1329 = vunpack.c.l.b16 %v1219
      %v1330 = vunpack.c.h.b16 %v1219
      %v1331 = vunpack.c.l.b16 %v1220
      %v1332 = vunpack.c.h.b16 %v1220
      %v1333 = vunpack.c.l.b16 %v1221
      %v1334 = vunpack.c.h.b16 %v1221
      %v1335 = vunpack.c.l.b16 %v1222
      %v1336 = vunpack.c.h.b16 %v1222
      %v1337 = vunpack.c.l.b16 %v1223
      %v1338 = vunpack.c.h.b16 %v1223
      %v1339 = vunpack.c.l.b16 %v1224
      %v1340 = vunpack.c.h.b16 %v1224
      %v1341 = vunpack.c.l.b16 %v1225
      %v1342 = vunpack.c.h.b16 %v1225
      %v1343 = vunpack.c.l.b16 %v1226
      %v1344 = vunpack.c.h.b16 %v1226
      %v1345 = vunpack.c.l.b16 %v1227
      %v1346 = vunpack.c.h.b16 %v1227
      %v1347 = vunpack.c.l.b16 %v1228
      %v1348 = vunpack.c.h.b16 %v1228
      %v1349 = vunpack.c.l.b16 %v1229
      %v1350 = vunpack.c.h.b16 %v1229
      %v1351 = vunpack.c.l.b16 %v1230
      %v1352 = vunpack.c.h.b16 %v1230
      %v1353 = vunpack.c.l.b16 %v1231
      %v1354 = vunpack.c.h.b16 %v1231
      %v1355 = vunpack.c.l.b16 %v1232
      %v1356 = vunpack.c.h.b16 %v1232
      %v1357 = vunpack.c.l.b16 %v1233
      %v1358 = vunpack.c.h.b16 %v1233
      %v1359 = vunpack.c.l.b16 %v1234
      %v1360 = vunpack.c.h.b16 %v1234
      %v1361 = vunpack.c.l.b16 %v1235
      %v1362 = vunpack.c.h.b16 %v1235
      %v1363 = vunpack.c.l.b16 %v1236
      %v1364 = vunpack.c.h.b16 %v1236
      %v1365 = vunpack.c.l.b16 %v1237
      %v1366 = vunpack.c.h.b16 %v1237
      %v1367 = vunpack.c.l.b16 %v1238
      %v1368 = vunpack.c.h.b16 %v1238
      %v1369 = vunpack.c.l.b16 %v1239
      %v1370 = vunpack.c.h.b16 %v1239
      %v1371 = vunpack.c.l.b16 %v1240
      %v1372 = vunpack.c.h.b16 %v1240
      %v1373 = vunpack.c.l.b16 %v1241
      %v1374 = vunpack.c.h.b16 %v1241
      %v1375 = vunpack.c.l.b16 %v1242
      %v1376 = vunpack.c.h.b16 %v1242
      %v1377 = vunpack.c.l.b16 %v1243
      %v1378 = vunpack.c.h.b16 %v1243
      %v1379 = vunpack.c.l.b16 %v1244
      %v1380 = vunpack.c.h.b16 %v1244
      %v1381 = vunpack.c.l.b16 %v1245
      %v1382 = vunpack.c.h.b16 %v1245
      %v1383 = vunpack.c.l.b16 %v1246
      %v1384 = vunpack.c.h.b16 %v1246
      %v1385 = vunpack.c.l.b16 %v1247
      %v1386 = vunpack.c.h.b16 %v1247
      %v1387 = vunpack.c.l.b16 %v1248
      %v1388 = vunpack.c.h.b16 %v1248
      %v1389 = vunpack.c.l.b16 %v1249
      %v1390 = vunpack.c.h.b16 %v1249
      %v1391 = vunpack.c.l.b16 %v1250
      %v1392 = vunpack.c.h.b16 %v1250
      %v1393 = vunpack.c.l.b16 %v1251
      %v1394 = vunpack.c.h.b16 %v1251
      %v1395 = vunpack.c.l.b16 %v1252
      %v1396 = vunpack.c.h.b16 %v1252
      %v1397 = vunpack.c.l.b16 %v1253
      %v1398 = vunpack.c.h.b16 %v1253
      %v1399 = vunpack.c.l.b16 %v1254
      %v1400 = vunpack.c.h.b16 %v1254
      %v1401 = vunpack.c.l.b16 %v1255
      %v1402 = vunpack.c.h.b16 %v1255
      %v1403 = vpack.c.b16 %v1305, %v1305
      %v1404 = vpack.c.b16 %v1306, %v1306
      %v1405 = vpack.c.b16 %v1307, %v1307
      %v1406 = vpack.c.b16 %v1308, %v1308
      %v1407 = vpack.c.b16 %v1309, %v1309
      %v1408 = vpack.c.b16 %v1310, %v1310
      %v1409 = vpack.c.b16 %v1311, %v1311
      %v1410 = vpack.c.b16 %v1312, %v1312
      %v1411 = vpack.c.b16 %v1313, %v1313
      %v1412 = vpack.c.b16 %v1314, %v1314
      %v1413 = vpack.c.b16 %v1315, %v1315
      %v1414 = vpack.c.b16 %v1316, %v1316
      %v1415 = vpack.c.b16 %v1317, %v1317
      %v1416 = vpack.c.b16 %v1318, %v1318
      %v1417 = vpack.c.b16 %v1319, %v1319
      %v1418 = vpack.c.b16 %v1320, %v1320
      %v1419 = vpack.c.b16 %v1321, %v1321
      %v1420 = vpack.c.b16 %v1322, %v1322
      %v1421 = vpack.c.b16 %v1323, %v1323
      %v1422 = vpack.c.b16 %v1324, %v1324
      %v1423 = vpack.c.b16 %v1325, %v1325
      %v1424 = vpack.c.b16 %v1326, %v1326
      %v1425 = vpack.c.b16 %v1327, %v1327
      %v1426 = vpack.c.b16 %v1328, %v1328
      %v1427 = vpack.c.b16 %v1329, %v1329
      %v1428 = vpack.c.b16 %v1330, %v1330
      %v1429 = vpack.c.b16 %v1331, %v1331
      %v1430 = vpack.c.b16 %v1332, %v1332
      %v1431 = vpack.c.b16 %v1333, %v1333
      %v1432 = vpack.c.b16 %v1334, %v1334
      %v1433 = vpack.c.b16 %v1335, %v1335
      %v1434 = vpack.c.b16 %v1336, %v1336
      %v1435 = vpack.c.b16 %v1337, %v1337
      %v1436 = vpack.c.b16 %v1338, %v1338
      %v1437 = vpack.c.b16 %v1339, %v1339
      %v1438 = vpack.c.b16 %v1340, %v1340
      %v1439 = vpack.c.b16 %v1341, %v1341
      %v1440 = vpack.c.b16 %v1342, %v1342
      %v1441 = vpack.c.b16 %v1343, %v1343
      %v1442 = vpack.c.b16 %v1344, %v1344
      %v1443 = vpack.c.b16 %v1345, %v1345
      %v1444 = vpack.c.b16 %v1346, %v1346
      %v1445 = vpack.c.b16 %v1347, %v1347
      %v1446 = vpack.c.b16 %v1348, %v1348
      %v1447 = vpack.c.b16 %v1349, %v1349
      %v1448 = vpack.c.b16 %v1350, %v1350
      %v1449 = vpack.c.b16 %v1351, %v1351
      %v1450 = vpack.c.b16 %v1352, %v1352
      %v1451 = vpack.c.b16 %v1353, %v1353
      %v1452 = vpack.c.b16 %v1354, %v1354
      %v1453 = vpack.c.b16 %v1355, %v1355
      %v1454 = vpack.c.b16 %v1356, %v1356
      %v1455 = vpack.c.b16 %v1357, %v1357
      %v1456 = vpack.c.b16 %v1358, %v1358
      %v1457 = vpack.c.b16 %v1359, %v1359
      %v1458 = vpack.c.b16 %v1360, %v1360
      %v1459 = vpack.c.b16 %v1361, %v1361
      %v1460 = vpack.c.b16 %v1362, %v1362
      %v1461 = vpack.c.b16 %v1363, %v1363
      %v1462 = vpack.c.b16 %v1364, %v1364
      %v1463 = vpack.c.b16 %v1365, %v1365
      %v1464 = vpack.c.b16 %v1366, %v1366
      %v1465 = vpack.c.b16 %v1367, %v1367
      %v1466 = vpack.c.b16 %v1368, %v1368
      %v1467 = vpack.c.b16 %v1369, %v1369
      %v1468 = vpack.c.b16 %v1370, %v1370
      %v1469 = vpack.c.b16 %v1371, %v1371
      %v1470 = vpack.c.b16 %v1372, %v1372
      %v1471 = vpack.c.b16 %v1373, %v1373
      %v1472 = vpack.c.b16 %v1374, %v1374
      %v1473 = vpack.c.b16 %v1375, %v1375
      %v1474 = vpack.c.b16 %v1376, %v1376
      %v1475 = vpack.c.b16 %v1377, %v1377
      %v1476 = vpack.c.b16 %v1378, %v1378
      %v1477 = vpack.c.b16 %v1379, %v1379
      %v1478 = vpack.c.b16 %v1380, %v1380
      %v1479 = vpack.c.b16 %v1381, %v1381
      %v1480 = vpack.c.b16 %v1382, %v1382
      %v1481 = vpack.c.b16 %v1383, %v1383
      %v1482 = vpack.c.b16 %v1384, %v1384
      %v1483 = vpack.c.b16 %v1385, %v1385
      %v1484 = vpack.c.b16 %v1386, %v1386
      %v1485 = vpack.c.b16 %v1387, %v1387
      %v1486 = vpack.c.b16 %v1388, %v1388
      %v1487 = vpack.c.b16 %v1389, %v1389
      %v1488 = vpack.c.b16 %v1390, %v1390
      %v1489 = vpack.c.b16 %v1391, %v1391
      %v1490 = vpack.c.b16 %v1392, %v1392
      %v1491 = vpack.c.b16 %v1393, %v1393
      %v1492 = vpack.c.b16 %v1394, %v1394
      %v1493 = vpack.c.b16 %v1395, %v1395
      %v1494 = vpack.c.b16 %v1396, %v1396
      %v1495 = vpack.c.b16 %v1397, %v1397
      %v1496 = vpack.c.b16 %v1398, %v1398
      %v1497 = vpack.c.b16 %v1399, %v1399
      %v1498 = vpack.c.b16 %v1400, %v1400
      %v1499 = vpack.c.b16 %v1401, %v1401
      %v1500 = vpack.c.b16 %v1402, %v1402
      %vm1599 = vcmask 257024
      %1600 = vst.msk [vmem:[%s170] sm:$0xf] %vm1599, %v1403
      %1601 = vst.msk [vmem:[%s170 + $0x4] sm:$0xf] %vm1599, %v1404
      %1602 = vst.msk [vmem:[%s170 + $0x8] sm:$0xf] %vm1599, %v1405
      %1603 = vst.msk [vmem:[%s170 + $0xc] sm:$0xf] %vm1599, %v1406
      %1604 = vst.msk [vmem:[%s170 + $0x10] sm:$0xf] %vm1599, %v1407
      %1605 = vst.msk [vmem:[%s170 + $0x14] sm:$0xf] %vm1599, %v1408
      %1606 = vst.msk [vmem:[%s170 + $0x18] sm:$0xf] %vm1599, %v1409
      %1607 = vst.msk [vmem:[%s170 + $0x1c] sm:$0xf] %vm1599, %v1410
      %1608 = vst.msk [vmem:[%s170 + $0x20] sm:$0xf] %vm1599, %v1411
      %1609 = vst.msk [vmem:[%s170 + $0x24] sm:$0xf] %vm1599, %v1412
      %1610 = vst.msk [vmem:[%s170 + $0x28] sm:$0xf] %vm1599, %v1413
      %1611 = vst.msk [vmem:[%s170 + $0x2c] sm:$0xf] %vm1599, %v1414
      %1612 = vst.msk [vmem:[%s170 + $0x30] sm:$0xf] %vm1599, %v1415
      %1613 = vst.msk [vmem:[%s170 + $0x34] sm:$0xf] %vm1599, %v1416
      %1614 = vst.msk [vmem:[%s170 + $0x38] sm:$0xf] %vm1599, %v1417
      %1615 = vst.msk [vmem:[%s170 + $0x3c] sm:$0xf] %vm1599, %v1418
      %1616 = vst.msk [vmem:[%s170 + $0x40] sm:$0xf] %vm1599, %v1419
      %1617 = vst.msk [vmem:[%s170 + $0x44] sm:$0xf] %vm1599, %v1420
      %1618 = vst.msk [vmem:[%s170 + $0x48] sm:$0xf] %vm1599, %v1421
      %1619 = vst.msk [vmem:[%s170 + $0x4c] sm:$0xf] %vm1599, %v1422
      %1620 = vst.msk [vmem:[%s170 + $0x50] sm:$0xf] %vm1599, %v1423
      %1621 = vst.msk [vmem:[%s170 + $0x54] sm:$0xf] %vm1599, %v1424
      %1622 = vst.msk [vmem:[%s170 + $0x58] sm:$0xf] %vm1599, %v1425
      %1623 = vst.msk [vmem:[%s170 + $0x5c] sm:$0xf] %vm1599, %v1426
      %1624 = vst.msk [vmem:[%s170 + $0x60] sm:$0xf] %vm1599, %v1427
      %1625 = vst.msk [vmem:[%s170 + $0x64] sm:$0xf] %vm1599, %v1428
      %1626 = vst.msk [vmem:[%s170 + $0x68] sm:$0xf] %vm1599, %v1429
      %1627 = vst.msk [vmem:[%s170 + $0x6c] sm:$0xf] %vm1599, %v1430
      %1628 = vst.msk [vmem:[%s170 + $0x70] sm:$0xf] %vm1599, %v1431
      %1629 = vst.msk [vmem:[%s170 + $0x74] sm:$0xf] %vm1599, %v1432
      %1630 = vst.msk [vmem:[%s170 + $0x78] sm:$0xf] %vm1599, %v1433
      %1631 = vst.msk [vmem:[%s170 + $0x7c] sm:$0xf] %vm1599, %v1434
      %1632 = vst.msk [vmem:[%s170 + $0x80] sm:$0xf] %vm1599, %v1435
      %1633 = vst.msk [vmem:[%s170 + $0x84] sm:$0xf] %vm1599, %v1436
      %1634 = vst.msk [vmem:[%s170 + $0x88] sm:$0xf] %vm1599, %v1437
      %1635 = vst.msk [vmem:[%s170 + $0x8c] sm:$0xf] %vm1599, %v1438
      %1636 = vst.msk [vmem:[%s170 + $0x90] sm:$0xf] %vm1599, %v1439
      %1637 = vst.msk [vmem:[%s170 + $0x94] sm:$0xf] %vm1599, %v1440
      %1638 = vst.msk [vmem:[%s170 + $0x98] sm:$0xf] %vm1599, %v1441
      %1639 = vst.msk [vmem:[%s170 + $0x9c] sm:$0xf] %vm1599, %v1442
      %1640 = vst.msk [vmem:[%s170 + $0xa0] sm:$0xf] %vm1599, %v1443
      %1641 = vst.msk [vmem:[%s170 + $0xa4] sm:$0xf] %vm1599, %v1444
      %1642 = vst.msk [vmem:[%s170 + $0xa8] sm:$0xf] %vm1599, %v1445
      %1643 = vst.msk [vmem:[%s170 + $0xac] sm:$0xf] %vm1599, %v1446
      %1644 = vst.msk [vmem:[%s170 + $0xb0] sm:$0xf] %vm1599, %v1447
      %1645 = vst.msk [vmem:[%s170 + $0xb4] sm:$0xf] %vm1599, %v1448
      %1646 = vst.msk [vmem:[%s170 + $0xb8] sm:$0xf] %vm1599, %v1449
      %1647 = vst.msk [vmem:[%s170 + $0xbc] sm:$0xf] %vm1599, %v1450
      %1648 = vst.msk [vmem:[%s170 + $0xc0] sm:$0xf] %vm1599, %v1451
      %1649 = vst.msk [vmem:[%s170 + $0xc4] sm:$0xf] %vm1599, %v1452
      %1650 = vst.msk [vmem:[%s170 + $0xc8] sm:$0xf] %vm1599, %v1453
      %1651 = vst.msk [vmem:[%s170 + $0xcc] sm:$0xf] %vm1599, %v1454
      %1652 = vst.msk [vmem:[%s170 + $0xd0] sm:$0xf] %vm1599, %v1455
      %1653 = vst.msk [vmem:[%s170 + $0xd4] sm:$0xf] %vm1599, %v1456
      %1654 = vst.msk [vmem:[%s170 + $0xd8] sm:$0xf] %vm1599, %v1457
      %1655 = vst.msk [vmem:[%s170 + $0xdc] sm:$0xf] %vm1599, %v1458
      %1656 = vst.msk [vmem:[%s170 + $0xe0] sm:$0xf] %vm1599, %v1459
      %1657 = vst.msk [vmem:[%s170 + $0xe4] sm:$0xf] %vm1599, %v1460
      %1658 = vst.msk [vmem:[%s170 + $0xe8] sm:$0xf] %vm1599, %v1461
      %1659 = vst.msk [vmem:[%s170 + $0xec] sm:$0xf] %vm1599, %v1462
      %1660 = vst.msk [vmem:[%s170 + $0xf0] sm:$0xf] %vm1599, %v1463
      %1661 = vst.msk [vmem:[%s170 + $0xf4] sm:$0xf] %vm1599, %v1464
      %1662 = vst.msk [vmem:[%s170 + $0xf8] sm:$0xf] %vm1599, %v1465
      %1663 = vst.msk [vmem:[%s170 + $0xfc] sm:$0xf] %vm1599, %v1466
      %1664 = vst.msk [vmem:[%s170 + $0x100] sm:$0xf] %vm1599, %v1467
      %1665 = vst.msk [vmem:[%s170 + $0x104] sm:$0xf] %vm1599, %v1468
      %1666 = vst.msk [vmem:[%s170 + $0x108] sm:$0xf] %vm1599, %v1469
      %1667 = vst.msk [vmem:[%s170 + $0x10c] sm:$0xf] %vm1599, %v1470
      %1668 = vst.msk [vmem:[%s170 + $0x110] sm:$0xf] %vm1599, %v1471
      %1669 = vst.msk [vmem:[%s170 + $0x114] sm:$0xf] %vm1599, %v1472
      %1670 = vst.msk [vmem:[%s170 + $0x118] sm:$0xf] %vm1599, %v1473
      %1671 = vst.msk [vmem:[%s170 + $0x11c] sm:$0xf] %vm1599, %v1474
      %1672 = vst.msk [vmem:[%s170 + $0x120] sm:$0xf] %vm1599, %v1475
      %1673 = vst.msk [vmem:[%s170 + $0x124] sm:$0xf] %vm1599, %v1476
      %1674 = vst.msk [vmem:[%s170 + $0x128] sm:$0xf] %vm1599, %v1477
      %1675 = vst.msk [vmem:[%s170 + $0x12c] sm:$0xf] %vm1599, %v1478
      %1676 = vst.msk [vmem:[%s170 + $0x130] sm:$0xf] %vm1599, %v1479
      %1677 = vst.msk [vmem:[%s170 + $0x134] sm:$0xf] %vm1599, %v1480
      %1678 = vst.msk [vmem:[%s170 + $0x138] sm:$0xf] %vm1599, %v1481
      %1679 = vst.msk [vmem:[%s170 + $0x13c] sm:$0xf] %vm1599, %v1482
      %1680 = vst.msk [vmem:[%s170 + $0x140] sm:$0xf] %vm1599, %v1483
      %1681 = vst.msk [vmem:[%s170 + $0x144] sm:$0xf] %vm1599, %v1484
      %1682 = vst.msk [vmem:[%s170 + $0x148] sm:$0xf] %vm1599, %v1485
      %1683 = vst.msk [vmem:[%s170 + $0x14c] sm:$0xf] %vm1599, %v1486
      %1684 = vst.msk [vmem:[%s170 + $0x150] sm:$0xf] %vm1599, %v1487
      %1685 = vst.msk [vmem:[%s170 + $0x154] sm:$0xf] %vm1599, %v1488
      %1686 = vst.msk [vmem:[%s170 + $0x158] sm:$0xf] %vm1599, %v1489
      %1687 = vst.msk [vmem:[%s170 + $0x15c] sm:$0xf] %vm1599, %v1490
      %1688 = vst.msk [vmem:[%s170 + $0x160] sm:$0xf] %vm1599, %v1491
      %1689 = vst.msk [vmem:[%s170 + $0x164] sm:$0xf] %vm1599, %v1492
      %1690 = vst.msk [vmem:[%s170 + $0x168] sm:$0xf] %vm1599, %v1493
      %1691 = vst.msk [vmem:[%s170 + $0x16c] sm:$0xf] %vm1599, %v1494
      %1692 = vst.msk [vmem:[%s170 + $0x170] sm:$0xf] %vm1599, %v1495
      %1693 = vst.msk [vmem:[%s170 + $0x174] sm:$0xf] %vm1599, %v1496
      %1694 = vst.msk [vmem:[%s170 + $0x178] sm:$0xf] %vm1599, %v1497
      %1695 = vst.msk [vmem:[%s170 + $0x17c] sm:$0xf] %vm1599, %v1498
      %1696 = vst.msk [vmem:[%s170 + $0x180] sm:$0xf] %vm1599, %v1499
      %1697 = vst.msk [vmem:[%s170 + $0x184] sm:$0xf] %vm1599, %v1500
      %p1698 = scmp.lt.s32.totalorder %s14, 1
      %s1699 = scalar_select %p1698, %s14, 1
      %s1700 = smul.addr %s1699, 98
      %s1701 = smul.addr %s1700, 4
      %s1702 = scalar_lea.vmem %s3, %s1701
      // Predicated region
      $region33: #{cnn_forward.3} parent=31 // pred_check
        %p1703 = pneg %p100
      $region34: #{cnn_forward.3} parent=31 // pred_check_branch
        %1705 = sbr.rel (%p1703) target = $region36
      $region35: #{cnn_forward.3} parent=31 // pred_region
        _
      $region36: #{cnn_forward.3} parent=31 // pred_fallthru
        _
    $region32: #{cnn_forward.3} parent=5 // pred_fallthru
      _
    %p1706 = scmp.le.s32.totalorder 2, %s9
    // Predicated region
    $region37: #{cnn_forward.3} parent=5 // pred_check
      %p1707 = pneg %p1706
    $region38: #{cnn_forward.3} parent=5 // pred_check_branch
      %1709 = sbr.rel (%p1707) target = $region40
    $region39: #{cnn_forward.3} parent=5 // pred_region
      %s1710 = ssub.s32 %s9, 2
      // Predicated region
      $region41: #{cnn_forward.3} parent=39 // pred_check
        %p1711 = pneg %p106
      $region42: #{cnn_forward.3} parent=39 // pred_check_branch
        %1713 = sbr.rel (%p1711) target = $region44
      $region43: #{cnn_forward.3} parent=39 // pred_region
        %p1714 = scmp.lt.s32.totalorder %s15, 1
        %s1715 = scalar_select %p1714, %s15, 1
        %s1716 = smul.addr %s1715, 98
        %s1717 = smul.addr %s1716, 4
        %s1718 = scalar_lea.vmem %s3, %s1717
      $region44: #{cnn_forward.3} parent=39 // pred_fallthru
        _
    $region40: #{cnn_forward.3} parent=5 // pred_fallthru
      _
  $region6: #{cnn_forward.3} parent=0 // loop_footer
    %s13 = sadd.s32 1, %s9
  $region7: #{cnn_forward.3} parent=0 // loop_footer_branch
    %8 = sbr.rel target = $region3
  $region8: #{cnn_forward.3} parent=0 // loop_exit
    _

// kernel: cnn_forward.4
$region0: #{cnn_forward.4}
  #allocation0 [shape = 'u32[]', space=smem, size = 0x4, offset = 0x4, fixed_abs, tag = 'smem constant byte address 0x4 - core index']
  #allocation1 [shape = 'u32[144,128]{1,0:T(1,128)}', space=vmem, size = 0x12000, scoped, tag = 'internal scratch']
  %s0 = inlined_call_operand.vmem [shape: bf16[2,4,196,288], index: 0, kind: input, shape index: {}]
  %s1 = inlined_call_operand.vmem [shape: bf16[288,64], index: 1, kind: input, shape index: {}]
  %s2 = inlined_call_operand.vmem [shape: f32[1,64], index: 2, kind: input, shape index: {}]
  %s3 = inlined_call_operand.vmem [shape: bf16[2,196,64], index: 3, kind: output, shape index: {}]
  %s4 = sld [smem:[#allocation0]]
  $region45: #{cnn_forward.4} parent=0
    _
  %s6 = ssub.s32 1, %s4
  %s7 = scalar_select 0, %s6, %s4
  loop: start=0, step=1, limit=4
  $region2: #{cnn_forward.4} parent=0 // loop_pre_header
    _
  $region3: #{cnn_forward.4} parent=0 // loop_header
    %s9 = sphi 0, %s13
    %p10 = scmp.ge.s32.totalorder %s9, 4
    %s19 = sphi 0, %s21
    %s22 = sphi 0, %s19
    %s23 = sphi 0, %s22
    %s39 = sphi 0, %s23
    %s43 = sphi 0, %s43
    %s45 = sphi 0, %s43
    %s46 = sphi 0, %s45
    %s60 = sphi 0, %s46
    %s64 = sphi 0, %s64
    %s66 = sphi 0, %s64
    %s67 = sphi 0, %s66
    %s81 = sphi 0, %s67
    %s87 = sphi 0, %s89
    %s90 = sphi 0, %s87
    %s91 = sphi 0, %s90
    %s107 = sphi 0, %s91
  $region4: #{cnn_forward.4} parent=0 // loop_header_branch
    %12 = sbr.rel (%p10) target = $region8
  $region5: #{cnn_forward.4} parent=0 // loop_body
    %s14 = ssub.s32 %s9, 1
    %s15 = ssub.s32 %s9, 2
    %s16 = sadd.s32 %s9, 1
    %s17 = ssub.s32 %s9, %s16
    %p18 = scmp.eq.s32.totalorder %s17, 0
    %s20 = sadd.s32 %s19, 1
    %s21 = scalar_select %p18, %s19, %s20
    %p24 = pneg %p18
    %p25 = scmp.eq.s32.totalorder %s9, 1
    %p26 = por %p24, %p25
    %p27 = scmp.ne.s32.totalorder %s19, %s22
    %p28 = scmp.eq.s32.totalorder %s9, 0
    %p29 = por %p27, %p28
    %p30 = scmp.ne.s32.totalorder %s19, %s22
    %p31 = scmp.eq.s32.totalorder %s14, 1
    %p32 = por %p30, %p31
    %p33 = scmp.ne.s32.totalorder %s22, %s23
    %p34 = scmp.eq.s32.totalorder %s14, 0
    %p35 = por %p33, %p34
    %p36 = scmp.ne.s32.totalorder %s22, %s23
    %p37 = scmp.eq.s32.totalorder %s15, 1
    %p38 = por %p36, %p37
    %p40 = scmp.ne.s32.totalorder %s23, %s39
    %p41 = scmp.eq.s32.totalorder %s15, 0
    %p42 = por %p40, %p41
    %s44 = sadd.s32 %s43, 1
    %p47 = scmp.eq.s32.totalorder %s9, 1
    %p48 = scmp.ne.s32.totalorder %s43, %s45
    %p49 = scmp.eq.s32.totalorder %s9, 0
    %p50 = por %p48, %p49
    %p51 = scmp.ne.s32.totalorder %s43, %s45
    %p52 = scmp.eq.s32.totalorder %s14, 1
    %p53 = por %p51, %p52
    %p54 = scmp.ne.s32.totalorder %s45, %s46
    %p55 = scmp.eq.s32.totalorder %s14, 0
    %p56 = por %p54, %p55
    %p57 = scmp.ne.s32.totalorder %s45, %s46
    %p58 = scmp.eq.s32.totalorder %s15, 1
    %p59 = por %p57, %p58
    %p61 = scmp.ne.s32.totalorder %s46, %s60
    %p62 = scmp.eq.s32.totalorder %s15, 0
    %p63 = por %p61, %p62
    %s65 = sadd.s32 %s64, 1
    %p68 = scmp.eq.s32.totalorder %s9, 1
    %p69 = scmp.ne.s32.totalorder %s64, %s66
    %p70 = scmp.eq.s32.totalorder %s9, 0
    %p71 = por %p69, %p70
    %p72 = scmp.ne.s32.totalorder %s64, %s66
    %p73 = scmp.eq.s32.totalorder %s14, 1
    %p74 = por %p72, %p73
    %p75 = scmp.ne.s32.totalorder %s66, %s67
    %p76 = scmp.eq.s32.totalorder %s14, 0
    %p77 = por %p75, %p76
    %p78 = scmp.ne.s32.totalorder %s66, %s67
    %p79 = scmp.eq.s32.totalorder %s15, 1
    %p80 = por %p78, %p79
    %p82 = scmp.ne.s32.totalorder %s67, %s81
    %p83 = scmp.eq.s32.totalorder %s15, 0
    %p84 = por %p82, %p83
    %s85 = ssub.s32 %s9, %s16
    %p86 = scmp.eq.s32.totalorder %s85, 0
    %s88 = sadd.s32 %s87, 1
    %s89 = scalar_select %p86, %s87, %s88
    %p92 = pneg %p86
    %p93 = scmp.eq.s32.totalorder %s9, 1
    %p94 = por %p92, %p93
    %p95 = scmp.ne.s32.totalorder %s87, %s90
    %p96 = scmp.eq.s32.totalorder %s9, 0
    %p97 = por %p95, %p96
    %p98 = scmp.ne.s32.totalorder %s87, %s90
    %p99 = scmp.eq.s32.totalorder %s14, 1
    %p100 = por %p98, %p99
    %p101 = scmp.ne.s32.totalorder %s90, %s91
    %p102 = scmp.eq.s32.totalorder %s14, 0
    %p103 = por %p101, %p102
    %p104 = scmp.ne.s32.totalorder %s90, %s91
    %p105 = scmp.eq.s32.totalorder %s15, 1
    %p106 = por %p104, %p105
    %p108 = scmp.ne.s32.totalorder %s91, %s107
    %p109 = scmp.eq.s32.totalorder %s15, 0
    %p110 = por %p108, %p109
    %p111 = scmp.le.s32.totalorder 1, %s9
    %p112 = scmp.lt.s32.totalorder %s9, 3
    %p113 = pnand %p111, %p112
    %p114 = pneg %p113
    // Predicated region
    $region9: #{cnn_forward.4} parent=5 // pred_check
      _
    $region10: #{cnn_forward.4} parent=5 // pred_check_branch
      %116 = sbr.rel (%p113) target = $region12
    $region11: #{cnn_forward.4} parent=5 // pred_region
      %s117 = ssub.s32 %s9, 1
      // Predicated region
      $region13: #{cnn_forward.4} parent=11 // pred_check
        %p118 = pneg %p56
      $region14: #{cnn_forward.4} parent=11 // pred_check_branch
        %120 = sbr.rel (%p118) target = $region16
      $region15: #{cnn_forward.4} parent=11 // pred_region
        _
      $region16: #{cnn_forward.4} parent=11 // pred_fallthru
        _
      // Predicated region
      $region17: #{cnn_forward.4} parent=11 // pred_check
        %p121 = pneg %p77
      $region18: #{cnn_forward.4} parent=11 // pred_check_branch
        %123 = sbr.rel (%p121) target = $region20
      $region19: #{cnn_forward.4} parent=11 // pred_region
        _
      $region20: #{cnn_forward.4} parent=11 // pred_fallthru
        _
    $region12: #{cnn_forward.4} parent=5 // pred_fallthru
      _
    %p124 = scmp.lt.s32.totalorder %s9, 2
    // Predicated region
    $region21: #{cnn_forward.4} parent=5 // pred_check
      %p125 = pneg %p124
    $region22: #{cnn_forward.4} parent=5 // pred_check_branch
      %127 = sbr.rel (%p125) target = $region24
    $region23: #{cnn_forward.4} parent=5 // pred_region
      // Predicated region
      $region25: #{cnn_forward.4} parent=23 // pred_check
        %p128 = pneg %p29
      $region26: #{cnn_forward.4} parent=23 // pred_check_branch
        %130 = sbr.rel (%p128) target = $region28
      $region27: #{cnn_forward.4} parent=23 // pred_region
        %p131 = scmp.lt.s32.totalorder %s9, 1
        %s132 = scalar_select %p131, %s9, 1
        %s133 = smul.addr %s132, 300
        %s134 = smul.addr %s133, 4
        %s135 = scalar_lea.vmem %s0, %s134
      $region28: #{cnn_forward.4} parent=23 // pred_fallthru
        _
    $region24: #{cnn_forward.4} parent=5 // pred_fallthru
      _
    %p136 = scmp.le.s32.totalorder 1, %s9
    %p137 = scmp.lt.s32.totalorder %s9, 3
    %p138 = pnand %p136, %p137
    %p139 = pneg %p138
    // Predicated region
    $region29: #{cnn_forward.4} parent=5 // pred_check
      _
    $region30: #{cnn_forward.4} parent=5 // pred_check_branch
      %141 = sbr.rel (%p138) target = $region32
    $region31: #{cnn_forward.4} parent=5 // pred_region
      %s142 = ssub.s32 %s9, 1
      %p143 = scmp.lt.s32.totalorder %s14, 1
      %s144 = scalar_select %p143, %s14, 1
      %s145 = smul.addr %s144, 300
      %s146 = smul.addr %s145, 4
      %s147 = scalar_lea.vmem %s0, %s146
      %p148 = pneg %p35
      %p149 = pneg %p32
      %p150 = pneg %p56
      %p151 = pneg %p53
      %p152 = pneg %p77
      %p153 = pneg %p74
      %p154 = pneg %p103
      %p155 = pneg %p100
      %p156 = scmp.lt.s32.totalorder %s14, 1
      %s157 = scalar_select %p156, %s14, 1
      %s158 = smul.addr %s157, 25
      %s159 = smul.addr %s158, 4
      %s160 = scalar_lea.vmem %s3, %s159
      %p161 = scmp.lt.s32.totalorder %s14, 1
      %s162 = scalar_select %p161, %s14, 1
      %s163 = smul.addr %s162, 300
      %s164 = smul.addr %s163, 4
      %s165 = scalar_lea.vmem %s0, %s164
      %p166 = scmp.lt.s32.totalorder %s14, 1
      %s167 = scalar_select %p166, %s14, 1
      %s168 = smul.addr %s167, 25
      %s169 = smul.addr %s168, 4
      %s170 = scalar_lea.vmem %s3, %s169
      %v172 = vld [vmem:[%s2] sm:$0x1]
      %v173 = vld [vmem:[%s165] sm:$0xff]
      %v174 = vld [vmem:[%s165 + $0x8] sm:$0xf]
      %v175 = vld [vmem:[%s165 + $0xc] sm:$0xff]
      %v176 = vld [vmem:[%s165 + $0x14] sm:$0xf]
      %v177 = vld [vmem:[%s165 + $0x18] sm:$0xff]
      %v178 = vld [vmem:[%s165 + $0x20] sm:$0xf]
      %v179 = vld [vmem:[%s165 + $0x24] sm:$0xff]
      %v180 = vld [vmem:[%s165 + $0x2c] sm:$0xf]
      %v181 = vld [vmem:[%s165 + $0x30] sm:$0xff]
      %v182 = vld [vmem:[%s165 + $0x38] sm:$0xf]
      %v183 = vld [vmem:[%s165 + $0x3c] sm:$0xff]
      %v184 = vld [vmem:[%s165 + $0x44] sm:$0xf]
      %v185 = vld [vmem:[%s165 + $0x48] sm:$0xff]
      %v186 = vld [vmem:[%s165 + $0x50] sm:$0xf]
      %v187 = vld [vmem:[%s165 + $0x54] sm:$0xff]
      %v188 = vld [vmem:[%s165 + $0x5c] sm:$0xf]
      %v189 = vld [vmem:[%s165 + $0x60] sm:$0xff]
      %v190 = vld [vmem:[%s165 + $0x68] sm:$0xf]
      %v191 = vld [vmem:[%s165 + $0x6c] sm:$0xff]
      %v192 = vld [vmem:[%s165 + $0x74] sm:$0xf]
      %v193 = vld [vmem:[%s165 + $0x78] sm:$0xff]
      %v194 = vld [vmem:[%s165 + $0x80] sm:$0xf]
      %v195 = vld [vmem:[%s165 + $0x84] sm:$0xff]
      %v196 = vld [vmem:[%s165 + $0x8c] sm:$0xf]
      %v197 = vld [vmem:[%s165 + $0x90] sm:$0xff]
      %v198 = vld [vmem:[%s165 + $0x98] sm:$0xf]
      %v199 = vld [vmem:[%s165 + $0x9c] sm:$0xff]
      %v200 = vld [vmem:[%s165 + $0xa4] sm:$0xf]
      %v201 = vld [vmem:[%s165 + $0xa8] sm:$0xff]
      %v202 = vld [vmem:[%s165 + $0xb0] sm:$0xf]
      %v203 = vld [vmem:[%s165 + $0xb4] sm:$0xff]
      %v204 = vld [vmem:[%s165 + $0xbc] sm:$0xf]
      %v205 = vld [vmem:[%s165 + $0xc0] sm:$0xff]
      %v206 = vld [vmem:[%s165 + $0xc8] sm:$0xf]
      %v207 = vld [vmem:[%s165 + $0xcc] sm:$0xff]
      %v208 = vld [vmem:[%s165 + $0xd4] sm:$0xf]
      %v209 = vld [vmem:[%s165 + $0xd8] sm:$0xff]
      %v210 = vld [vmem:[%s165 + $0xe0] sm:$0xf]
      %v211 = vld [vmem:[%s165 + $0xe4] sm:$0xff]
      %v212 = vld [vmem:[%s165 + $0xec] sm:$0xf]
      %v213 = vld [vmem:[%s165 + $0xf0] sm:$0xff]
      %v214 = vld [vmem:[%s165 + $0xf8] sm:$0xf]
      %v215 = vld [vmem:[%s165 + $0xfc] sm:$0xff]
      %v216 = vld [vmem:[%s165 + $0x104] sm:$0xf]
      %v217 = vld [vmem:[%s165 + $0x108] sm:$0xff]
      %v218 = vld [vmem:[%s165 + $0x110] sm:$0xf]
      %v219 = vld [vmem:[%s165 + $0x114] sm:$0xff]
      %v220 = vld [vmem:[%s165 + $0x11c] sm:$0xf]
      %v221 = vld [vmem:[%s165 + $0x120] sm:$0x33]
      %v222 = vld [vmem:[%s165 + $0x128] sm:$0x3]
      %v223 = vld [vmem:[%s1] sm:$0xf]
      %v224 = vld [vmem:[%s1 + $0x4] sm:$0xf]
      %v225 = vld [vmem:[%s1 + $0x8] sm:$0xf]
      %v226 = vld [vmem:[%s1 + $0xc] sm:$0xf]
      %v227 = vld [vmem:[%s1 + $0x10] sm:$0xf]
      %v228 = vld [vmem:[%s1 + $0x14] sm:$0xf]
      %v229 = vld [vmem:[%s1 + $0x18] sm:$0xf]
      %v230 = vld [vmem:[%s1 + $0x1c] sm:$0xf]
      %v231 = vld [vmem:[%s1 + $0x20] sm:$0xf]
      %v232 = vld [vmem:[%s1 + $0x24] sm:$0xf]
      %v233 = vld [vmem:[%s1 + $0x28] sm:$0xf]
      %v234 = vld [vmem:[%s1 + $0x2c] sm:$0xf]
      %v235 = vld [vmem:[%s1 + $0x30] sm:$0xf]
      %v236 = vld [vmem:[%s1 + $0x34] sm:$0xf]
      %v237 = vld [vmem:[%s1 + $0x38] sm:$0xf]
      %v238 = vld [vmem:[%s1 + $0x3c] sm:$0xf]
      %v239 = vld [vmem:[%s1 + $0x40] sm:$0xf]
      %v240 = vld [vmem:[%s1 + $0x44] sm:$0xf]
      %v241 = vld [vmem:[%s1 + $0x48] sm:$0xf]
      %v242 = vld [vmem:[%s1 + $0x4c] sm:$0xf]
      %v243 = vld [vmem:[%s1 + $0x50] sm:$0xf]
      %v244 = vld [vmem:[%s1 + $0x54] sm:$0xf]
      %v245 = vld [vmem:[%s1 + $0x58] sm:$0xf]
      %v246 = vld [vmem:[%s1 + $0x5c] sm:$0xf]
      %v247 = vld [vmem:[%s1 + $0x60] sm:$0xf]
      %v248 = vld [vmem:[%s1 + $0x64] sm:$0xf]
      %v249 = vld [vmem:[%s1 + $0x68] sm:$0xf]
      %v250 = vld [vmem:[%s1 + $0x6c] sm:$0xf]
      %v251 = vld [vmem:[%s1 + $0x70] sm:$0xf]
      %v252 = vld [vmem:[%s1 + $0x74] sm:$0xf]
      %v253 = vld [vmem:[%s1 + $0x78] sm:$0xf]
      %v254 = vld [vmem:[%s1 + $0x7c] sm:$0xf]
      %v255 = vld [vmem:[%s1 + $0x80] sm:$0xf]
      %v256 = vld [vmem:[%s1 + $0x84] sm:$0xf]
      %v257 = vld [vmem:[%s1 + $0x88] sm:$0xf]
      %v258 = vld [vmem:[%s1 + $0x8c] sm:$0xf]
      %v260 = vlaneseq
      %v261 = vshrl.u32 %v260, 7
      %v262 = vsub.s32 0, %v261
      %v263 = vrot.slane %v172, %v262
      %v315 = vunpack.c.l.b16 %v173
      %v316 = vunpack.c.h.b16 %v173
      %v317 = vunpack.c.l.b16 %v174
      %v318 = vunpack.c.l.b16 %v175
      %v319 = vunpack.c.h.b16 %v175
      %v320 = vunpack.c.l.b16 %v176
      %v321 = vunpack.c.l.b16 %v177
      %v322 = vunpack.c.h.b16 %v177
      %v323 = vunpack.c.l.b16 %v178
      %v324 = vunpack.c.l.b16 %v179
      %v325 = vunpack.c.h.b16 %v179
      %v326 = vunpack.c.l.b16 %v180
      %v327 = vunpack.c.l.b16 %v181
      %v328 = vunpack.c.h.b16 %v181
      %v329 = vunpack.c.l.b16 %v182
      %v330 = vunpack.c.l.b16 %v183
      %v331 = vunpack.c.h.b16 %v183
      %v332 = vunpack.c.l.b16 %v184
      %v333 = vunpack.c.l.b16 %v185
      %v334 = vunpack.c.h.b16 %v185
      %v335 = vunpack.c.l.b16 %v186
      %v336 = vunpack.c.l.b16 %v187
      %v337 = vunpack.c.h.b16 %v187
      %v338 = vunpack.c.l.b16 %v188
      %v339 = vunpack.c.l.b16 %v189
      %v340 = vunpack.c.h.b16 %v189
      %v341 = vunpack.c.l.b16 %v190
      %v342 = vunpack.c.l.b16 %v191
      %v343 = vunpack.c.h.b16 %v191
      %v344 = vunpack.c.l.b16 %v192
      %v345 = vunpack.c.l.b16 %v193
      %v346 = vunpack.c.h.b16 %v193
      %v347 = vunpack.c.l.b16 %v194
      %v348 = vunpack.c.l.b16 %v195
      %v349 = vunpack.c.h.b16 %v195
      %v350 = vunpack.c.l.b16 %v196
      %v351 = vunpack.c.l.b16 %v197
      %v352 = vunpack.c.h.b16 %v197
      %v353 = vunpack.c.l.b16 %v198
      %v354 = vunpack.c.l.b16 %v199
      %v355 = vunpack.c.h.b16 %v199
      %v356 = vunpack.c.l.b16 %v200
      %v357 = vunpack.c.l.b16 %v201
      %v358 = vunpack.c.h.b16 %v201
      %v359 = vunpack.c.l.b16 %v202
      %v360 = vunpack.c.l.b16 %v203
      %v361 = vunpack.c.h.b16 %v203
      %v362 = vunpack.c.l.b16 %v204
      %v363 = vunpack.c.l.b16 %v205
      %v364 = vunpack.c.h.b16 %v205
      %v365 = vunpack.c.l.b16 %v206
      %v366 = vunpack.c.l.b16 %v207
      %v367 = vunpack.c.h.b16 %v207
      %v368 = vunpack.c.l.b16 %v208
      %v369 = vunpack.c.l.b16 %v209
      %v370 = vunpack.c.h.b16 %v209
      %v371 = vunpack.c.l.b16 %v210
      %v372 = vunpack.c.l.b16 %v211
      %v373 = vunpack.c.h.b16 %v211
      %v374 = vunpack.c.l.b16 %v212
      %v375 = vunpack.c.l.b16 %v213
      %v376 = vunpack.c.h.b16 %v213
      %v377 = vunpack.c.l.b16 %v214
      %v378 = vunpack.c.l.b16 %v215
      %v379 = vunpack.c.h.b16 %v215
      %v380 = vunpack.c.l.b16 %v216
      %v381 = vunpack.c.l.b16 %v217
      %v382 = vunpack.c.h.b16 %v217
      %v383 = vunpack.c.l.b16 %v218
      %v384 = vunpack.c.l.b16 %v219
      %v385 = vunpack.c.h.b16 %v219
      %v386 = vunpack.c.l.b16 %v220
      %v387 = vunpack.c.l.b16 %v221
      %v388 = vunpack.c.h.b16 %v221
      %v389 = vunpack.c.l.b16 %v222
      %v390 = vpack.c.b16 %v318, %v315
      %v391 = vpack.c.b16 %v319, %v316
      %v392 = vpack.c.b16 %v320, %v317
      %v393 = vpack.c.b16 %v324, %v321
      %v394 = vpack.c.b16 %v325, %v322
      %v395 = vpack.c.b16 %v326, %v323
      %v396 = vpack.c.b16 %v330, %v327
      %v397 = vpack.c.b16 %v331, %v328
      %v398 = vpack.c.b16 %v332, %v329
      %v399 = vpack.c.b16 %v336, %v333
      %v400 = vpack.c.b16 %v337, %v334
      %v401 = vpack.c.b16 %v338, %v335
      %v402 = vpack.c.b16 %v342, %v339
      %v403 = vpack.c.b16 %v343, %v340
      %v404 = vpack.c.b16 %v344, %v341
      %v405 = vpack.c.b16 %v348, %v345
      %v406 = vpack.c.b16 %v349, %v346
      %v407 = vpack.c.b16 %v350, %v347
      %v408 = vpack.c.b16 %v354, %v351
      %v409 = vpack.c.b16 %v355, %v352
      %v410 = vpack.c.b16 %v356, %v353
      %v411 = vpack.c.b16 %v360, %v357
      %v412 = vpack.c.b16 %v361, %v358
      %v413 = vpack.c.b16 %v362, %v359
      %v414 = vpack.c.b16 %v366, %v363
      %v415 = vpack.c.b16 %v367, %v364
      %v416 = vpack.c.b16 %v368, %v365
      %v417 = vpack.c.b16 %v372, %v369
      %v418 = vpack.c.b16 %v373, %v370
      %v419 = vpack.c.b16 %v374, %v371
      %v420 = vpack.c.b16 %v378, %v375
      %v421 = vpack.c.b16 %v379, %v376
      %v422 = vpack.c.b16 %v380, %v377
      %v423 = vpack.c.b16 %v384, %v381
      %v424 = vpack.c.b16 %v385, %v382
      %v425 = vpack.c.b16 %v386, %v383
      %v426 = vpack.c.b16 %v387, %v387
      %v427 = vpack.c.b16 %v388, %v388
      %v428 = vpack.c.b16 %v389, %v389
      %v491 = vunpack.c.l.b16 %v223
      %v492 = vunpack.c.l.b16 %v224
      %v493 = vunpack.c.l.b16 %v225
      %v494 = vunpack.c.l.b16 %v226
      %v495 = vunpack.c.l.b16 %v227
      %v496 = vunpack.c.l.b16 %v228
      %v497 = vunpack.c.l.b16 %v229
      %v498 = vunpack.c.l.b16 %v230
      %v499 = vunpack.c.l.b16 %v231
      %v500 = vunpack.c.l.b16 %v232
      %v501 = vunpack.c.l.b16 %v233
      %v502 = vunpack.c.l.b16 %v234
      %v503 = vunpack.c.l.b16 %v235
      %v504 = vunpack.c.l.b16 %v236
      %v505 = vunpack.c.l.b16 %v237
      %v506 = vunpack.c.l.b16 %v238
      %v507 = vunpack.c.l.b16 %v239
      %v508 = vunpack.c.l.b16 %v240
      %v509 = vunpack.c.l.b16 %v241
      %v510 = vunpack.c.l.b16 %v242
      %v511 = vunpack.c.l.b16 %v243
      %v512 = vunpack.c.l.b16 %v244
      %v513 = vunpack.c.l.b16 %v245
      %v514 = vunpack.c.l.b16 %v246
      %v515 = vunpack.c.l.b16 %v247
      %v516 = vunpack.c.l.b16 %v248
      %v517 = vunpack.c.l.b16 %v249
      %v518 = vunpack.c.l.b16 %v250
      %v519 = vunpack.c.l.b16 %v251
      %v520 = vunpack.c.l.b16 %v252
      %v521 = vunpack.c.l.b16 %v253
      %v522 = vunpack.c.l.b16 %v254
      %v523 = vunpack.c.l.b16 %v255
      %v524 = vunpack.c.l.b16 %v256
      %v525 = vunpack.c.l.b16 %v257
      %v526 = vunpack.c.l.b16 %v258
      %v527 = vpack.c.b16 %v492, %v491
      %v528 = vpack.c.b16 %v494, %v493
      %v529 = vpack.c.b16 %v496, %v495
      %v530 = vpack.c.b16 %v498, %v497
      %v531 = vpack.c.b16 %v500, %v499
      %v532 = vpack.c.b16 %v502, %v501
      %v533 = vpack.c.b16 %v504, %v503
      %v534 = vpack.c.b16 %v506, %v505
      %v535 = vpack.c.b16 %v508, %v507
      %v536 = vpack.c.b16 %v510, %v509
      %v537 = vpack.c.b16 %v512, %v511
      %v538 = vpack.c.b16 %v514, %v513
      %v539 = vpack.c.b16 %v516, %v515
      %v540 = vpack.c.b16 %v518, %v517
      %v541 = vpack.c.b16 %v520, %v519
      %v542 = vpack.c.b16 %v522, %v521
      %v543 = vpack.c.b16 %v524, %v523
      %v544 = vpack.c.b16 %v526, %v525
      %vm563 = vcmask 261120
      %v565 = vsel %vm563, %v392, 0
      %v568 = vsel %vm563, %v395, 0
      %v571 = vsel %vm563, %v398, 0
      %v574 = vsel %vm563, %v401, 0
      %v577 = vsel %vm563, %v404, 0
      %v580 = vsel %vm563, %v407, 0
      %v583 = vsel %vm563, %v410, 0
      %v586 = vsel %vm563, %v413, 0
      %v589 = vsel %vm563, %v416, 0
      %v592 = vsel %vm563, %v419, 0
      %v595 = vsel %vm563, %v422, 0
      %v598 = vsel %vm563, %v425, 0
      %v601 = vsel %vm563, %v428, 0
      %603 = vmatprep.subr.bf16.mxu0 0
      %604 = vmatpush1.bf16.msra.mxu0 %v527
      %605 = vmatprep.subr.bf16.mxu0 0
      %606 = vmatpush1.bf16.msra.mxu0 %v528
      %607 = vmatprep.subr.bf16.mxu0 0
      %608 = vmatpush1.bf16.msra.mxu0 %v529
      %609 = vmatprep.subr.bf16.mxu0 0
      %610 = vmatpush1.bf16.msra.mxu0 %v530
      %611 = vmatprep.subr.bf16.mxu0 0
      %612 = vmatpush1.bf16.msra.mxu0 %v531
      %613 = vmatprep.subr.bf16.mxu0 0
      %614 = vmatpush1.bf16.msra.mxu0 %v532
      %615 = vmatprep.subr.bf16.mxu0 0
      %616 = vmatpush1.bf16.msra.mxu0 %v533
      %617 = vmatprep.subr.bf16.mxu0 0
      %618 = vmatpush1.bf16.msra.mxu0 %v534
      %619 = vmatprep.subr.bf16.mxu0 0
      %620 = vmatpush1.bf16.msra.mxu0 %v535
      %621 = vmatprep.subr.bf16.mxu0 0
      %622 = vmatpush1.bf16.msra.mxu0 %v536
      %623 = vmatprep.subr.bf16.mxu0 0
      %624 = vmatpush1.bf16.msra.mxu0 %v537
      %625 = vmatprep.subr.bf16.mxu0 0
      %626 = vmatpush1.bf16.msra.mxu0 %v538
      %627 = vmatprep.subr.bf16.mxu0 0
      %628 = vmatpush1.bf16.msra.mxu0 %v539
      %629 = vmatprep.subr.bf16.mxu0 0
      %630 = vmatpush1.bf16.msra.mxu0 %v540
      %631 = vmatprep.subr.bf16.mxu0 0
      %632 = vmatpush1.bf16.msra.mxu0 %v541
      %633 = vmatprep.subr.bf16.mxu0 0
      %634 = vmatpush1.bf16.msra.mxu0 %v542
      %635 = vmatprep.mubr.bf16.mxu0 %v391
      %636 = vmatmul.mubr.bf16.gmra.mrb[0].mxu0 %v390
      %v637 = vpop.f32.mrb[0].mxu0
      %v638 = vadd.f32 %v263, %v637
      %v639 = vpop.f32.mrb[0].mxu0
      %v640 = vpop.f32.mrb[0].mxu0
      %v641 = vadd.f32 %v263, %v640
      %v642 = vpop.f32.mrb[0].mxu0
      %643 = vmatprep.mubr.bf16.mxu0 %v394
      %644 = vmatmul.mubr.bf16.gmra.mrb[0].mxu0 %v393
      %v645 = vpop.f32.mrb[0].mxu0
      %v646 = vadd.f32 %v263, %v645
      %v647 = vpop.f32.mrb[0].mxu0
      %v648 = vpop.f32.mrb[0].mxu0
      %v649 = vadd.f32 %v263, %v648
      %v650 = vpop.f32.mrb[0].mxu0
      %651 = vmatprep.mubr.bf16.mxu0 %v397
      %652 = vmatmul.mubr.bf16.gmra.mrb[0].mxu0 %v396
      %v653 = vpop.f32.mrb[0].mxu0
      %v654 = vadd.f32 %v263, %v653
      %v655 = vpop.f32.mrb[0].mxu0
      %v656 = vpop.f32.mrb[0].mxu0
      %v657 = vadd.f32 %v263, %v656
      %v658 = vpop.f32.mrb[0].mxu0
      %659 = vmatprep.mubr.bf16.mxu0 %v400
      %660 = vmatmul.mubr.bf16.gmra.mrb[0].mxu0 %v399
      %v661 = vpop.f32.mrb[0].mxu0
      %v662 = vadd.f32 %v263, %v661
      %v663 = vpop.f32.mrb[0].mxu0
      %v664 = vpop.f32.mrb[0].mxu0
      %v665 = vadd.f32 %v263, %v664
      %v666 = vpop.f32.mrb[0].mxu0
      %667 = vmatprep.mubr.bf16.mxu0 %v403
      %668 = vmatmul.mubr.bf16.gmra.mrb[0].mxu0 %v402
      %v669 = vpop.f32.mrb[0].mxu0
      %v670 = vadd.f32 %v263, %v669
      %v671 = vpop.f32.mrb[0].mxu0
      %v672 = vpop.f32.mrb[0].mxu0
      %v673 = vadd.f32 %v263, %v672
      %v674 = vpop.f32.mrb[0].mxu0
      %675 = vmatprep.mubr.bf16.mxu0 %v406
      %676 = vmatmul.mubr.bf16.gmra.mrb[0].mxu0 %v405
      %v677 = vpop.f32.mrb[0].mxu0
      %v678 = vadd.f32 %v263, %v677
      %v679 = vpop.f32.mrb[0].mxu0
      %v680 = vpop.f32.mrb[0].mxu0
      %v681 = vadd.f32 %v263, %v680
      %v682 = vpop.f32.mrb[0].mxu0
      %683 = vmatprep.mubr.bf16.mxu0 %v409
      %684 = vmatmul.mubr.bf16.gmra.mrb[0].mxu0 %v408
      %v685 = vpop.f32.mrb[0].mxu0
      %v686 = vadd.f32 %v263, %v685
      %v687 = vpop.f32.mrb[0].mxu0
      %v688 = vpop.f32.mrb[0].mxu0
      %v689 = vadd.f32 %v263, %v688
      %v690 = vpop.f32.mrb[0].mxu0
      %691 = vmatprep.mubr.bf16.mxu0 %v412
      %692 = vmatmul.mubr.bf16.gmra.mrb[0].mxu0 %v411
      %v693 = vpop.f32.mrb[0].mxu0
      %v694 = vadd.f32 %v263, %v693
      %v695 = vpop.f32.mrb[0].mxu0
      %v696 = vpop.f32.mrb[0].mxu0
      %v697 = vadd.f32 %v263, %v696
      %v698 = vpop.f32.mrb[0].mxu0
      %699 = vmatprep.mubr.bf16.mxu0 %v415
      %700 = vmatmul.mubr.bf16.gmra.mrb[0].mxu0 %v414
      %v701 = vpop.f32.mrb[0].mxu0
      %v702 = vadd.f32 %v263, %v701
      %v703 = vpop.f32.mrb[0].mxu0
      %v704 = vpop.f32.mrb[0].mxu0
      %v705 = vadd.f32 %v263, %v704
      %v706 = vpop.f32.mrb[0].mxu0
      %707 = vmatprep.mubr.bf16.mxu0 %v418
      %708 = vmatmul.mubr.bf16.gmra.mrb[0].mxu0 %v417
      %v709 = vpop.f32.mrb[0].mxu0
      %v710 = vadd.f32 %v263, %v709
      %v711 = vpop.f32.mrb[0].mxu0
      %v712 = vpop.f32.mrb[0].mxu0
      %v713 = vadd.f32 %v263, %v712
      %v714 = vpop.f32.mrb[0].mxu0
      %715 = vmatprep.mubr.bf16.mxu0 %v421
      %716 = vmatmul.mubr.bf16.gmra.mrb[0].mxu0 %v420
      %v717 = vpop.f32.mrb[0].mxu0
      %v718 = vadd.f32 %v263, %v717
      %v719 = vpop.f32.mrb[0].mxu0
      %v720 = vpop.f32.mrb[0].mxu0
      %v721 = vadd.f32 %v263, %v720
      %v722 = vpop.f32.mrb[0].mxu0
      %723 = vmatprep.mubr.bf16.mxu0 %v424
      %724 = vmatmul.mubr.bf16.gmra.mrb[0].mxu0 %v423
      %v725 = vpop.f32.mrb[0].mxu0
      %v726 = vadd.f32 %v263, %v725
      %v727 = vpop.f32.mrb[0].mxu0
      %v728 = vpop.f32.mrb[0].mxu0
      %v729 = vadd.f32 %v263, %v728
      %v730 = vpop.f32.mrb[0].mxu0
      %731 = vmatprep.mubr.bf16.mxu0 %v427
      %732 = vmatmul.mubr.bf16.gmra.mrb[0].mxu0 %v426
      %v733 = vpop.f32.mrb[0].mxu0
      %v734 = vadd.f32 %v263, %v733
      %v735 = vpop.f32.mrb[0].mxu0
      %v736 = vpop.f32.mrb[0].mxu0
      %v737 = vpop.f32.mrb[0].mxu0
      %738 = vdwg.mxu0
      %739 = vmatprep.subr.bf16.mxu0 0
      %740 = vmatpush1.bf16.msra.mxu0 %v543
      %741 = vmatprep.subr.bf16.mxu0 0
      %742 = vmatpush1.bf16.msra.mxu0 %v544
      %743 = vmatprep.subr.bf16.mxu0 0
      %744 = vmatpush1.bf16.msra.mxu0 0
      %745 = vmatprep.subr.bf16.mxu0 0
      %746 = vmatpush1.bf16.msra.mxu0 0
      %747 = vmatprep.subr.bf16.mxu0 0
      %748 = vmatpush1.bf16.msra.mxu0 0
      %749 = vmatprep.subr.bf16.mxu0 0
      %750 = vmatpush1.bf16.msra.mxu0 0
      %751 = vmatprep.subr.bf16.mxu0 0
      %752 = vmatpush1.bf16.msra.mxu0 0
      %753 = vmatprep.subr.bf16.mxu0 0
      %754 = vmatpush1.bf16.msra.mxu0 0
      %755 = vmatprep.subr.bf16.mxu0 0
      %756 = vmatpush1.bf16.msra.mxu0 0
      %757 = vmatprep.subr.bf16.mxu0 0
      %758 = vmatpush1.bf16.msra.mxu0 0
      %759 = vmatprep.subr.bf16.mxu0 0
      %760 = vmatpush1.bf16.msra.mxu0 0
      %761 = vmatprep.subr.bf16.mxu0 0
      %762 = vmatpush1.bf16.msra.mxu0 0
      %763 = vmatprep.subr.bf16.mxu0 0
      %764 = vmatpush1.bf16.msra.mxu0 0
      %765 = vmatprep.subr.bf16.mxu0 0
      %766 = vmatpush1.bf16.msra.mxu0 0
      %767 = vmatprep.subr.bf16.mxu0 0
      %768 = vmatpush1.bf16.msra.mxu0 0
      %769 = vmatprep.subr.bf16.mxu0 0
      %770 = vmatpush1.bf16.msra.mxu0 0
      %771 = vmatprep.mubr.bf16.mxu0 0
      %772 = vmatmul.mubr.bf16.gmra.mrb[0].mxu0 %v565
      %v773 = vpop.f32.mrb[0].mxu0
      %v774 = vadd.f32 %v638, %v773
      %v775 = vpop.f32.mrb[0].mxu0
      %v776 = vpop.f32.mrb[0].mxu0
      %v777 = vadd.f32 %v641, %v776
      %v778 = vpop.f32.mrb[0].mxu0
      %779 = vmatprep.mubr.bf16.mxu0 0
      %780 = vmatmul.mubr.bf16.gmra.mrb[0].mxu0 %v568
      %v781 = vpop.f32.mrb[0].mxu0
      %v782 = vadd.f32 %v646, %v781
      %v783 = vpop.f32.mrb[0].mxu0
      %v784 = vpop.f32.mrb[0].mxu0
      %v785 = vadd.f32 %v649, %v784
      %v786 = vpop.f32.mrb[0].mxu0
      %787 = vmatprep.mubr.bf16.mxu0 0
      %788 = vmatmul.mubr.bf16.gmra.mrb[0].mxu0 %v571
      %v789 = vpop.f32.mrb[0].mxu0
      %v790 = vadd.f32 %v654, %v789
      %v791 = vpop.f32.mrb[0].mxu0
      %v792 = vpop.f32.mrb[0].mxu0
      %v793 = vadd.f32 %v657, %v792
      %v794 = vpop.f32.mrb[0].mxu0
      %795 = vmatprep.mubr.bf16.mxu0 0
      %796 = vmatmul.mubr.bf16.gmra.mrb[0].mxu0 %v574
      %v797 = vpop.f32.mrb[0].mxu0
      %v798 = vadd.f32 %v662, %v797
      %v799 = vpop.f32.mrb[0].mxu0
      %v800 = vpop.f32.mrb[0].mxu0
      %v801 = vadd.f32 %v665, %v800
      %v802 = vpop.f32.mrb[0].mxu0
      %803 = vmatprep.mubr.bf16.mxu0 0
      %804 = vmatmul.mubr.bf16.gmra.mrb[0].mxu0 %v577
      %v805 = vpop.f32.mrb[0].mxu0
      %v806 = vadd.f32 %v670, %v805
      %v807 = vpop.f32.mrb[0].mxu0
      %v808 = vpop.f32.mrb[0].mxu0
      %v809 = vadd.f32 %v673, %v808
      %v810 = vpop.f32.mrb[0].mxu0
      %811 = vmatprep.mubr.bf16.mxu0 0
      %812 = vmatmul.mubr.bf16.gmra.mrb[0].mxu0 %v580
      %v813 = vpop.f32.mrb[0].mxu0
      %v814 = vadd.f32 %v678, %v813
      %v815 = vpop.f32.mrb[0].mxu0
      %v816 = vpop.f32.mrb[0].mxu0
      %v817 = vadd.f32 %v681, %v816
      %v818 = vpop.f32.mrb[0].mxu0
      %819 = vmatprep.mubr.bf16.mxu0 0
      %820 = vmatmul.mubr.bf16.gmra.mrb[0].mxu0 %v583
      %v821 = vpop.f32.mrb[0].mxu0
      %v822 = vadd.f32 %v686, %v821
      %v823 = vpop.f32.mrb[0].mxu0
      %v824 = vpop.f32.mrb[0].mxu0
      %v825 = vadd.f32 %v689, %v824
      %v826 = vpop.f32.mrb[0].mxu0
      %827 = vmatprep.mubr.bf16.mxu0 0
      %828 = vmatmul.mubr.bf16.gmra.mrb[0].mxu0 %v586
      %v829 = vpop.f32.mrb[0].mxu0
      %v830 = vadd.f32 %v694, %v829
      %v831 = vpop.f32.mrb[0].mxu0
      %v832 = vpop.f32.mrb[0].mxu0
      %v833 = vadd.f32 %v697, %v832
      %v834 = vpop.f32.mrb[0].mxu0
      %835 = vmatprep.mubr.bf16.mxu0 0
      %836 = vmatmul.mubr.bf16.gmra.mrb[0].mxu0 %v589
      %v837 = vpop.f32.mrb[0].mxu0
      %v838 = vadd.f32 %v702, %v837
      %v839 = vpop.f32.mrb[0].mxu0
      %v840 = vpop.f32.mrb[0].mxu0
      %v841 = vadd.f32 %v705, %v840
      %v842 = vpop.f32.mrb[0].mxu0
      %843 = vmatprep.mubr.bf16.mxu0 0
      %844 = vmatmul.mubr.bf16.gmra.mrb[0].mxu0 %v592
      %v845 = vpop.f32.mrb[0].mxu0
      %v846 = vadd.f32 %v710, %v845
      %v847 = vpop.f32.mrb[0].mxu0
      %v848 = vpop.f32.mrb[0].mxu0
      %v849 = vadd.f32 %v713, %v848
      %v850 = vpop.f32.mrb[0].mxu0
      %851 = vmatprep.mubr.bf16.mxu0 0
      %852 = vmatmul.mubr.bf16.gmra.mrb[0].mxu0 %v595
      %v853 = vpop.f32.mrb[0].mxu0
      %v854 = vadd.f32 %v718, %v853
      %v855 = vpop.f32.mrb[0].mxu0
      %v856 = vpop.f32.mrb[0].mxu0
      %v857 = vadd.f32 %v721, %v856
      %v858 = vpop.f32.mrb[0].mxu0
      %859 = vmatprep.mubr.bf16.mxu0 0
      %860 = vmatmul.mubr.bf16.gmra.mrb[0].mxu0 %v598
      %v861 = vpop.f32.mrb[0].mxu0
      %v862 = vadd.f32 %v726, %v861
      %v863 = vpop.f32.mrb[0].mxu0
      %v864 = vpop.f32.mrb[0].mxu0
      %v865 = vadd.f32 %v729, %v864
      %v866 = vpop.f32.mrb[0].mxu0
      %867 = vmatprep.mubr.bf16.mxu0 0
      %868 = vmatmul.mubr.bf16.gmra.mrb[0].mxu0 %v601
      %v869 = vpop.f32.mrb[0].mxu0
      %v870 = vadd.f32 %v734, %v869
      %v871 = vpop.f32.mrb[0].mxu0
      %v872 = vpop.f32.mrb[0].mxu0
      %v873 = vpop.f32.mrb[0].mxu0
      %874 = vdwg.mxu0
      %v875 = vmax.f32 %v774, 0.0
      %v876 = vmax.f32 %v777, 0.0
      %v877 = vmax.f32 %v782, 0.0
      %v878 = vmax.f32 %v785, 0.0
      %v879 = vmax.f32 %v790, 0.0
      %v880 = vmax.f32 %v793, 0.0
      %v881 = vmax.f32 %v798, 0.0
      %v882 = vmax.f32 %v801, 0.0
      %v883 = vmax.f32 %v806, 0.0
      %v884 = vmax.f32 %v809, 0.0
      %v885 = vmax.f32 %v814, 0.0
      %v886 = vmax.f32 %v817, 0.0
      %v887 = vmax.f32 %v822, 0.0
      %v888 = vmax.f32 %v825, 0.0
      %v889 = vmax.f32 %v830, 0.0
      %v890 = vmax.f32 %v833, 0.0
      %v891 = vmax.f32 %v838, 0.0
      %v892 = vmax.f32 %v841, 0.0
      %v893 = vmax.f32 %v846, 0.0
      %v894 = vmax.f32 %v849, 0.0
      %v895 = vmax.f32 %v854, 0.0
      %v896 = vmax.f32 %v857, 0.0
      %v897 = vmax.f32 %v862, 0.0
      %v898 = vmax.f32 %v865, 0.0
      %v899 = vmax.f32 %v870, 0.0
      %s900 = scalar_lea.vmem %s165, 300
      %v901 = vld [vmem:[%s900] sm:$0xff]
      %v902 = vld [vmem:[%s900 + $0x8] sm:$0xf]
      %v903 = vld [vmem:[%s900 + $0xc] sm:$0xff]
      %v904 = vld [vmem:[%s900 + $0x14] sm:$0xf]
      %v905 = vld [vmem:[%s900 + $0x18] sm:$0xff]
      %v906 = vld [vmem:[%s900 + $0x20] sm:$0xf]
      %v907 = vld [vmem:[%s900 + $0x24] sm:$0xff]
      %v908 = vld [vmem:[%s900 + $0x2c] sm:$0xf]
      %v909 = vld [vmem:[%s900 + $0x30] sm:$0xff]
      %v910 = vld [vmem:[%s900 + $0x38] sm:$0xf]
      %v911 = vld [vmem:[%s900 + $0x3c] sm:$0xff]
      %v912 = vld [vmem:[%s900 + $0x44] sm:$0xf]
      %v913 = vld [vmem:[%s900 + $0x48] sm:$0xff]
      %v914 = vld [vmem:[%s900 + $0x50] sm:$0xf]
      %v915 = vld [vmem:[%s900 + $0x54] sm:$0xff]
      %v916 = vld [vmem:[%s900 + $0x5c] sm:$0xf]
      %v917 = vld [vmem:[%s900 + $0x60] sm:$0xff]
      %v918 = vld [vmem:[%s900 + $0x68] sm:$0xf]
      %v919 = vld [vmem:[%s900 + $0x6c] sm:$0xff]
      %v920 = vld [vmem:[%s900 + $0x74] sm:$0xf]
      %v921 = vld [vmem:[%s900 + $0x78] sm:$0xff]
      %v922 = vld [vmem:[%s900 + $0x80] sm:$0xf]
      %v923 = vld [vmem:[%s900 + $0x84] sm:$0xff]
      %v924 = vld [vmem:[%s900 + $0x8c] sm:$0xf]
      %v925 = vld [vmem:[%s900 + $0x90] sm:$0xff]
      %v926 = vld [vmem:[%s900 + $0x98] sm:$0xf]
      %v927 = vld [vmem:[%s900 + $0x9c] sm:$0xff]
      %v928 = vld [vmem:[%s900 + $0xa4] sm:$0xf]
      %v929 = vld [vmem:[%s900 + $0xa8] sm:$0xff]
      %v930 = vld [vmem:[%s900 + $0xb0] sm:$0xf]
      %v931 = vld [vmem:[%s900 + $0xb4] sm:$0xff]
      %v932 = vld [vmem:[%s900 + $0xbc] sm:$0xf]
      %v933 = vld [vmem:[%s900 + $0xc0] sm:$0xff]
      %v934 = vld [vmem:[%s900 + $0xc8] sm:$0xf]
      %v935 = vld [vmem:[%s900 + $0xcc] sm:$0xff]
      %v936 = vld [vmem:[%s900 + $0xd4] sm:$0xf]
      %v937 = vld [vmem:[%s900 + $0xd8] sm:$0xff]
      %v938 = vld [vmem:[%s900 + $0xe0] sm:$0xf]
      %v939 = vld [vmem:[%s900 + $0xe4] sm:$0xff]
      %v940 = vld [vmem:[%s900 + $0xec] sm:$0xf]
      %v941 = vld [vmem:[%s900 + $0xf0] sm:$0xff]
      %v942 = vld [vmem:[%s900 + $0xf8] sm:$0xf]
      %v943 = vld [vmem:[%s900 + $0xfc] sm:$0xff]
      %v944 = vld [vmem:[%s900 + $0x104] sm:$0xf]
      %v945 = vld [vmem:[%s900 + $0x108] sm:$0xff]
      %v946 = vld [vmem:[%s900 + $0x110] sm:$0xf]
      %v947 = vld [vmem:[%s900 + $0x114] sm:$0xff]
      %v948 = vld [vmem:[%s900 + $0x11c] sm:$0xf]
      %v949 = vld [vmem:[%s900 + $0x120] sm:$0x33]
      %v950 = vld [vmem:[%s900 + $0x128] sm:$0x3]
      %v1001 = vunpack.c.l.b16 %v901
      %v1002 = vunpack.c.h.b16 %v901
      %v1003 = vunpack.c.l.b16 %v902
      %v1004 = vunpack.c.l.b16 %v903
      %v1005 = vunpack.c.h.b16 %v903
      %v1006 = vunpack.c.l.b16 %v904
      %v1007 = vunpack.c.l.b16 %v905
      %v1008 = vunpack.c.h.b16 %v905
      %v1009 = vunpack.c.l.b16 %v906
      %v1010 = vunpack.c.l.b16 %v907
      %v1011 = vunpack.c.h.b16 %v907
      %v1012 = vunpack.c.l.b16 %v908
      %v1013 = vunpack.c.l.b16 %v909
      %v1014 = vunpack.c.h.b16 %v909
      %v1015 = vunpack.c.l.b16 %v910
      %v1016 = vunpack.c.l.b16 %v911
      %v1017 = vunpack.c.h.b16 %v911
      %v1018 = vunpack.c.l.b16 %v912
      %v1019 = vunpack.c.l.b16 %v913
      %v1020 = vunpack.c.h.b16 %v913
      %v1021 = vunpack.c.l.b16 %v914
      %v1022 = vunpack.c.l.b16 %v915
      %v1023 = vunpack.c.h.b16 %v915
      %v1024 = vunpack.c.l.b16 %v916
      %v1025 = vunpack.c.l.b16 %v917
      %v1026 = vunpack.c.h.b16 %v917
      %v1027 = vunpack.c.l.b16 %v918
      %v1028 = vunpack.c.l.b16 %v919
      %v1029 = vunpack.c.h.b16 %v919
      %v1030 = vunpack.c.l.b16 %v920
      %v1031 = vunpack.c.l.b16 %v921
      %v1032 = vunpack.c.h.b16 %v921
      %v1033 = vunpack.c.l.b16 %v922
      %v1034 = vunpack.c.l.b16 %v923
      %v1035 = vunpack.c.h.b16 %v923
      %v1036 = vunpack.c.l.b16 %v924
      %v1037 = vunpack.c.l.b16 %v925
      %v1038 = vunpack.c.h.b16 %v925
      %v1039 = vunpack.c.l.b16 %v926
      %v1040 = vunpack.c.l.b16 %v927
      %v1041 = vunpack.c.h.b16 %v927
      %v1042 = vunpack.c.l.b16 %v928
      %v1043 = vunpack.c.l.b16 %v929
      %v1044 = vunpack.c.h.b16 %v929
      %v1045 = vunpack.c.l.b16 %v930
      %v1046 = vunpack.c.l.b16 %v931
      %v1047 = vunpack.c.h.b16 %v931
      %v1048 = vunpack.c.l.b16 %v932
      %v1049 = vunpack.c.l.b16 %v933
      %v1050 = vunpack.c.h.b16 %v933
      %v1051 = vunpack.c.l.b16 %v934
      %v1052 = vunpack.c.l.b16 %v935
      %v1053 = vunpack.c.h.b16 %v935
      %v1054 = vunpack.c.l.b16 %v936
      %v1055 = vunpack.c.l.b16 %v937
      %v1056 = vunpack.c.h.b16 %v937
      %v1057 = vunpack.c.l.b16 %v938
      %v1058 = vunpack.c.l.b16 %v939
      %v1059 = vunpack.c.h.b16 %v939
      %v1060 = vunpack.c.l.b16 %v940
      %v1061 = vunpack.c.l.b16 %v941
      %v1062 = vunpack.c.h.b16 %v941
      %v1063 = vunpack.c.l.b16 %v942
      %v1064 = vunpack.c.l.b16 %v943
      %v1065 = vunpack.c.h.b16 %v943
      %v1066 = vunpack.c.l.b16 %v944
      %v1067 = vunpack.c.l.b16 %v945
      %v1068 = vunpack.c.h.b16 %v945
      %v1069 = vunpack.c.l.b16 %v946
      %v1070 = vunpack.c.l.b16 %v947
      %v1071 = vunpack.c.h.b16 %v947
      %v1072 = vunpack.c.l.b16 %v948
      %v1073 = vunpack.c.l.b16 %v949
      %v1074 = vunpack.c.h.b16 %v949
      %v1075 = vunpack.c.l.b16 %v950
      %v1076 = vpack.c.b16 %v1004, %v1001
      %v1077 = vpack.c.b16 %v1005, %v1002
      %v1078 = vpack.c.b16 %v1006, %v1003
      %v1079 = vpack.c.b16 %v1010, %v1007
      %v1080 = vpack.c.b16 %v1011, %v1008
      %v1081 = vpack.c.b16 %v1012, %v1009
      %v1082 = vpack.c.b16 %v1016, %v1013
      %v1083 = vpack.c.b16 %v1017, %v1014
      %v1084 = vpack.c.b16 %v1018, %v1015
      %v1085 = vpack.c.b16 %v1022, %v1019
      %v1086 = vpack.c.b16 %v1023, %v1020
      %v1087 = vpack.c.b16 %v1024, %v1021
      %v1088 = vpack.c.b16 %v1028, %v1025
      %v1089 = vpack.c.b16 %v1029, %v1026
      %v1090 = vpack.c.b16 %v1030, %v1027
      %v1091 = vpack.c.b16 %v1034, %v1031
      %v1092 = vpack.c.b16 %v1035, %v1032
      %v1093 = vpack.c.b16 %v1036, %v1033
      %v1094 = vpack.c.b16 %v1040, %v1037
      %v1095 = vpack.c.b16 %v1041, %v1038
      %v1096 = vpack.c.b16 %v1042, %v1039
      %v1097 = vpack.c.b16 %v1046, %v1043
      %v1098 = vpack.c.b16 %v1047, %v1044
      %v1099 = vpack.c.b16 %v1048, %v1045
      %v1100 = vpack.c.b16 %v1052, %v1049
      %v1101 = vpack.c.b16 %v1053, %v1050
      %v1102 = vpack.c.b16 %v1054, %v1051
      %v1103 = vpack.c.b16 %v1058, %v1055
      %v1104 = vpack.c.b16 %v1059, %v1056
      %v1105 = vpack.c.b16 %v1060, %v1057
      %v1106 = vpack.c.b16 %v1064, %v1061
      %v1107 = vpack.c.b16 %v1065, %v1062
      %v1108 = vpack.c.b16 %v1066, %v1063
      %v1109 = vpack.c.b16 %v1070, %v1067
      %v1110 = vpack.c.b16 %v1071, %v1068
      %v1111 = vpack.c.b16 %v1072, %v1069
      %v1112 = vpack.c.b16 %v1073, %v1073
      %v1113 = vpack.c.b16 %v1074, %v1074
      %v1114 = vpack.c.b16 %v1075, %v1075
      %v1142 = vsel %vm563, %v1078, 0
      %v1145 = vsel %vm563, %v1081, 0
      %v1148 = vsel %vm563, %v1084, 0
      %v1151 = vsel %vm563, %v1087, 0
      %v1154 = vsel %vm563, %v1090, 0
      %v1157 = vsel %vm563, %v1093, 0
      %v1160 = vsel %vm563, %v1096, 0
      %v1163 = vsel %vm563, %v1099, 0
      %v1166 = vsel %vm563, %v1102, 0
      %v1169 = vsel %vm563, %v1105, 0
      %v1172 = vsel %vm563, %v1108, 0
      %v1175 = vsel %vm563, %v1111, 0
      %v1178 = vsel %vm563, %v1114, 0
      %1180 = vmatprep.subr.bf16.mxu0 0
      %1181 = vmatpush1.bf16.msra.mxu0 %v527
      %1182 = vmatprep.subr.bf16.mxu0 0
      %1183 = vmatpush1.bf16.msra.mxu0 %v528
      %1184 = vmatprep.subr.bf16.mxu0 0
      %1185 = vmatpush1.bf16.msra.mxu0 %v529
      %1186 = vmatprep.subr.bf16.mxu0 0
      %1187 = vmatpush1.bf16.msra.mxu0 %v530
      %1188 = vmatprep.subr.bf16.mxu0 0
      %1189 = vmatpush1.bf16.msra.mxu0 %v531
      %1190 = vmatprep.subr.bf16.mxu0 0
      %1191 = vmatpush1.bf16.msra.mxu0 %v532
      %1192 = vmatprep.subr.bf16.mxu0 0
      %1193 = vmatpush1.bf16.msra.mxu0 %v533
      %1194 = vmatprep.subr.bf16.mxu0 0
      %1195 = vmatpush1.bf16.msra.mxu0 %v534
      %1196 = vmatprep.subr.bf16.mxu0 0
      %1197 = vmatpush1.bf16.msra.mxu0 %v535
      %1198 = vmatprep.subr.bf16.mxu0 0
      %1199 = vmatpush1.bf16.msra.mxu0 %v536
      %1200 = vmatprep.subr.bf16.mxu0 0
      %1201 = vmatpush1.bf16.msra.mxu0 %v537
      %1202 = vmatprep.subr.bf16.mxu0 0
      %1203 = vmatpush1.bf16.msra.mxu0 %v538
      %1204 = vmatprep.subr.bf16.mxu0 0
      %1205 = vmatpush1.bf16.msra.mxu0 %v539
      %1206 = vmatprep.subr.bf16.mxu0 0
      %1207 = vmatpush1.bf16.msra.mxu0 %v540
      %1208 = vmatprep.subr.bf16.mxu0 0
      %1209 = vmatpush1.bf16.msra.mxu0 %v541
      %1210 = vmatprep.subr.bf16.mxu0 0
      %1211 = vmatpush1.bf16.msra.mxu0 %v542
      %1212 = vmatprep.mubr.bf16.mxu0 %v1077
      %1213 = vmatmul.mubr.bf16.gmra.mrb[0].mxu0 %v1076
      %v1214 = vpop.f32.mrb[0].mxu0
      %v1215 = vadd.f32 %v263, %v1214
      %v1216 = vpop.f32.mrb[0].mxu0
      %v1217 = vpop.f32.mrb[0].mxu0
      %v1218 = vadd.f32 %v263, %v1217
      %v1219 = vpop.f32.mrb[0].mxu0
      %1220 = vmatprep.mubr.bf16.mxu0 %v1080
      %1221 = vmatmul.mubr.bf16.gmra.mrb[0].mxu0 %v1079
      %v1222 = vpop.f32.mrb[0].mxu0
      %v1223 = vadd.f32 %v263, %v1222
      %v1224 = vpop.f32.mrb[0].mxu0
      %v1225 = vpop.f32.mrb[0].mxu0
      %v1226 = vadd.f32 %v263, %v1225
      %v1227 = vpop.f32.mrb[0].mxu0
      %1228 = vmatprep.mubr.bf16.mxu0 %v1083
      %1229 = vmatmul.mubr.bf16.gmra.mrb[0].mxu0 %v1082
      %v1230 = vpop.f32.mrb[0].mxu0
      %v1231 = vadd.f32 %v263, %v1230
      %v1232 = vpop.f32.mrb[0].mxu0
      %v1233 = vpop.f32.mrb[0].mxu0
      %v1234 = vadd.f32 %v263, %v1233
      %v1235 = vpop.f32.mrb[0].mxu0
      %1236 = vmatprep.mubr.bf16.mxu0 %v1086
      %1237 = vmatmul.mubr.bf16.gmra.mrb[0].mxu0 %v1085
      %v1238 = vpop.f32.mrb[0].mxu0
      %v1239 = vadd.f32 %v263, %v1238
      %v1240 = vpop.f32.mrb[0].mxu0
      %v1241 = vpop.f32.mrb[0].mxu0
      %v1242 = vadd.f32 %v263, %v1241
      %v1243 = vpop.f32.mrb[0].mxu0
      %1244 = vmatprep.mubr.bf16.mxu0 %v1089
      %1245 = vmatmul.mubr.bf16.gmra.mrb[0].mxu0 %v1088
      %v1246 = vpop.f32.mrb[0].mxu0
      %v1247 = vadd.f32 %v263, %v1246
      %v1248 = vpop.f32.mrb[0].mxu0
      %v1249 = vpop.f32.mrb[0].mxu0
      %v1250 = vadd.f32 %v263, %v1249
      %v1251 = vpop.f32.mrb[0].mxu0
      %1252 = vmatprep.mubr.bf16.mxu0 %v1092
      %1253 = vmatmul.mubr.bf16.gmra.mrb[0].mxu0 %v1091
      %v1254 = vpop.f32.mrb[0].mxu0
      %v1255 = vadd.f32 %v263, %v1254
      %v1256 = vpop.f32.mrb[0].mxu0
      %v1257 = vpop.f32.mrb[0].mxu0
      %v1258 = vadd.f32 %v263, %v1257
      %v1259 = vpop.f32.mrb[0].mxu0
      %1260 = vmatprep.mubr.bf16.mxu0 %v1095
      %1261 = vmatmul.mubr.bf16.gmra.mrb[0].mxu0 %v1094
      %v1262 = vpop.f32.mrb[0].mxu0
      %v1263 = vadd.f32 %v263, %v1262
      %v1264 = vpop.f32.mrb[0].mxu0
      %v1265 = vpop.f32.mrb[0].mxu0
      %v1266 = vadd.f32 %v263, %v1265
      %v1267 = vpop.f32.mrb[0].mxu0
      %1268 = vmatprep.mubr.bf16.mxu0 %v1098
      %1269 = vmatmul.mubr.bf16.gmra.mrb[0].mxu0 %v1097
      %v1270 = vpop.f32.mrb[0].mxu0
      %v1271 = vadd.f32 %v263, %v1270
      %v1272 = vpop.f32.mrb[0].mxu0
      %v1273 = vpop.f32.mrb[0].mxu0
      %v1274 = vadd.f32 %v263, %v1273
      %v1275 = vpop.f32.mrb[0].mxu0
      %1276 = vmatprep.mubr.bf16.mxu0 %v1101
      %1277 = vmatmul.mubr.bf16.gmra.mrb[0].mxu0 %v1100
      %v1278 = vpop.f32.mrb[0].mxu0
      %v1279 = vadd.f32 %v263, %v1278
      %v1280 = vpop.f32.mrb[0].mxu0
      %v1281 = vpop.f32.mrb[0].mxu0
      %v1282 = vadd.f32 %v263, %v1281
      %v1283 = vpop.f32.mrb[0].mxu0
      %1284 = vmatprep.mubr.bf16.mxu0 %v1104
      %1285 = vmatmul.mubr.bf16.gmra.mrb[0].mxu0 %v1103
      %v1286 = vpop.f32.mrb[0].mxu0
      %v1287 = vadd.f32 %v263, %v1286
      %v1288 = vpop.f32.mrb[0].mxu0
      %v1289 = vpop.f32.mrb[0].mxu0
      %v1290 = vadd.f32 %v263, %v1289
      %v1291 = vpop.f32.mrb[0].mxu0
      %1292 = vmatprep.mubr.bf16.mxu0 %v1107
      %1293 = vmatmul.mubr.bf16.gmra.mrb[0].mxu0 %v1106
      %v1294 = vpop.f32.mrb[0].mxu0
      %v1295 = vadd.f32 %v263, %v1294
      %v1296 = vpop.f32.mrb[0].mxu0
      %v1297 = vpop.f32.mrb[0].mxu0
      %v1298 = vadd.f32 %v263, %v1297
      %v1299 = vpop.f32.mrb[0].mxu0
      %1300 = vmatprep.mubr.bf16.mxu0 %v1110
      %1301 = vmatmul.mubr.bf16.gmra.mrb[0].mxu0 %v1109
      %v1302 = vpop.f32.mrb[0].mxu0
      %v1303 = vadd.f32 %v263, %v1302
      %v1304 = vpop.f32.mrb[0].mxu0
      %v1305 = vpop.f32.mrb[0].mxu0
      %v1306 = vadd.f32 %v263, %v1305
      %v1307 = vpop.f32.mrb[0].mxu0
      %1308 = vmatprep.mubr.bf16.mxu0 %v1113
      %1309 = vmatmul.mubr.bf16.gmra.mrb[0].mxu0 %v1112
      %v1310 = vpop.f32.mrb[0].mxu0
      %v1311 = vadd.f32 %v263, %v1310
      %v1312 = vpop.f32.mrb[0].mxu0
      %v1313 = vpop.f32.mrb[0].mxu0
      %v1314 = vpop.f32.mrb[0].mxu0
      %1315 = vdwg.mxu0
      %1316 = vmatprep.subr.bf16.mxu0 0
      %1317 = vmatpush1.bf16.msra.mxu0 %v543
      %1318 = vmatprep.subr.bf16.mxu0 0
      %1319 = vmatpush1.bf16.msra.mxu0 %v544
      %1320 = vmatprep.subr.bf16.mxu0 0
      %1321 = vmatpush1.bf16.msra.mxu0 0
      %1322 = vmatprep.subr.bf16.mxu0 0
      %1323 = vmatpush1.bf16.msra.mxu0 0
      %1324 = vmatprep.subr.bf16.mxu0 0
      %1325 = vmatpush1.bf16.msra.mxu0 0
      %1326 = vmatprep.subr.bf16.mxu0 0
      %1327 = vmatpush1.bf16.msra.mxu0 0
      %1328 = vmatprep.subr.bf16.mxu0 0
      %1329 = vmatpush1.bf16.msra.mxu0 0
      %1330 = vmatprep.subr.bf16.mxu0 0
      %1331 = vmatpush1.bf16.msra.mxu0 0
      %1332 = vmatprep.subr.bf16.mxu0 0
      %1333 = vmatpush1.bf16.msra.mxu0 0
      %1334 = vmatprep.subr.bf16.mxu0 0
      %1335 = vmatpush1.bf16.msra.mxu0 0
      %1336 = vmatprep.subr.bf16.mxu0 0
      %1337 = vmatpush1.bf16.msra.mxu0 0
      %1338 = vmatprep.subr.bf16.mxu0 0
      %1339 = vmatpush1.bf16.msra.mxu0 0
      %1340 = vmatprep.subr.bf16.mxu0 0
      %1341 = vmatpush1.bf16.msra.mxu0 0
      %1342 = vmatprep.subr.bf16.mxu0 0
      %1343 = vmatpush1.bf16.msra.mxu0 0
      %1344 = vmatprep.subr.bf16.mxu0 0
      %1345 = vmatpush1.bf16.msra.mxu0 0
      %1346 = vmatprep.subr.bf16.mxu0 0
      %1347 = vmatpush1.bf16.msra.mxu0 0
      %1348 = vmatprep.mubr.bf16.mxu0 0
      %1349 = vmatmul.mubr.bf16.gmra.mrb[0].mxu0 %v1142
      %v1350 = vpop.f32.mrb[0].mxu0
      %v1351 = vadd.f32 %v1215, %v1350
      %v1352 = vpop.f32.mrb[0].mxu0
      %v1353 = vpop.f32.mrb[0].mxu0
      %v1354 = vadd.f32 %v1218, %v1353
      %v1355 = vpop.f32.mrb[0].mxu0
      %1356 = vmatprep.mubr.bf16.mxu0 0
      %1357 = vmatmul.mubr.bf16.gmra.mrb[0].mxu0 %v1145
      %v1358 = vpop.f32.mrb[0].mxu0
      %v1359 = vadd.f32 %v1223, %v1358
      %v1360 = vpop.f32.mrb[0].mxu0
      %v1361 = vpop.f32.mrb[0].mxu0
      %v1362 = vadd.f32 %v1226, %v1361
      %v1363 = vpop.f32.mrb[0].mxu0
      %1364 = vmatprep.mubr.bf16.mxu0 0
      %1365 = vmatmul.mubr.bf16.gmra.mrb[0].mxu0 %v1148
      %v1366 = vpop.f32.mrb[0].mxu0
      %v1367 = vadd.f32 %v1231, %v1366
      %v1368 = vpop.f32.mrb[0].mxu0
      %v1369 = vpop.f32.mrb[0].mxu0
      %v1370 = vadd.f32 %v1234, %v1369
      %v1371 = vpop.f32.mrb[0].mxu0
      %1372 = vmatprep.mubr.bf16.mxu0 0
      %1373 = vmatmul.mubr.bf16.gmra.mrb[0].mxu0 %v1151
      %v1374 = vpop.f32.mrb[0].mxu0
      %v1375 = vadd.f32 %v1239, %v1374
      %v1376 = vpop.f32.mrb[0].mxu0
      %v1377 = vpop.f32.mrb[0].mxu0
      %v1378 = vadd.f32 %v1242, %v1377
      %v1379 = vpop.f32.mrb[0].mxu0
      %1380 = vmatprep.mubr.bf16.mxu0 0
      %1381 = vmatmul.mubr.bf16.gmra.mrb[0].mxu0 %v1154
      %v1382 = vpop.f32.mrb[0].mxu0
      %v1383 = vadd.f32 %v1247, %v1382
      %v1384 = vpop.f32.mrb[0].mxu0
      %v1385 = vpop.f32.mrb[0].mxu0
      %v1386 = vadd.f32 %v1250, %v1385
      %v1387 = vpop.f32.mrb[0].mxu0
      %1388 = vmatprep.mubr.bf16.mxu0 0
      %1389 = vmatmul.mubr.bf16.gmra.mrb[0].mxu0 %v1157
      %v1390 = vpop.f32.mrb[0].mxu0
      %v1391 = vadd.f32 %v1255, %v1390
      %v1392 = vpop.f32.mrb[0].mxu0
      %v1393 = vpop.f32.mrb[0].mxu0
      %v1394 = vadd.f32 %v1258, %v1393
      %v1395 = vpop.f32.mrb[0].mxu0
      %1396 = vmatprep.mubr.bf16.mxu0 0
      %1397 = vmatmul.mubr.bf16.gmra.mrb[0].mxu0 %v1160
      %v1398 = vpop.f32.mrb[0].mxu0
      %v1399 = vadd.f32 %v1263, %v1398
      %v1400 = vpop.f32.mrb[0].mxu0
      %v1401 = vpop.f32.mrb[0].mxu0
      %v1402 = vadd.f32 %v1266, %v1401
      %v1403 = vpop.f32.mrb[0].mxu0
      %1404 = vmatprep.mubr.bf16.mxu0 0
      %1405 = vmatmul.mubr.bf16.gmra.mrb[0].mxu0 %v1163
      %v1406 = vpop.f32.mrb[0].mxu0
      %v1407 = vadd.f32 %v1271, %v1406
      %v1408 = vpop.f32.mrb[0].mxu0
      %v1409 = vpop.f32.mrb[0].mxu0
      %v1410 = vadd.f32 %v1274, %v1409
      %v1411 = vpop.f32.mrb[0].mxu0
      %1412 = vmatprep.mubr.bf16.mxu0 0
      %1413 = vmatmul.mubr.bf16.gmra.mrb[0].mxu0 %v1166
      %v1414 = vpop.f32.mrb[0].mxu0
      %v1415 = vadd.f32 %v1279, %v1414
      %v1416 = vpop.f32.mrb[0].mxu0
      %v1417 = vpop.f32.mrb[0].mxu0
      %v1418 = vadd.f32 %v1282, %v1417
      %v1419 = vpop.f32.mrb[0].mxu0
      %1420 = vmatprep.mubr.bf16.mxu0 0
      %1421 = vmatmul.mubr.bf16.gmra.mrb[0].mxu0 %v1169
      %v1422 = vpop.f32.mrb[0].mxu0
      %v1423 = vadd.f32 %v1287, %v1422
      %v1424 = vpop.f32.mrb[0].mxu0
      %v1425 = vpop.f32.mrb[0].mxu0
      %v1426 = vadd.f32 %v1290, %v1425
      %v1427 = vpop.f32.mrb[0].mxu0
      %1428 = vmatprep.mubr.bf16.mxu0 0
      %1429 = vmatmul.mubr.bf16.gmra.mrb[0].mxu0 %v1172
      %v1430 = vpop.f32.mrb[0].mxu0
      %v1431 = vadd.f32 %v1295, %v1430
      %v1432 = vpop.f32.mrb[0].mxu0
      %v1433 = vpop.f32.mrb[0].mxu0
      %v1434 = vadd.f32 %v1298, %v1433
      %v1435 = vpop.f32.mrb[0].mxu0
      %1436 = vmatprep.mubr.bf16.mxu0 0
      %1437 = vmatmul.mubr.bf16.gmra.mrb[0].mxu0 %v1175
      %v1438 = vpop.f32.mrb[0].mxu0
      %v1439 = vadd.f32 %v1303, %v1438
      %v1440 = vpop.f32.mrb[0].mxu0
      %v1441 = vpop.f32.mrb[0].mxu0
      %v1442 = vadd.f32 %v1306, %v1441
      %v1443 = vpop.f32.mrb[0].mxu0
      %1444 = vmatprep.mubr.bf16.mxu0 0
      %1445 = vmatmul.mubr.bf16.gmra.mrb[0].mxu0 %v1178
      %v1446 = vpop.f32.mrb[0].mxu0
      %v1447 = vadd.f32 %v1311, %v1446
      %v1448 = vpop.f32.mrb[0].mxu0
      %v1449 = vpop.f32.mrb[0].mxu0
      %v1450 = vpop.f32.mrb[0].mxu0
      %1451 = vdwg.mxu0
      %v1452 = vmax.f32 %v1351, 0.0
      %v1453 = vmax.f32 %v1354, 0.0
      %v1454 = vmax.f32 %v1359, 0.0
      %v1455 = vmax.f32 %v1362, 0.0
      %v1456 = vmax.f32 %v1367, 0.0
      %v1457 = vmax.f32 %v1370, 0.0
      %v1458 = vmax.f32 %v1375, 0.0
      %v1459 = vmax.f32 %v1378, 0.0
      %v1460 = vmax.f32 %v1383, 0.0
      %v1461 = vmax.f32 %v1386, 0.0
      %v1462 = vmax.f32 %v1391, 0.0
      %v1463 = vmax.f32 %v1394, 0.0
      %v1464 = vmax.f32 %v1399, 0.0
      %v1465 = vmax.f32 %v1402, 0.0
      %v1466 = vmax.f32 %v1407, 0.0
      %v1467 = vmax.f32 %v1410, 0.0
      %v1468 = vmax.f32 %v1415, 0.0
      %v1469 = vmax.f32 %v1418, 0.0
      %v1470 = vmax.f32 %v1423, 0.0
      %v1471 = vmax.f32 %v1426, 0.0
      %v1472 = vmax.f32 %v1431, 0.0
      %v1473 = vmax.f32 %v1434, 0.0
      %v1474 = vmax.f32 %v1439, 0.0
      %v1475 = vmax.f32 %v1442, 0.0
      %v1476 = vmax.f32 %v1447, 0.0
      %v1477 = vmax.f32 %v875, %v1452
      %v1478 = vmax.f32 %v876, %v1453
      %v1479 = vmax.f32 %v877, %v1454
      %v1480 = vmax.f32 %v878, %v1455
      %v1481 = vmax.f32 %v879, %v1456
      %v1482 = vmax.f32 %v880, %v1457
      %v1483 = vmax.f32 %v881, %v1458
      %v1484 = vmax.f32 %v882, %v1459
      %v1485 = vmax.f32 %v883, %v1460
      %v1486 = vmax.f32 %v884, %v1461
      %v1487 = vmax.f32 %v885, %v1462
      %v1488 = vmax.f32 %v886, %v1463
      %v1489 = vmax.f32 %v887, %v1464
      %v1490 = vmax.f32 %v888, %v1465
      %v1491 = vmax.f32 %v889, %v1466
      %v1492 = vmax.f32 %v890, %v1467
      %v1493 = vmax.f32 %v891, %v1468
      %v1494 = vmax.f32 %v892, %v1469
      %v1495 = vmax.f32 %v893, %v1470
      %v1496 = vmax.f32 %v894, %v1471
      %v1497 = vmax.f32 %v895, %v1472
      %v1498 = vmax.f32 %v896, %v1473
      %v1499 = vmax.f32 %v897, %v1474
      %v1500 = vmax.f32 %v898, %v1475
      %v1501 = vmax.f32 %v899, %v1476
      %s1502 = scalar_lea.vmem %s165, 600
      %v1503 = vld [vmem:[%s1502] sm:$0xff]
      %v1504 = vld [vmem:[%s1502 + $0x8] sm:$0xf]
      %v1505 = vld [vmem:[%s1502 + $0xc] sm:$0xff]
      %v1506 = vld [vmem:[%s1502 + $0x14] sm:$0xf]
      %v1507 = vld [vmem:[%s1502 + $0x18] sm:$0xff]
      %v1508 = vld [vmem:[%s1502 + $0x20] sm:$0xf]
      %v1509 = vld [vmem:[%s1502 + $0x24] sm:$0xff]
      %v1510 = vld [vmem:[%s1502 + $0x2c] sm:$0xf]
      %v1511 = vld [vmem:[%s1502 + $0x30] sm:$0xff]
      %v1512 = vld [vmem:[%s1502 + $0x38] sm:$0xf]
      %v1513 = vld [vmem:[%s1502 + $0x3c] sm:$0xff]
      %v1514 = vld [vmem:[%s1502 + $0x44] sm:$0xf]
      %v1515 = vld [vmem:[%s1502 + $0x48] sm:$0xff]
      %v1516 = vld [vmem:[%s1502 + $0x50] sm:$0xf]
      %v1517 = vld [vmem:[%s1502 + $0x54] sm:$0xff]
      %v1518 = vld [vmem:[%s1502 + $0x5c] sm:$0xf]
      %v1519 = vld [vmem:[%s1502 + $0x60] sm:$0xff]
      %v1520 = vld [vmem:[%s1502 + $0x68] sm:$0xf]
      %v1521 = vld [vmem:[%s1502 + $0x6c] sm:$0xff]
      %v1522 = vld [vmem:[%s1502 + $0x74] sm:$0xf]
      %v1523 = vld [vmem:[%s1502 + $0x78] sm:$0xff]
      %v1524 = vld [vmem:[%s1502 + $0x80] sm:$0xf]
      %v1525 = vld [vmem:[%s1502 + $0x84] sm:$0xff]
      %v1526 = vld [vmem:[%s1502 + $0x8c] sm:$0xf]
      %v1527 = vld [vmem:[%s1502 + $0x90] sm:$0xff]
      %v1528 = vld [vmem:[%s1502 + $0x98] sm:$0xf]
      %v1529 = vld [vmem:[%s1502 + $0x9c] sm:$0xff]
      %v1530 = vld [vmem:[%s1502 + $0xa4] sm:$0xf]
      %v1531 = vld [vmem:[%s1502 + $0xa8] sm:$0xff]
      %v1532 = vld [vmem:[%s1502 + $0xb0] sm:$0xf]
      %v1533 = vld [vmem:[%s1502 + $0xb4] sm:$0xff]
      %v1534 = vld [vmem:[%s1502 + $0xbc] sm:$0xf]
      %v1535 = vld [vmem:[%s1502 + $0xc0] sm:$0xff]
      %v1536 = vld [vmem:[%s1502 + $0xc8] sm:$0xf]
      %v1537 = vld [vmem:[%s1502 + $0xcc] sm:$0xff]
      %v1538 = vld [vmem:[%s1502 + $0xd4] sm:$0xf]
      %v1539 = vld [vmem:[%s1502 + $0xd8] sm:$0xff]
      %v1540 = vld [vmem:[%s1502 + $0xe0] sm:$0xf]
      %v1541 = vld [vmem:[%s1502 + $0xe4] sm:$0xff]
      %v1542 = vld [vmem:[%s1502 + $0xec] sm:$0xf]
      %v1543 = vld [vmem:[%s1502 + $0xf0] sm:$0xff]
      %v1544 = vld [vmem:[%s1502 + $0xf8] sm:$0xf]
      %v1545 = vld [vmem:[%s1502 + $0xfc] sm:$0xff]
      %v1546 = vld [vmem:[%s1502 + $0x104] sm:$0xf]
      %v1547 = vld [vmem:[%s1502 + $0x108] sm:$0xff]
      %v1548 = vld [vmem:[%s1502 + $0x110] sm:$0xf]
      %v1549 = vld [vmem:[%s1502 + $0x114] sm:$0xff]
      %v1550 = vld [vmem:[%s1502 + $0x11c] sm:$0xf]
      %v1551 = vld [vmem:[%s1502 + $0x120] sm:$0x33]
      %v1552 = vld [vmem:[%s1502 + $0x128] sm:$0x3]
      %v1603 = vunpack.c.l.b16 %v1503
      %v1604 = vunpack.c.h.b16 %v1503
      %v1605 = vunpack.c.l.b16 %v1504
      %v1606 = vunpack.c.l.b16 %v1505
      %v1607 = vunpack.c.h.b16 %v1505
      %v1608 = vunpack.c.l.b16 %v1506
      %v1609 = vunpack.c.l.b16 %v1507
      %v1610 = vunpack.c.h.b16 %v1507
      %v1611 = vunpack.c.l.b16 %v1508
      %v1612 = vunpack.c.l.b16 %v1509
      %v1613 = vunpack.c.h.b16 %v1509
      %v1614 = vunpack.c.l.b16 %v1510
      %v1615 = vunpack.c.l.b16 %v1511
      %v1616 = vunpack.c.h.b16 %v1511
      %v1617 = vunpack.c.l.b16 %v1512
      %v1618 = vunpack.c.l.b16 %v1513
      %v1619 = vunpack.c.h.b16 %v1513
      %v1620 = vunpack.c.l.b16 %v1514
      %v1621 = vunpack.c.l.b16 %v1515
      %v1622 = vunpack.c.h.b16 %v1515
      %v1623 = vunpack.c.l.b16 %v1516
      %v1624 = vunpack.c.l.b16 %v1517
      %v1625 = vunpack.c.h.b16 %v1517
      %v1626 = vunpack.c.l.b16 %v1518
      %v1627 = vunpack.c.l.b16 %v1519
      %v1628 = vunpack.c.h.b16 %v1519
      %v1629 = vunpack.c.l.b16 %v1520
      %v1630 = vunpack.c.l.b16 %v1521
      %v1631 = vunpack.c.h.b16 %v1521
      %v1632 = vunpack.c.l.b16 %v1522
      %v1633 = vunpack.c.l.b16 %v1523
      %v1634 = vunpack.c.h.b16 %v1523
      %v1635 = vunpack.c.l.b16 %v1524
      %v1636 = vunpack.c.l.b16 %v1525
      %v1637 = vunpack.c.h.b16 %v1525
      %v1638 = vunpack.c.l.b16 %v1526
      %v1639 = vunpack.c.l.b16 %v1527
      %v1640 = vunpack.c.h.b16 %v1527
      %v1641 = vunpack.c.l.b16 %v1528
      %v1642 = vunpack.c.l.b16 %v1529
      %v1643 = vunpack.c.h.b16 %v1529
      %v1644 = vunpack.c.l.b16 %v1530
      %v1645 = vunpack.c.l.b16 %v1531
      %v1646 = vunpack.c.h.b16 %v1531
      %v1647 = vunpack.c.l.b16 %v1532
      %v1648 = vunpack.c.l.b16 %v1533
      %v1649 = vunpack.c.h.b16 %v1533
      %v1650 = vunpack.c.l.b16 %v1534
      %v1651 = vunpack.c.l.b16 %v1535
      %v1652 = vunpack.c.h.b16 %v1535
      %v1653 = vunpack.c.l.b16 %v1536
      %v1654 = vunpack.c.l.b16 %v1537
      %v1655 = vunpack.c.h.b16 %v1537
      %v1656 = vunpack.c.l.b16 %v1538
      %v1657 = vunpack.c.l.b16 %v1539
      %v1658 = vunpack.c.h.b16 %v1539
      %v1659 = vunpack.c.l.b16 %v1540
      %v1660 = vunpack.c.l.b16 %v1541
      %v1661 = vunpack.c.h.b16 %v1541
      %v1662 = vunpack.c.l.b16 %v1542
      %v1663 = vunpack.c.l.b16 %v1543
      %v1664 = vunpack.c.h.b16 %v1543
      %v1665 = vunpack.c.l.b16 %v1544
      %v1666 = vunpack.c.l.b16 %v1545
      %v1667 = vunpack.c.h.b16 %v1545
      %v1668 = vunpack.c.l.b16 %v1546
      %v1669 = vunpack.c.l.b16 %v1547
      %v1670 = vunpack.c.h.b16 %v1547
      %v1671 = vunpack.c.l.b16 %v1548
      %v1672 = vunpack.c.l.b16 %v1549
      %v1673 = vunpack.c.h.b16 %v1549
      %v1674 = vunpack.c.l.b16 %v1550
      %v1675 = vunpack.c.l.b16 %v1551
      %v1676 = vunpack.c.h.b16 %v1551
      %v1677 = vunpack.c.l.b16 %v1552
      %v1678 = vpack.c.b16 %v1606, %v1603
      %v1679 = vpack.c.b16 %v1607, %v1604
      %v1680 = vpack.c.b16 %v1608, %v1605
      %v1681 = vpack.c.b16 %v1612, %v1609
      %v1682 = vpack.c.b16 %v1613, %v1610
      %v1683 = vpack.c.b16 %v1614, %v1611
      %v1684 = vpack.c.b16 %v1618, %v1615
      %v1685 = vpack.c.b16 %v1619, %v1616
      %v1686 = vpack.c.b16 %v1620, %v1617
      %v1687 = vpack.c.b16 %v1624, %v1621
      %v1688 = vpack.c.b16 %v1625, %v1622
      %v1689 = vpack.c.b16 %v1626, %v1623
      %v1690 = vpack.c.b16 %v1630, %v1627
      %v1691 = vpack.c.b16 %v1631, %v1628
      %v1692 = vpack.c.b16 %v1632, %v1629
      %v1693 = vpack.c.b16 %v1636, %v1633
      %v1694 = vpack.c.b16 %v1637, %v1634
      %v1695 = vpack.c.b16 %v1638, %v1635
      %v1696 = vpack.c.b16 %v1642, %v1639
      %v1697 = vpack.c.b16 %v1643, %v1640
      %v1698 = vpack.c.b16 %v1644, %v1641
      %v1699 = vpack.c.b16 %v1648, %v1645
      %v1700 = vpack.c.b16 %v1649, %v1646
      %v1701 = vpack.c.b16 %v1650, %v1647
      %v1702 = vpack.c.b16 %v1654, %v1651
      %v1703 = vpack.c.b16 %v1655, %v1652
      %v1704 = vpack.c.b16 %v1656, %v1653
      %v1705 = vpack.c.b16 %v1660, %v1657
      %v1706 = vpack.c.b16 %v1661, %v1658
      %v1707 = vpack.c.b16 %v1662, %v1659
      %v1708 = vpack.c.b16 %v1666, %v1663
      %v1709 = vpack.c.b16 %v1667, %v1664
      %v1710 = vpack.c.b16 %v1668, %v1665
      %v1711 = vpack.c.b16 %v1672, %v1669
      %v1712 = vpack.c.b16 %v1673, %v1670
      %v1713 = vpack.c.b16 %v1674, %v1671
      %v1714 = vpack.c.b16 %v1675, %v1675
      %v1715 = vpack.c.b16 %v1676, %v1676
      %v1716 = vpack.c.b16 %v1677, %v1677
      %v1744 = vsel %vm563, %v1680, 0
      %v1747 = vsel %vm563, %v1683, 0
      %v1750 = vsel %vm563, %v1686, 0
      %v1753 = vsel %vm563, %v1689, 0
      %v1756 = vsel %vm563, %v1692, 0
      %v1759 = vsel %vm563, %v1695, 0
      %v1762 = vsel %vm563, %v1698, 0
      %v1765 = vsel %vm563, %v1701, 0
      %v1768 = vsel %vm563, %v1704, 0
      %v1771 = vsel %vm563, %v1707, 0
      %v1774 = vsel %vm563, %v1710, 0
      %v1777 = vsel %vm563, %v1713, 0
      %v1780 = vsel %vm563, %v1716, 0
      %1782 = vmatprep.subr.bf16.mxu0 0
      %1783 = vmatpush1.bf16.msra.mxu0 %v527
      %1784 = vmatprep.subr.bf16.mxu0 0
      %1785 = vmatpush1.bf16.msra.mxu0 %v528
      %1786 = vmatprep.subr.bf16.mxu0 0
      %1787 = vmatpush1.bf16.msra.mxu0 %v529
      %1788 = vmatprep.subr.bf16.mxu0 0
      %1789 = vmatpush1.bf16.msra.mxu0 %v530
      %1790 = vmatprep.subr.bf16.mxu0 0
      %1791 = vmatpush1.bf16.msra.mxu0 %v531
      %1792 = vmatprep.subr.bf16.mxu0 0
      %1793 = vmatpush1.bf16.msra.mxu0 %v532
      %1794 = vmatprep.subr.bf16.mxu0 0
      %1795 = vmatpush1.bf16.msra.mxu0 %v533
      %1796 = vmatprep.subr.bf16.mxu0 0
      %1797 = vmatpush1.bf16.msra.mxu0 %v534
      %1798 = vmatprep.subr.bf16.mxu0 0
      %1799 = vmatpush1.bf16.msra.mxu0 %v535
      %1800 = vmatprep.subr.bf16.mxu0 0
      %1801 = vmatpush1.bf16.msra.mxu0 %v536
      %1802 = vmatprep.subr.bf16.mxu0 0
      %1803 = vmatpush1.bf16.msra.mxu0 %v537
      %1804 = vmatprep.subr.bf16.mxu0 0
      %1805 = vmatpush1.bf16.msra.mxu0 %v538
      %1806 = vmatprep.subr.bf16.mxu0 0
      %1807 = vmatpush1.bf16.msra.mxu0 %v539
      %1808 = vmatprep.subr.bf16.mxu0 0
      %1809 = vmatpush1.bf16.msra.mxu0 %v540
      %1810 = vmatprep.subr.bf16.mxu0 0
      %1811 = vmatpush1.bf16.msra.mxu0 %v541
      %1812 = vmatprep.subr.bf16.mxu0 0
      %1813 = vmatpush1.bf16.msra.mxu0 %v542
      %1814 = vmatprep.mubr.bf16.mxu0 %v1679
      %1815 = vmatmul.mubr.bf16.gmra.mrb[0].mxu0 %v1678
      %v1816 = vpop.f32.mrb[0].mxu0
      %v1817 = vadd.f32 %v263, %v1816
      %v1818 = vpop.f32.mrb[0].mxu0
      %v1819 = vpop.f32.mrb[0].mxu0
      %v1820 = vadd.f32 %v263, %v1819
      %v1821 = vpop.f32.mrb[0].mxu0
      %1822 = vmatprep.mubr.bf16.mxu0 %v1682
      %1823 = vmatmul.mubr.bf16.gmra.mrb[0].mxu0 %v1681
      %v1824 = vpop.f32.mrb[0].mxu0
      %v1825 = vadd.f32 %v263, %v1824
      %v1826 = vpop.f32.mrb[0].mxu0
      %v1827 = vpop.f32.mrb[0].mxu0
      %v1828 = vadd.f32 %v263, %v1827
      %v1829 = vpop.f32.mrb[0].mxu0
      %1830 = vmatprep.mubr.bf16.mxu0 %v1685
      %1831 = vmatmul.mubr.bf16.gmra.mrb[0].mxu0 %v1684
      %v1832 = vpop.f32.mrb[0].mxu0
      %v1833 = vadd.f32 %v263, %v1832
      %v1834 = vpop.f32.mrb[0].mxu0
      %v1835 = vpop.f32.mrb[0].mxu0
      %v1836 = vadd.f32 %v263, %v1835
      %v1837 = vpop.f32.mrb[0].mxu0
      %1838 = vmatprep.mubr.bf16.mxu0 %v1688
      %1839 = vmatmul.mubr.bf16.gmra.mrb[0].mxu0 %v1687
      %v1840 = vpop.f32.mrb[0].mxu0
      %v1841 = vadd.f32 %v263, %v1840
      %v1842 = vpop.f32.mrb[0].mxu0
      %v1843 = vpop.f32.mrb[0].mxu0
      %v1844 = vadd.f32 %v263, %v1843
      %v1845 = vpop.f32.mrb[0].mxu0
      %1846 = vmatprep.mubr.bf16.mxu0 %v1691
      %1847 = vmatmul.mubr.bf16.gmra.mrb[0].mxu0 %v1690
      %v1848 = vpop.f32.mrb[0].mxu0
      %v1849 = vadd.f32 %v263, %v1848
      %v1850 = vpop.f32.mrb[0].mxu0
      %v1851 = vpop.f32.mrb[0].mxu0
      %v1852 = vadd.f32 %v263, %v1851
      %v1853 = vpop.f32.mrb[0].mxu0
      %1854 = vmatprep.mubr.bf16.mxu0 %v1694
      %1855 = vmatmul.mubr.bf16.gmra.mrb[0].mxu0 %v1693
      %v1856 = vpop.f32.mrb[0].mxu0
      %v1857 = vadd.f32 %v263, %v1856
      %v1858 = vpop.f32.mrb[0].mxu0
      %v1859 = vpop.f32.mrb[0].mxu0
      %v1860 = vadd.f32 %v263, %v1859
      %v1861 = vpop.f32.mrb[0].mxu0
      %1862 = vmatprep.mubr.bf16.mxu0 %v1697
      %1863 = vmatmul.mubr.bf16.gmra.mrb[0].mxu0 %v1696
      %v1864 = vpop.f32.mrb[0].mxu0
      %v1865 = vadd.f32 %v263, %v1864
      %v1866 = vpop.f32.mrb[0].mxu0
      %v1867 = vpop.f32.mrb[0].mxu0
      %v1868 = vadd.f32 %v263, %v1867
      %v1869 = vpop.f32.mrb[0].mxu0
      %1870 = vmatprep.mubr.bf16.mxu0 %v1700
      %1871 = vmatmul.mubr.bf16.gmra.mrb[0].mxu0 %v1699
      %v1872 = vpop.f32.mrb[0].mxu0
      %v1873 = vadd.f32 %v263, %v1872
      %v1874 = vpop.f32.mrb[0].mxu0
      %v1875 = vpop.f32.mrb[0].mxu0
      %v1876 = vadd.f32 %v263, %v1875
      %v1877 = vpop.f32.mrb[0].mxu0
      %1878 = vmatprep.mubr.bf16.mxu0 %v1703
      %1879 = vmatmul.mubr.bf16.gmra.mrb[0].mxu0 %v1702
      %v1880 = vpop.f32.mrb[0].mxu0
      %v1881 = vadd.f32 %v263, %v1880
      %v1882 = vpop.f32.mrb[0].mxu0
      %v1883 = vpop.f32.mrb[0].mxu0
      %v1884 = vadd.f32 %v263, %v1883
      %v1885 = vpop.f32.mrb[0].mxu0
      %1886 = vmatprep.mubr.bf16.mxu0 %v1706
      %1887 = vmatmul.mubr.bf16.gmra.mrb[0].mxu0 %v1705
      %v1888 = vpop.f32.mrb[0].mxu0
      %v1889 = vadd.f32 %v263, %v1888
      %v1890 = vpop.f32.mrb[0].mxu0
      %v1891 = vpop.f32.mrb[0].mxu0
      %v1892 = vadd.f32 %v263, %v1891
      %v1893 = vpop.f32.mrb[0].mxu0
      %1894 = vmatprep.mubr.bf16.mxu0 %v1709
      %1895 = vmatmul.mubr.bf16.gmra.mrb[0].mxu0 %v1708
      %v1896 = vpop.f32.mrb[0].mxu0
      %v1897 = vadd.f32 %v263, %v1896
      %v1898 = vpop.f32.mrb[0].mxu0
      %v1899 = vpop.f32.mrb[0].mxu0
      %v1900 = vadd.f32 %v263, %v1899
      %v1901 = vpop.f32.mrb[0].mxu0
      %1902 = vmatprep.mubr.bf16.mxu0 %v1712
      %1903 = vmatmul.mubr.bf16.gmra.mrb[0].mxu0 %v1711
      %v1904 = vpop.f32.mrb[0].mxu0
      %v1905 = vadd.f32 %v263, %v1904
      %v1906 = vpop.f32.mrb[0].mxu0
      %v1907 = vpop.f32.mrb[0].mxu0
      %v1908 = vadd.f32 %v263, %v1907
      %v1909 = vpop.f32.mrb[0].mxu0
      %1910 = vmatprep.mubr.bf16.mxu0 %v1715
      %1911 = vmatmul.mubr.bf16.gmra.mrb[0].mxu0 %v1714
      %v1912 = vpop.f32.mrb[0].mxu0
      %v1913 = vadd.f32 %v263, %v1912
      %v1914 = vpop.f32.mrb[0].mxu0
      %v1915 = vpop.f32.mrb[0].mxu0
      %v1916 = vpop.f32.mrb[0].mxu0
      %1917 = vdwg.mxu0
      %1918 = vmatprep.subr.bf16.mxu0 0
      %1919 = vmatpush1.bf16.msra.mxu0 %v543
      %1920 = vmatprep.subr.bf16.mxu0 0
      %1921 = vmatpush1.bf16.msra.mxu0 %v544
      %1922 = vmatprep.subr.bf16.mxu0 0
      %1923 = vmatpush1.bf16.msra.mxu0 0
      %1924 = vmatprep.subr.bf16.mxu0 0
      %1925 = vmatpush1.bf16.msra.mxu0 0
      %1926 = vmatprep.subr.bf16.mxu0 0
      %1927 = vmatpush1.bf16.msra.mxu0 0
      %1928 = vmatprep.subr.bf16.mxu0 0
      %1929 = vmatpush1.bf16.msra.mxu0 0
      %1930 = vmatprep.subr.bf16.mxu0 0
      %1931 = vmatpush1.bf16.msra.mxu0 0
      %1932 = vmatprep.subr.bf16.mxu0 0
      %1933 = vmatpush1.bf16.msra.mxu0 0
      %1934 = vmatprep.subr.bf16.mxu0 0
      %1935 = vmatpush1.bf16.msra.mxu0 0
      %1936 = vmatprep.subr.bf16.mxu0 0
      %1937 = vmatpush1.bf16.msra.mxu0 0
      %1938 = vmatprep.subr.bf16.mxu0 0
      %1939 = vmatpush1.bf16.msra.mxu0 0
      %1940 = vmatprep.subr.bf16.mxu0 0
      %1941 = vmatpush1.bf16.msra.mxu0 0
      %1942 = vmatprep.subr.bf16.mxu0 0
      %1943 = vmatpush1.bf16.msra.mxu0 0
      %1944 = vmatprep.subr.bf16.mxu0 0
      %1945 = vmatpush1.bf16.msra.mxu0 0
      %1946 = vmatprep.subr.bf16.mxu0 0
      %1947 = vmatpush1.bf16.msra.mxu0 0
      %1948 = vmatprep.subr.bf16.mxu0 0
      %1949 = vmatpush1.bf16.msra.mxu0 0
      %1950 = vmatprep.mubr.bf16.mxu0 0
      %1951 = vmatmul.mubr.bf16.gmra.mrb[0].mxu0 %v1744
      %v1952 = vpop.f32.mrb[0].mxu0
      %v1953 = vadd.f32 %v1817, %v1952
      %v1954 = vpop.f32.mrb[0].mxu0
      %v1955 = vpop.f32.mrb[0].mxu0
      %v1956 = vadd.f32 %v1820, %v1955
      %v1957 = vpop.f32.mrb[0].mxu0
      %1958 = vmatprep.mubr.bf16.mxu0 0
      %1959 = vmatmul.mubr.bf16.gmra.mrb[0].mxu0 %v1747
      %v1960 = vpop.f32.mrb[0].mxu0
      %v1961 = vadd.f32 %v1825, %v1960
      %v1962 = vpop.f32.mrb[0].mxu0
      %v1963 = vpop.f32.mrb[0].mxu0
      %v1964 = vadd.f32 %v1828, %v1963
      %v1965 = vpop.f32.mrb[0].mxu0
      %1966 = vmatprep.mubr.bf16.mxu0 0
      %1967 = vmatmul.mubr.bf16.gmra.mrb[0].mxu0 %v1750
      %v1968 = vpop.f32.mrb[0].mxu0
      %v1969 = vadd.f32 %v1833, %v1968
      %v1970 = vpop.f32.mrb[0].mxu0
      %v1971 = vpop.f32.mrb[0].mxu0
      %v1972 = vadd.f32 %v1836, %v1971
      %v1973 = vpop.f32.mrb[0].mxu0
      %1974 = vmatprep.mubr.bf16.mxu0 0
      %1975 = vmatmul.mubr.bf16.gmra.mrb[0].mxu0 %v1753
      %v1976 = vpop.f32.mrb[0].mxu0
      %v1977 = vadd.f32 %v1841, %v1976
      %v1978 = vpop.f32.mrb[0].mxu0
      %v1979 = vpop.f32.mrb[0].mxu0
      %v1980 = vadd.f32 %v1844, %v1979
      %v1981 = vpop.f32.mrb[0].mxu0
      %1982 = vmatprep.mubr.bf16.mxu0 0
      %1983 = vmatmul.mubr.bf16.gmra.mrb[0].mxu0 %v1756
      %v1984 = vpop.f32.mrb[0].mxu0
      %v1985 = vadd.f32 %v1849, %v1984
      %v1986 = vpop.f32.mrb[0].mxu0
      %v1987 = vpop.f32.mrb[0].mxu0
      %v1988 = vadd.f32 %v1852, %v1987
      %v1989 = vpop.f32.mrb[0].mxu0
      %1990 = vmatprep.mubr.bf16.mxu0 0
      %1991 = vmatmul.mubr.bf16.gmra.mrb[0].mxu0 %v1759
      %v1992 = vpop.f32.mrb[0].mxu0
      %v1993 = vadd.f32 %v1857, %v1992
      %v1994 = vpop.f32.mrb[0].mxu0
      %v1995 = vpop.f32.mrb[0].mxu0
      %v1996 = vadd.f32 %v1860, %v1995
      %v1997 = vpop.f32.mrb[0].mxu0
      %1998 = vmatprep.mubr.bf16.mxu0 0
      %1999 = vmatmul.mubr.bf16.gmra.mrb[0].mxu0 %v1762
      %v2000 = vpop.f32.mrb[0].mxu0
      %v2001 = vadd.f32 %v1865, %v2000
      %v2002 = vpop.f32.mrb[0].mxu0
      %v2003 = vpop.f32.mrb[0].mxu0
      %v2004 = vadd.f32 %v1868, %v2003
      %v2005 = vpop.f32.mrb[0].mxu0
      %2006 = vmatprep.mubr.bf16.mxu0 0
      %2007 = vmatmul.mubr.bf16.gmra.mrb[0].mxu0 %v1765
      %v2008 = vpop.f32.mrb[0].mxu0
      %v2009 = vadd.f32 %v1873, %v2008
      %v2010 = vpop.f32.mrb[0].mxu0
      %v2011 = vpop.f32.mrb[0].mxu0
      %v2012 = vadd.f32 %v1876, %v2011
      %v2013 = vpop.f32.mrb[0].mxu0
      %2014 = vmatprep.mubr.bf16.mxu0 0
      %2015 = vmatmul.mubr.bf16.gmra.mrb[0].mxu0 %v1768
      %v2016 = vpop.f32.mrb[0].mxu0
      %v2017 = vadd.f32 %v1881, %v2016
      %v2018 = vpop.f32.mrb[0].mxu0
      %v2019 = vpop.f32.mrb[0].mxu0
      %v2020 = vadd.f32 %v1884, %v2019
      %v2021 = vpop.f32.mrb[0].mxu0
      %2022 = vmatprep.mubr.bf16.mxu0 0
      %2023 = vmatmul.mubr.bf16.gmra.mrb[0].mxu0 %v1771
      %v2024 = vpop.f32.mrb[0].mxu0
      %v2025 = vadd.f32 %v1889, %v2024
      %v2026 = vpop.f32.mrb[0].mxu0
      %v2027 = vpop.f32.mrb[0].mxu0
      %v2028 = vadd.f32 %v1892, %v2027
      %v2029 = vpop.f32.mrb[0].mxu0
      %2030 = vmatprep.mubr.bf16.mxu0 0
      %2031 = vmatmul.mubr.bf16.gmra.mrb[0].mxu0 %v1774
      %v2032 = vpop.f32.mrb[0].mxu0
      %v2033 = vadd.f32 %v1897, %v2032
      %v2034 = vpop.f32.mrb[0].mxu0
      %v2035 = vpop.f32.mrb[0].mxu0
      %v2036 = vadd.f32 %v1900, %v2035
      %v2037 = vpop.f32.mrb[0].mxu0
      %2038 = vmatprep.mubr.bf16.mxu0 0
      %2039 = vmatmul.mubr.bf16.gmra.mrb[0].mxu0 %v1777
      %v2040 = vpop.f32.mrb[0].mxu0
      %v2041 = vadd.f32 %v1905, %v2040
      %v2042 = vpop.f32.mrb[0].mxu0
      %v2043 = vpop.f32.mrb[0].mxu0
      %v2044 = vadd.f32 %v1908, %v2043
      %v2045 = vpop.f32.mrb[0].mxu0
      %2046 = vmatprep.mubr.bf16.mxu0 0
      %2047 = vmatmul.mubr.bf16.gmra.mrb[0].mxu0 %v1780
      %v2048 = vpop.f32.mrb[0].mxu0
      %v2049 = vadd.f32 %v1913, %v2048
      %v2050 = vpop.f32.mrb[0].mxu0
      %v2051 = vpop.f32.mrb[0].mxu0
      %v2052 = vpop.f32.mrb[0].mxu0
      %2053 = vdwg.mxu0
      %v2054 = vmax.f32 %v1953, 0.0
      %v2055 = vmax.f32 %v1956, 0.0
      %v2056 = vmax.f32 %v1961, 0.0
      %v2057 = vmax.f32 %v1964, 0.0
      %v2058 = vmax.f32 %v1969, 0.0
      %v2059 = vmax.f32 %v1972, 0.0
      %v2060 = vmax.f32 %v1977, 0.0
      %v2061 = vmax.f32 %v1980, 0.0
      %v2062 = vmax.f32 %v1985, 0.0
      %v2063 = vmax.f32 %v1988, 0.0
      %v2064 = vmax.f32 %v1993, 0.0
      %v2065 = vmax.f32 %v1996, 0.0
      %v2066 = vmax.f32 %v2001, 0.0
      %v2067 = vmax.f32 %v2004, 0.0
      %v2068 = vmax.f32 %v2009, 0.0
      %v2069 = vmax.f32 %v2012, 0.0
      %v2070 = vmax.f32 %v2017, 0.0
      %v2071 = vmax.f32 %v2020, 0.0
      %v2072 = vmax.f32 %v2025, 0.0
      %v2073 = vmax.f32 %v2028, 0.0
      %v2074 = vmax.f32 %v2033, 0.0
      %v2075 = vmax.f32 %v2036, 0.0
      %v2076 = vmax.f32 %v2041, 0.0
      %v2077 = vmax.f32 %v2044, 0.0
      %v2078 = vmax.f32 %v2049, 0.0
      %s2079 = scalar_lea.vmem %s165, 900
      %v2080 = vld [vmem:[%s2079] sm:$0xff]
      %v2081 = vld [vmem:[%s2079 + $0x8] sm:$0xf]
      %v2082 = vld [vmem:[%s2079 + $0xc] sm:$0xff]
      %v2083 = vld [vmem:[%s2079 + $0x14] sm:$0xf]
      %v2084 = vld [vmem:[%s2079 + $0x18] sm:$0xff]
      %v2085 = vld [vmem:[%s2079 + $0x20] sm:$0xf]
      %v2086 = vld [vmem:[%s2079 + $0x24] sm:$0xff]
      %v2087 = vld [vmem:[%s2079 + $0x2c] sm:$0xf]
      %v2088 = vld [vmem:[%s2079 + $0x30] sm:$0xff]
      %v2089 = vld [vmem:[%s2079 + $0x38] sm:$0xf]
      %v2090 = vld [vmem:[%s2079 + $0x3c] sm:$0xff]
      %v2091 = vld [vmem:[%s2079 + $0x44] sm:$0xf]
      %v2092 = vld [vmem:[%s2079 + $0x48] sm:$0xff]
      %v2093 = vld [vmem:[%s2079 + $0x50] sm:$0xf]
      %v2094 = vld [vmem:[%s2079 + $0x54] sm:$0xff]
      %v2095 = vld [vmem:[%s2079 + $0x5c] sm:$0xf]
      %v2096 = vld [vmem:[%s2079 + $0x60] sm:$0xff]
      %v2097 = vld [vmem:[%s2079 + $0x68] sm:$0xf]
      %v2098 = vld [vmem:[%s2079 + $0x6c] sm:$0xff]
      %v2099 = vld [vmem:[%s2079 + $0x74] sm:$0xf]
      %v2100 = vld [vmem:[%s2079 + $0x78] sm:$0xff]
      %v2101 = vld [vmem:[%s2079 + $0x80] sm:$0xf]
      %v2102 = vld [vmem:[%s2079 + $0x84] sm:$0xff]
      %v2103 = vld [vmem:[%s2079 + $0x8c] sm:$0xf]
      %v2104 = vld [vmem:[%s2079 + $0x90] sm:$0xff]
      %v2105 = vld [vmem:[%s2079 + $0x98] sm:$0xf]
      %v2106 = vld [vmem:[%s2079 + $0x9c] sm:$0xff]
      %v2107 = vld [vmem:[%s2079 + $0xa4] sm:$0xf]
      %v2108 = vld [vmem:[%s2079 + $0xa8] sm:$0xff]
      %v2109 = vld [vmem:[%s2079 + $0xb0] sm:$0xf]
      %v2110 = vld [vmem:[%s2079 + $0xb4] sm:$0xff]
      %v2111 = vld [vmem:[%s2079 + $0xbc] sm:$0xf]
      %v2112 = vld [vmem:[%s2079 + $0xc0] sm:$0xff]
      %v2113 = vld [vmem:[%s2079 + $0xc8] sm:$0xf]
      %v2114 = vld [vmem:[%s2079 + $0xcc] sm:$0xff]
      %v2115 = vld [vmem:[%s2079 + $0xd4] sm:$0xf]
      %v2116 = vld [vmem:[%s2079 + $0xd8] sm:$0xff]
      %v2117 = vld [vmem:[%s2079 + $0xe0] sm:$0xf]
      %v2118 = vld [vmem:[%s2079 + $0xe4] sm:$0xff]
      %v2119 = vld [vmem:[%s2079 + $0xec] sm:$0xf]
      %v2120 = vld [vmem:[%s2079 + $0xf0] sm:$0xff]
      %v2121 = vld [vmem:[%s2079 + $0xf8] sm:$0xf]
      %v2122 = vld [vmem:[%s2079 + $0xfc] sm:$0xff]
      %v2123 = vld [vmem:[%s2079 + $0x104] sm:$0xf]
      %v2124 = vld [vmem:[%s2079 + $0x108] sm:$0xff]
      %v2125 = vld [vmem:[%s2079 + $0x110] sm:$0xf]
      %v2126 = vld [vmem:[%s2079 + $0x114] sm:$0xff]
      %v2127 = vld [vmem:[%s2079 + $0x11c] sm:$0xf]
      %v2128 = vld [vmem:[%s2079 + $0x120] sm:$0x33]
      %v2129 = vld [vmem:[%s2079 + $0x128] sm:$0x3]
      %v2180 = vunpack.c.l.b16 %v2080
      %v2181 = vunpack.c.h.b16 %v2080
      %v2182 = vunpack.c.l.b16 %v2081
      %v2183 = vunpack.c.l.b16 %v2082
      %v2184 = vunpack.c.h.b16 %v2082
      %v2185 = vunpack.c.l.b16 %v2083
      %v2186 = vunpack.c.l.b16 %v2084
      %v2187 = vunpack.c.h.b16 %v2084
      %v2188 = vunpack.c.l.b16 %v2085
      %v2189 = vunpack.c.l.b16 %v2086
      %v2190 = vunpack.c.h.b16 %v2086
      %v2191 = vunpack.c.l.b16 %v2087
      %v2192 = vunpack.c.l.b16 %v2088
      %v2193 = vunpack.c.h.b16 %v2088
      %v2194 = vunpack.c.l.b16 %v2089
      %v2195 = vunpack.c.l.b16 %v2090
      %v2196 = vunpack.c.h.b16 %v2090
      %v2197 = vunpack.c.l.b16 %v2091
      %v2198 = vunpack.c.l.b16 %v2092
      %v2199 = vunpack.c.h.b16 %v2092
      %v2200 = vunpack.c.l.b16 %v2093
      %v2201 = vunpack.c.l.b16 %v2094
      %v2202 = vunpack.c.h.b16 %v2094
      %v2203 = vunpack.c.l.b16 %v2095
      %v2204 = vunpack.c.l.b16 %v2096
      %v2205 = vunpack.c.h.b16 %v2096
      %v2206 = vunpack.c.l.b16 %v2097
      %v2207 = vunpack.c.l.b16 %v2098
      %v2208 = vunpack.c.h.b16 %v2098
      %v2209 = vunpack.c.l.b16 %v2099
      %v2210 = vunpack.c.l.b16 %v2100
      %v2211 = vunpack.c.h.b16 %v2100
      %v2212 = vunpack.c.l.b16 %v2101
      %v2213 = vunpack.c.l.b16 %v2102
      %v2214 = vunpack.c.h.b16 %v2102
      %v2215 = vunpack.c.l.b16 %v2103
      %v2216 = vunpack.c.l.b16 %v2104
      %v2217 = vunpack.c.h.b16 %v2104
      %v2218 = vunpack.c.l.b16 %v2105
      %v2219 = vunpack.c.l.b16 %v2106
      %v2220 = vunpack.c.h.b16 %v2106
      %v2221 = vunpack.c.l.b16 %v2107
      %v2222 = vunpack.c.l.b16 %v2108
      %v2223 = vunpack.c.h.b16 %v2108
      %v2224 = vunpack.c.l.b16 %v2109
      %v2225 = vunpack.c.l.b16 %v2110
      %v2226 = vunpack.c.h.b16 %v2110
      %v2227 = vunpack.c.l.b16 %v2111
      %v2228 = vunpack.c.l.b16 %v2112
      %v2229 = vunpack.c.h.b16 %v2112
      %v2230 = vunpack.c.l.b16 %v2113
      %v2231 = vunpack.c.l.b16 %v2114
      %v2232 = vunpack.c.h.b16 %v2114
      %v2233 = vunpack.c.l.b16 %v2115
      %v2234 = vunpack.c.l.b16 %v2116
      %v2235 = vunpack.c.h.b16 %v2116
      %v2236 = vunpack.c.l.b16 %v2117
      %v2237 = vunpack.c.l.b16 %v2118
      %v2238 = vunpack.c.h.b16 %v2118
      %v2239 = vunpack.c.l.b16 %v2119
      %v2240 = vunpack.c.l.b16 %v2120
      %v2241 = vunpack.c.h.b16 %v2120
      %v2242 = vunpack.c.l.b16 %v2121
      %v2243 = vunpack.c.l.b16 %v2122
      %v2244 = vunpack.c.h.b16 %v2122
      %v2245 = vunpack.c.l.b16 %v2123
      %v2246 = vunpack.c.l.b16 %v2124
      %v2247 = vunpack.c.h.b16 %v2124
      %v2248 = vunpack.c.l.b16 %v2125
      %v2249 = vunpack.c.l.b16 %v2126
      %v2250 = vunpack.c.h.b16 %v2126
      %v2251 = vunpack.c.l.b16 %v2127
      %v2252 = vunpack.c.l.b16 %v2128
      %v2253 = vunpack.c.h.b16 %v2128
      %v2254 = vunpack.c.l.b16 %v2129
      %v2255 = vpack.c.b16 %v2183, %v2180
      %v2256 = vpack.c.b16 %v2184, %v2181
      %v2257 = vpack.c.b16 %v2185, %v2182
      %v2258 = vpack.c.b16 %v2189, %v2186
      %v2259 = vpack.c.b16 %v2190, %v2187
      %v2260 = vpack.c.b16 %v2191, %v2188
      %v2261 = vpack.c.b16 %v2195, %v2192
      %v2262 = vpack.c.b16 %v2196, %v2193
      %v2263 = vpack.c.b16 %v2197, %v2194
      %v2264 = vpack.c.b16 %v2201, %v2198
      %v2265 = vpack.c.b16 %v2202, %v2199
      %v2266 = vpack.c.b16 %v2203, %v2200
      %v2267 = vpack.c.b16 %v2207, %v2204
      %v2268 = vpack.c.b16 %v2208, %v2205
      %v2269 = vpack.c.b16 %v2209, %v2206
      %v2270 = vpack.c.b16 %v2213, %v2210
      %v2271 = vpack.c.b16 %v2214, %v2211
      %v2272 = vpack.c.b16 %v2215, %v2212
      %v2273 = vpack.c.b16 %v2219, %v2216
      %v2274 = vpack.c.b16 %v2220, %v2217
      %v2275 = vpack.c.b16 %v2221, %v2218
      %v2276 = vpack.c.b16 %v2225, %v2222
      %v2277 = vpack.c.b16 %v2226, %v2223
      %v2278 = vpack.c.b16 %v2227, %v2224
      %v2279 = vpack.c.b16 %v2231, %v2228
      %v2280 = vpack.c.b16 %v2232, %v2229
      %v2281 = vpack.c.b16 %v2233, %v2230
      %v2282 = vpack.c.b16 %v2237, %v2234
      %v2283 = vpack.c.b16 %v2238, %v2235
      %v2284 = vpack.c.b16 %v2239, %v2236
      %v2285 = vpack.c.b16 %v2243, %v2240
      %v2286 = vpack.c.b16 %v2244, %v2241
      %v2287 = vpack.c.b16 %v2245, %v2242
      %v2288 = vpack.c.b16 %v2249, %v2246
      %v2289 = vpack.c.b16 %v2250, %v2247
      %v2290 = vpack.c.b16 %v2251, %v2248
      %v2291 = vpack.c.b16 %v2252, %v2252
      %v2292 = vpack.c.b16 %v2253, %v2253
      %v2293 = vpack.c.b16 %v2254, %v2254
      %v2321 = vsel %vm563, %v2257, 0
      %v2324 = vsel %vm563, %v2260, 0
      %v2327 = vsel %vm563, %v2263, 0
      %v2330 = vsel %vm563, %v2266, 0
      %v2333 = vsel %vm563, %v2269, 0
      %v2336 = vsel %vm563, %v2272, 0
      %v2339 = vsel %vm563, %v2275, 0
      %v2342 = vsel %vm563, %v2278, 0
      %v2345 = vsel %vm563, %v2281, 0
      %v2348 = vsel %vm563, %v2284, 0
      %v2351 = vsel %vm563, %v2287, 0
      %v2354 = vsel %vm563, %v2290, 0
      %v2357 = vsel %vm563, %v2293, 0
      %2359 = vmatprep.subr.bf16.mxu0 0
      %2360 = vmatpush1.bf16.msra.mxu0 %v527
      %2361 = vmatprep.subr.bf16.mxu0 0
      %2362 = vmatpush1.bf16.msra.mxu0 %v528
      %2363 = vmatprep.subr.bf16.mxu0 0
      %2364 = vmatpush1.bf16.msra.mxu0 %v529
      %2365 = vmatprep.subr.bf16.mxu0 0
      %2366 = vmatpush1.bf16.msra.mxu0 %v530
      %2367 = vmatprep.subr.bf16.mxu0 0
      %2368 = vmatpush1.bf16.msra.mxu0 %v531
      %2369 = vmatprep.subr.bf16.mxu0 0
      %2370 = vmatpush1.bf16.msra.mxu0 %v532
      %2371 = vmatprep.subr.bf16.mxu0 0
      %2372 = vmatpush1.bf16.msra.mxu0 %v533
      %2373 = vmatprep.subr.bf16.mxu0 0
      %2374 = vmatpush1.bf16.msra.mxu0 %v534
      %2375 = vmatprep.subr.bf16.mxu0 0
      %2376 = vmatpush1.bf16.msra.mxu0 %v535
      %2377 = vmatprep.subr.bf16.mxu0 0
      %2378 = vmatpush1.bf16.msra.mxu0 %v536
      %2379 = vmatprep.subr.bf16.mxu0 0
      %2380 = vmatpush1.bf16.msra.mxu0 %v537
      %2381 = vmatprep.subr.bf16.mxu0 0
      %2382 = vmatpush1.bf16.msra.mxu0 %v538
      %2383 = vmatprep.subr.bf16.mxu0 0
      %2384 = vmatpush1.bf16.msra.mxu0 %v539
      %2385 = vmatprep.subr.bf16.mxu0 0
      %2386 = vmatpush1.bf16.msra.mxu0 %v540
      %2387 = vmatprep.subr.bf16.mxu0 0
      %2388 = vmatpush1.bf16.msra.mxu0 %v541
      %2389 = vmatprep.subr.bf16.mxu0 0
      %2390 = vmatpush1.bf16.msra.mxu0 %v542
      %2391 = vmatprep.mubr.bf16.mxu0 %v2256
      %2392 = vmatmul.mubr.bf16.gmra.mrb[0].mxu0 %v2255
      %v2393 = vpop.f32.mrb[0].mxu0
      %v2394 = vadd.f32 %v263, %v2393
      %v2395 = vpop.f32.mrb[0].mxu0
      %v2396 = vpop.f32.mrb[0].mxu0
      %v2397 = vadd.f32 %v263, %v2396
      %v2398 = vpop.f32.mrb[0].mxu0
      %2399 = vmatprep.mubr.bf16.mxu0 %v2259
      %2400 = vmatmul.mubr.bf16.gmra.mrb[0].mxu0 %v2258
      %v2401 = vpop.f32.mrb[0].mxu0
      %v2402 = vadd.f32 %v263, %v2401
      %v2403 = vpop.f32.mrb[0].mxu0
      %v2404 = vpop.f32.mrb[0].mxu0
      %v2405 = vadd.f32 %v263, %v2404
      %v2406 = vpop.f32.mrb[0].mxu0
      %2407 = vmatprep.mubr.bf16.mxu0 %v2262
      %2408 = vmatmul.mubr.bf16.gmra.mrb[0].mxu0 %v2261
      %v2409 = vpop.f32.mrb[0].mxu0
      %v2410 = vadd.f32 %v263, %v2409
      %v2411 = vpop.f32.mrb[0].mxu0
      %v2412 = vpop.f32.mrb[0].mxu0
      %v2413 = vadd.f32 %v263, %v2412
      %v2414 = vpop.f32.mrb[0].mxu0
      %2415 = vmatprep.mubr.bf16.mxu0 %v2265
      %2416 = vmatmul.mubr.bf16.gmra.mrb[0].mxu0 %v2264
      %v2417 = vpop.f32.mrb[0].mxu0
      %v2418 = vadd.f32 %v263, %v2417
      %v2419 = vpop.f32.mrb[0].mxu0
      %v2420 = vpop.f32.mrb[0].mxu0
      %v2421 = vadd.f32 %v263, %v2420
      %v2422 = vpop.f32.mrb[0].mxu0
      %2423 = vmatprep.mubr.bf16.mxu0 %v2268
      %2424 = vmatmul.mubr.bf16.gmra.mrb[0].mxu0 %v2267
      %v2425 = vpop.f32.mrb[0].mxu0
      %v2426 = vadd.f32 %v263, %v2425
      %v2427 = vpop.f32.mrb[0].mxu0
      %v2428 = vpop.f32.mrb[0].mxu0
      %v2429 = vadd.f32 %v263, %v2428
      %v2430 = vpop.f32.mrb[0].mxu0
      %2431 = vmatprep.mubr.bf16.mxu0 %v2271
      %2432 = vmatmul.mubr.bf16.gmra.mrb[0].mxu0 %v2270
      %v2433 = vpop.f32.mrb[0].mxu0
      %v2434 = vadd.f32 %v263, %v2433
      %v2435 = vpop.f32.mrb[0].mxu0
      %v2436 = vpop.f32.mrb[0].mxu0
      %v2437 = vadd.f32 %v263, %v2436
      %v2438 = vpop.f32.mrb[0].mxu0
      %2439 = vmatprep.mubr.bf16.mxu0 %v2274
      %2440 = vmatmul.mubr.bf16.gmra.mrb[0].mxu0 %v2273
      %v2441 = vpop.f32.mrb[0].mxu0
      %v2442 = vadd.f32 %v263, %v2441
      %v2443 = vpop.f32.mrb[0].mxu0
      %v2444 = vpop.f32.mrb[0].mxu0
      %v2445 = vadd.f32 %v263, %v2444
      %v2446 = vpop.f32.mrb[0].mxu0
      %2447 = vmatprep.mubr.bf16.mxu0 %v2277
      %2448 = vmatmul.mubr.bf16.gmra.mrb[0].mxu0 %v2276
      %v2449 = vpop.f32.mrb[0].mxu0
      %v2450 = vadd.f32 %v263, %v2449
      %v2451 = vpop.f32.mrb[0].mxu0
      %v2452 = vpop.f32.mrb[0].mxu0
      %v2453 = vadd.f32 %v263, %v2452
      %v2454 = vpop.f32.mrb[0].mxu0
      %2455 = vmatprep.mubr.bf16.mxu0 %v2280
      %2456 = vmatmul.mubr.bf16.gmra.mrb[0].mxu0 %v2279
      %v2457 = vpop.f32.mrb[0].mxu0
      %v2458 = vadd.f32 %v263, %v2457
      %v2459 = vpop.f32.mrb[0].mxu0
      %v2460 = vpop.f32.mrb[0].mxu0
      %v2461 = vadd.f32 %v263, %v2460
      %v2462 = vpop.f32.mrb[0].mxu0
      %2463 = vmatprep.mubr.bf16.mxu0 %v2283
      %2464 = vmatmul.mubr.bf16.gmra.mrb[0].mxu0 %v2282
      %v2465 = vpop.f32.mrb[0].mxu0
      %v2466 = vadd.f32 %v263, %v2465
      %v2467 = vpop.f32.mrb[0].mxu0
      %v2468 = vpop.f32.mrb[0].mxu0
      %v2469 = vadd.f32 %v263, %v2468
      %v2470 = vpop.f32.mrb[0].mxu0
      %2471 = vmatprep.mubr.bf16.mxu0 %v2286
      %2472 = vmatmul.mubr.bf16.gmra.mrb[0].mxu0 %v2285
      %v2473 = vpop.f32.mrb[0].mxu0
      %v2474 = vadd.f32 %v263, %v2473
      %v2475 = vpop.f32.mrb[0].mxu0
      %v2476 = vpop.f32.mrb[0].mxu0
      %v2477 = vadd.f32 %v263, %v2476
      %v2478 = vpop.f32.mrb[0].mxu0
      %2479 = vmatprep.mubr.bf16.mxu0 %v2289
      %2480 = vmatmul.mubr.bf16.gmra.mrb[0].mxu0 %v2288
      %v2481 = vpop.f32.mrb[0].mxu0
      %v2482 = vadd.f32 %v263, %v2481
      %v2483 = vpop.f32.mrb[0].mxu0
      %v2484 = vpop.f32.mrb[0].mxu0
      %v2485 = vadd.f32 %v263, %v2484
      %v2486 = vpop.f32.mrb[0].mxu0
      %2487 = vmatprep.mubr.bf16.mxu0 %v2292
      %2488 = vmatmul.mubr.bf16.gmra.mrb[0].mxu0 %v2291
      %v2489 = vpop.f32.mrb[0].mxu0
      %v2490 = vadd.f32 %v263, %v2489
      %v2491 = vpop.f32.mrb[0].mxu0
      %v2492 = vpop.f32.mrb[0].mxu0
      %v2493 = vpop.f32.mrb[0].mxu0
      %2494 = vdwg.mxu0
      %2495 = vmatprep.subr.bf16.mxu0 0
      %2496 = vmatpush1.bf16.msra.mxu0 %v543
      %2497 = vmatprep.subr.bf16.mxu0 0
      %2498 = vmatpush1.bf16.msra.mxu0 %v544
      %2499 = vmatprep.subr.bf16.mxu0 0
      %2500 = vmatpush1.bf16.msra.mxu0 0
      %2501 = vmatprep.subr.bf16.mxu0 0
      %2502 = vmatpush1.bf16.msra.mxu0 0
      %2503 = vmatprep.subr.bf16.mxu0 0
      %2504 = vmatpush1.bf16.msra.mxu0 0
      %2505 = vmatprep.subr.bf16.mxu0 0
      %2506 = vmatpush1.bf16.msra.mxu0 0
      %2507 = vmatprep.subr.bf16.mxu0 0
      %2508 = vmatpush1.bf16.msra.mxu0 0
      %2509 = vmatprep.subr.bf16.mxu0 0
      %2510 = vmatpush1.bf16.msra.mxu0 0
      %2511 = vmatprep.subr.bf16.mxu0 0
      %2512 = vmatpush1.bf16.msra.mxu0 0
      %2513 = vmatprep.subr.bf16.mxu0 0
      %2514 = vmatpush1.bf16.msra.mxu0 0
      %2515 = vmatprep.subr.bf16.mxu0 0
      %2516 = vmatpush1.bf16.msra.mxu0 0
      %2517 = vmatprep.subr.bf16.mxu0 0
      %2518 = vmatpush1.bf16.msra.mxu0 0
      %2519 = vmatprep.subr.bf16.mxu0 0
      %2520 = vmatpush1.bf16.msra.mxu0 0
      %2521 = vmatprep.subr.bf16.mxu0 0
      %2522 = vmatpush1.bf16.msra.mxu0 0
      %2523 = vmatprep.subr.bf16.mxu0 0
      %2524 = vmatpush1.bf16.msra.mxu0 0
      %2525 = vmatprep.subr.bf16.mxu0 0
      %2526 = vmatpush1.bf16.msra.mxu0 0
      %2527 = vmatprep.mubr.bf16.mxu0 0
      %2528 = vmatmul.mubr.bf16.gmra.mrb[0].mxu0 %v2321
      %v2529 = vpop.f32.mrb[0].mxu0
      %v2530 = vadd.f32 %v2394, %v2529
      %v2531 = vpop.f32.mrb[0].mxu0
      %v2532 = vpop.f32.mrb[0].mxu0
      %v2533 = vadd.f32 %v2397, %v2532
      %v2534 = vpop.f32.mrb[0].mxu0
      %2535 = vmatprep.mubr.bf16.mxu0 0
      %2536 = vmatmul.mubr.bf16.gmra.mrb[0].mxu0 %v2324
      %v2537 = vpop.f32.mrb[0].mxu0
      %v2538 = vadd.f32 %v2402, %v2537
      %v2539 = vpop.f32.mrb[0].mxu0
      %v2540 = vpop.f32.mrb[0].mxu0
      %v2541 = vadd.f32 %v2405, %v2540
      %v2542 = vpop.f32.mrb[0].mxu0
      %2543 = vmatprep.mubr.bf16.mxu0 0
      %2544 = vmatmul.mubr.bf16.gmra.mrb[0].mxu0 %v2327
      %v2545 = vpop.f32.mrb[0].mxu0
      %v2546 = vadd.f32 %v2410, %v2545
      %v2547 = vpop.f32.mrb[0].mxu0
      %v2548 = vpop.f32.mrb[0].mxu0
      %v2549 = vadd.f32 %v2413, %v2548
      %v2550 = vpop.f32.mrb[0].mxu0
      %2551 = vmatprep.mubr.bf16.mxu0 0
      %2552 = vmatmul.mubr.bf16.gmra.mrb[0].mxu0 %v2330
      %v2553 = vpop.f32.mrb[0].mxu0
      %v2554 = vadd.f32 %v2418, %v2553
      %v2555 = vpop.f32.mrb[0].mxu0
      %v2556 = vpop.f32.mrb[0].mxu0
      %v2557 = vadd.f32 %v2421, %v2556
      %v2558 = vpop.f32.mrb[0].mxu0
      %2559 = vmatprep.mubr.bf16.mxu0 0
      %2560 = vmatmul.mubr.bf16.gmra.mrb[0].mxu0 %v2333
      %v2561 = vpop.f32.mrb[0].mxu0
      %v2562 = vadd.f32 %v2426, %v2561
      %v2563 = vpop.f32.mrb[0].mxu0
      %v2564 = vpop.f32.mrb[0].mxu0
      %v2565 = vadd.f32 %v2429, %v2564
      %v2566 = vpop.f32.mrb[0].mxu0
      %2567 = vmatprep.mubr.bf16.mxu0 0
      %2568 = vmatmul.mubr.bf16.gmra.mrb[0].mxu0 %v2336
      %v2569 = vpop.f32.mrb[0].mxu0
      %v2570 = vadd.f32 %v2434, %v2569
      %v2571 = vpop.f32.mrb[0].mxu0
      %v2572 = vpop.f32.mrb[0].mxu0
      %v2573 = vadd.f32 %v2437, %v2572
      %v2574 = vpop.f32.mrb[0].mxu0
      %2575 = vmatprep.mubr.bf16.mxu0 0
      %2576 = vmatmul.mubr.bf16.gmra.mrb[0].mxu0 %v2339
      %v2577 = vpop.f32.mrb[0].mxu0
      %v2578 = vadd.f32 %v2442, %v2577
      %v2579 = vpop.f32.mrb[0].mxu0
      %v2580 = vpop.f32.mrb[0].mxu0
      %v2581 = vadd.f32 %v2445, %v2580
      %v2582 = vpop.f32.mrb[0].mxu0
      %2583 = vmatprep.mubr.bf16.mxu0 0
      %2584 = vmatmul.mubr.bf16.gmra.mrb[0].mxu0 %v2342
      %v2585 = vpop.f32.mrb[0].mxu0
      %v2586 = vadd.f32 %v2450, %v2585
      %v2587 = vpop.f32.mrb[0].mxu0
      %v2588 = vpop.f32.mrb[0].mxu0
      %v2589 = vadd.f32 %v2453, %v2588
      %v2590 = vpop.f32.mrb[0].mxu0
      %2591 = vmatprep.mubr.bf16.mxu0 0
      %2592 = vmatmul.mubr.bf16.gmra.mrb[0].mxu0 %v2345
      %v2593 = vpop.f32.mrb[0].mxu0
      %v2594 = vadd.f32 %v2458, %v2593
      %v2595 = vpop.f32.mrb[0].mxu0
      %v2596 = vpop.f32.mrb[0].mxu0
      %v2597 = vadd.f32 %v2461, %v2596
      %v2598 = vpop.f32.mrb[0].mxu0
      %2599 = vmatprep.mubr.bf16.mxu0 0
      %2600 = vmatmul.mubr.bf16.gmra.mrb[0].mxu0 %v2348
      %v2601 = vpop.f32.mrb[0].mxu0
      %v2602 = vadd.f32 %v2466, %v2601
      %v2603 = vpop.f32.mrb[0].mxu0
      %v2604 = vpop.f32.mrb[0].mxu0
      %v2605 = vadd.f32 %v2469, %v2604
      %v2606 = vpop.f32.mrb[0].mxu0
      %2607 = vmatprep.mubr.bf16.mxu0 0
      %2608 = vmatmul.mubr.bf16.gmra.mrb[0].mxu0 %v2351
      %v2609 = vpop.f32.mrb[0].mxu0
      %v2610 = vadd.f32 %v2474, %v2609
      %v2611 = vpop.f32.mrb[0].mxu0
      %v2612 = vpop.f32.mrb[0].mxu0
      %v2613 = vadd.f32 %v2477, %v2612
      %v2614 = vpop.f32.mrb[0].mxu0
      %2615 = vmatprep.mubr.bf16.mxu0 0
      %2616 = vmatmul.mubr.bf16.gmra.mrb[0].mxu0 %v2354
      %v2617 = vpop.f32.mrb[0].mxu0
      %v2618 = vadd.f32 %v2482, %v2617
      %v2619 = vpop.f32.mrb[0].mxu0
      %v2620 = vpop.f32.mrb[0].mxu0
      %v2621 = vadd.f32 %v2485, %v2620
      %v2622 = vpop.f32.mrb[0].mxu0
      %2623 = vmatprep.mubr.bf16.mxu0 0
      %2624 = vmatmul.mubr.bf16.gmra.mrb[0].mxu0 %v2357
      %v2625 = vpop.f32.mrb[0].mxu0
      %v2626 = vadd.f32 %v2490, %v2625
      %v2627 = vpop.f32.mrb[0].mxu0
      %v2628 = vpop.f32.mrb[0].mxu0
      %v2629 = vpop.f32.mrb[0].mxu0
      %2630 = vdwg.mxu0
      %v2631 = vmax.f32 %v2530, 0.0
      %v2632 = vmax.f32 %v2533, 0.0
      %v2633 = vmax.f32 %v2538, 0.0
      %v2634 = vmax.f32 %v2541, 0.0
      %v2635 = vmax.f32 %v2546, 0.0
      %v2636 = vmax.f32 %v2549, 0.0
      %v2637 = vmax.f32 %v2554, 0.0
      %v2638 = vmax.f32 %v2557, 0.0
      %v2639 = vmax.f32 %v2562, 0.0
      %v2640 = vmax.f32 %v2565, 0.0
      %v2641 = vmax.f32 %v2570, 0.0
      %v2642 = vmax.f32 %v2573, 0.0
      %v2643 = vmax.f32 %v2578, 0.0
      %v2644 = vmax.f32 %v2581, 0.0
      %v2645 = vmax.f32 %v2586, 0.0
      %v2646 = vmax.f32 %v2589, 0.0
      %v2647 = vmax.f32 %v2594, 0.0
      %v2648 = vmax.f32 %v2597, 0.0
      %v2649 = vmax.f32 %v2602, 0.0
      %v2650 = vmax.f32 %v2605, 0.0
      %v2651 = vmax.f32 %v2610, 0.0
      %v2652 = vmax.f32 %v2613, 0.0
      %v2653 = vmax.f32 %v2618, 0.0
      %v2654 = vmax.f32 %v2621, 0.0
      %v2655 = vmax.f32 %v2626, 0.0
      %v2656 = vmax.f32 %v2054, %v2631
      %v2657 = vmax.f32 %v2055, %v2632
      %v2658 = vmax.f32 %v2056, %v2633
      %v2659 = vmax.f32 %v2057, %v2634
      %v2660 = vmax.f32 %v2058, %v2635
      %v2661 = vmax.f32 %v2059, %v2636
      %v2662 = vmax.f32 %v2060, %v2637
      %v2663 = vmax.f32 %v2061, %v2638
      %v2664 = vmax.f32 %v2062, %v2639
      %v2665 = vmax.f32 %v2063, %v2640
      %v2666 = vmax.f32 %v2064, %v2641
      %v2667 = vmax.f32 %v2065, %v2642
      %v2668 = vmax.f32 %v2066, %v2643
      %v2669 = vmax.f32 %v2067, %v2644
      %v2670 = vmax.f32 %v2068, %v2645
      %v2671 = vmax.f32 %v2069, %v2646
      %v2672 = vmax.f32 %v2070, %v2647
      %v2673 = vmax.f32 %v2071, %v2648
      %v2674 = vmax.f32 %v2072, %v2649
      %v2675 = vmax.f32 %v2073, %v2650
      %v2676 = vmax.f32 %v2074, %v2651
      %v2677 = vmax.f32 %v2075, %v2652
      %v2678 = vmax.f32 %v2076, %v2653
      %v2679 = vmax.f32 %v2077, %v2654
      %v2680 = vmax.f32 %v2078, %v2655
      %v2681 = vmax.f32 %v1477, %v2656
      %v2682 = vmax.f32 %v1478, %v2657
      %v2683 = vmax.f32 %v1479, %v2658
      %v2684 = vmax.f32 %v1480, %v2659
      %v2685 = vmax.f32 %v1481, %v2660
      %v2686 = vmax.f32 %v1482, %v2661
      %v2687 = vmax.f32 %v1483, %v2662
      %v2688 = vmax.f32 %v1484, %v2663
      %v2689 = vmax.f32 %v1485, %v2664
      %v2690 = vmax.f32 %v1486, %v2665
      %v2691 = vmax.f32 %v1487, %v2666
      %v2692 = vmax.f32 %v1488, %v2667
      %v2693 = vmax.f32 %v1489, %v2668
      %v2694 = vmax.f32 %v1490, %v2669
      %v2695 = vmax.f32 %v1491, %v2670
      %v2696 = vmax.f32 %v1492, %v2671
      %v2697 = vmax.f32 %v1493, %v2672
      %v2698 = vmax.f32 %v1494, %v2673
      %v2699 = vmax.f32 %v1495, %v2674
      %v2700 = vmax.f32 %v1496, %v2675
      %v2701 = vmax.f32 %v1497, %v2676
      %v2702 = vmax.f32 %v1498, %v2677
      %v2703 = vmax.f32 %v1499, %v2678
      %v2704 = vmax.f32 %v1500, %v2679
      %v2705 = vmax.f32 %v1501, %v2680
      %v2706 = vpack.c.bf16 %v2682, %v2681
      %v2707 = vpack.c.bf16 %v2684, %v2683
      %v2708 = vpack.c.bf16 %v2686, %v2685
      %v2709 = vpack.c.bf16 %v2688, %v2687
      %v2710 = vpack.c.bf16 %v2690, %v2689
      %v2711 = vpack.c.bf16 %v2692, %v2691
      %v2712 = vpack.c.bf16 %v2694, %v2693
      %v2713 = vpack.c.bf16 %v2696, %v2695
      %v2714 = vpack.c.bf16 %v2698, %v2697
      %v2715 = vpack.c.bf16 %v2700, %v2699
      %v2716 = vpack.c.bf16 %v2702, %v2701
      %v2717 = vpack.c.bf16 %v2704, %v2703
      %v2718 = vpack.c.bf16 %v2705, %v2705
      %v2732 = vunpack.c.l.b16 %v2706
      %v2733 = vunpack.c.h.b16 %v2706
      %v2734 = vunpack.c.l.b16 %v2707
      %v2735 = vunpack.c.h.b16 %v2707
      %v2736 = vunpack.c.l.b16 %v2708
      %v2737 = vunpack.c.h.b16 %v2708
      %v2738 = vunpack.c.l.b16 %v2709
      %v2739 = vunpack.c.h.b16 %v2709
      %v2740 = vunpack.c.l.b16 %v2710
      %v2741 = vunpack.c.h.b16 %v2710
      %v2742 = vunpack.c.l.b16 %v2711
      %v2743 = vunpack.c.h.b16 %v2711
      %v2744 = vunpack.c.l.b16 %v2712
      %v2745 = vunpack.c.h.b16 %v2712
      %v2746 = vunpack.c.l.b16 %v2713
      %v2747 = vunpack.c.h.b16 %v2713
      %v2748 = vunpack.c.l.b16 %v2714
      %v2749 = vunpack.c.h.b16 %v2714
      %v2750 = vunpack.c.l.b16 %v2715
      %v2751 = vunpack.c.h.b16 %v2715
      %v2752 = vunpack.c.l.b16 %v2716
      %v2753 = vunpack.c.h.b16 %v2716
      %v2754 = vunpack.c.l.b16 %v2717
      %v2755 = vunpack.c.h.b16 %v2717
      %v2756 = vunpack.c.l.b16 %v2718
      %v2757 = vpack.c.b16 %v2732, %v2732
      %v2758 = vpack.c.b16 %v2733, %v2733
      %v2759 = vpack.c.b16 %v2734, %v2734
      %v2760 = vpack.c.b16 %v2735, %v2735
      %v2761 = vpack.c.b16 %v2736, %v2736
      %v2762 = vpack.c.b16 %v2737, %v2737
      %v2763 = vpack.c.b16 %v2738, %v2738
      %v2764 = vpack.c.b16 %v2739, %v2739
      %v2765 = vpack.c.b16 %v2740, %v2740
      %v2766 = vpack.c.b16 %v2741, %v2741
      %v2767 = vpack.c.b16 %v2742, %v2742
      %v2768 = vpack.c.b16 %v2743, %v2743
      %v2769 = vpack.c.b16 %v2744, %v2744
      %v2770 = vpack.c.b16 %v2745, %v2745
      %v2771 = vpack.c.b16 %v2746, %v2746
      %v2772 = vpack.c.b16 %v2747, %v2747
      %v2773 = vpack.c.b16 %v2748, %v2748
      %v2774 = vpack.c.b16 %v2749, %v2749
      %v2775 = vpack.c.b16 %v2750, %v2750
      %v2776 = vpack.c.b16 %v2751, %v2751
      %v2777 = vpack.c.b16 %v2752, %v2752
      %v2778 = vpack.c.b16 %v2753, %v2753
      %v2779 = vpack.c.b16 %v2754, %v2754
      %v2780 = vpack.c.b16 %v2755, %v2755
      %v2781 = vpack.c.b16 %v2756, %v2756
      %vm2807 = vcmask 519168
      %2808 = vst.msk [vmem:[%s170] sm:$0xf] %vm2807, %v2757
      %2809 = vst.msk [vmem:[%s170 + $0x4] sm:$0xf] %vm2807, %v2758
      %2810 = vst.msk [vmem:[%s170 + $0x8] sm:$0xf] %vm2807, %v2759
      %2811 = vst.msk [vmem:[%s170 + $0xc] sm:$0xf] %vm2807, %v2760
      %2812 = vst.msk [vmem:[%s170 + $0x10] sm:$0xf] %vm2807, %v2761
      %2813 = vst.msk [vmem:[%s170 + $0x14] sm:$0xf] %vm2807, %v2762
      %2814 = vst.msk [vmem:[%s170 + $0x18] sm:$0xf] %vm2807, %v2763
      %2815 = vst.msk [vmem:[%s170 + $0x1c] sm:$0xf] %vm2807, %v2764
      %2816 = vst.msk [vmem:[%s170 + $0x20] sm:$0xf] %vm2807, %v2765
      %2817 = vst.msk [vmem:[%s170 + $0x24] sm:$0xf] %vm2807, %v2766
      %2818 = vst.msk [vmem:[%s170 + $0x28] sm:$0xf] %vm2807, %v2767
      %2819 = vst.msk [vmem:[%s170 + $0x2c] sm:$0xf] %vm2807, %v2768
      %2820 = vst.msk [vmem:[%s170 + $0x30] sm:$0xf] %vm2807, %v2769
      %2821 = vst.msk [vmem:[%s170 + $0x34] sm:$0xf] %vm2807, %v2770
      %2822 = vst.msk [vmem:[%s170 + $0x38] sm:$0xf] %vm2807, %v2771
      %2823 = vst.msk [vmem:[%s170 + $0x3c] sm:$0xf] %vm2807, %v2772
      %2824 = vst.msk [vmem:[%s170 + $0x40] sm:$0xf] %vm2807, %v2773
      %2825 = vst.msk [vmem:[%s170 + $0x44] sm:$0xf] %vm2807, %v2774
      %2826 = vst.msk [vmem:[%s170 + $0x48] sm:$0xf] %vm2807, %v2775
      %2827 = vst.msk [vmem:[%s170 + $0x4c] sm:$0xf] %vm2807, %v2776
      %2828 = vst.msk [vmem:[%s170 + $0x50] sm:$0xf] %vm2807, %v2777
      %2829 = vst.msk [vmem:[%s170 + $0x54] sm:$0xf] %vm2807, %v2778
      %2830 = vst.msk [vmem:[%s170 + $0x58] sm:$0xf] %vm2807, %v2779
      %2831 = vst.msk [vmem:[%s170 + $0x5c] sm:$0xf] %vm2807, %v2780
      %vm2832 = vcmask 517120
      %2833 = vst.msk [vmem:[%s170 + $0x60] sm:$0x3] %vm2832, %v2781
      %p2834 = scmp.lt.s32.totalorder %s14, 1
      %s2835 = scalar_select %p2834, %s14, 1
      %s2836 = smul.addr %s2835, 25
      %s2837 = smul.addr %s2836, 4
      %s2838 = scalar_lea.vmem %s3, %s2837
      // Predicated region
      $region33: #{cnn_forward.4} parent=31 // pred_check
        %p2839 = pneg %p100
      $region34: #{cnn_forward.4} parent=31 // pred_check_branch
        %2841 = sbr.rel (%p2839) target = $region36
      $region35: #{cnn_forward.4} parent=31 // pred_region
        _
      $region36: #{cnn_forward.4} parent=31 // pred_fallthru
        _
    $region32: #{cnn_forward.4} parent=5 // pred_fallthru
      _
    %p2842 = scmp.le.s32.totalorder 2, %s9
    // Predicated region
    $region37: #{cnn_forward.4} parent=5 // pred_check
      %p2843 = pneg %p2842
    $region38: #{cnn_forward.4} parent=5 // pred_check_branch
      %2845 = sbr.rel (%p2843) target = $region40
    $region39: #{cnn_forward.4} parent=5 // pred_region
      %s2846 = ssub.s32 %s9, 2
      // Predicated region
      $region41: #{cnn_forward.4} parent=39 // pred_check
        %p2847 = pneg %p106
      $region42: #{cnn_forward.4} parent=39 // pred_check_branch
        %2849 = sbr.rel (%p2847) target = $region44
      $region43: #{cnn_forward.4} parent=39 // pred_region
        %p2850 = scmp.lt.s32.totalorder %s15, 1
        %s2851 = scalar_select %p2850, %s15, 1
        %s2852 = smul.addr %s2851, 25
        %s2853 = smul.addr %s2852, 4
        %s2854 = scalar_lea.vmem %s3, %s2853
      $region44: #{cnn_forward.4} parent=39 // pred_fallthru
        _
    $region40: #{cnn_forward.4} parent=5 // pred_fallthru
      _
  $region6: #{cnn_forward.4} parent=0 // loop_footer
    %s13 = sadd.s32 1, %s9
  $region7: #{cnn_forward.4} parent=0 // loop_footer_branch
    %8 = sbr.rel target = $region3
  $region8: #{cnn_forward.4} parent=0 // loop_exit
    _

// kernel: cnn_forward.5
$region0: #{cnn_forward.5}
  #allocation0 [shape = 'u32[]', space=smem, size = 0x4, offset = 0x4, fixed_abs, tag = 'smem constant byte address 0x4 - core index']
  #allocation1 [shape = 'u32[144,128]{1,0:T(1,128)}', space=vmem, size = 0x12000, scoped, tag = 'internal scratch']
  %s0 = inlined_call_operand.vmem [shape: bf16[8,12544], index: 0, kind: input, shape index: {}]
  %s1 = inlined_call_operand.vmem [shape: bf16[12544,128], index: 1, kind: input, shape index: {}]
  %s2 = inlined_call_operand.vmem [shape: f32[1,128], index: 2, kind: input, shape index: {}]
  %s3 = inlined_call_operand.vmem [shape: bf16[128,128], index: 3, kind: input, shape index: {}]
  %s4 = inlined_call_operand.vmem [shape: f32[1,128], index: 4, kind: input, shape index: {}]
  %s5 = inlined_call_operand.vmem [shape: f32[8,128], index: 5, kind: output, shape index: {}]
  %s6 = sld [smem:[#allocation0]]
  $region30: #{cnn_forward.5} parent=0
    _
  %s8 = ssub.s32 1, %s6
  %s9 = scalar_select 0, %s8, %s6
  // Predicated region
  $region2: #{cnn_forward.5} parent=0 // pred_check
    _
  $region3: #{cnn_forward.5} parent=0 // pred_check_branch
    %11 = sbr.rel (0) target = $region5
  $region4: #{cnn_forward.5} parent=0 // pred_region
    _
  $region5: #{cnn_forward.5} parent=0 // pred_fallthru
    _
  // Predicated region
  $region6: #{cnn_forward.5} parent=0 // pred_check
    _
  $region7: #{cnn_forward.5} parent=0 // pred_check_branch
    %13 = sbr.rel (0) target = $region9
  $region8: #{cnn_forward.5} parent=0 // pred_region
    _
  $region9: #{cnn_forward.5} parent=0 // pred_fallthru
    _
  // Predicated region
  $region10: #{cnn_forward.5} parent=0 // pred_check
    _
  $region11: #{cnn_forward.5} parent=0 // pred_check_branch
    %15 = sbr.rel (0) target = $region13
  $region12: #{cnn_forward.5} parent=0 // pred_region
    _
  $region13: #{cnn_forward.5} parent=0 // pred_fallthru
    _
  // Predicated region
  $region14: #{cnn_forward.5} parent=0 // pred_check
    _
  $region15: #{cnn_forward.5} parent=0 // pred_check_branch
    %17 = sbr.rel (0) target = $region17
  $region16: #{cnn_forward.5} parent=0 // pred_region
    _
  $region17: #{cnn_forward.5} parent=0 // pred_fallthru
    _
  // Predicated region
  $region18: #{cnn_forward.5} parent=0 // pred_check
    _
  $region19: #{cnn_forward.5} parent=0 // pred_check_branch
    %19 = sbr.rel (0) target = $region21
  $region20: #{cnn_forward.5} parent=0 // pred_region
    _
  $region21: #{cnn_forward.5} parent=0 // pred_fallthru
    _
  %v21 = vld [vmem:[%s0] sm:$0xff]
  %v22 = vld [vmem:[%s0 + $0x8] sm:$0xff]
  %v23 = vld [vmem:[%s0 + $0x10] sm:$0xff]
  %v24 = vld [vmem:[%s0 + $0x18] sm:$0xff]
  %v25 = vld [vmem:[%s0 + $0x20] sm:$0xff]
  %v26 = vld [vmem:[%s0 + $0x28] sm:$0xff]
  %v27 = vld [vmem:[%s0 + $0x30] sm:$0xff]
  %v28 = vld [vmem:[%s0 + $0x38] sm:$0xff]
  %v29 = vld [vmem:[%s0 + $0x40] sm:$0xff]
  %v30 = vld [vmem:[%s0 + $0x48] sm:$0xff]
  %v31 = vld [vmem:[%s0 + $0x50] sm:$0xff]
  %v32 = vld [vmem:[%s0 + $0x58] sm:$0xff]
  %v33 = vld [vmem:[%s0 + $0x60] sm:$0xff]
  %v34 = vld [vmem:[%s0 + $0x68] sm:$0xff]
  %v35 = vld [vmem:[%s0 + $0x70] sm:$0xff]
  %v36 = vld [vmem:[%s0 + $0x78] sm:$0xff]
  %v37 = vld [vmem:[%s0 + $0x80] sm:$0xff]
  %v38 = vld [vmem:[%s0 + $0x88] sm:$0xff]
  %v39 = vld [vmem:[%s0 + $0x90] sm:$0xff]
  %v40 = vld [vmem:[%s0 + $0x98] sm:$0xff]
  %v41 = vld [vmem:[%s0 + $0xa0] sm:$0xff]
  %v42 = vld [vmem:[%s0 + $0xa8] sm:$0xff]
  %v43 = vld [vmem:[%s0 + $0xb0] sm:$0xff]
  %v44 = vld [vmem:[%s0 + $0xb8] sm:$0xff]
  %v45 = vld [vmem:[%s0 + $0xc0] sm:$0xff]
  %v46 = vld [vmem:[%s0 + $0xc8] sm:$0xff]
  %v47 = vld [vmem:[%s0 + $0xd0] sm:$0xff]
  %v48 = vld [vmem:[%s0 + $0xd8] sm:$0xff]
  %v49 = vld [vmem:[%s0 + $0xe0] sm:$0xff]
  %v50 = vld [vmem:[%s0 + $0xe8] sm:$0xff]
  %v51 = vld [vmem:[%s0 + $0xf0] sm:$0xff]
  %v52 = vld [vmem:[%s0 + $0xf8] sm:$0xff]
  %v53 = vld [vmem:[%s0 + $0x100] sm:$0xff]
  %v54 = vld [vmem:[%s0 + $0x108] sm:$0xff]
  %v55 = vld [vmem:[%s0 + $0x110] sm:$0xff]
  %v56 = vld [vmem:[%s0 + $0x118] sm:$0xff]
  %v57 = vld [vmem:[%s0 + $0x120] sm:$0xff]
  %v58 = vld [vmem:[%s0 + $0x128] sm:$0xff]
  %v59 = vld [vmem:[%s0 + $0x130] sm:$0xff]
  %v60 = vld [vmem:[%s0 + $0x138] sm:$0xff]
  %v61 = vld [vmem:[%s0 + $0x140] sm:$0xff]
  %v62 = vld [vmem:[%s0 + $0x148] sm:$0xff]
  %v63 = vld [vmem:[%s0 + $0x150] sm:$0xff]
  %v64 = vld [vmem:[%s0 + $0x158] sm:$0xff]
  %v65 = vld [vmem:[%s0 + $0x160] sm:$0xff]
  %v66 = vld [vmem:[%s0 + $0x168] sm:$0xff]
  %v67 = vld [vmem:[%s0 + $0x170] sm:$0xff]
  %v68 = vld [vmem:[%s0 + $0x178] sm:$0xff]
  %v69 = vld [vmem:[%s0 + $0x180] sm:$0xff]
  %v70 = vld [vmem:[%s1] sm:$0xf]
  %v71 = vld [vmem:[%s1 + $0x4] sm:$0xf]
  %v72 = vld [vmem:[%s1 + $0x8] sm:$0xf]
  %v73 = vld [vmem:[%s1 + $0xc] sm:$0xf]
  %v74 = vld [vmem:[%s1 + $0x10] sm:$0xf]
  %v75 = vld [vmem:[%s1 + $0x14] sm:$0xf]
  %v76 = vld [vmem:[%s1 + $0x18] sm:$0xf]
  %v77 = vld [vmem:[%s1 + $0x1c] sm:$0xf]
  %v78 = vld [vmem:[%s1 + $0x20] sm:$0xf]
  %v79 = vld [vmem:[%s1 + $0x24] sm:$0xf]
  %v80 = vld [vmem:[%s1 + $0x28] sm:$0xf]
  %v81 = vld [vmem:[%s1 + $0x2c] sm:$0xf]
  %v82 = vld [vmem:[%s1 + $0x30] sm:$0xf]
  %v83 = vld [vmem:[%s1 + $0x34] sm:$0xf]
  %v84 = vld [vmem:[%s1 + $0x38] sm:$0xf]
  %v85 = vld [vmem:[%s1 + $0x3c] sm:$0xf]
  %v86 = vld [vmem:[%s1 + $0x40] sm:$0xf]
  %v87 = vld [vmem:[%s1 + $0x44] sm:$0xf]
  %v88 = vld [vmem:[%s1 + $0x48] sm:$0xf]
  %v89 = vld [vmem:[%s1 + $0x4c] sm:$0xf]
  %v90 = vld [vmem:[%s1 + $0x50] sm:$0xf]
  %v91 = vld [vmem:[%s1 + $0x54] sm:$0xf]
  %v92 = vld [vmem:[%s1 + $0x58] sm:$0xf]
  %v93 = vld [vmem:[%s1 + $0x5c] sm:$0xf]
  %v94 = vld [vmem:[%s1 + $0x60] sm:$0xf]
  %v95 = vld [vmem:[%s1 + $0x64] sm:$0xf]
  %v96 = vld [vmem:[%s1 + $0x68] sm:$0xf]
  %v97 = vld [vmem:[%s1 + $0x6c] sm:$0xf]
  %v98 = vld [vmem:[%s1 + $0x70] sm:$0xf]
  %v99 = vld [vmem:[%s1 + $0x74] sm:$0xf]
  %v100 = vld [vmem:[%s1 + $0x78] sm:$0xf]
  %v101 = vld [vmem:[%s1 + $0x7c] sm:$0xf]
  %v102 = vld [vmem:[%s1 + $0x80] sm:$0xf]
  %v103 = vld [vmem:[%s1 + $0x84] sm:$0xf]
  %v104 = vld [vmem:[%s1 + $0x88] sm:$0xf]
  %v105 = vld [vmem:[%s1 + $0x8c] sm:$0xf]
  %v106 = vld [vmem:[%s1 + $0x90] sm:$0xf]
  %v107 = vld [vmem:[%s1 + $0x94] sm:$0xf]
  %v108 = vld [vmem:[%s1 + $0x98] sm:$0xf]
  %v109 = vld [vmem:[%s1 + $0x9c] sm:$0xf]
  %v110 = vld [vmem:[%s1 + $0xa0] sm:$0xf]
  %v111 = vld [vmem:[%s1 + $0xa4] sm:$0xf]
  %v112 = vld [vmem:[%s1 + $0xa8] sm:$0xf]
  %v113 = vld [vmem:[%s1 + $0xac] sm:$0xf]
  %v114 = vld [vmem:[%s1 + $0xb0] sm:$0xf]
  %v115 = vld [vmem:[%s1 + $0xb4] sm:$0xf]
  %v116 = vld [vmem:[%s1 + $0xb8] sm:$0xf]
  %v117 = vld [vmem:[%s1 + $0xbc] sm:$0xf]
  %v118 = vld [vmem:[%s1 + $0xc0] sm:$0xf]
  %v119 = vld [vmem:[%s1 + $0xc4] sm:$0xf]
  %v120 = vld [vmem:[%s1 + $0xc8] sm:$0xf]
  %v121 = vld [vmem:[%s1 + $0xcc] sm:$0xf]
  %v122 = vld [vmem:[%s1 + $0xd0] sm:$0xf]
  %v123 = vld [vmem:[%s1 + $0xd4] sm:$0xf]
  %v124 = vld [vmem:[%s1 + $0xd8] sm:$0xf]
  %v125 = vld [vmem:[%s1 + $0xdc] sm:$0xf]
  %v126 = vld [vmem:[%s1 + $0xe0] sm:$0xf]
  %v127 = vld [vmem:[%s1 + $0xe4] sm:$0xf]
  %v128 = vld [vmem:[%s1 + $0xe8] sm:$0xf]
  %v129 = vld [vmem:[%s1 + $0xec] sm:$0xf]
  %v130 = vld [vmem:[%s1 + $0xf0] sm:$0xf]
  %v131 = vld [vmem:[%s1 + $0xf4] sm:$0xf]
  %v132 = vld [vmem:[%s1 + $0xf8] sm:$0xf]
  %v133 = vld [vmem:[%s1 + $0xfc] sm:$0xf]
  %v134 = vld [vmem:[%s1 + $0x100] sm:$0xf]
  %v135 = vld [vmem:[%s1 + $0x104] sm:$0xf]
  %v136 = vld [vmem:[%s1 + $0x108] sm:$0xf]
  %v137 = vld [vmem:[%s1 + $0x10c] sm:$0xf]
  %v138 = vld [vmem:[%s1 + $0x110] sm:$0xf]
  %v139 = vld [vmem:[%s1 + $0x114] sm:$0xf]
  %v140 = vld [vmem:[%s1 + $0x118] sm:$0xf]
  %v141 = vld [vmem:[%s1 + $0x11c] sm:$0xf]
  %v142 = vld [vmem:[%s1 + $0x120] sm:$0xf]
  %v143 = vld [vmem:[%s1 + $0x124] sm:$0xf]
  %v144 = vld [vmem:[%s1 + $0x128] sm:$0xf]
  %v145 = vld [vmem:[%s1 + $0x12c] sm:$0xf]
  %v146 = vld [vmem:[%s1 + $0x130] sm:$0xf]
  %v147 = vld [vmem:[%s1 + $0x134] sm:$0xf]
  %v148 = vld [vmem:[%s1 + $0x138] sm:$0xf]
  %v149 = vld [vmem:[%s1 + $0x13c] sm:$0xf]
  %v150 = vld [vmem:[%s1 + $0x140] sm:$0xf]
  %v151 = vld [vmem:[%s1 + $0x144] sm:$0xf]
  %v152 = vld [vmem:[%s1 + $0x148] sm:$0xf]
  %v153 = vld [vmem:[%s1 + $0x14c] sm:$0xf]
  %v154 = vld [vmem:[%s1 + $0x150] sm:$0xf]
  %v155 = vld [vmem:[%s1 + $0x154] sm:$0xf]
  %v156 = vld [vmem:[%s1 + $0x158] sm:$0xf]
  %v157 = vld [vmem:[%s1 + $0x15c] sm:$0xf]
  %v158 = vld [vmem:[%s1 + $0x160] sm:$0xf]
  %v159 = vld [vmem:[%s1 + $0x164] sm:$0xf]
  %v160 = vld [vmem:[%s1 + $0x168] sm:$0xf]
  %v161 = vld [vmem:[%s1 + $0x16c] sm:$0xf]
  %v162 = vld [vmem:[%s1 + $0x170] sm:$0xf]
  %v163 = vld [vmem:[%s1 + $0x174] sm:$0xf]
  %v164 = vld [vmem:[%s1 + $0x178] sm:$0xf]
  %v165 = vld [vmem:[%s1 + $0x17c] sm:$0xf]
  %v166 = vld [vmem:[%s1 + $0x180] sm:$0xf]
  %v167 = vld [vmem:[%s1 + $0x184] sm:$0xf]
  %v168 = vld [vmem:[%s1 + $0x188] sm:$0xf]
  %v169 = vld [vmem:[%s1 + $0x18c] sm:$0xf]
  %v170 = vld [vmem:[%s1 + $0x190] sm:$0xf]
  %v171 = vld [vmem:[%s1 + $0x194] sm:$0xf]
  %v172 = vld [vmem:[%s1 + $0x198] sm:$0xf]
  %v173 = vld [vmem:[%s1 + $0x19c] sm:$0xf]
  %v174 = vld [vmem:[%s1 + $0x1a0] sm:$0xf]
  %v175 = vld [vmem:[%s1 + $0x1a4] sm:$0xf]
  %v176 = vld [vmem:[%s1 + $0x1a8] sm:$0xf]
  %v177 = vld [vmem:[%s1 + $0x1ac] sm:$0xf]
  %v178 = vld [vmem:[%s1 + $0x1b0] sm:$0xf]
  %v179 = vld [vmem:[%s1 + $0x1b4] sm:$0xf]
  %v180 = vld [vmem:[%s1 + $0x1b8] sm:$0xf]
  %v181 = vld [vmem:[%s1 + $0x1bc] sm:$0xf]
  %v182 = vld [vmem:[%s1 + $0x1c0] sm:$0xf]
  %v183 = vld [vmem:[%s1 + $0x1c4] sm:$0xf]
  %v184 = vld [vmem:[%s1 + $0x1c8] sm:$0xf]
  %v185 = vld [vmem:[%s1 + $0x1cc] sm:$0xf]
  %v186 = vld [vmem:[%s1 + $0x1d0] sm:$0xf]
  %v187 = vld [vmem:[%s1 + $0x1d4] sm:$0xf]
  %v188 = vld [vmem:[%s1 + $0x1d8] sm:$0xf]
  %v189 = vld [vmem:[%s1 + $0x1dc] sm:$0xf]
  %v190 = vld [vmem:[%s1 + $0x1e0] sm:$0xf]
  %v191 = vld [vmem:[%s1 + $0x1e4] sm:$0xf]
  %v192 = vld [vmem:[%s1 + $0x1e8] sm:$0xf]
  %v193 = vld [vmem:[%s1 + $0x1ec] sm:$0xf]
  %v194 = vld [vmem:[%s1 + $0x1f0] sm:$0xf]
  %v195 = vld [vmem:[%s1 + $0x1f4] sm:$0xf]
  %v196 = vld [vmem:[%s1 + $0x1f8] sm:$0xf]
  %v197 = vld [vmem:[%s1 + $0x1fc] sm:$0xf]
  %v198 = vld [vmem:[%s1 + $0x200] sm:$0xf]
  %v199 = vld [vmem:[%s1 + $0x204] sm:$0xf]
  %v200 = vld [vmem:[%s1 + $0x208] sm:$0xf]
  %v201 = vld [vmem:[%s1 + $0x20c] sm:$0xf]
  %v202 = vld [vmem:[%s1 + $0x210] sm:$0xf]
  %v203 = vld [vmem:[%s1 + $0x214] sm:$0xf]
  %v204 = vld [vmem:[%s1 + $0x218] sm:$0xf]
  %v205 = vld [vmem:[%s1 + $0x21c] sm:$0xf]
  %v206 = vld [vmem:[%s1 + $0x220] sm:$0xf]
  %v207 = vld [vmem:[%s1 + $0x224] sm:$0xf]
  %v208 = vld [vmem:[%s1 + $0x228] sm:$0xf]
  %v209 = vld [vmem:[%s1 + $0x22c] sm:$0xf]
  %v210 = vld [vmem:[%s1 + $0x230] sm:$0xf]
  %v211 = vld [vmem:[%s1 + $0x234] sm:$0xf]
  %v212 = vld [vmem:[%s1 + $0x238] sm:$0xf]
  %v213 = vld [vmem:[%s1 + $0x23c] sm:$0xf]
  %v214 = vld [vmem:[%s1 + $0x240] sm:$0xf]
  %v215 = vld [vmem:[%s1 + $0x244] sm:$0xf]
  %v216 = vld [vmem:[%s1 + $0x248] sm:$0xf]
  %v217 = vld [vmem:[%s1 + $0x24c] sm:$0xf]
  %v218 = vld [vmem:[%s1 + $0x250] sm:$0xf]
  %v219 = vld [vmem:[%s1 + $0x254] sm:$0xf]
  %v220 = vld [vmem:[%s1 + $0x258] sm:$0xf]
  %v221 = vld [vmem:[%s1 + $0x25c] sm:$0xf]
  %v222 = vld [vmem:[%s1 + $0x260] sm:$0xf]
  %v223 = vld [vmem:[%s1 + $0x264] sm:$0xf]
  %v224 = vld [vmem:[%s1 + $0x268] sm:$0xf]
  %v225 = vld [vmem:[%s1 + $0x26c] sm:$0xf]
  %v226 = vld [vmem:[%s1 + $0x270] sm:$0xf]
  %v227 = vld [vmem:[%s1 + $0x274] sm:$0xf]
  %v228 = vld [vmem:[%s1 + $0x278] sm:$0xf]
  %v229 = vld [vmem:[%s1 + $0x27c] sm:$0xf]
  %v230 = vld [vmem:[%s1 + $0x280] sm:$0xf]
  %v231 = vld [vmem:[%s1 + $0x284] sm:$0xf]
  %v232 = vld [vmem:[%s1 + $0x288] sm:$0xf]
  %v233 = vld [vmem:[%s1 + $0x28c] sm:$0xf]
  %v234 = vld [vmem:[%s1 + $0x290] sm:$0xf]
  %v235 = vld [vmem:[%s1 + $0x294] sm:$0xf]
  %v236 = vld [vmem:[%s1 + $0x298] sm:$0xf]
  %v237 = vld [vmem:[%s1 + $0x29c] sm:$0xf]
  %v238 = vld [vmem:[%s1 + $0x2a0] sm:$0xf]
  %v239 = vld [vmem:[%s1 + $0x2a4] sm:$0xf]
  %v240 = vld [vmem:[%s1 + $0x2a8] sm:$0xf]
  %v241 = vld [vmem:[%s1 + $0x2ac] sm:$0xf]
  %v242 = vld [vmem:[%s1 + $0x2b0] sm:$0xf]
  %v243 = vld [vmem:[%s1 + $0x2b4] sm:$0xf]
  %v244 = vld [vmem:[%s1 + $0x2b8] sm:$0xf]
  %v245 = vld [vmem:[%s1 + $0x2bc] sm:$0xf]
  %v246 = vld [vmem:[%s1 + $0x2c0] sm:$0xf]
  %v247 = vld [vmem:[%s1 + $0x2c4] sm:$0xf]
  %v248 = vld [vmem:[%s1 + $0x2c8] sm:$0xf]
  %v249 = vld [vmem:[%s1 + $0x2cc] sm:$0xf]
  %v250 = vld [vmem:[%s1 + $0x2d0] sm:$0xf]
  %v251 = vld [vmem:[%s1 + $0x2d4] sm:$0xf]
  %v252 = vld [vmem:[%s1 + $0x2d8] sm:$0xf]
  %v253 = vld [vmem:[%s1 + $0x2dc] sm:$0xf]
  %v254 = vld [vmem:[%s1 + $0x2e0] sm:$0xf]
  %v255 = vld [vmem:[%s1 + $0x2e4] sm:$0xf]
  %v256 = vld [vmem:[%s1 + $0x2e8] sm:$0xf]
  %v257 = vld [vmem:[%s1 + $0x2ec] sm:$0xf]
  %v258 = vld [vmem:[%s1 + $0x2f0] sm:$0xf]
  %v259 = vld [vmem:[%s1 + $0x2f4] sm:$0xf]
  %v260 = vld [vmem:[%s1 + $0x2f8] sm:$0xf]
  %v261 = vld [vmem:[%s1 + $0x2fc] sm:$0xf]
  %v262 = vld [vmem:[%s1 + $0x300] sm:$0xf]
  %v263 = vld [vmem:[%s1 + $0x304] sm:$0xf]
  %v264 = vld [vmem:[%s1 + $0x308] sm:$0xf]
  %v265 = vld [vmem:[%s1 + $0x30c] sm:$0xf]
  %v266 = vld [vmem:[%s1 + $0x310] sm:$0xf]
  %v267 = vld [vmem:[%s1 + $0x314] sm:$0xf]
  %v268 = vld [vmem:[%s1 + $0x318] sm:$0xf]
  %v269 = vld [vmem:[%s1 + $0x31c] sm:$0xf]
  %v270 = vld [vmem:[%s1 + $0x320] sm:$0xf]
  %v271 = vld [vmem:[%s1 + $0x324] sm:$0xf]
  %v272 = vld [vmem:[%s1 + $0x328] sm:$0xf]
  %v273 = vld [vmem:[%s1 + $0x32c] sm:$0xf]
  %v274 = vld [vmem:[%s1 + $0x330] sm:$0xf]
  %v275 = vld [vmem:[%s1 + $0x334] sm:$0xf]
  %v276 = vld [vmem:[%s1 + $0x338] sm:$0xf]
  %v277 = vld [vmem:[%s1 + $0x33c] sm:$0xf]
  %v278 = vld [vmem:[%s1 + $0x340] sm:$0xf]
  %v279 = vld [vmem:[%s1 + $0x344] sm:$0xf]
  %v280 = vld [vmem:[%s1 + $0x348] sm:$0xf]
  %v281 = vld [vmem:[%s1 + $0x34c] sm:$0xf]
  %v282 = vld [vmem:[%s1 + $0x350] sm:$0xf]
  %v283 = vld [vmem:[%s1 + $0x354] sm:$0xf]
  %v284 = vld [vmem:[%s1 + $0x358] sm:$0xf]
  %v285 = vld [vmem:[%s1 + $0x35c] sm:$0xf]
  %v286 = vld [vmem:[%s1 + $0x360] sm:$0xf]
  %v287 = vld [vmem:[%s1 + $0x364] sm:$0xf]
  %v288 = vld [vmem:[%s1 + $0x368] sm:$0xf]
  %v289 = vld [vmem:[%s1 + $0x36c] sm:$0xf]
  %v290 = vld [vmem:[%s1 + $0x370] sm:$0xf]
  %v291 = vld [vmem:[%s1 + $0x374] sm:$0xf]
  %v292 = vld [vmem:[%s1 + $0x378] sm:$0xf]
  %v293 = vld [vmem:[%s1 + $0x37c] sm:$0xf]
  %v294 = vld [vmem:[%s1 + $0x380] sm:$0xf]
  %v295 = vld [vmem:[%s1 + $0x384] sm:$0xf]
  %v296 = vld [vmem:[%s1 + $0x388] sm:$0xf]
  %v297 = vld [vmem:[%s1 + $0x38c] sm:$0xf]
  %v298 = vld [vmem:[%s1 + $0x390] sm:$0xf]
  %v299 = vld [vmem:[%s1 + $0x394] sm:$0xf]
  %v300 = vld [vmem:[%s1 + $0x398] sm:$0xf]
  %v301 = vld [vmem:[%s1 + $0x39c] sm:$0xf]
  %v302 = vld [vmem:[%s1 + $0x3a0] sm:$0xf]
  %v303 = vld [vmem:[%s1 + $0x3a4] sm:$0xf]
  %v304 = vld [vmem:[%s1 + $0x3a8] sm:$0xf]
  %v305 = vld [vmem:[%s1 + $0x3ac] sm:$0xf]
  %v306 = vld [vmem:[%s1 + $0x3b0] sm:$0xf]
  %v307 = vld [vmem:[%s1 + $0x3b4] sm:$0xf]
  %v308 = vld [vmem:[%s1 + $0x3b8] sm:$0xf]
  %v309 = vld [vmem:[%s1 + $0x3bc] sm:$0xf]
  %v310 = vld [vmem:[%s1 + $0x3c0] sm:$0xf]
  %v311 = vld [vmem:[%s1 + $0x3c4] sm:$0xf]
  %v312 = vld [vmem:[%s1 + $0x3c8] sm:$0xf]
  %v313 = vld [vmem:[%s1 + $0x3cc] sm:$0xf]
  %v314 = vld [vmem:[%s1 + $0x3d0] sm:$0xf]
  %v315 = vld [vmem:[%s1 + $0x3d4] sm:$0xf]
  %v316 = vld [vmem:[%s1 + $0x3d8] sm:$0xf]
  %v317 = vld [vmem:[%s1 + $0x3dc] sm:$0xf]
  %v318 = vld [vmem:[%s1 + $0x3e0] sm:$0xf]
  %v319 = vld [vmem:[%s1 + $0x3e4] sm:$0xf]
  %v320 = vld [vmem:[%s1 + $0x3e8] sm:$0xf]
  %v321 = vld [vmem:[%s1 + $0x3ec] sm:$0xf]
  %v322 = vld [vmem:[%s1 + $0x3f0] sm:$0xf]
  %v323 = vld [vmem:[%s1 + $0x3f4] sm:$0xf]
  %v324 = vld [vmem:[%s1 + $0x3f8] sm:$0xf]
  %v325 = vld [vmem:[%s1 + $0x3fc] sm:$0xf]
  %v326 = vld [vmem:[%s1 + $0x400] sm:$0xf]
  %v327 = vld [vmem:[%s1 + $0x404] sm:$0xf]
  %v328 = vld [vmem:[%s1 + $0x408] sm:$0xf]
  %v329 = vld [vmem:[%s1 + $0x40c] sm:$0xf]
  %v330 = vld [vmem:[%s1 + $0x410] sm:$0xf]
  %v331 = vld [vmem:[%s1 + $0x414] sm:$0xf]
  %v332 = vld [vmem:[%s1 + $0x418] sm:$0xf]
  %v333 = vld [vmem:[%s1 + $0x41c] sm:$0xf]
  %v334 = vld [vmem:[%s1 + $0x420] sm:$0xf]
  %v335 = vld [vmem:[%s1 + $0x424] sm:$0xf]
  %v336 = vld [vmem:[%s1 + $0x428] sm:$0xf]
  %v337 = vld [vmem:[%s1 + $0x42c] sm:$0xf]
  %v338 = vld [vmem:[%s1 + $0x430] sm:$0xf]
  %v339 = vld [vmem:[%s1 + $0x434] sm:$0xf]
  %v340 = vld [vmem:[%s1 + $0x438] sm:$0xf]
  %v341 = vld [vmem:[%s1 + $0x43c] sm:$0xf]
  %v342 = vld [vmem:[%s1 + $0x440] sm:$0xf]
  %v343 = vld [vmem:[%s1 + $0x444] sm:$0xf]
  %v344 = vld [vmem:[%s1 + $0x448] sm:$0xf]
  %v345 = vld [vmem:[%s1 + $0x44c] sm:$0xf]
  %v346 = vld [vmem:[%s1 + $0x450] sm:$0xf]
  %v347 = vld [vmem:[%s1 + $0x454] sm:$0xf]
  %v348 = vld [vmem:[%s1 + $0x458] sm:$0xf]
  %v349 = vld [vmem:[%s1 + $0x45c] sm:$0xf]
  %v350 = vld [vmem:[%s1 + $0x460] sm:$0xf]
  %v351 = vld [vmem:[%s1 + $0x464] sm:$0xf]
  %v352 = vld [vmem:[%s1 + $0x468] sm:$0xf]
  %v353 = vld [vmem:[%s1 + $0x46c] sm:$0xf]
  %v354 = vld [vmem:[%s1 + $0x470] sm:$0xf]
  %v355 = vld [vmem:[%s1 + $0x474] sm:$0xf]
  %v356 = vld [vmem:[%s1 + $0x478] sm:$0xf]
  %v357 = vld [vmem:[%s1 + $0x47c] sm:$0xf]
  %v358 = vld [vmem:[%s1 + $0x480] sm:$0xf]
  %v359 = vld [vmem:[%s1 + $0x484] sm:$0xf]
  %v360 = vld [vmem:[%s1 + $0x488] sm:$0xf]
  %v361 = vld [vmem:[%s1 + $0x48c] sm:$0xf]
  %v362 = vld [vmem:[%s1 + $0x490] sm:$0xf]
  %v363 = vld [vmem:[%s1 + $0x494] sm:$0xf]
  %v364 = vld [vmem:[%s1 + $0x498] sm:$0xf]
  %v365 = vld [vmem:[%s1 + $0x49c] sm:$0xf]
  %v366 = vld [vmem:[%s1 + $0x4a0] sm:$0xf]
  %v367 = vld [vmem:[%s1 + $0x4a4] sm:$0xf]
  %v368 = vld [vmem:[%s1 + $0x4a8] sm:$0xf]
  %v369 = vld [vmem:[%s1 + $0x4ac] sm:$0xf]
  %v370 = vld [vmem:[%s1 + $0x4b0] sm:$0xf]
  %v371 = vld [vmem:[%s1 + $0x4b4] sm:$0xf]
  %v372 = vld [vmem:[%s1 + $0x4b8] sm:$0xf]
  %v373 = vld [vmem:[%s1 + $0x4bc] sm:$0xf]
  %v374 = vld [vmem:[%s1 + $0x4c0] sm:$0xf]
  %v375 = vld [vmem:[%s1 + $0x4c4] sm:$0xf]
  %v376 = vld [vmem:[%s1 + $0x4c8] sm:$0xf]
  %v377 = vld [vmem:[%s1 + $0x4cc] sm:$0xf]
  %v378 = vld [vmem:[%s1 + $0x4d0] sm:$0xf]
  %v379 = vld [vmem:[%s1 + $0x4d4] sm:$0xf]
  %v380 = vld [vmem:[%s1 + $0x4d8] sm:$0xf]
  %v381 = vld [vmem:[%s1 + $0x4dc] sm:$0xf]
  %v382 = vld [vmem:[%s1 + $0x4e0] sm:$0xf]
  %v383 = vld [vmem:[%s1 + $0x4e4] sm:$0xf]
  %v384 = vld [vmem:[%s1 + $0x4e8] sm:$0xf]
  %v385 = vld [vmem:[%s1 + $0x4ec] sm:$0xf]
  %v386 = vld [vmem:[%s1 + $0x4f0] sm:$0xf]
  %v387 = vld [vmem:[%s1 + $0x4f4] sm:$0xf]
  %v388 = vld [vmem:[%s1 + $0x4f8] sm:$0xf]
  %v389 = vld [vmem:[%s1 + $0x4fc] sm:$0xf]
  %v390 = vld [vmem:[%s1 + $0x500] sm:$0xf]
  %v391 = vld [vmem:[%s1 + $0x504] sm:$0xf]
  %v392 = vld [vmem:[%s1 + $0x508] sm:$0xf]
  %v393 = vld [vmem:[%s1 + $0x50c] sm:$0xf]
  %v394 = vld [vmem:[%s1 + $0x510] sm:$0xf]
  %v395 = vld [vmem:[%s1 + $0x514] sm:$0xf]
  %v396 = vld [vmem:[%s1 + $0x518] sm:$0xf]
  %v397 = vld [vmem:[%s1 + $0x51c] sm:$0xf]
  %v398 = vld [vmem:[%s1 + $0x520] sm:$0xf]
  %v399 = vld [vmem:[%s1 + $0x524] sm:$0xf]
  %v400 = vld [vmem:[%s1 + $0x528] sm:$0xf]
  %v401 = vld [vmem:[%s1 + $0x52c] sm:$0xf]
  %v402 = vld [vmem:[%s1 + $0x530] sm:$0xf]
  %v403 = vld [vmem:[%s1 + $0x534] sm:$0xf]
  %v404 = vld [vmem:[%s1 + $0x538] sm:$0xf]
  %v405 = vld [vmem:[%s1 + $0x53c] sm:$0xf]
  %v406 = vld [vmem:[%s1 + $0x540] sm:$0xf]
  %v407 = vld [vmem:[%s1 + $0x544] sm:$0xf]
  %v408 = vld [vmem:[%s1 + $0x548] sm:$0xf]
  %v409 = vld [vmem:[%s1 + $0x54c] sm:$0xf]
  %v410 = vld [vmem:[%s1 + $0x550] sm:$0xf]
  %v411 = vld [vmem:[%s1 + $0x554] sm:$0xf]
  %v412 = vld [vmem:[%s1 + $0x558] sm:$0xf]
  %v413 = vld [vmem:[%s1 + $0x55c] sm:$0xf]
  %v414 = vld [vmem:[%s1 + $0x560] sm:$0xf]
  %v415 = vld [vmem:[%s1 + $0x564] sm:$0xf]
  %v416 = vld [vmem:[%s1 + $0x568] sm:$0xf]
  %v417 = vld [vmem:[%s1 + $0x56c] sm:$0xf]
  %v418 = vld [vmem:[%s1 + $0x570] sm:$0xf]
  %v419 = vld [vmem:[%s1 + $0x574] sm:$0xf]
  %v420 = vld [vmem:[%s1 + $0x578] sm:$0xf]
  %v421 = vld [vmem:[%s1 + $0x57c] sm:$0xf]
  %v422 = vld [vmem:[%s1 + $0x580] sm:$0xf]
  %v423 = vld [vmem:[%s1 + $0x584] sm:$0xf]
  %v424 = vld [vmem:[%s1 + $0x588] sm:$0xf]
  %v425 = vld [vmem:[%s1 + $0x58c] sm:$0xf]
  %v426 = vld [vmem:[%s1 + $0x590] sm:$0xf]
  %v427 = vld [vmem:[%s1 + $0x594] sm:$0xf]
  %v428 = vld [vmem:[%s1 + $0x598] sm:$0xf]
  %v429 = vld [vmem:[%s1 + $0x59c] sm:$0xf]
  %v430 = vld [vmem:[%s1 + $0x5a0] sm:$0xf]
  %v431 = vld [vmem:[%s1 + $0x5a4] sm:$0xf]
  %v432 = vld [vmem:[%s1 + $0x5a8] sm:$0xf]
  %v433 = vld [vmem:[%s1 + $0x5ac] sm:$0xf]
  %v434 = vld [vmem:[%s1 + $0x5b0] sm:$0xf]
  %v435 = vld [vmem:[%s1 + $0x5b4] sm:$0xf]
  %v436 = vld [vmem:[%s1 + $0x5b8] sm:$0xf]
  %v437 = vld [vmem:[%s1 + $0x5bc] sm:$0xf]
  %v438 = vld [vmem:[%s1 + $0x5c0] sm:$0xf]
  %v439 = vld [vmem:[%s1 + $0x5c4] sm:$0xf]
  %v440 = vld [vmem:[%s1 + $0x5c8] sm:$0xf]
  %v441 = vld [vmem:[%s1 + $0x5cc] sm:$0xf]
  %v442 = vld [vmem:[%s1 + $0x5d0] sm:$0xf]
  %v443 = vld [vmem:[%s1 + $0x5d4] sm:$0xf]
  %v444 = vld [vmem:[%s1 + $0x5d8] sm:$0xf]
  %v445 = vld [vmem:[%s1 + $0x5dc] sm:$0xf]
  %v446 = vld [vmem:[%s1 + $0x5e0] sm:$0xf]
  %v447 = vld [vmem:[%s1 + $0x5e4] sm:$0xf]
  %v448 = vld [vmem:[%s1 + $0x5e8] sm:$0xf]
  %v449 = vld [vmem:[%s1 + $0x5ec] sm:$0xf]
  %v450 = vld [vmem:[%s1 + $0x5f0] sm:$0xf]
  %v451 = vld [vmem:[%s1 + $0x5f4] sm:$0xf]
  %v452 = vld [vmem:[%s1 + $0x5f8] sm:$0xf]
  %v453 = vld [vmem:[%s1 + $0x5fc] sm:$0xf]
  %v454 = vld [vmem:[%s1 + $0x600] sm:$0xf]
  %v455 = vld [vmem:[%s1 + $0x604] sm:$0xf]
  %v456 = vld [vmem:[%s1 + $0x608] sm:$0xf]
  %v457 = vld [vmem:[%s1 + $0x60c] sm:$0xf]
  %v458 = vld [vmem:[%s1 + $0x610] sm:$0xf]
  %v459 = vld [vmem:[%s1 + $0x614] sm:$0xf]
  %v460 = vld [vmem:[%s1 + $0x618] sm:$0xf]
  %v461 = vld [vmem:[%s1 + $0x61c] sm:$0xf]
  %v462 = vld [vmem:[%s1 + $0x620] sm:$0xf]
  %v463 = vld [vmem:[%s1 + $0x624] sm:$0xf]
  %v464 = vld [vmem:[%s1 + $0x628] sm:$0xf]
  %v465 = vld [vmem:[%s1 + $0x62c] sm:$0xf]
  %v466 = vld [vmem:[%s1 + $0x630] sm:$0xf]
  %v467 = vld [vmem:[%s1 + $0x634] sm:$0xf]
  %v468 = vld [vmem:[%s1 + $0x638] sm:$0xf]
  %v469 = vld [vmem:[%s1 + $0x63c] sm:$0xf]
  %v470 = vld [vmem:[%s1 + $0x640] sm:$0xf]
  %v471 = vld [vmem:[%s1 + $0x644] sm:$0xf]
  %v472 = vld [vmem:[%s1 + $0x648] sm:$0xf]
  %v473 = vld [vmem:[%s1 + $0x64c] sm:$0xf]
  %v474 = vld [vmem:[%s1 + $0x650] sm:$0xf]
  %v475 = vld [vmem:[%s1 + $0x654] sm:$0xf]
  %v476 = vld [vmem:[%s1 + $0x658] sm:$0xf]
  %v477 = vld [vmem:[%s1 + $0x65c] sm:$0xf]
  %v478 = vld [vmem:[%s1 + $0x660] sm:$0xf]
  %v479 = vld [vmem:[%s1 + $0x664] sm:$0xf]
  %v480 = vld [vmem:[%s1 + $0x668] sm:$0xf]
  %v481 = vld [vmem:[%s1 + $0x66c] sm:$0xf]
  %v482 = vld [vmem:[%s1 + $0x670] sm:$0xf]
  %v483 = vld [vmem:[%s1 + $0x674] sm:$0xf]
  %v484 = vld [vmem:[%s1 + $0x678] sm:$0xf]
  %v485 = vld [vmem:[%s1 + $0x67c] sm:$0xf]
  %v486 = vld [vmem:[%s1 + $0x680] sm:$0xf]
  %v487 = vld [vmem:[%s1 + $0x684] sm:$0xf]
  %v488 = vld [vmem:[%s1 + $0x688] sm:$0xf]
  %v489 = vld [vmem:[%s1 + $0x68c] sm:$0xf]
  %v490 = vld [vmem:[%s1 + $0x690] sm:$0xf]
  %v491 = vld [vmem:[%s1 + $0x694] sm:$0xf]
  %v492 = vld [vmem:[%s1 + $0x698] sm:$0xf]
  %v493 = vld [vmem:[%s1 + $0x69c] sm:$0xf]
  %v494 = vld [vmem:[%s1 + $0x6a0] sm:$0xf]
  %v495 = vld [vmem:[%s1 + $0x6a4] sm:$0xf]
  %v496 = vld [vmem:[%s1 + $0x6a8] sm:$0xf]
  %v497 = vld [vmem:[%s1 + $0x6ac] sm:$0xf]
  %v498 = vld [vmem:[%s1 + $0x6b0] sm:$0xf]
  %v499 = vld [vmem:[%s1 + $0x6b4] sm:$0xf]
  %v500 = vld [vmem:[%s1 + $0x6b8] sm:$0xf]
  %v501 = vld [vmem:[%s1 + $0x6bc] sm:$0xf]
  %v502 = vld [vmem:[%s1 + $0x6c0] sm:$0xf]
  %v503 = vld [vmem:[%s1 + $0x6c4] sm:$0xf]
  %v504 = vld [vmem:[%s1 + $0x6c8] sm:$0xf]
  %v505 = vld [vmem:[%s1 + $0x6cc] sm:$0xf]
  %v506 = vld [vmem:[%s1 + $0x6d0] sm:$0xf]
  %v507 = vld [vmem:[%s1 + $0x6d4] sm:$0xf]
  %v508 = vld [vmem:[%s1 + $0x6d8] sm:$0xf]
  %v509 = vld [vmem:[%s1 + $0x6dc] sm:$0xf]
  %v510 = vld [vmem:[%s1 + $0x6e0] sm:$0xf]
  %v511 = vld [vmem:[%s1 + $0x6e4] sm:$0xf]
  %v512 = vld [vmem:[%s1 + $0x6e8] sm:$0xf]
  %v513 = vld [vmem:[%s1 + $0x6ec] sm:$0xf]
  %v514 = vld [vmem:[%s1 + $0x6f0] sm:$0xf]
  %v515 = vld [vmem:[%s1 + $0x6f4] sm:$0xf]
  %v516 = vld [vmem:[%s1 + $0x6f8] sm:$0xf]
  %v517 = vld [vmem:[%s1 + $0x6fc] sm:$0xf]
  %v518 = vld [vmem:[%s1 + $0x700] sm:$0xf]
  %v519 = vld [vmem:[%s1 + $0x704] sm:$0xf]
  %v520 = vld [vmem:[%s1 + $0x708] sm:$0xf]
  %v521 = vld [vmem:[%s1 + $0x70c] sm:$0xf]
  %v522 = vld [vmem:[%s1 + $0x710] sm:$0xf]
  %v523 = vld [vmem:[%s1 + $0x714] sm:$0xf]
  %v524 = vld [vmem:[%s1 + $0x718] sm:$0xf]
  %v525 = vld [vmem:[%s1 + $0x71c] sm:$0xf]
  %v526 = vld [vmem:[%s1 + $0x720] sm:$0xf]
  %v527 = vld [vmem:[%s1 + $0x724] sm:$0xf]
  %v528 = vld [vmem:[%s1 + $0x728] sm:$0xf]
  %v529 = vld [vmem:[%s1 + $0x72c] sm:$0xf]
  %v530 = vld [vmem:[%s1 + $0x730] sm:$0xf]
  %v531 = vld [vmem:[%s1 + $0x734] sm:$0xf]
  %v532 = vld [vmem:[%s1 + $0x738] sm:$0xf]
  %v533 = vld [vmem:[%s1 + $0x73c] sm:$0xf]
  %v534 = vld [vmem:[%s1 + $0x740] sm:$0xf]
  %v535 = vld [vmem:[%s1 + $0x744] sm:$0xf]
  %v536 = vld [vmem:[%s1 + $0x748] sm:$0xf]
  %v537 = vld [vmem:[%s1 + $0x74c] sm:$0xf]
  %v538 = vld [vmem:[%s1 + $0x750] sm:$0xf]
  %v539 = vld [vmem:[%s1 + $0x754] sm:$0xf]
  %v540 = vld [vmem:[%s1 + $0x758] sm:$0xf]
  %v541 = vld [vmem:[%s1 + $0x75c] sm:$0xf]
  %v542 = vld [vmem:[%s1 + $0x760] sm:$0xf]
  %v543 = vld [vmem:[%s1 + $0x764] sm:$0xf]
  %v544 = vld [vmem:[%s1 + $0x768] sm:$0xf]
  %v545 = vld [vmem:[%s1 + $0x76c] sm:$0xf]
  %v546 = vld [vmem:[%s1 + $0x770] sm:$0xf]
  %v547 = vld [vmem:[%s1 + $0x774] sm:$0xf]
  %v548 = vld [vmem:[%s1 + $0x778] sm:$0xf]
  %v549 = vld [vmem:[%s1 + $0x77c] sm:$0xf]
  %v550 = vld [vmem:[%s1 + $0x780] sm:$0xf]
  %v551 = vld [vmem:[%s1 + $0x784] sm:$0xf]
  %v552 = vld [vmem:[%s1 + $0x788] sm:$0xf]
  %v553 = vld [vmem:[%s1 + $0x78c] sm:$0xf]
  %v554 = vld [vmem:[%s1 + $0x790] sm:$0xf]
  %v555 = vld [vmem:[%s1 + $0x794] sm:$0xf]
  %v556 = vld [vmem:[%s1 + $0x798] sm:$0xf]
  %v557 = vld [vmem:[%s1 + $0x79c] sm:$0xf]
  %v558 = vld [vmem:[%s1 + $0x7a0] sm:$0xf]
  %v559 = vld [vmem:[%s1 + $0x7a4] sm:$0xf]
  %v560 = vld [vmem:[%s1 + $0x7a8] sm:$0xf]
  %v561 = vld [vmem:[%s1 + $0x7ac] sm:$0xf]
  %v562 = vld [vmem:[%s1 + $0x7b0] sm:$0xf]
  %v563 = vld [vmem:[%s1 + $0x7b4] sm:$0xf]
  %v564 = vld [vmem:[%s1 + $0x7b8] sm:$0xf]
  %v565 = vld [vmem:[%s1 + $0x7bc] sm:$0xf]
  %v566 = vld [vmem:[%s1 + $0x7c0] sm:$0xf]
  %v567 = vld [vmem:[%s1 + $0x7c4] sm:$0xf]
  %v568 = vld [vmem:[%s1 + $0x7c8] sm:$0xf]
  %v569 = vld [vmem:[%s1 + $0x7cc] sm:$0xf]
  %v570 = vld [vmem:[%s1 + $0x7d0] sm:$0xf]
  %v571 = vld [vmem:[%s1 + $0x7d4] sm:$0xf]
  %v572 = vld [vmem:[%s1 + $0x7d8] sm:$0xf]
  %v573 = vld [vmem:[%s1 + $0x7dc] sm:$0xf]
  %v574 = vld [vmem:[%s1 + $0x7e0] sm:$0xf]
  %v575 = vld [vmem:[%s1 + $0x7e4] sm:$0xf]
  %v576 = vld [vmem:[%s1 + $0x7e8] sm:$0xf]
  %v577 = vld [vmem:[%s1 + $0x7ec] sm:$0xf]
  %v578 = vld [vmem:[%s1 + $0x7f0] sm:$0xf]
  %v579 = vld [vmem:[%s1 + $0x7f4] sm:$0xf]
  %v580 = vld [vmem:[%s1 + $0x7f8] sm:$0xf]
  %v581 = vld [vmem:[%s1 + $0x7fc] sm:$0xf]
  %v582 = vld [vmem:[%s1 + $0x800] sm:$0xf]
  %v583 = vld [vmem:[%s1 + $0x804] sm:$0xf]
  %v584 = vld [vmem:[%s1 + $0x808] sm:$0xf]
  %v585 = vld [vmem:[%s1 + $0x80c] sm:$0xf]
  %v586 = vld [vmem:[%s1 + $0x810] sm:$0xf]
  %v587 = vld [vmem:[%s1 + $0x814] sm:$0xf]
  %v588 = vld [vmem:[%s1 + $0x818] sm:$0xf]
  %v589 = vld [vmem:[%s1 + $0x81c] sm:$0xf]
  %v590 = vld [vmem:[%s1 + $0x820] sm:$0xf]
  %v591 = vld [vmem:[%s1 + $0x824] sm:$0xf]
  %v592 = vld [vmem:[%s1 + $0x828] sm:$0xf]
  %v593 = vld [vmem:[%s1 + $0x82c] sm:$0xf]
  %v594 = vld [vmem:[%s1 + $0x830] sm:$0xf]
  %v595 = vld [vmem:[%s1 + $0x834] sm:$0xf]
  %v596 = vld [vmem:[%s1 + $0x838] sm:$0xf]
  %v597 = vld [vmem:[%s1 + $0x83c] sm:$0xf]
  %v598 = vld [vmem:[%s1 + $0x840] sm:$0xf]
  %v599 = vld [vmem:[%s1 + $0x844] sm:$0xf]
  %v600 = vld [vmem:[%s1 + $0x848] sm:$0xf]
  %v601 = vld [vmem:[%s1 + $0x84c] sm:$0xf]
  %v602 = vld [vmem:[%s1 + $0x850] sm:$0xf]
  %v603 = vld [vmem:[%s1 + $0x854] sm:$0xf]
  %v604 = vld [vmem:[%s1 + $0x858] sm:$0xf]
  %v605 = vld [vmem:[%s1 + $0x85c] sm:$0xf]
  %v606 = vld [vmem:[%s1 + $0x860] sm:$0xf]
  %v607 = vld [vmem:[%s1 + $0x864] sm:$0xf]
  %v608 = vld [vmem:[%s1 + $0x868] sm:$0xf]
  %v609 = vld [vmem:[%s1 + $0x86c] sm:$0xf]
  %v610 = vld [vmem:[%s1 + $0x870] sm:$0xf]
  %v611 = vld [vmem:[%s1 + $0x874] sm:$0xf]
  %v612 = vld [vmem:[%s1 + $0x878] sm:$0xf]
  %v613 = vld [vmem:[%s1 + $0x87c] sm:$0xf]
  %v614 = vld [vmem:[%s1 + $0x880] sm:$0xf]
  %v615 = vld [vmem:[%s1 + $0x884] sm:$0xf]
  %v616 = vld [vmem:[%s1 + $0x888] sm:$0xf]
  %v617 = vld [vmem:[%s1 + $0x88c] sm:$0xf]
  %v618 = vld [vmem:[%s1 + $0x890] sm:$0xf]
  %v619 = vld [vmem:[%s1 + $0x894] sm:$0xf]
  %v620 = vld [vmem:[%s1 + $0x898] sm:$0xf]
  %v621 = vld [vmem:[%s1 + $0x89c] sm:$0xf]
  %v622 = vld [vmem:[%s1 + $0x8a0] sm:$0xf]
  %v623 = vld [vmem:[%s1 + $0x8a4] sm:$0xf]
  %v624 = vld [vmem:[%s1 + $0x8a8] sm:$0xf]
  %v625 = vld [vmem:[%s1 + $0x8ac] sm:$0xf]
  %v626 = vld [vmem:[%s1 + $0x8b0] sm:$0xf]
  %v627 = vld [vmem:[%s1 + $0x8b4] sm:$0xf]
  %v628 = vld [vmem:[%s1 + $0x8b8] sm:$0xf]
  %v629 = vld [vmem:[%s1 + $0x8bc] sm:$0xf]
  %v630 = vld [vmem:[%s1 + $0x8c0] sm:$0xf]
  %v631 = vld [vmem:[%s1 + $0x8c4] sm:$0xf]
  %v632 = vld [vmem:[%s1 + $0x8c8] sm:$0xf]
  %v633 = vld [vmem:[%s1 + $0x8cc] sm:$0xf]
  %v634 = vld [vmem:[%s1 + $0x8d0] sm:$0xf]
  %v635 = vld [vmem:[%s1 + $0x8d4] sm:$0xf]
  %v636 = vld [vmem:[%s1 + $0x8d8] sm:$0xf]
  %v637 = vld [vmem:[%s1 + $0x8dc] sm:$0xf]
  %v638 = vld [vmem:[%s1 + $0x8e0] sm:$0xf]
  %v639 = vld [vmem:[%s1 + $0x8e4] sm:$0xf]
  %v640 = vld [vmem:[%s1 + $0x8e8] sm:$0xf]
  %v641 = vld [vmem:[%s1 + $0x8ec] sm:$0xf]
  %v642 = vld [vmem:[%s1 + $0x8f0] sm:$0xf]
  %v643 = vld [vmem:[%s1 + $0x8f4] sm:$0xf]
  %v644 = vld [vmem:[%s1 + $0x8f8] sm:$0xf]
  %v645 = vld [vmem:[%s1 + $0x8fc] sm:$0xf]
  %v646 = vld [vmem:[%s1 + $0x900] sm:$0xf]
  %v647 = vld [vmem:[%s1 + $0x904] sm:$0xf]
  %v648 = vld [vmem:[%s1 + $0x908] sm:$0xf]
  %v649 = vld [vmem:[%s1 + $0x90c] sm:$0xf]
  %v650 = vld [vmem:[%s1 + $0x910] sm:$0xf]
  %v651 = vld [vmem:[%s1 + $0x914] sm:$0xf]
  %v652 = vld [vmem:[%s1 + $0x918] sm:$0xf]
  %v653 = vld [vmem:[%s1 + $0x91c] sm:$0xf]
  %v654 = vld [vmem:[%s1 + $0x920] sm:$0xf]
  %v655 = vld [vmem:[%s1 + $0x924] sm:$0xf]
  %v656 = vld [vmem:[%s1 + $0x928] sm:$0xf]
  %v657 = vld [vmem:[%s1 + $0x92c] sm:$0xf]
  %v658 = vld [vmem:[%s1 + $0x930] sm:$0xf]
  %v659 = vld [vmem:[%s1 + $0x934] sm:$0xf]
  %v660 = vld [vmem:[%s1 + $0x938] sm:$0xf]
  %v661 = vld [vmem:[%s1 + $0x93c] sm:$0xf]
  %v662 = vld [vmem:[%s1 + $0x940] sm:$0xf]
  %v663 = vld [vmem:[%s1 + $0x944] sm:$0xf]
  %v664 = vld [vmem:[%s1 + $0x948] sm:$0xf]
  %v665 = vld [vmem:[%s1 + $0x94c] sm:$0xf]
  %v666 = vld [vmem:[%s1 + $0x950] sm:$0xf]
  %v667 = vld [vmem:[%s1 + $0x954] sm:$0xf]
  %v668 = vld [vmem:[%s1 + $0x958] sm:$0xf]
  %v669 = vld [vmem:[%s1 + $0x95c] sm:$0xf]
  %v670 = vld [vmem:[%s1 + $0x960] sm:$0xf]
  %v671 = vld [vmem:[%s1 + $0x964] sm:$0xf]
  %v672 = vld [vmem:[%s1 + $0x968] sm:$0xf]
  %v673 = vld [vmem:[%s1 + $0x96c] sm:$0xf]
  %v674 = vld [vmem:[%s1 + $0x970] sm:$0xf]
  %v675 = vld [vmem:[%s1 + $0x974] sm:$0xf]
  %v676 = vld [vmem:[%s1 + $0x978] sm:$0xf]
  %v677 = vld [vmem:[%s1 + $0x97c] sm:$0xf]
  %v678 = vld [vmem:[%s1 + $0x980] sm:$0xf]
  %v679 = vld [vmem:[%s1 + $0x984] sm:$0xf]
  %v680 = vld [vmem:[%s1 + $0x988] sm:$0xf]
  %v681 = vld [vmem:[%s1 + $0x98c] sm:$0xf]
  %v682 = vld [vmem:[%s1 + $0x990] sm:$0xf]
  %v683 = vld [vmem:[%s1 + $0x994] sm:$0xf]
  %v684 = vld [vmem:[%s1 + $0x998] sm:$0xf]
  %v685 = vld [vmem:[%s1 + $0x99c] sm:$0xf]
  %v686 = vld [vmem:[%s1 + $0x9a0] sm:$0xf]
  %v687 = vld [vmem:[%s1 + $0x9a4] sm:$0xf]
  %v688 = vld [vmem:[%s1 + $0x9a8] sm:$0xf]
  %v689 = vld [vmem:[%s1 + $0x9ac] sm:$0xf]
  %v690 = vld [vmem:[%s1 + $0x9b0] sm:$0xf]
  %v691 = vld [vmem:[%s1 + $0x9b4] sm:$0xf]
  %v692 = vld [vmem:[%s1 + $0x9b8] sm:$0xf]
  %v693 = vld [vmem:[%s1 + $0x9bc] sm:$0xf]
  %v694 = vld [vmem:[%s1 + $0x9c0] sm:$0xf]
  %v695 = vld [vmem:[%s1 + $0x9c4] sm:$0xf]
  %v696 = vld [vmem:[%s1 + $0x9c8] sm:$0xf]
  %v697 = vld [vmem:[%s1 + $0x9cc] sm:$0xf]
  %v698 = vld [vmem:[%s1 + $0x9d0] sm:$0xf]
  %v699 = vld [vmem:[%s1 + $0x9d4] sm:$0xf]
  %v700 = vld [vmem:[%s1 + $0x9d8] sm:$0xf]
  %v701 = vld [vmem:[%s1 + $0x9dc] sm:$0xf]
  %v702 = vld [vmem:[%s1 + $0x9e0] sm:$0xf]
  %v703 = vld [vmem:[%s1 + $0x9e4] sm:$0xf]
  %v704 = vld [vmem:[%s1 + $0x9e8] sm:$0xf]
  %v705 = vld [vmem:[%s1 + $0x9ec] sm:$0xf]
  %v706 = vld [vmem:[%s1 + $0x9f0] sm:$0xf]
  %v707 = vld [vmem:[%s1 + $0x9f4] sm:$0xf]
  %v708 = vld [vmem:[%s1 + $0x9f8] sm:$0xf]
  %v709 = vld [vmem:[%s1 + $0x9fc] sm:$0xf]
  %v710 = vld [vmem:[%s1 + $0xa00] sm:$0xf]
  %v711 = vld [vmem:[%s1 + $0xa04] sm:$0xf]
  %v712 = vld [vmem:[%s1 + $0xa08] sm:$0xf]
  %v713 = vld [vmem:[%s1 + $0xa0c] sm:$0xf]
  %v714 = vld [vmem:[%s1 + $0xa10] sm:$0xf]
  %v715 = vld [vmem:[%s1 + $0xa14] sm:$0xf]
  %v716 = vld [vmem:[%s1 + $0xa18] sm:$0xf]
  %v717 = vld [vmem:[%s1 + $0xa1c] sm:$0xf]
  %v718 = vld [vmem:[%s1 + $0xa20] sm:$0xf]
  %v719 = vld [vmem:[%s1 + $0xa24] sm:$0xf]
  %v720 = vld [vmem:[%s1 + $0xa28] sm:$0xf]
  %v721 = vld [vmem:[%s1 + $0xa2c] sm:$0xf]
  %v722 = vld [vmem:[%s1 + $0xa30] sm:$0xf]
  %v723 = vld [vmem:[%s1 + $0xa34] sm:$0xf]
  %v724 = vld [vmem:[%s1 + $0xa38] sm:$0xf]
  %v725 = vld [vmem:[%s1 + $0xa3c] sm:$0xf]
  %v726 = vld [vmem:[%s1 + $0xa40] sm:$0xf]
  %v727 = vld [vmem:[%s1 + $0xa44] sm:$0xf]
  %v728 = vld [vmem:[%s1 + $0xa48] sm:$0xf]
  %v729 = vld [vmem:[%s1 + $0xa4c] sm:$0xf]
  %v730 = vld [vmem:[%s1 + $0xa50] sm:$0xf]
  %v731 = vld [vmem:[%s1 + $0xa54] sm:$0xf]
  %v732 = vld [vmem:[%s1 + $0xa58] sm:$0xf]
  %v733 = vld [vmem:[%s1 + $0xa5c] sm:$0xf]
  %v734 = vld [vmem:[%s1 + $0xa60] sm:$0xf]
  %v735 = vld [vmem:[%s1 + $0xa64] sm:$0xf]
  %v736 = vld [vmem:[%s1 + $0xa68] sm:$0xf]
  %v737 = vld [vmem:[%s1 + $0xa6c] sm:$0xf]
  %v738 = vld [vmem:[%s1 + $0xa70] sm:$0xf]
  %v739 = vld [vmem:[%s1 + $0xa74] sm:$0xf]
  %v740 = vld [vmem:[%s1 + $0xa78] sm:$0xf]
  %v741 = vld [vmem:[%s1 + $0xa7c] sm:$0xf]
  %v742 = vld [vmem:[%s1 + $0xa80] sm:$0xf]
  %v743 = vld [vmem:[%s1 + $0xa84] sm:$0xf]
  %v744 = vld [vmem:[%s1 + $0xa88] sm:$0xf]
  %v745 = vld [vmem:[%s1 + $0xa8c] sm:$0xf]
  %v746 = vld [vmem:[%s1 + $0xa90] sm:$0xf]
  %v747 = vld [vmem:[%s1 + $0xa94] sm:$0xf]
  %v748 = vld [vmem:[%s1 + $0xa98] sm:$0xf]
  %v749 = vld [vmem:[%s1 + $0xa9c] sm:$0xf]
  %v750 = vld [vmem:[%s1 + $0xaa0] sm:$0xf]
  %v751 = vld [vmem:[%s1 + $0xaa4] sm:$0xf]
  %v752 = vld [vmem:[%s1 + $0xaa8] sm:$0xf]
  %v753 = vld [vmem:[%s1 + $0xaac] sm:$0xf]
  %v754 = vld [vmem:[%s1 + $0xab0] sm:$0xf]
  %v755 = vld [vmem:[%s1 + $0xab4] sm:$0xf]
  %v756 = vld [vmem:[%s1 + $0xab8] sm:$0xf]
  %v757 = vld [vmem:[%s1 + $0xabc] sm:$0xf]
  %v758 = vld [vmem:[%s1 + $0xac0] sm:$0xf]
  %v759 = vld [vmem:[%s1 + $0xac4] sm:$0xf]
  %v760 = vld [vmem:[%s1 + $0xac8] sm:$0xf]
  %v761 = vld [vmem:[%s1 + $0xacc] sm:$0xf]
  %v762 = vld [vmem:[%s1 + $0xad0] sm:$0xf]
  %v763 = vld [vmem:[%s1 + $0xad4] sm:$0xf]
  %v764 = vld [vmem:[%s1 + $0xad8] sm:$0xf]
  %v765 = vld [vmem:[%s1 + $0xadc] sm:$0xf]
  %v766 = vld [vmem:[%s1 + $0xae0] sm:$0xf]
  %v767 = vld [vmem:[%s1 + $0xae4] sm:$0xf]
  %v768 = vld [vmem:[%s1 + $0xae8] sm:$0xf]
  %v769 = vld [vmem:[%s1 + $0xaec] sm:$0xf]
  %v770 = vld [vmem:[%s1 + $0xaf0] sm:$0xf]
  %v771 = vld [vmem:[%s1 + $0xaf4] sm:$0xf]
  %v772 = vld [vmem:[%s1 + $0xaf8] sm:$0xf]
  %v773 = vld [vmem:[%s1 + $0xafc] sm:$0xf]
  %v774 = vld [vmem:[%s1 + $0xb00] sm:$0xf]
  %v775 = vld [vmem:[%s1 + $0xb04] sm:$0xf]
  %v776 = vld [vmem:[%s1 + $0xb08] sm:$0xf]
  %v777 = vld [vmem:[%s1 + $0xb0c] sm:$0xf]
  %v778 = vld [vmem:[%s1 + $0xb10] sm:$0xf]
  %v779 = vld [vmem:[%s1 + $0xb14] sm:$0xf]
  %v780 = vld [vmem:[%s1 + $0xb18] sm:$0xf]
  %v781 = vld [vmem:[%s1 + $0xb1c] sm:$0xf]
  %v782 = vld [vmem:[%s1 + $0xb20] sm:$0xf]
  %v783 = vld [vmem:[%s1 + $0xb24] sm:$0xf]
  %v784 = vld [vmem:[%s1 + $0xb28] sm:$0xf]
  %v785 = vld [vmem:[%s1 + $0xb2c] sm:$0xf]
  %v786 = vld [vmem:[%s1 + $0xb30] sm:$0xf]
  %v787 = vld [vmem:[%s1 + $0xb34] sm:$0xf]
  %v788 = vld [vmem:[%s1 + $0xb38] sm:$0xf]
  %v789 = vld [vmem:[%s1 + $0xb3c] sm:$0xf]
  %v790 = vld [vmem:[%s1 + $0xb40] sm:$0xf]
  %v791 = vld [vmem:[%s1 + $0xb44] sm:$0xf]
  %v792 = vld [vmem:[%s1 + $0xb48] sm:$0xf]
  %v793 = vld [vmem:[%s1 + $0xb4c] sm:$0xf]
  %v794 = vld [vmem:[%s1 + $0xb50] sm:$0xf]
  %v795 = vld [vmem:[%s1 + $0xb54] sm:$0xf]
  %v796 = vld [vmem:[%s1 + $0xb58] sm:$0xf]
  %v797 = vld [vmem:[%s1 + $0xb5c] sm:$0xf]
  %v798 = vld [vmem:[%s1 + $0xb60] sm:$0xf]
  %v799 = vld [vmem:[%s1 + $0xb64] sm:$0xf]
  %v800 = vld [vmem:[%s1 + $0xb68] sm:$0xf]
  %v801 = vld [vmem:[%s1 + $0xb6c] sm:$0xf]
  %v802 = vld [vmem:[%s1 + $0xb70] sm:$0xf]
  %v803 = vld [vmem:[%s1 + $0xb74] sm:$0xf]
  %v804 = vld [vmem:[%s1 + $0xb78] sm:$0xf]
  %v805 = vld [vmem:[%s1 + $0xb7c] sm:$0xf]
  %v806 = vld [vmem:[%s1 + $0xb80] sm:$0xf]
  %v807 = vld [vmem:[%s1 + $0xb84] sm:$0xf]
  %v808 = vld [vmem:[%s1 + $0xb88] sm:$0xf]
  %v809 = vld [vmem:[%s1 + $0xb8c] sm:$0xf]
  %v810 = vld [vmem:[%s1 + $0xb90] sm:$0xf]
  %v811 = vld [vmem:[%s1 + $0xb94] sm:$0xf]
  %v812 = vld [vmem:[%s1 + $0xb98] sm:$0xf]
  %v813 = vld [vmem:[%s1 + $0xb9c] sm:$0xf]
  %v814 = vld [vmem:[%s1 + $0xba0] sm:$0xf]
  %v815 = vld [vmem:[%s1 + $0xba4] sm:$0xf]
  %v816 = vld [vmem:[%s1 + $0xba8] sm:$0xf]
  %v817 = vld [vmem:[%s1 + $0xbac] sm:$0xf]
  %v818 = vld [vmem:[%s1 + $0xbb0] sm:$0xf]
  %v819 = vld [vmem:[%s1 + $0xbb4] sm:$0xf]
  %v820 = vld [vmem:[%s1 + $0xbb8] sm:$0xf]
  %v821 = vld [vmem:[%s1 + $0xbbc] sm:$0xf]
  %v822 = vld [vmem:[%s1 + $0xbc0] sm:$0xf]
  %v823 = vld [vmem:[%s1 + $0xbc4] sm:$0xf]
  %v824 = vld [vmem:[%s1 + $0xbc8] sm:$0xf]
  %v825 = vld [vmem:[%s1 + $0xbcc] sm:$0xf]
  %v826 = vld [vmem:[%s1 + $0xbd0] sm:$0xf]
  %v827 = vld [vmem:[%s1 + $0xbd4] sm:$0xf]
  %v828 = vld [vmem:[%s1 + $0xbd8] sm:$0xf]
  %v829 = vld [vmem:[%s1 + $0xbdc] sm:$0xf]
  %v830 = vld [vmem:[%s1 + $0xbe0] sm:$0xf]
  %v831 = vld [vmem:[%s1 + $0xbe4] sm:$0xf]
  %v832 = vld [vmem:[%s1 + $0xbe8] sm:$0xf]
  %v833 = vld [vmem:[%s1 + $0xbec] sm:$0xf]
  %v834 = vld [vmem:[%s1 + $0xbf0] sm:$0xf]
  %v835 = vld [vmem:[%s1 + $0xbf4] sm:$0xf]
  %v836 = vld [vmem:[%s1 + $0xbf8] sm:$0xf]
  %v837 = vld [vmem:[%s1 + $0xbfc] sm:$0xf]
  %v838 = vld [vmem:[%s1 + $0xc00] sm:$0xf]
  %v839 = vld [vmem:[%s1 + $0xc04] sm:$0xf]
  %v840 = vld [vmem:[%s1 + $0xc08] sm:$0xf]
  %v841 = vld [vmem:[%s1 + $0xc0c] sm:$0xf]
  %v842 = vld [vmem:[%s1 + $0xc10] sm:$0xf]
  %v843 = vld [vmem:[%s1 + $0xc14] sm:$0xf]
  %v844 = vld [vmem:[%s1 + $0xc18] sm:$0xf]
  %v845 = vld [vmem:[%s1 + $0xc1c] sm:$0xf]
  %v846 = vld [vmem:[%s1 + $0xc20] sm:$0xf]
  %v847 = vld [vmem:[%s1 + $0xc24] sm:$0xf]
  %v848 = vld [vmem:[%s1 + $0xc28] sm:$0xf]
  %v849 = vld [vmem:[%s1 + $0xc2c] sm:$0xf]
  %v850 = vld [vmem:[%s1 + $0xc30] sm:$0xf]
  %v851 = vld [vmem:[%s1 + $0xc34] sm:$0xf]
  %v852 = vld [vmem:[%s1 + $0xc38] sm:$0xf]
  %v853 = vld [vmem:[%s1 + $0xc3c] sm:$0xf]
  %v854 = vld [vmem:[%s1 + $0xc40] sm:$0xf]
  %v855 = vld [vmem:[%s1 + $0xc44] sm:$0xf]
  %v856 = vld [vmem:[%s1 + $0xc48] sm:$0xf]
  %v857 = vld [vmem:[%s1 + $0xc4c] sm:$0xf]
  %v858 = vld [vmem:[%s1 + $0xc50] sm:$0xf]
  %v859 = vld [vmem:[%s1 + $0xc54] sm:$0xf]
  %v860 = vld [vmem:[%s1 + $0xc58] sm:$0xf]
  %v861 = vld [vmem:[%s1 + $0xc5c] sm:$0xf]
  %v862 = vld [vmem:[%s1 + $0xc60] sm:$0xf]
  %v863 = vld [vmem:[%s1 + $0xc64] sm:$0xf]
  %v864 = vld [vmem:[%s1 + $0xc68] sm:$0xf]
  %v865 = vld [vmem:[%s1 + $0xc6c] sm:$0xf]
  %v866 = vld [vmem:[%s1 + $0xc70] sm:$0xf]
  %v867 = vld [vmem:[%s1 + $0xc74] sm:$0xf]
  %v868 = vld [vmem:[%s1 + $0xc78] sm:$0xf]
  %v869 = vld [vmem:[%s1 + $0xc7c] sm:$0xf]
  %v870 = vld [vmem:[%s1 + $0xc80] sm:$0xf]
  %v871 = vld [vmem:[%s1 + $0xc84] sm:$0xf]
  %v872 = vld [vmem:[%s1 + $0xc88] sm:$0xf]
  %v873 = vld [vmem:[%s1 + $0xc8c] sm:$0xf]
  %v874 = vld [vmem:[%s1 + $0xc90] sm:$0xf]
  %v875 = vld [vmem:[%s1 + $0xc94] sm:$0xf]
  %v876 = vld [vmem:[%s1 + $0xc98] sm:$0xf]
  %v877 = vld [vmem:[%s1 + $0xc9c] sm:$0xf]
  %v878 = vld [vmem:[%s1 + $0xca0] sm:$0xf]
  %v879 = vld [vmem:[%s1 + $0xca4] sm:$0xf]
  %v880 = vld [vmem:[%s1 + $0xca8] sm:$0xf]
  %v881 = vld [vmem:[%s1 + $0xcac] sm:$0xf]
  %v882 = vld [vmem:[%s1 + $0xcb0] sm:$0xf]
  %v883 = vld [vmem:[%s1 + $0xcb4] sm:$0xf]
  %v884 = vld [vmem:[%s1 + $0xcb8] sm:$0xf]
  %v885 = vld [vmem:[%s1 + $0xcbc] sm:$0xf]
  %v886 = vld [vmem:[%s1 + $0xcc0] sm:$0xf]
  %v887 = vld [vmem:[%s1 + $0xcc4] sm:$0xf]
  %v888 = vld [vmem:[%s1 + $0xcc8] sm:$0xf]
  %v889 = vld [vmem:[%s1 + $0xccc] sm:$0xf]
  %v890 = vld [vmem:[%s1 + $0xcd0] sm:$0xf]
  %v891 = vld [vmem:[%s1 + $0xcd4] sm:$0xf]
  %v892 = vld [vmem:[%s1 + $0xcd8] sm:$0xf]
  %v893 = vld [vmem:[%s1 + $0xcdc] sm:$0xf]
  %v894 = vld [vmem:[%s1 + $0xce0] sm:$0xf]
  %v895 = vld [vmem:[%s1 + $0xce4] sm:$0xf]
  %v896 = vld [vmem:[%s1 + $0xce8] sm:$0xf]
  %v897 = vld [vmem:[%s1 + $0xcec] sm:$0xf]
  %v898 = vld [vmem:[%s1 + $0xcf0] sm:$0xf]
  %v899 = vld [vmem:[%s1 + $0xcf4] sm:$0xf]
  %v900 = vld [vmem:[%s1 + $0xcf8] sm:$0xf]
  %v901 = vld [vmem:[%s1 + $0xcfc] sm:$0xf]
  %v902 = vld [vmem:[%s1 + $0xd00] sm:$0xf]
  %v903 = vld [vmem:[%s1 + $0xd04] sm:$0xf]
  %v904 = vld [vmem:[%s1 + $0xd08] sm:$0xf]
  %v905 = vld [vmem:[%s1 + $0xd0c] sm:$0xf]
  %v906 = vld [vmem:[%s1 + $0xd10] sm:$0xf]
  %v907 = vld [vmem:[%s1 + $0xd14] sm:$0xf]
  %v908 = vld [vmem:[%s1 + $0xd18] sm:$0xf]
  %v909 = vld [vmem:[%s1 + $0xd1c] sm:$0xf]
  %v910 = vld [vmem:[%s1 + $0xd20] sm:$0xf]
  %v911 = vld [vmem:[%s1 + $0xd24] sm:$0xf]
  %v912 = vld [vmem:[%s1 + $0xd28] sm:$0xf]
  %v913 = vld [vmem:[%s1 + $0xd2c] sm:$0xf]
  %v914 = vld [vmem:[%s1 + $0xd30] sm:$0xf]
  %v915 = vld [vmem:[%s1 + $0xd34] sm:$0xf]
  %v916 = vld [vmem:[%s1 + $0xd38] sm:$0xf]
  %v917 = vld [vmem:[%s1 + $0xd3c] sm:$0xf]
  %v918 = vld [vmem:[%s1 + $0xd40] sm:$0xf]
  %v919 = vld [vmem:[%s1 + $0xd44] sm:$0xf]
  %v920 = vld [vmem:[%s1 + $0xd48] sm:$0xf]
  %v921 = vld [vmem:[%s1 + $0xd4c] sm:$0xf]
  %v922 = vld [vmem:[%s1 + $0xd50] sm:$0xf]
  %v923 = vld [vmem:[%s1 + $0xd54] sm:$0xf]
  %v924 = vld [vmem:[%s1 + $0xd58] sm:$0xf]
  %v925 = vld [vmem:[%s1 + $0xd5c] sm:$0xf]
  %v926 = vld [vmem:[%s1 + $0xd60] sm:$0xf]
  %v927 = vld [vmem:[%s1 + $0xd64] sm:$0xf]
  %v928 = vld [vmem:[%s1 + $0xd68] sm:$0xf]
  %v929 = vld [vmem:[%s1 + $0xd6c] sm:$0xf]
  %v930 = vld [vmem:[%s1 + $0xd70] sm:$0xf]
  %v931 = vld [vmem:[%s1 + $0xd74] sm:$0xf]
  %v932 = vld [vmem:[%s1 + $0xd78] sm:$0xf]
  %v933 = vld [vmem:[%s1 + $0xd7c] sm:$0xf]
  %v934 = vld [vmem:[%s1 + $0xd80] sm:$0xf]
  %v935 = vld [vmem:[%s1 + $0xd84] sm:$0xf]
  %v936 = vld [vmem:[%s1 + $0xd88] sm:$0xf]
  %v937 = vld [vmem:[%s1 + $0xd8c] sm:$0xf]
  %v938 = vld [vmem:[%s1 + $0xd90] sm:$0xf]
  %v939 = vld [vmem:[%s1 + $0xd94] sm:$0xf]
  %v940 = vld [vmem:[%s1 + $0xd98] sm:$0xf]
  %v941 = vld [vmem:[%s1 + $0xd9c] sm:$0xf]
  %v942 = vld [vmem:[%s1 + $0xda0] sm:$0xf]
  %v943 = vld [vmem:[%s1 + $0xda4] sm:$0xf]
  %v944 = vld [vmem:[%s1 + $0xda8] sm:$0xf]
  %v945 = vld [vmem:[%s1 + $0xdac] sm:$0xf]
  %v946 = vld [vmem:[%s1 + $0xdb0] sm:$0xf]
  %v947 = vld [vmem:[%s1 + $0xdb4] sm:$0xf]
  %v948 = vld [vmem:[%s1 + $0xdb8] sm:$0xf]
  %v949 = vld [vmem:[%s1 + $0xdbc] sm:$0xf]
  %v950 = vld [vmem:[%s1 + $0xdc0] sm:$0xf]
  %v951 = vld [vmem:[%s1 + $0xdc4] sm:$0xf]
  %v952 = vld [vmem:[%s1 + $0xdc8] sm:$0xf]
  %v953 = vld [vmem:[%s1 + $0xdcc] sm:$0xf]
  %v954 = vld [vmem:[%s1 + $0xdd0] sm:$0xf]
  %v955 = vld [vmem:[%s1 + $0xdd4] sm:$0xf]
  %v956 = vld [vmem:[%s1 + $0xdd8] sm:$0xf]
  %v957 = vld [vmem:[%s1 + $0xddc] sm:$0xf]
  %v958 = vld [vmem:[%s1 + $0xde0] sm:$0xf]
  %v959 = vld [vmem:[%s1 + $0xde4] sm:$0xf]
  %v960 = vld [vmem:[%s1 + $0xde8] sm:$0xf]
  %v961 = vld [vmem:[%s1 + $0xdec] sm:$0xf]
  %v962 = vld [vmem:[%s1 + $0xdf0] sm:$0xf]
  %v963 = vld [vmem:[%s1 + $0xdf4] sm:$0xf]
  %v964 = vld [vmem:[%s1 + $0xdf8] sm:$0xf]
  %v965 = vld [vmem:[%s1 + $0xdfc] sm:$0xf]
  %v966 = vld [vmem:[%s1 + $0xe00] sm:$0xf]
  %v967 = vld [vmem:[%s1 + $0xe04] sm:$0xf]
  %v968 = vld [vmem:[%s1 + $0xe08] sm:$0xf]
  %v969 = vld [vmem:[%s1 + $0xe0c] sm:$0xf]
  %v970 = vld [vmem:[%s1 + $0xe10] sm:$0xf]
  %v971 = vld [vmem:[%s1 + $0xe14] sm:$0xf]
  %v972 = vld [vmem:[%s1 + $0xe18] sm:$0xf]
  %v973 = vld [vmem:[%s1 + $0xe1c] sm:$0xf]
  %v974 = vld [vmem:[%s1 + $0xe20] sm:$0xf]
  %v975 = vld [vmem:[%s1 + $0xe24] sm:$0xf]
  %v976 = vld [vmem:[%s1 + $0xe28] sm:$0xf]
  %v977 = vld [vmem:[%s1 + $0xe2c] sm:$0xf]
  %v978 = vld [vmem:[%s1 + $0xe30] sm:$0xf]
  %v979 = vld [vmem:[%s1 + $0xe34] sm:$0xf]
  %v980 = vld [vmem:[%s1 + $0xe38] sm:$0xf]
  %v981 = vld [vmem:[%s1 + $0xe3c] sm:$0xf]
  %v982 = vld [vmem:[%s1 + $0xe40] sm:$0xf]
  %v983 = vld [vmem:[%s1 + $0xe44] sm:$0xf]
  %v984 = vld [vmem:[%s1 + $0xe48] sm:$0xf]
  %v985 = vld [vmem:[%s1 + $0xe4c] sm:$0xf]
  %v986 = vld [vmem:[%s1 + $0xe50] sm:$0xf]
  %v987 = vld [vmem:[%s1 + $0xe54] sm:$0xf]
  %v988 = vld [vmem:[%s1 + $0xe58] sm:$0xf]
  %v989 = vld [vmem:[%s1 + $0xe5c] sm:$0xf]
  %v990 = vld [vmem:[%s1 + $0xe60] sm:$0xf]
  %v991 = vld [vmem:[%s1 + $0xe64] sm:$0xf]
  %v992 = vld [vmem:[%s1 + $0xe68] sm:$0xf]
  %v993 = vld [vmem:[%s1 + $0xe6c] sm:$0xf]
  %v994 = vld [vmem:[%s1 + $0xe70] sm:$0xf]
  %v995 = vld [vmem:[%s1 + $0xe74] sm:$0xf]
  %v996 = vld [vmem:[%s1 + $0xe78] sm:$0xf]
  %v997 = vld [vmem:[%s1 + $0xe7c] sm:$0xf]
  %v998 = vld [vmem:[%s1 + $0xe80] sm:$0xf]
  %v999 = vld [vmem:[%s1 + $0xe84] sm:$0xf]
  %v1000 = vld [vmem:[%s1 + $0xe88] sm:$0xf]
  %v1001 = vld [vmem:[%s1 + $0xe8c] sm:$0xf]
  %v1002 = vld [vmem:[%s1 + $0xe90] sm:$0xf]
  %v1003 = vld [vmem:[%s1 + $0xe94] sm:$0xf]
  %v1004 = vld [vmem:[%s1 + $0xe98] sm:$0xf]
  %v1005 = vld [vmem:[%s1 + $0xe9c] sm:$0xf]
  %v1006 = vld [vmem:[%s1 + $0xea0] sm:$0xf]
  %v1007 = vld [vmem:[%s1 + $0xea4] sm:$0xf]
  %v1008 = vld [vmem:[%s1 + $0xea8] sm:$0xf]
  %v1009 = vld [vmem:[%s1 + $0xeac] sm:$0xf]
  %v1010 = vld [vmem:[%s1 + $0xeb0] sm:$0xf]
  %v1011 = vld [vmem:[%s1 + $0xeb4] sm:$0xf]
  %v1012 = vld [vmem:[%s1 + $0xeb8] sm:$0xf]
  %v1013 = vld [vmem:[%s1 + $0xebc] sm:$0xf]
  %v1014 = vld [vmem:[%s1 + $0xec0] sm:$0xf]
  %v1015 = vld [vmem:[%s1 + $0xec4] sm:$0xf]
  %v1016 = vld [vmem:[%s1 + $0xec8] sm:$0xf]
  %v1017 = vld [vmem:[%s1 + $0xecc] sm:$0xf]
  %v1018 = vld [vmem:[%s1 + $0xed0] sm:$0xf]
  %v1019 = vld [vmem:[%s1 + $0xed4] sm:$0xf]
  %v1020 = vld [vmem:[%s1 + $0xed8] sm:$0xf]
  %v1021 = vld [vmem:[%s1 + $0xedc] sm:$0xf]
  %v1022 = vld [vmem:[%s1 + $0xee0] sm:$0xf]
  %v1023 = vld [vmem:[%s1 + $0xee4] sm:$0xf]
  %v1024 = vld [vmem:[%s1 + $0xee8] sm:$0xf]
  %v1025 = vld [vmem:[%s1 + $0xeec] sm:$0xf]
  %v1026 = vld [vmem:[%s1 + $0xef0] sm:$0xf]
  %v1027 = vld [vmem:[%s1 + $0xef4] sm:$0xf]
  %v1028 = vld [vmem:[%s1 + $0xef8] sm:$0xf]
  %v1029 = vld [vmem:[%s1 + $0xefc] sm:$0xf]
  %v1030 = vld [vmem:[%s1 + $0xf00] sm:$0xf]
  %v1031 = vld [vmem:[%s1 + $0xf04] sm:$0xf]
  %v1032 = vld [vmem:[%s1 + $0xf08] sm:$0xf]
  %v1033 = vld [vmem:[%s1 + $0xf0c] sm:$0xf]
  %v1034 = vld [vmem:[%s1 + $0xf10] sm:$0xf]
  %v1035 = vld [vmem:[%s1 + $0xf14] sm:$0xf]
  %v1036 = vld [vmem:[%s1 + $0xf18] sm:$0xf]
  %v1037 = vld [vmem:[%s1 + $0xf1c] sm:$0xf]
  %v1038 = vld [vmem:[%s1 + $0xf20] sm:$0xf]
  %v1039 = vld [vmem:[%s1 + $0xf24] sm:$0xf]
  %v1040 = vld [vmem:[%s1 + $0xf28] sm:$0xf]
  %v1041 = vld [vmem:[%s1 + $0xf2c] sm:$0xf]
  %v1042 = vld [vmem:[%s1 + $0xf30] sm:$0xf]
  %v1043 = vld [vmem:[%s1 + $0xf34] sm:$0xf]
  %v1044 = vld [vmem:[%s1 + $0xf38] sm:$0xf]
  %v1045 = vld [vmem:[%s1 + $0xf3c] sm:$0xf]
  %v1046 = vld [vmem:[%s1 + $0xf40] sm:$0xf]
  %v1047 = vld [vmem:[%s1 + $0xf44] sm:$0xf]
  %v1048 = vld [vmem:[%s1 + $0xf48] sm:$0xf]
  %v1049 = vld [vmem:[%s1 + $0xf4c] sm:$0xf]
  %v1050 = vld [vmem:[%s1 + $0xf50] sm:$0xf]
  %v1051 = vld [vmem:[%s1 + $0xf54] sm:$0xf]
  %v1052 = vld [vmem:[%s1 + $0xf58] sm:$0xf]
  %v1053 = vld [vmem:[%s1 + $0xf5c] sm:$0xf]
  %v1054 = vld [vmem:[%s1 + $0xf60] sm:$0xf]
  %v1055 = vld [vmem:[%s1 + $0xf64] sm:$0xf]
  %v1056 = vld [vmem:[%s1 + $0xf68] sm:$0xf]
  %v1057 = vld [vmem:[%s1 + $0xf6c] sm:$0xf]
  %v1058 = vld [vmem:[%s1 + $0xf70] sm:$0xf]
  %v1059 = vld [vmem:[%s1 + $0xf74] sm:$0xf]
  %v1060 = vld [vmem:[%s1 + $0xf78] sm:$0xf]
  %v1061 = vld [vmem:[%s1 + $0xf7c] sm:$0xf]
  %v1062 = vld [vmem:[%s1 + $0xf80] sm:$0xf]
  %v1063 = vld [vmem:[%s1 + $0xf84] sm:$0xf]
  %v1064 = vld [vmem:[%s1 + $0xf88] sm:$0xf]
  %v1065 = vld [vmem:[%s1 + $0xf8c] sm:$0xf]
  %v1066 = vld [vmem:[%s1 + $0xf90] sm:$0xf]
  %v1067 = vld [vmem:[%s1 + $0xf94] sm:$0xf]
  %v1068 = vld [vmem:[%s1 + $0xf98] sm:$0xf]
  %v1069 = vld [vmem:[%s1 + $0xf9c] sm:$0xf]
  %v1070 = vld [vmem:[%s1 + $0xfa0] sm:$0xf]
  %v1071 = vld [vmem:[%s1 + $0xfa4] sm:$0xf]
  %v1072 = vld [vmem:[%s1 + $0xfa8] sm:$0xf]
  %v1073 = vld [vmem:[%s1 + $0xfac] sm:$0xf]
  %v1074 = vld [vmem:[%s1 + $0xfb0] sm:$0xf]
  %v1075 = vld [vmem:[%s1 + $0xfb4] sm:$0xf]
  %v1076 = vld [vmem:[%s1 + $0xfb8] sm:$0xf]
  %v1077 = vld [vmem:[%s1 + $0xfbc] sm:$0xf]
  %v1078 = vld [vmem:[%s1 + $0xfc0] sm:$0xf]
  %v1079 = vld [vmem:[%s1 + $0xfc4] sm:$0xf]
  %v1080 = vld [vmem:[%s1 + $0xfc8] sm:$0xf]
  %v1081 = vld [vmem:[%s1 + $0xfcc] sm:$0xf]
  %v1082 = vld [vmem:[%s1 + $0xfd0] sm:$0xf]
  %v1083 = vld [vmem:[%s1 + $0xfd4] sm:$0xf]
  %v1084 = vld [vmem:[%s1 + $0xfd8] sm:$0xf]
  %v1085 = vld [vmem:[%s1 + $0xfdc] sm:$0xf]
  %v1086 = vld [vmem:[%s1 + $0xfe0] sm:$0xf]
  %v1087 = vld [vmem:[%s1 + $0xfe4] sm:$0xf]
  %v1088 = vld [vmem:[%s1 + $0xfe8] sm:$0xf]
  %v1089 = vld [vmem:[%s1 + $0xfec] sm:$0xf]
  %v1090 = vld [vmem:[%s1 + $0xff0] sm:$0xf]
  %v1091 = vld [vmem:[%s1 + $0xff4] sm:$0xf]
  %v1092 = vld [vmem:[%s1 + $0xff8] sm:$0xf]
  %v1093 = vld [vmem:[%s1 + $0xffc] sm:$0xf]
  %v1094 = vld [vmem:[%s1 + $0x1000] sm:$0xf]
  %v1095 = vld [vmem:[%s1 + $0x1004] sm:$0xf]
  %v1096 = vld [vmem:[%s1 + $0x1008] sm:$0xf]
  %v1097 = vld [vmem:[%s1 + $0x100c] sm:$0xf]
  %v1098 = vld [vmem:[%s1 + $0x1010] sm:$0xf]
  %v1099 = vld [vmem:[%s1 + $0x1014] sm:$0xf]
  %v1100 = vld [vmem:[%s1 + $0x1018] sm:$0xf]
  %v1101 = vld [vmem:[%s1 + $0x101c] sm:$0xf]
  %v1102 = vld [vmem:[%s1 + $0x1020] sm:$0xf]
  %v1103 = vld [vmem:[%s1 + $0x1024] sm:$0xf]
  %v1104 = vld [vmem:[%s1 + $0x1028] sm:$0xf]
  %v1105 = vld [vmem:[%s1 + $0x102c] sm:$0xf]
  %v1106 = vld [vmem:[%s1 + $0x1030] sm:$0xf]
  %v1107 = vld [vmem:[%s1 + $0x1034] sm:$0xf]
  %v1108 = vld [vmem:[%s1 + $0x1038] sm:$0xf]
  %v1109 = vld [vmem:[%s1 + $0x103c] sm:$0xf]
  %v1110 = vld [vmem:[%s1 + $0x1040] sm:$0xf]
  %v1111 = vld [vmem:[%s1 + $0x1044] sm:$0xf]
  %v1112 = vld [vmem:[%s1 + $0x1048] sm:$0xf]
  %v1113 = vld [vmem:[%s1 + $0x104c] sm:$0xf]
  %v1114 = vld [vmem:[%s1 + $0x1050] sm:$0xf]
  %v1115 = vld [vmem:[%s1 + $0x1054] sm:$0xf]
  %v1116 = vld [vmem:[%s1 + $0x1058] sm:$0xf]
  %v1117 = vld [vmem:[%s1 + $0x105c] sm:$0xf]
  %v1118 = vld [vmem:[%s1 + $0x1060] sm:$0xf]
  %v1119 = vld [vmem:[%s1 + $0x1064] sm:$0xf]
  %v1120 = vld [vmem:[%s1 + $0x1068] sm:$0xf]
  %v1121 = vld [vmem:[%s1 + $0x106c] sm:$0xf]
  %v1122 = vld [vmem:[%s1 + $0x1070] sm:$0xf]
  %v1123 = vld [vmem:[%s1 + $0x1074] sm:$0xf]
  %v1124 = vld [vmem:[%s1 + $0x1078] sm:$0xf]
  %v1125 = vld [vmem:[%s1 + $0x107c] sm:$0xf]
  %v1126 = vld [vmem:[%s1 + $0x1080] sm:$0xf]
  %v1127 = vld [vmem:[%s1 + $0x1084] sm:$0xf]
  %v1128 = vld [vmem:[%s1 + $0x1088] sm:$0xf]
  %v1129 = vld [vmem:[%s1 + $0x108c] sm:$0xf]
  %v1130 = vld [vmem:[%s1 + $0x1090] sm:$0xf]
  %v1131 = vld [vmem:[%s1 + $0x1094] sm:$0xf]
  %v1132 = vld [vmem:[%s1 + $0x1098] sm:$0xf]
  %v1133 = vld [vmem:[%s1 + $0x109c] sm:$0xf]
  %v1134 = vld [vmem:[%s1 + $0x10a0] sm:$0xf]
  %v1135 = vld [vmem:[%s1 + $0x10a4] sm:$0xf]
  %v1136 = vld [vmem:[%s1 + $0x10a8] sm:$0xf]
  %v1137 = vld [vmem:[%s1 + $0x10ac] sm:$0xf]
  %v1138 = vld [vmem:[%s1 + $0x10b0] sm:$0xf]
  %v1139 = vld [vmem:[%s1 + $0x10b4] sm:$0xf]
  %v1140 = vld [vmem:[%s1 + $0x10b8] sm:$0xf]
  %v1141 = vld [vmem:[%s1 + $0x10bc] sm:$0xf]
  %v1142 = vld [vmem:[%s1 + $0x10c0] sm:$0xf]
  %v1143 = vld [vmem:[%s1 + $0x10c4] sm:$0xf]
  %v1144 = vld [vmem:[%s1 + $0x10c8] sm:$0xf]
  %v1145 = vld [vmem:[%s1 + $0x10cc] sm:$0xf]
  %v1146 = vld [vmem:[%s1 + $0x10d0] sm:$0xf]
  %v1147 = vld [vmem:[%s1 + $0x10d4] sm:$0xf]
  %v1148 = vld [vmem:[%s1 + $0x10d8] sm:$0xf]
  %v1149 = vld [vmem:[%s1 + $0x10dc] sm:$0xf]
  %v1150 = vld [vmem:[%s1 + $0x10e0] sm:$0xf]
  %v1151 = vld [vmem:[%s1 + $0x10e4] sm:$0xf]
  %v1152 = vld [vmem:[%s1 + $0x10e8] sm:$0xf]
  %v1153 = vld [vmem:[%s1 + $0x10ec] sm:$0xf]
  %v1154 = vld [vmem:[%s1 + $0x10f0] sm:$0xf]
  %v1155 = vld [vmem:[%s1 + $0x10f4] sm:$0xf]
  %v1156 = vld [vmem:[%s1 + $0x10f8] sm:$0xf]
  %v1157 = vld [vmem:[%s1 + $0x10fc] sm:$0xf]
  %v1158 = vld [vmem:[%s1 + $0x1100] sm:$0xf]
  %v1159 = vld [vmem:[%s1 + $0x1104] sm:$0xf]
  %v1160 = vld [vmem:[%s1 + $0x1108] sm:$0xf]
  %v1161 = vld [vmem:[%s1 + $0x110c] sm:$0xf]
  %v1162 = vld [vmem:[%s1 + $0x1110] sm:$0xf]
  %v1163 = vld [vmem:[%s1 + $0x1114] sm:$0xf]
  %v1164 = vld [vmem:[%s1 + $0x1118] sm:$0xf]
  %v1165 = vld [vmem:[%s1 + $0x111c] sm:$0xf]
  %v1166 = vld [vmem:[%s1 + $0x1120] sm:$0xf]
  %v1167 = vld [vmem:[%s1 + $0x1124] sm:$0xf]
  %v1168 = vld [vmem:[%s1 + $0x1128] sm:$0xf]
  %v1169 = vld [vmem:[%s1 + $0x112c] sm:$0xf]
  %v1170 = vld [vmem:[%s1 + $0x1130] sm:$0xf]
  %v1171 = vld [vmem:[%s1 + $0x1134] sm:$0xf]
  %v1172 = vld [vmem:[%s1 + $0x1138] sm:$0xf]
  %v1173 = vld [vmem:[%s1 + $0x113c] sm:$0xf]
  %v1174 = vld [vmem:[%s1 + $0x1140] sm:$0xf]
  %v1175 = vld [vmem:[%s1 + $0x1144] sm:$0xf]
  %v1176 = vld [vmem:[%s1 + $0x1148] sm:$0xf]
  %v1177 = vld [vmem:[%s1 + $0x114c] sm:$0xf]
  %v1178 = vld [vmem:[%s1 + $0x1150] sm:$0xf]
  %v1179 = vld [vmem:[%s1 + $0x1154] sm:$0xf]
  %v1180 = vld [vmem:[%s1 + $0x1158] sm:$0xf]
  %v1181 = vld [vmem:[%s1 + $0x115c] sm:$0xf]
  %v1182 = vld [vmem:[%s1 + $0x1160] sm:$0xf]
  %v1183 = vld [vmem:[%s1 + $0x1164] sm:$0xf]
  %v1184 = vld [vmem:[%s1 + $0x1168] sm:$0xf]
  %v1185 = vld [vmem:[%s1 + $0x116c] sm:$0xf]
  %v1186 = vld [vmem:[%s1 + $0x1170] sm:$0xf]
  %v1187 = vld [vmem:[%s1 + $0x1174] sm:$0xf]
  %v1188 = vld [vmem:[%s1 + $0x1178] sm:$0xf]
  %v1189 = vld [vmem:[%s1 + $0x117c] sm:$0xf]
  %v1190 = vld [vmem:[%s1 + $0x1180] sm:$0xf]
  %v1191 = vld [vmem:[%s1 + $0x1184] sm:$0xf]
  %v1192 = vld [vmem:[%s1 + $0x1188] sm:$0xf]
  %v1193 = vld [vmem:[%s1 + $0x118c] sm:$0xf]
  %v1194 = vld [vmem:[%s1 + $0x1190] sm:$0xf]
  %v1195 = vld [vmem:[%s1 + $0x1194] sm:$0xf]
  %v1196 = vld [vmem:[%s1 + $0x1198] sm:$0xf]
  %v1197 = vld [vmem:[%s1 + $0x119c] sm:$0xf]
  %v1198 = vld [vmem:[%s1 + $0x11a0] sm:$0xf]
  %v1199 = vld [vmem:[%s1 + $0x11a4] sm:$0xf]
  %v1200 = vld [vmem:[%s1 + $0x11a8] sm:$0xf]
  %v1201 = vld [vmem:[%s1 + $0x11ac] sm:$0xf]
  %v1202 = vld [vmem:[%s1 + $0x11b0] sm:$0xf]
  %v1203 = vld [vmem:[%s1 + $0x11b4] sm:$0xf]
  %v1204 = vld [vmem:[%s1 + $0x11b8] sm:$0xf]
  %v1205 = vld [vmem:[%s1 + $0x11bc] sm:$0xf]
  %v1206 = vld [vmem:[%s1 + $0x11c0] sm:$0xf]
  %v1207 = vld [vmem:[%s1 + $0x11c4] sm:$0xf]
  %v1208 = vld [vmem:[%s1 + $0x11c8] sm:$0xf]
  %v1209 = vld [vmem:[%s1 + $0x11cc] sm:$0xf]
  %v1210 = vld [vmem:[%s1 + $0x11d0] sm:$0xf]
  %v1211 = vld [vmem:[%s1 + $0x11d4] sm:$0xf]
  %v1212 = vld [vmem:[%s1 + $0x11d8] sm:$0xf]
  %v1213 = vld [vmem:[%s1 + $0x11dc] sm:$0xf]
  %v1214 = vld [vmem:[%s1 + $0x11e0] sm:$0xf]
  %v1215 = vld [vmem:[%s1 + $0x11e4] sm:$0xf]
  %v1216 = vld [vmem:[%s1 + $0x11e8] sm:$0xf]
  %v1217 = vld [vmem:[%s1 + $0x11ec] sm:$0xf]
  %v1218 = vld [vmem:[%s1 + $0x11f0] sm:$0xf]
  %v1219 = vld [vmem:[%s1 + $0x11f4] sm:$0xf]
  %v1220 = vld [vmem:[%s1 + $0x11f8] sm:$0xf]
  %v1221 = vld [vmem:[%s1 + $0x11fc] sm:$0xf]
  %v1222 = vld [vmem:[%s1 + $0x1200] sm:$0xf]
  %v1223 = vld [vmem:[%s1 + $0x1204] sm:$0xf]
  %v1224 = vld [vmem:[%s1 + $0x1208] sm:$0xf]
  %v1225 = vld [vmem:[%s1 + $0x120c] sm:$0xf]
  %v1226 = vld [vmem:[%s1 + $0x1210] sm:$0xf]
  %v1227 = vld [vmem:[%s1 + $0x1214] sm:$0xf]
  %v1228 = vld [vmem:[%s1 + $0x1218] sm:$0xf]
  %v1229 = vld [vmem:[%s1 + $0x121c] sm:$0xf]
  %v1230 = vld [vmem:[%s1 + $0x1220] sm:$0xf]
  %v1231 = vld [vmem:[%s1 + $0x1224] sm:$0xf]
  %v1232 = vld [vmem:[%s1 + $0x1228] sm:$0xf]
  %v1233 = vld [vmem:[%s1 + $0x122c] sm:$0xf]
  %v1234 = vld [vmem:[%s1 + $0x1230] sm:$0xf]
  %v1235 = vld [vmem:[%s1 + $0x1234] sm:$0xf]
  %v1236 = vld [vmem:[%s1 + $0x1238] sm:$0xf]
  %v1237 = vld [vmem:[%s1 + $0x123c] sm:$0xf]
  %v1238 = vld [vmem:[%s1 + $0x1240] sm:$0xf]
  %v1239 = vld [vmem:[%s1 + $0x1244] sm:$0xf]
  %v1240 = vld [vmem:[%s1 + $0x1248] sm:$0xf]
  %v1241 = vld [vmem:[%s1 + $0x124c] sm:$0xf]
  %v1242 = vld [vmem:[%s1 + $0x1250] sm:$0xf]
  %v1243 = vld [vmem:[%s1 + $0x1254] sm:$0xf]
  %v1244 = vld [vmem:[%s1 + $0x1258] sm:$0xf]
  %v1245 = vld [vmem:[%s1 + $0x125c] sm:$0xf]
  %v1246 = vld [vmem:[%s1 + $0x1260] sm:$0xf]
  %v1247 = vld [vmem:[%s1 + $0x1264] sm:$0xf]
  %v1248 = vld [vmem:[%s1 + $0x1268] sm:$0xf]
  %v1249 = vld [vmem:[%s1 + $0x126c] sm:$0xf]
  %v1250 = vld [vmem:[%s1 + $0x1270] sm:$0xf]
  %v1251 = vld [vmem:[%s1 + $0x1274] sm:$0xf]
  %v1252 = vld [vmem:[%s1 + $0x1278] sm:$0xf]
  %v1253 = vld [vmem:[%s1 + $0x127c] sm:$0xf]
  %v1254 = vld [vmem:[%s1 + $0x1280] sm:$0xf]
  %v1255 = vld [vmem:[%s1 + $0x1284] sm:$0xf]
  %v1256 = vld [vmem:[%s1 + $0x1288] sm:$0xf]
  %v1257 = vld [vmem:[%s1 + $0x128c] sm:$0xf]
  %v1258 = vld [vmem:[%s1 + $0x1290] sm:$0xf]
  %v1259 = vld [vmem:[%s1 + $0x1294] sm:$0xf]
  %v1260 = vld [vmem:[%s1 + $0x1298] sm:$0xf]
  %v1261 = vld [vmem:[%s1 + $0x129c] sm:$0xf]
  %v1262 = vld [vmem:[%s1 + $0x12a0] sm:$0xf]
  %v1263 = vld [vmem:[%s1 + $0x12a4] sm:$0xf]
  %v1264 = vld [vmem:[%s1 + $0x12a8] sm:$0xf]
  %v1265 = vld [vmem:[%s1 + $0x12ac] sm:$0xf]
  %v1266 = vld [vmem:[%s1 + $0x12b0] sm:$0xf]
  %v1267 = vld [vmem:[%s1 + $0x12b4] sm:$0xf]
  %v1268 = vld [vmem:[%s1 + $0x12b8] sm:$0xf]
  %v1269 = vld [vmem:[%s1 + $0x12bc] sm:$0xf]
  %v1270 = vld [vmem:[%s1 + $0x12c0] sm:$0xf]
  %v1271 = vld [vmem:[%s1 + $0x12c4] sm:$0xf]
  %v1272 = vld [vmem:[%s1 + $0x12c8] sm:$0xf]
  %v1273 = vld [vmem:[%s1 + $0x12cc] sm:$0xf]
  %v1274 = vld [vmem:[%s1 + $0x12d0] sm:$0xf]
  %v1275 = vld [vmem:[%s1 + $0x12d4] sm:$0xf]
  %v1276 = vld [vmem:[%s1 + $0x12d8] sm:$0xf]
  %v1277 = vld [vmem:[%s1 + $0x12dc] sm:$0xf]
  %v1278 = vld [vmem:[%s1 + $0x12e0] sm:$0xf]
  %v1279 = vld [vmem:[%s1 + $0x12e4] sm:$0xf]
  %v1280 = vld [vmem:[%s1 + $0x12e8] sm:$0xf]
  %v1281 = vld [vmem:[%s1 + $0x12ec] sm:$0xf]
  %v1282 = vld [vmem:[%s1 + $0x12f0] sm:$0xf]
  %v1283 = vld [vmem:[%s1 + $0x12f4] sm:$0xf]
  %v1284 = vld [vmem:[%s1 + $0x12f8] sm:$0xf]
  %v1285 = vld [vmem:[%s1 + $0x12fc] sm:$0xf]
  %v1286 = vld [vmem:[%s1 + $0x1300] sm:$0xf]
  %v1287 = vld [vmem:[%s1 + $0x1304] sm:$0xf]
  %v1288 = vld [vmem:[%s1 + $0x1308] sm:$0xf]
  %v1289 = vld [vmem:[%s1 + $0x130c] sm:$0xf]
  %v1290 = vld [vmem:[%s1 + $0x1310] sm:$0xf]
  %v1291 = vld [vmem:[%s1 + $0x1314] sm:$0xf]
  %v1292 = vld [vmem:[%s1 + $0x1318] sm:$0xf]
  %v1293 = vld [vmem:[%s1 + $0x131c] sm:$0xf]
  %v1294 = vld [vmem:[%s1 + $0x1320] sm:$0xf]
  %v1295 = vld [vmem:[%s1 + $0x1324] sm:$0xf]
  %v1296 = vld [vmem:[%s1 + $0x1328] sm:$0xf]
  %v1297 = vld [vmem:[%s1 + $0x132c] sm:$0xf]
  %v1298 = vld [vmem:[%s1 + $0x1330] sm:$0xf]
  %v1299 = vld [vmem:[%s1 + $0x1334] sm:$0xf]
  %v1300 = vld [vmem:[%s1 + $0x1338] sm:$0xf]
  %v1301 = vld [vmem:[%s1 + $0x133c] sm:$0xf]
  %v1302 = vld [vmem:[%s1 + $0x1340] sm:$0xf]
  %v1303 = vld [vmem:[%s1 + $0x1344] sm:$0xf]
  %v1304 = vld [vmem:[%s1 + $0x1348] sm:$0xf]
  %v1305 = vld [vmem:[%s1 + $0x134c] sm:$0xf]
  %v1306 = vld [vmem:[%s1 + $0x1350] sm:$0xf]
  %v1307 = vld [vmem:[%s1 + $0x1354] sm:$0xf]
  %v1308 = vld [vmem:[%s1 + $0x1358] sm:$0xf]
  %v1309 = vld [vmem:[%s1 + $0x135c] sm:$0xf]
  %v1310 = vld [vmem:[%s1 + $0x1360] sm:$0xf]
  %v1311 = vld [vmem:[%s1 + $0x1364] sm:$0xf]
  %v1312 = vld [vmem:[%s1 + $0x1368] sm:$0xf]
  %v1313 = vld [vmem:[%s1 + $0x136c] sm:$0xf]
  %v1314 = vld [vmem:[%s1 + $0x1370] sm:$0xf]
  %v1315 = vld [vmem:[%s1 + $0x1374] sm:$0xf]
  %v1316 = vld [vmem:[%s1 + $0x1378] sm:$0xf]
  %v1317 = vld [vmem:[%s1 + $0x137c] sm:$0xf]
  %v1318 = vld [vmem:[%s1 + $0x1380] sm:$0xf]
  %v1319 = vld [vmem:[%s1 + $0x1384] sm:$0xf]
  %v1320 = vld [vmem:[%s1 + $0x1388] sm:$0xf]
  %v1321 = vld [vmem:[%s1 + $0x138c] sm:$0xf]
  %v1322 = vld [vmem:[%s1 + $0x1390] sm:$0xf]
  %v1323 = vld [vmem:[%s1 + $0x1394] sm:$0xf]
  %v1324 = vld [vmem:[%s1 + $0x1398] sm:$0xf]
  %v1325 = vld [vmem:[%s1 + $0x139c] sm:$0xf]
  %v1326 = vld [vmem:[%s1 + $0x13a0] sm:$0xf]
  %v1327 = vld [vmem:[%s1 + $0x13a4] sm:$0xf]
  %v1328 = vld [vmem:[%s1 + $0x13a8] sm:$0xf]
  %v1329 = vld [vmem:[%s1 + $0x13ac] sm:$0xf]
  %v1330 = vld [vmem:[%s1 + $0x13b0] sm:$0xf]
  %v1331 = vld [vmem:[%s1 + $0x13b4] sm:$0xf]
  %v1332 = vld [vmem:[%s1 + $0x13b8] sm:$0xf]
  %v1333 = vld [vmem:[%s1 + $0x13bc] sm:$0xf]
  %v1334 = vld [vmem:[%s1 + $0x13c0] sm:$0xf]
  %v1335 = vld [vmem:[%s1 + $0x13c4] sm:$0xf]
  %v1336 = vld [vmem:[%s1 + $0x13c8] sm:$0xf]
  %v1337 = vld [vmem:[%s1 + $0x13cc] sm:$0xf]
  %v1338 = vld [vmem:[%s1 + $0x13d0] sm:$0xf]
  %v1339 = vld [vmem:[%s1 + $0x13d4] sm:$0xf]
  %v1340 = vld [vmem:[%s1 + $0x13d8] sm:$0xf]
  %v1341 = vld [vmem:[%s1 + $0x13dc] sm:$0xf]
  %v1342 = vld [vmem:[%s1 + $0x13e0] sm:$0xf]
  %v1343 = vld [vmem:[%s1 + $0x13e4] sm:$0xf]
  %v1344 = vld [vmem:[%s1 + $0x13e8] sm:$0xf]
  %v1345 = vld [vmem:[%s1 + $0x13ec] sm:$0xf]
  %v1346 = vld [vmem:[%s1 + $0x13f0] sm:$0xf]
  %v1347 = vld [vmem:[%s1 + $0x13f4] sm:$0xf]
  %v1348 = vld [vmem:[%s1 + $0x13f8] sm:$0xf]
  %v1349 = vld [vmem:[%s1 + $0x13fc] sm:$0xf]
  %v1350 = vld [vmem:[%s1 + $0x1400] sm:$0xf]
  %v1351 = vld [vmem:[%s1 + $0x1404] sm:$0xf]
  %v1352 = vld [vmem:[%s1 + $0x1408] sm:$0xf]
  %v1353 = vld [vmem:[%s1 + $0x140c] sm:$0xf]
  %v1354 = vld [vmem:[%s1 + $0x1410] sm:$0xf]
  %v1355 = vld [vmem:[%s1 + $0x1414] sm:$0xf]
  %v1356 = vld [vmem:[%s1 + $0x1418] sm:$0xf]
  %v1357 = vld [vmem:[%s1 + $0x141c] sm:$0xf]
  %v1358 = vld [vmem:[%s1 + $0x1420] sm:$0xf]
  %v1359 = vld [vmem:[%s1 + $0x1424] sm:$0xf]
  %v1360 = vld [vmem:[%s1 + $0x1428] sm:$0xf]
  %v1361 = vld [vmem:[%s1 + $0x142c] sm:$0xf]
  %v1362 = vld [vmem:[%s1 + $0x1430] sm:$0xf]
  %v1363 = vld [vmem:[%s1 + $0x1434] sm:$0xf]
  %v1364 = vld [vmem:[%s1 + $0x1438] sm:$0xf]
  %v1365 = vld [vmem:[%s1 + $0x143c] sm:$0xf]
  %v1366 = vld [vmem:[%s1 + $0x1440] sm:$0xf]
  %v1367 = vld [vmem:[%s1 + $0x1444] sm:$0xf]
  %v1368 = vld [vmem:[%s1 + $0x1448] sm:$0xf]
  %v1369 = vld [vmem:[%s1 + $0x144c] sm:$0xf]
  %v1370 = vld [vmem:[%s1 + $0x1450] sm:$0xf]
  %v1371 = vld [vmem:[%s1 + $0x1454] sm:$0xf]
  %v1372 = vld [vmem:[%s1 + $0x1458] sm:$0xf]
  %v1373 = vld [vmem:[%s1 + $0x145c] sm:$0xf]
  %v1374 = vld [vmem:[%s1 + $0x1460] sm:$0xf]
  %v1375 = vld [vmem:[%s1 + $0x1464] sm:$0xf]
  %v1376 = vld [vmem:[%s1 + $0x1468] sm:$0xf]
  %v1377 = vld [vmem:[%s1 + $0x146c] sm:$0xf]
  %v1378 = vld [vmem:[%s1 + $0x1470] sm:$0xf]
  %v1379 = vld [vmem:[%s1 + $0x1474] sm:$0xf]
  %v1380 = vld [vmem:[%s1 + $0x1478] sm:$0xf]
  %v1381 = vld [vmem:[%s1 + $0x147c] sm:$0xf]
  %v1382 = vld [vmem:[%s1 + $0x1480] sm:$0xf]
  %v1383 = vld [vmem:[%s1 + $0x1484] sm:$0xf]
  %v1384 = vld [vmem:[%s1 + $0x1488] sm:$0xf]
  %v1385 = vld [vmem:[%s1 + $0x148c] sm:$0xf]
  %v1386 = vld [vmem:[%s1 + $0x1490] sm:$0xf]
  %v1387 = vld [vmem:[%s1 + $0x1494] sm:$0xf]
  %v1388 = vld [vmem:[%s1 + $0x1498] sm:$0xf]
  %v1389 = vld [vmem:[%s1 + $0x149c] sm:$0xf]
  %v1390 = vld [vmem:[%s1 + $0x14a0] sm:$0xf]
  %v1391 = vld [vmem:[%s1 + $0x14a4] sm:$0xf]
  %v1392 = vld [vmem:[%s1 + $0x14a8] sm:$0xf]
  %v1393 = vld [vmem:[%s1 + $0x14ac] sm:$0xf]
  %v1394 = vld [vmem:[%s1 + $0x14b0] sm:$0xf]
  %v1395 = vld [vmem:[%s1 + $0x14b4] sm:$0xf]
  %v1396 = vld [vmem:[%s1 + $0x14b8] sm:$0xf]
  %v1397 = vld [vmem:[%s1 + $0x14bc] sm:$0xf]
  %v1398 = vld [vmem:[%s1 + $0x14c0] sm:$0xf]
  %v1399 = vld [vmem:[%s1 + $0x14c4] sm:$0xf]
  %v1400 = vld [vmem:[%s1 + $0x14c8] sm:$0xf]
  %v1401 = vld [vmem:[%s1 + $0x14cc] sm:$0xf]
  %v1402 = vld [vmem:[%s1 + $0x14d0] sm:$0xf]
  %v1403 = vld [vmem:[%s1 + $0x14d4] sm:$0xf]
  %v1404 = vld [vmem:[%s1 + $0x14d8] sm:$0xf]
  %v1405 = vld [vmem:[%s1 + $0x14dc] sm:$0xf]
  %v1406 = vld [vmem:[%s1 + $0x14e0] sm:$0xf]
  %v1407 = vld [vmem:[%s1 + $0x14e4] sm:$0xf]
  %v1408 = vld [vmem:[%s1 + $0x14e8] sm:$0xf]
  %v1409 = vld [vmem:[%s1 + $0x14ec] sm:$0xf]
  %v1410 = vld [vmem:[%s1 + $0x14f0] sm:$0xf]
  %v1411 = vld [vmem:[%s1 + $0x14f4] sm:$0xf]
  %v1412 = vld [vmem:[%s1 + $0x14f8] sm:$0xf]
  %v1413 = vld [vmem:[%s1 + $0x14fc] sm:$0xf]
  %v1414 = vld [vmem:[%s1 + $0x1500] sm:$0xf]
  %v1415 = vld [vmem:[%s1 + $0x1504] sm:$0xf]
  %v1416 = vld [vmem:[%s1 + $0x1508] sm:$0xf]
  %v1417 = vld [vmem:[%s1 + $0x150c] sm:$0xf]
  %v1418 = vld [vmem:[%s1 + $0x1510] sm:$0xf]
  %v1419 = vld [vmem:[%s1 + $0x1514] sm:$0xf]
  %v1420 = vld [vmem:[%s1 + $0x1518] sm:$0xf]
  %v1421 = vld [vmem:[%s1 + $0x151c] sm:$0xf]
  %v1422 = vld [vmem:[%s1 + $0x1520] sm:$0xf]
  %v1423 = vld [vmem:[%s1 + $0x1524] sm:$0xf]
  %v1424 = vld [vmem:[%s1 + $0x1528] sm:$0xf]
  %v1425 = vld [vmem:[%s1 + $0x152c] sm:$0xf]
  %v1426 = vld [vmem:[%s1 + $0x1530] sm:$0xf]
  %v1427 = vld [vmem:[%s1 + $0x1534] sm:$0xf]
  %v1428 = vld [vmem:[%s1 + $0x1538] sm:$0xf]
  %v1429 = vld [vmem:[%s1 + $0x153c] sm:$0xf]
  %v1430 = vld [vmem:[%s1 + $0x1540] sm:$0xf]
  %v1431 = vld [vmem:[%s1 + $0x1544] sm:$0xf]
  %v1432 = vld [vmem:[%s1 + $0x1548] sm:$0xf]
  %v1433 = vld [vmem:[%s1 + $0x154c] sm:$0xf]
  %v1434 = vld [vmem:[%s1 + $0x1550] sm:$0xf]
  %v1435 = vld [vmem:[%s1 + $0x1554] sm:$0xf]
  %v1436 = vld [vmem:[%s1 + $0x1558] sm:$0xf]
  %v1437 = vld [vmem:[%s1 + $0x155c] sm:$0xf]
  %v1438 = vld [vmem:[%s1 + $0x1560] sm:$0xf]
  %v1439 = vld [vmem:[%s1 + $0x1564] sm:$0xf]
  %v1440 = vld [vmem:[%s1 + $0x1568] sm:$0xf]
  %v1441 = vld [vmem:[%s1 + $0x156c] sm:$0xf]
  %v1442 = vld [vmem:[%s1 + $0x1570] sm:$0xf]
  %v1443 = vld [vmem:[%s1 + $0x1574] sm:$0xf]
  %v1444 = vld [vmem:[%s1 + $0x1578] sm:$0xf]
  %v1445 = vld [vmem:[%s1 + $0x157c] sm:$0xf]
  %v1446 = vld [vmem:[%s1 + $0x1580] sm:$0xf]
  %v1447 = vld [vmem:[%s1 + $0x1584] sm:$0xf]
  %v1448 = vld [vmem:[%s1 + $0x1588] sm:$0xf]
  %v1449 = vld [vmem:[%s1 + $0x158c] sm:$0xf]
  %v1450 = vld [vmem:[%s1 + $0x1590] sm:$0xf]
  %v1451 = vld [vmem:[%s1 + $0x1594] sm:$0xf]
  %v1452 = vld [vmem:[%s1 + $0x1598] sm:$0xf]
  %v1453 = vld [vmem:[%s1 + $0x159c] sm:$0xf]
  %v1454 = vld [vmem:[%s1 + $0x15a0] sm:$0xf]
  %v1455 = vld [vmem:[%s1 + $0x15a4] sm:$0xf]
  %v1456 = vld [vmem:[%s1 + $0x15a8] sm:$0xf]
  %v1457 = vld [vmem:[%s1 + $0x15ac] sm:$0xf]
  %v1458 = vld [vmem:[%s1 + $0x15b0] sm:$0xf]
  %v1459 = vld [vmem:[%s1 + $0x15b4] sm:$0xf]
  %v1460 = vld [vmem:[%s1 + $0x15b8] sm:$0xf]
  %v1461 = vld [vmem:[%s1 + $0x15bc] sm:$0xf]
  %v1462 = vld [vmem:[%s1 + $0x15c0] sm:$0xf]
  %v1463 = vld [vmem:[%s1 + $0x15c4] sm:$0xf]
  %v1464 = vld [vmem:[%s1 + $0x15c8] sm:$0xf]
  %v1465 = vld [vmem:[%s1 + $0x15cc] sm:$0xf]
  %v1466 = vld [vmem:[%s1 + $0x15d0] sm:$0xf]
  %v1467 = vld [vmem:[%s1 + $0x15d4] sm:$0xf]
  %v1468 = vld [vmem:[%s1 + $0x15d8] sm:$0xf]
  %v1469 = vld [vmem:[%s1 + $0x15dc] sm:$0xf]
  %v1470 = vld [vmem:[%s1 + $0x15e0] sm:$0xf]
  %v1471 = vld [vmem:[%s1 + $0x15e4] sm:$0xf]
  %v1472 = vld [vmem:[%s1 + $0x15e8] sm:$0xf]
  %v1473 = vld [vmem:[%s1 + $0x15ec] sm:$0xf]
  %v1474 = vld [vmem:[%s1 + $0x15f0] sm:$0xf]
  %v1475 = vld [vmem:[%s1 + $0x15f4] sm:$0xf]
  %v1476 = vld [vmem:[%s1 + $0x15f8] sm:$0xf]
  %v1477 = vld [vmem:[%s1 + $0x15fc] sm:$0xf]
  %v1478 = vld [vmem:[%s1 + $0x1600] sm:$0xf]
  %v1479 = vld [vmem:[%s1 + $0x1604] sm:$0xf]
  %v1480 = vld [vmem:[%s1 + $0x1608] sm:$0xf]
  %v1481 = vld [vmem:[%s1 + $0x160c] sm:$0xf]
  %v1482 = vld [vmem:[%s1 + $0x1610] sm:$0xf]
  %v1483 = vld [vmem:[%s1 + $0x1614] sm:$0xf]
  %v1484 = vld [vmem:[%s1 + $0x1618] sm:$0xf]
  %v1485 = vld [vmem:[%s1 + $0x161c] sm:$0xf]
  %v1486 = vld [vmem:[%s1 + $0x1620] sm:$0xf]
  %v1487 = vld [vmem:[%s1 + $0x1624] sm:$0xf]
  %v1488 = vld [vmem:[%s1 + $0x1628] sm:$0xf]
  %v1489 = vld [vmem:[%s1 + $0x162c] sm:$0xf]
  %v1490 = vld [vmem:[%s1 + $0x1630] sm:$0xf]
  %v1491 = vld [vmem:[%s1 + $0x1634] sm:$0xf]
  %v1492 = vld [vmem:[%s1 + $0x1638] sm:$0xf]
  %v1493 = vld [vmem:[%s1 + $0x163c] sm:$0xf]
  %v1494 = vld [vmem:[%s1 + $0x1640] sm:$0xf]
  %v1495 = vld [vmem:[%s1 + $0x1644] sm:$0xf]
  %v1496 = vld [vmem:[%s1 + $0x1648] sm:$0xf]
  %v1497 = vld [vmem:[%s1 + $0x164c] sm:$0xf]
  %v1498 = vld [vmem:[%s1 + $0x1650] sm:$0xf]
  %v1499 = vld [vmem:[%s1 + $0x1654] sm:$0xf]
  %v1500 = vld [vmem:[%s1 + $0x1658] sm:$0xf]
  %v1501 = vld [vmem:[%s1 + $0x165c] sm:$0xf]
  %v1502 = vld [vmem:[%s1 + $0x1660] sm:$0xf]
  %v1503 = vld [vmem:[%s1 + $0x1664] sm:$0xf]
  %v1504 = vld [vmem:[%s1 + $0x1668] sm:$0xf]
  %v1505 = vld [vmem:[%s1 + $0x166c] sm:$0xf]
  %v1506 = vld [vmem:[%s1 + $0x1670] sm:$0xf]
  %v1507 = vld [vmem:[%s1 + $0x1674] sm:$0xf]
  %v1508 = vld [vmem:[%s1 + $0x1678] sm:$0xf]
  %v1509 = vld [vmem:[%s1 + $0x167c] sm:$0xf]
  %v1510 = vld [vmem:[%s1 + $0x1680] sm:$0xf]
  %v1511 = vld [vmem:[%s1 + $0x1684] sm:$0xf]
  %v1512 = vld [vmem:[%s1 + $0x1688] sm:$0xf]
  %v1513 = vld [vmem:[%s1 + $0x168c] sm:$0xf]
  %v1514 = vld [vmem:[%s1 + $0x1690] sm:$0xf]
  %v1515 = vld [vmem:[%s1 + $0x1694] sm:$0xf]
  %v1516 = vld [vmem:[%s1 + $0x1698] sm:$0xf]
  %v1517 = vld [vmem:[%s1 + $0x169c] sm:$0xf]
  %v1518 = vld [vmem:[%s1 + $0x16a0] sm:$0xf]
  %v1519 = vld [vmem:[%s1 + $0x16a4] sm:$0xf]
  %v1520 = vld [vmem:[%s1 + $0x16a8] sm:$0xf]
  %v1521 = vld [vmem:[%s1 + $0x16ac] sm:$0xf]
  %v1522 = vld [vmem:[%s1 + $0x16b0] sm:$0xf]
  %v1523 = vld [vmem:[%s1 + $0x16b4] sm:$0xf]
  %v1524 = vld [vmem:[%s1 + $0x16b8] sm:$0xf]
  %v1525 = vld [vmem:[%s1 + $0x16bc] sm:$0xf]
  %v1526 = vld [vmem:[%s1 + $0x16c0] sm:$0xf]
  %v1527 = vld [vmem:[%s1 + $0x16c4] sm:$0xf]
  %v1528 = vld [vmem:[%s1 + $0x16c8] sm:$0xf]
  %v1529 = vld [vmem:[%s1 + $0x16cc] sm:$0xf]
  %v1530 = vld [vmem:[%s1 + $0x16d0] sm:$0xf]
  %v1531 = vld [vmem:[%s1 + $0x16d4] sm:$0xf]
  %v1532 = vld [vmem:[%s1 + $0x16d8] sm:$0xf]
  %v1533 = vld [vmem:[%s1 + $0x16dc] sm:$0xf]
  %v1534 = vld [vmem:[%s1 + $0x16e0] sm:$0xf]
  %v1535 = vld [vmem:[%s1 + $0x16e4] sm:$0xf]
  %v1536 = vld [vmem:[%s1 + $0x16e8] sm:$0xf]
  %v1537 = vld [vmem:[%s1 + $0x16ec] sm:$0xf]
  %v1538 = vld [vmem:[%s1 + $0x16f0] sm:$0xf]
  %v1539 = vld [vmem:[%s1 + $0x16f4] sm:$0xf]
  %v1540 = vld [vmem:[%s1 + $0x16f8] sm:$0xf]
  %v1541 = vld [vmem:[%s1 + $0x16fc] sm:$0xf]
  %v1542 = vld [vmem:[%s1 + $0x1700] sm:$0xf]
  %v1543 = vld [vmem:[%s1 + $0x1704] sm:$0xf]
  %v1544 = vld [vmem:[%s1 + $0x1708] sm:$0xf]
  %v1545 = vld [vmem:[%s1 + $0x170c] sm:$0xf]
  %v1546 = vld [vmem:[%s1 + $0x1710] sm:$0xf]
  %v1547 = vld [vmem:[%s1 + $0x1714] sm:$0xf]
  %v1548 = vld [vmem:[%s1 + $0x1718] sm:$0xf]
  %v1549 = vld [vmem:[%s1 + $0x171c] sm:$0xf]
  %v1550 = vld [vmem:[%s1 + $0x1720] sm:$0xf]
  %v1551 = vld [vmem:[%s1 + $0x1724] sm:$0xf]
  %v1552 = vld [vmem:[%s1 + $0x1728] sm:$0xf]
  %v1553 = vld [vmem:[%s1 + $0x172c] sm:$0xf]
  %v1554 = vld [vmem:[%s1 + $0x1730] sm:$0xf]
  %v1555 = vld [vmem:[%s1 + $0x1734] sm:$0xf]
  %v1556 = vld [vmem:[%s1 + $0x1738] sm:$0xf]
  %v1557 = vld [vmem:[%s1 + $0x173c] sm:$0xf]
  %v1558 = vld [vmem:[%s1 + $0x1740] sm:$0xf]
  %v1559 = vld [vmem:[%s1 + $0x1744] sm:$0xf]
  %v1560 = vld [vmem:[%s1 + $0x1748] sm:$0xf]
  %v1561 = vld [vmem:[%s1 + $0x174c] sm:$0xf]
  %v1562 = vld [vmem:[%s1 + $0x1750] sm:$0xf]
  %v1563 = vld [vmem:[%s1 + $0x1754] sm:$0xf]
  %v1564 = vld [vmem:[%s1 + $0x1758] sm:$0xf]
  %v1565 = vld [vmem:[%s1 + $0x175c] sm:$0xf]
  %v1566 = vld [vmem:[%s1 + $0x1760] sm:$0xf]
  %v1567 = vld [vmem:[%s1 + $0x1764] sm:$0xf]
  %v1568 = vld [vmem:[%s1 + $0x1768] sm:$0xf]
  %v1569 = vld [vmem:[%s1 + $0x176c] sm:$0xf]
  %v1570 = vld [vmem:[%s1 + $0x1770] sm:$0xf]
  %v1571 = vld [vmem:[%s1 + $0x1774] sm:$0xf]
  %v1572 = vld [vmem:[%s1 + $0x1778] sm:$0xf]
  %v1573 = vld [vmem:[%s1 + $0x177c] sm:$0xf]
  %v1574 = vld [vmem:[%s1 + $0x1780] sm:$0xf]
  %v1575 = vld [vmem:[%s1 + $0x1784] sm:$0xf]
  %v1576 = vld [vmem:[%s1 + $0x1788] sm:$0xf]
  %v1577 = vld [vmem:[%s1 + $0x178c] sm:$0xf]
  %v1578 = vld [vmem:[%s1 + $0x1790] sm:$0xf]
  %v1579 = vld [vmem:[%s1 + $0x1794] sm:$0xf]
  %v1580 = vld [vmem:[%s1 + $0x1798] sm:$0xf]
  %v1581 = vld [vmem:[%s1 + $0x179c] sm:$0xf]
  %v1582 = vld [vmem:[%s1 + $0x17a0] sm:$0xf]
  %v1583 = vld [vmem:[%s1 + $0x17a4] sm:$0xf]
  %v1584 = vld [vmem:[%s1 + $0x17a8] sm:$0xf]
  %v1585 = vld [vmem:[%s1 + $0x17ac] sm:$0xf]
  %v1586 = vld [vmem:[%s1 + $0x17b0] sm:$0xf]
  %v1587 = vld [vmem:[%s1 + $0x17b4] sm:$0xf]
  %v1588 = vld [vmem:[%s1 + $0x17b8] sm:$0xf]
  %v1589 = vld [vmem:[%s1 + $0x17bc] sm:$0xf]
  %v1590 = vld [vmem:[%s1 + $0x17c0] sm:$0xf]
  %v1591 = vld [vmem:[%s1 + $0x17c4] sm:$0xf]
  %v1592 = vld [vmem:[%s1 + $0x17c8] sm:$0xf]
  %v1593 = vld [vmem:[%s1 + $0x17cc] sm:$0xf]
  %v1594 = vld [vmem:[%s1 + $0x17d0] sm:$0xf]
  %v1595 = vld [vmem:[%s1 + $0x17d4] sm:$0xf]
  %v1596 = vld [vmem:[%s1 + $0x17d8] sm:$0xf]
  %v1597 = vld [vmem:[%s1 + $0x17dc] sm:$0xf]
  %v1598 = vld [vmem:[%s1 + $0x17e0] sm:$0xf]
  %v1599 = vld [vmem:[%s1 + $0x17e4] sm:$0xf]
  %v1600 = vld [vmem:[%s1 + $0x17e8] sm:$0xf]
  %v1601 = vld [vmem:[%s1 + $0x17ec] sm:$0xf]
  %v1602 = vld [vmem:[%s1 + $0x17f0] sm:$0xf]
  %v1603 = vld [vmem:[%s1 + $0x17f4] sm:$0xf]
  %v1604 = vld [vmem:[%s1 + $0x17f8] sm:$0xf]
  %v1605 = vld [vmem:[%s1 + $0x17fc] sm:$0xf]
  %v1606 = vld [vmem:[%s1 + $0x1800] sm:$0xf]
  %v1607 = vld [vmem:[%s1 + $0x1804] sm:$0xf]
  %v1608 = vld [vmem:[%s1 + $0x1808] sm:$0xf]
  %v1609 = vld [vmem:[%s1 + $0x180c] sm:$0xf]
  %v1610 = vld [vmem:[%s1 + $0x1810] sm:$0xf]
  %v1611 = vld [vmem:[%s1 + $0x1814] sm:$0xf]
  %v1612 = vld [vmem:[%s1 + $0x1818] sm:$0xf]
  %v1613 = vld [vmem:[%s1 + $0x181c] sm:$0xf]
  %v1614 = vld [vmem:[%s1 + $0x1820] sm:$0xf]
  %v1615 = vld [vmem:[%s1 + $0x1824] sm:$0xf]
  %v1616 = vld [vmem:[%s1 + $0x1828] sm:$0xf]
  %v1617 = vld [vmem:[%s1 + $0x182c] sm:$0xf]
  %v1618 = vld [vmem:[%s1 + $0x1830] sm:$0xf]
  %v1619 = vld [vmem:[%s1 + $0x1834] sm:$0xf]
  %v1620 = vld [vmem:[%s1 + $0x1838] sm:$0xf]
  %v1621 = vld [vmem:[%s1 + $0x183c] sm:$0xf]
  %v1622 = vld [vmem:[%s1 + $0x1840] sm:$0xf]
  %v1623 = vld [vmem:[%s1 + $0x1844] sm:$0xf]
  %v1624 = vld [vmem:[%s1 + $0x1848] sm:$0xf]
  %v1625 = vld [vmem:[%s1 + $0x184c] sm:$0xf]
  %v1626 = vld [vmem:[%s1 + $0x1850] sm:$0xf]
  %v1627 = vld [vmem:[%s1 + $0x1854] sm:$0xf]
  %v1628 = vld [vmem:[%s1 + $0x1858] sm:$0xf]
  %v1629 = vld [vmem:[%s1 + $0x185c] sm:$0xf]
  %v1630 = vld [vmem:[%s1 + $0x1860] sm:$0xf]
  %v1631 = vld [vmem:[%s1 + $0x1864] sm:$0xf]
  %v1632 = vld [vmem:[%s1 + $0x1868] sm:$0xf]
  %v1633 = vld [vmem:[%s1 + $0x186c] sm:$0xf]
  %v1634 = vld [vmem:[%s1 + $0x1870] sm:$0xf]
  %v1635 = vld [vmem:[%s1 + $0x1874] sm:$0xf]
  %v1636 = vld [vmem:[%s1 + $0x1878] sm:$0xf]
  %v1637 = vld [vmem:[%s1 + $0x187c] sm:$0xf]
  %v1638 = vld [vmem:[%s2] sm:$0x1]
  %v1640 = vlaneseq
  %v1641 = vshrl.u32 %v1640, 7
  %v1642 = vsub.s32 0, %v1641
  %v1643 = vrot.slane %v1638, %v1642
  %v1694 = vunpack.c.l.b16 %v21
  %v1695 = vunpack.c.h.b16 %v21
  %v1696 = vunpack.c.l.b16 %v22
  %v1697 = vunpack.c.h.b16 %v22
  %v1698 = vunpack.c.l.b16 %v23
  %v1699 = vunpack.c.h.b16 %v23
  %v1700 = vunpack.c.l.b16 %v24
  %v1701 = vunpack.c.h.b16 %v24
  %v1702 = vunpack.c.l.b16 %v25
  %v1703 = vunpack.c.h.b16 %v25
  %v1704 = vunpack.c.l.b16 %v26
  %v1705 = vunpack.c.h.b16 %v26
  %v1706 = vunpack.c.l.b16 %v27
  %v1707 = vunpack.c.h.b16 %v27
  %v1708 = vunpack.c.l.b16 %v28
  %v1709 = vunpack.c.h.b16 %v28
  %v1710 = vunpack.c.l.b16 %v29
  %v1711 = vunpack.c.h.b16 %v29
  %v1712 = vunpack.c.l.b16 %v30
  %v1713 = vunpack.c.h.b16 %v30
  %v1714 = vunpack.c.l.b16 %v31
  %v1715 = vunpack.c.h.b16 %v31
  %v1716 = vunpack.c.l.b16 %v32
  %v1717 = vunpack.c.h.b16 %v32
  %v1718 = vunpack.c.l.b16 %v33
  %v1719 = vunpack.c.h.b16 %v33
  %v1720 = vunpack.c.l.b16 %v34
  %v1721 = vunpack.c.h.b16 %v34
  %v1722 = vunpack.c.l.b16 %v35
  %v1723 = vunpack.c.h.b16 %v35
  %v1724 = vunpack.c.l.b16 %v36
  %v1725 = vunpack.c.h.b16 %v36
  %v1726 = vunpack.c.l.b16 %v37
  %v1727 = vunpack.c.h.b16 %v37
  %v1728 = vunpack.c.l.b16 %v38
  %v1729 = vunpack.c.h.b16 %v38
  %v1730 = vunpack.c.l.b16 %v39
  %v1731 = vunpack.c.h.b16 %v39
  %v1732 = vunpack.c.l.b16 %v40
  %v1733 = vunpack.c.h.b16 %v40
  %v1734 = vunpack.c.l.b16 %v41
  %v1735 = vunpack.c.h.b16 %v41
  %v1736 = vunpack.c.l.b16 %v42
  %v1737 = vunpack.c.h.b16 %v42
  %v1738 = vunpack.c.l.b16 %v43
  %v1739 = vunpack.c.h.b16 %v43
  %v1740 = vunpack.c.l.b16 %v44
  %v1741 = vunpack.c.h.b16 %v44
  %v1742 = vunpack.c.l.b16 %v45
  %v1743 = vunpack.c.h.b16 %v45
  %v1744 = vunpack.c.l.b16 %v46
  %v1745 = vunpack.c.h.b16 %v46
  %v1746 = vunpack.c.l.b16 %v47
  %v1747 = vunpack.c.h.b16 %v47
  %v1748 = vunpack.c.l.b16 %v48
  %v1749 = vunpack.c.h.b16 %v48
  %v1750 = vunpack.c.l.b16 %v49
  %v1751 = vunpack.c.h.b16 %v49
  %v1752 = vunpack.c.l.b16 %v50
  %v1753 = vunpack.c.h.b16 %v50
  %v1754 = vunpack.c.l.b16 %v51
  %v1755 = vunpack.c.h.b16 %v51
  %v1756 = vunpack.c.l.b16 %v52
  %v1757 = vunpack.c.h.b16 %v52
  %v1758 = vunpack.c.l.b16 %v53
  %v1759 = vunpack.c.h.b16 %v53
  %v1760 = vunpack.c.l.b16 %v54
  %v1761 = vunpack.c.h.b16 %v54
  %v1762 = vunpack.c.l.b16 %v55
  %v1763 = vunpack.c.h.b16 %v55
  %v1764 = vunpack.c.l.b16 %v56
  %v1765 = vunpack.c.h.b16 %v56
  %v1766 = vunpack.c.l.b16 %v57
  %v1767 = vunpack.c.h.b16 %v57
  %v1768 = vunpack.c.l.b16 %v58
  %v1769 = vunpack.c.h.b16 %v58
  %v1770 = vunpack.c.l.b16 %v59
  %v1771 = vunpack.c.h.b16 %v59
  %v1772 = vunpack.c.l.b16 %v60
  %v1773 = vunpack.c.h.b16 %v60
  %v1774 = vunpack.c.l.b16 %v61
  %v1775 = vunpack.c.h.b16 %v61
  %v1776 = vunpack.c.l.b16 %v62
  %v1777 = vunpack.c.h.b16 %v62
  %v1778 = vunpack.c.l.b16 %v63
  %v1779 = vunpack.c.h.b16 %v63
  %v1780 = vunpack.c.l.b16 %v64
  %v1781 = vunpack.c.h.b16 %v64
  %v1782 = vunpack.c.l.b16 %v65
  %v1783 = vunpack.c.h.b16 %v65
  %v1784 = vunpack.c.l.b16 %v66
  %v1785 = vunpack.c.h.b16 %v66
  %v1786 = vunpack.c.l.b16 %v67
  %v1787 = vunpack.c.h.b16 %v67
  %v1788 = vunpack.c.l.b16 %v68
  %v1789 = vunpack.c.h.b16 %v68
  %v1790 = vunpack.c.l.b16 %v69
  %v1791 = vunpack.c.h.b16 %v69
  %v1792 = vpack.c.b16 %v1694, %v1694
  %v1793 = vpack.c.b16 %v1695, %v1695
  %v1794 = vpack.c.b16 %v1696, %v1696
  %v1795 = vpack.c.b16 %v1697, %v1697
  %v1796 = vpack.c.b16 %v1698, %v1698
  %v1797 = vpack.c.b16 %v1699, %v1699
  %v1798 = vpack.c.b16 %v1700, %v1700
  %v1799 = vpack.c.b16 %v1701, %v1701
  %v1800 = vpack.c.b16 %v1702, %v1702
  %v1801 = vpack.c.b16 %v1703, %v1703
  %v1802 = vpack.c.b16 %v1704, %v1704
  %v1803 = vpack.c.b16 %v1705, %v1705
  %v1804 = vpack.c.b16 %v1706, %v1706
  %v1805 = vpack.c.b16 %v1707, %v1707
  %v1806 = vpack.c.b16 %v1708, %v1708
  %v1807 = vpack.c.b16 %v1709, %v1709
  %v1808 = vpack.c.b16 %v1710, %v1710
  %v1809 = vpack.c.b16 %v1711, %v1711
  %v1810 = vpack.c.b16 %v1712, %v1712
  %v1811 = vpack.c.b16 %v1713, %v1713
  %v1812 = vpack.c.b16 %v1714, %v1714
  %v1813 = vpack.c.b16 %v1715, %v1715
  %v1814 = vpack.c.b16 %v1716, %v1716
  %v1815 = vpack.c.b16 %v1717, %v1717
  %v1816 = vpack.c.b16 %v1718, %v1718
  %v1817 = vpack.c.b16 %v1719, %v1719
  %v1818 = vpack.c.b16 %v1720, %v1720
  %v1819 = vpack.c.b16 %v1721, %v1721
  %v1820 = vpack.c.b16 %v1722, %v1722
  %v1821 = vpack.c.b16 %v1723, %v1723
  %v1822 = vpack.c.b16 %v1724, %v1724
  %v1823 = vpack.c.b16 %v1725, %v1725
  %v1824 = vpack.c.b16 %v1726, %v1726
  %v1825 = vpack.c.b16 %v1727, %v1727
  %v1826 = vpack.c.b16 %v1728, %v1728
  %v1827 = vpack.c.b16 %v1729, %v1729
  %v1828 = vpack.c.b16 %v1730, %v1730
  %v1829 = vpack.c.b16 %v1731, %v1731
  %v1830 = vpack.c.b16 %v1732, %v1732
  %v1831 = vpack.c.b16 %v1733, %v1733
  %v1832 = vpack.c.b16 %v1734, %v1734
  %v1833 = vpack.c.b16 %v1735, %v1735
  %v1834 = vpack.c.b16 %v1736, %v1736
  %v1835 = vpack.c.b16 %v1737, %v1737
  %v1836 = vpack.c.b16 %v1738, %v1738
  %v1837 = vpack.c.b16 %v1739, %v1739
  %v1838 = vpack.c.b16 %v1740, %v1740
  %v1839 = vpack.c.b16 %v1741, %v1741
  %v1840 = vpack.c.b16 %v1742, %v1742
  %v1841 = vpack.c.b16 %v1743, %v1743
  %v1842 = vpack.c.b16 %v1744, %v1744
  %v1843 = vpack.c.b16 %v1745, %v1745
  %v1844 = vpack.c.b16 %v1746, %v1746
  %v1845 = vpack.c.b16 %v1747, %v1747
  %v1846 = vpack.c.b16 %v1748, %v1748
  %v1847 = vpack.c.b16 %v1749, %v1749
  %v1848 = vpack.c.b16 %v1750, %v1750
  %v1849 = vpack.c.b16 %v1751, %v1751
  %v1850 = vpack.c.b16 %v1752, %v1752
  %v1851 = vpack.c.b16 %v1753, %v1753
  %v1852 = vpack.c.b16 %v1754, %v1754
  %v1853 = vpack.c.b16 %v1755, %v1755
  %v1854 = vpack.c.b16 %v1756, %v1756
  %v1855 = vpack.c.b16 %v1757, %v1757
  %v1856 = vpack.c.b16 %v1758, %v1758
  %v1857 = vpack.c.b16 %v1759, %v1759
  %v1858 = vpack.c.b16 %v1760, %v1760
  %v1859 = vpack.c.b16 %v1761, %v1761
  %v1860 = vpack.c.b16 %v1762, %v1762
  %v1861 = vpack.c.b16 %v1763, %v1763
  %v1862 = vpack.c.b16 %v1764, %v1764
  %v1863 = vpack.c.b16 %v1765, %v1765
  %v1864 = vpack.c.b16 %v1766, %v1766
  %v1865 = vpack.c.b16 %v1767, %v1767
  %v1866 = vpack.c.b16 %v1768, %v1768
  %v1867 = vpack.c.b16 %v1769, %v1769
  %v1868 = vpack.c.b16 %v1770, %v1770
  %v1869 = vpack.c.b16 %v1771, %v1771
  %v1870 = vpack.c.b16 %v1772, %v1772
  %v1871 = vpack.c.b16 %v1773, %v1773
  %v1872 = vpack.c.b16 %v1774, %v1774
  %v1873 = vpack.c.b16 %v1775, %v1775
  %v1874 = vpack.c.b16 %v1776, %v1776
  %v1875 = vpack.c.b16 %v1777, %v1777
  %v1876 = vpack.c.b16 %v1778, %v1778
  %v1877 = vpack.c.b16 %v1779, %v1779
  %v1878 = vpack.c.b16 %v1780, %v1780
  %v1879 = vpack.c.b16 %v1781, %v1781
  %v1880 = vpack.c.b16 %v1782, %v1782
  %v1881 = vpack.c.b16 %v1783, %v1783
  %v1882 = vpack.c.b16 %v1784, %v1784
  %v1883 = vpack.c.b16 %v1785, %v1785
  %v1884 = vpack.c.b16 %v1786, %v1786
  %v1885 = vpack.c.b16 %v1787, %v1787
  %v1886 = vpack.c.b16 %v1788, %v1788
  %v1887 = vpack.c.b16 %v1789, %v1789
  %v1888 = vpack.c.b16 %v1790, %v1790
  %v1889 = vpack.c.b16 %v1791, %v1791
  %v3556 = vunpack.c.l.b16 %v70
  %v3557 = vunpack.c.l.b16 %v71
  %v3558 = vunpack.c.l.b16 %v72
  %v3559 = vunpack.c.l.b16 %v73
  %v3560 = vunpack.c.l.b16 %v74
  %v3561 = vunpack.c.l.b16 %v75
  %v3562 = vunpack.c.l.b16 %v76
  %v3563 = vunpack.c.l.b16 %v77
  %v3564 = vunpack.c.l.b16 %v78
  %v3565 = vunpack.c.l.b16 %v79
  %v3566 = vunpack.c.l.b16 %v80
  %v3567 = vunpack.c.l.b16 %v81
  %v3568 = vunpack.c.l.b16 %v82
  %v3569 = vunpack.c.l.b16 %v83
  %v3570 = vunpack.c.l.b16 %v84
  %v3571 = vunpack.c.l.b16 %v85
  %v3572 = vunpack.c.l.b16 %v86
  %v3573 = vunpack.c.l.b16 %v87
  %v3574 = vunpack.c.l.b16 %v88
  %v3575 = vunpack.c.l.b16 %v89
  %v3576 = vunpack.c.l.b16 %v90
  %v3577 = vunpack.c.l.b16 %v91
  %v3578 = vunpack.c.l.b16 %v92
  %v3579 = vunpack.c.l.b16 %v93
  %v3580 = vunpack.c.l.b16 %v94
  %v3581 = vunpack.c.l.b16 %v95
  %v3582 = vunpack.c.l.b16 %v96
  %v3583 = vunpack.c.l.b16 %v97
  %v3584 = vunpack.c.l.b16 %v98
  %v3585 = vunpack.c.l.b16 %v99
  %v3586 = vunpack.c.l.b16 %v100
  %v3587 = vunpack.c.l.b16 %v101
  %v3588 = vunpack.c.l.b16 %v102
  %v3589 = vunpack.c.l.b16 %v103
  %v3590 = vunpack.c.l.b16 %v104
  %v3591 = vunpack.c.l.b16 %v105
  %v3592 = vunpack.c.l.b16 %v106
  %v3593 = vunpack.c.l.b16 %v107
  %v3594 = vunpack.c.l.b16 %v108
  %v3595 = vunpack.c.l.b16 %v109
  %v3596 = vunpack.c.l.b16 %v110
  %v3597 = vunpack.c.l.b16 %v111
  %v3598 = vunpack.c.l.b16 %v112
  %v3599 = vunpack.c.l.b16 %v113
  %v3600 = vunpack.c.l.b16 %v114
  %v3601 = vunpack.c.l.b16 %v115
  %v3602 = vunpack.c.l.b16 %v116
  %v3603 = vunpack.c.l.b16 %v117
  %v3604 = vunpack.c.l.b16 %v118
  %v3605 = vunpack.c.l.b16 %v119
  %v3606 = vunpack.c.l.b16 %v120
  %v3607 = vunpack.c.l.b16 %v121
  %v3608 = vunpack.c.l.b16 %v122
  %v3609 = vunpack.c.l.b16 %v123
  %v3610 = vunpack.c.l.b16 %v124
  %v3611 = vunpack.c.l.b16 %v125
  %v3612 = vunpack.c.l.b16 %v126
  %v3613 = vunpack.c.l.b16 %v127
  %v3614 = vunpack.c.l.b16 %v128
  %v3615 = vunpack.c.l.b16 %v129
  %v3616 = vunpack.c.l.b16 %v130
  %v3617 = vunpack.c.l.b16 %v131
  %v3618 = vunpack.c.l.b16 %v132
  %v3619 = vunpack.c.l.b16 %v133
  %v3620 = vunpack.c.l.b16 %v134
  %v3621 = vunpack.c.l.b16 %v135
  %v3622 = vunpack.c.l.b16 %v136
  %v3623 = vunpack.c.l.b16 %v137
  %v3624 = vunpack.c.l.b16 %v138
  %v3625 = vunpack.c.l.b16 %v139
  %v3626 = vunpack.c.l.b16 %v140
  %v3627 = vunpack.c.l.b16 %v141
  %v3628 = vunpack.c.l.b16 %v142
  %v3629 = vunpack.c.l.b16 %v143
  %v3630 = vunpack.c.l.b16 %v144
  %v3631 = vunpack.c.l.b16 %v145
  %v3632 = vunpack.c.l.b16 %v146
  %v3633 = vunpack.c.l.b16 %v147
  %v3634 = vunpack.c.l.b16 %v148
  %v3635 = vunpack.c.l.b16 %v149
  %v3636 = vunpack.c.l.b16 %v150
  %v3637 = vunpack.c.l.b16 %v151
  %v3638 = vunpack.c.l.b16 %v152
  %v3639 = vunpack.c.l.b16 %v153
  %v3640 = vunpack.c.l.b16 %v154
  %v3641 = vunpack.c.l.b16 %v155
  %v3642 = vunpack.c.l.b16 %v156
  %v3643 = vunpack.c.l.b16 %v157
  %v3644 = vunpack.c.l.b16 %v158
  %v3645 = vunpack.c.l.b16 %v159
  %v3646 = vunpack.c.l.b16 %v160
  %v3647 = vunpack.c.l.b16 %v161
  %v3648 = vunpack.c.l.b16 %v162
  %v3649 = vunpack.c.l.b16 %v163
  %v3650 = vunpack.c.l.b16 %v164
  %v3651 = vunpack.c.l.b16 %v165
  %v3652 = vunpack.c.l.b16 %v166
  %v3653 = vunpack.c.l.b16 %v167
  %v3654 = vunpack.c.l.b16 %v168
  %v3655 = vunpack.c.l.b16 %v169
  %v3656 = vunpack.c.l.b16 %v170
  %v3657 = vunpack.c.l.b16 %v171
  %v3658 = vunpack.c.l.b16 %v172
  %v3659 = vunpack.c.l.b16 %v173
  %v3660 = vunpack.c.l.b16 %v174
  %v3661 = vunpack.c.l.b16 %v175
  %v3662 = vunpack.c.l.b16 %v176
  %v3663 = vunpack.c.l.b16 %v177
  %v3664 = vunpack.c.l.b16 %v178
  %v3665 = vunpack.c.l.b16 %v179
  %v3666 = vunpack.c.l.b16 %v180
  %v3667 = vunpack.c.l.b16 %v181
  %v3668 = vunpack.c.l.b16 %v182
  %v3669 = vunpack.c.l.b16 %v183
  %v3670 = vunpack.c.l.b16 %v184
  %v3671 = vunpack.c.l.b16 %v185
  %v3672 = vunpack.c.l.b16 %v186
  %v3673 = vunpack.c.l.b16 %v187
  %v3674 = vunpack.c.l.b16 %v188
  %v3675 = vunpack.c.l.b16 %v189
  %v3676 = vunpack.c.l.b16 %v190
  %v3677 = vunpack.c.l.b16 %v191
  %v3678 = vunpack.c.l.b16 %v192
  %v3679 = vunpack.c.l.b16 %v193
  %v3680 = vunpack.c.l.b16 %v194
  %v3681 = vunpack.c.l.b16 %v195
  %v3682 = vunpack.c.l.b16 %v196
  %v3683 = vunpack.c.l.b16 %v197
  %v3684 = vunpack.c.l.b16 %v198
  %v3685 = vunpack.c.l.b16 %v199
  %v3686 = vunpack.c.l.b16 %v200
  %v3687 = vunpack.c.l.b16 %v201
  %v3688 = vunpack.c.l.b16 %v202
  %v3689 = vunpack.c.l.b16 %v203
  %v3690 = vunpack.c.l.b16 %v204
  %v3691 = vunpack.c.l.b16 %v205
  %v3692 = vunpack.c.l.b16 %v206
  %v3693 = vunpack.c.l.b16 %v207
  %v3694 = vunpack.c.l.b16 %v208
  %v3695 = vunpack.c.l.b16 %v209
  %v3696 = vunpack.c.l.b16 %v210
  %v3697 = vunpack.c.l.b16 %v211
  %v3698 = vunpack.c.l.b16 %v212
  %v3699 = vunpack.c.l.b16 %v213
  %v3700 = vunpack.c.l.b16 %v214
  %v3701 = vunpack.c.l.b16 %v215
  %v3702 = vunpack.c.l.b16 %v216
  %v3703 = vunpack.c.l.b16 %v217
  %v3704 = vunpack.c.l.b16 %v218
  %v3705 = vunpack.c.l.b16 %v219
  %v3706 = vunpack.c.l.b16 %v220
  %v3707 = vunpack.c.l.b16 %v221
  %v3708 = vunpack.c.l.b16 %v222
  %v3709 = vunpack.c.l.b16 %v223
  %v3710 = vunpack.c.l.b16 %v224
  %v3711 = vunpack.c.l.b16 %v225
  %v3712 = vunpack.c.l.b16 %v226
  %v3713 = vunpack.c.l.b16 %v227
  %v3714 = vunpack.c.l.b16 %v228
  %v3715 = vunpack.c.l.b16 %v229
  %v3716 = vunpack.c.l.b16 %v230
  %v3717 = vunpack.c.l.b16 %v231
  %v3718 = vunpack.c.l.b16 %v232
  %v3719 = vunpack.c.l.b16 %v233
  %v3720 = vunpack.c.l.b16 %v234
  %v3721 = vunpack.c.l.b16 %v235
  %v3722 = vunpack.c.l.b16 %v236
  %v3723 = vunpack.c.l.b16 %v237
  %v3724 = vunpack.c.l.b16 %v238
  %v3725 = vunpack.c.l.b16 %v239
  %v3726 = vunpack.c.l.b16 %v240
  %v3727 = vunpack.c.l.b16 %v241
  %v3728 = vunpack.c.l.b16 %v242
  %v3729 = vunpack.c.l.b16 %v243
  %v3730 = vunpack.c.l.b16 %v244
  %v3731 = vunpack.c.l.b16 %v245
  %v3732 = vunpack.c.l.b16 %v246
  %v3733 = vunpack.c.l.b16 %v247
  %v3734 = vunpack.c.l.b16 %v248
  %v3735 = vunpack.c.l.b16 %v249
  %v3736 = vunpack.c.l.b16 %v250
  %v3737 = vunpack.c.l.b16 %v251
  %v3738 = vunpack.c.l.b16 %v252
  %v3739 = vunpack.c.l.b16 %v253
  %v3740 = vunpack.c.l.b16 %v254
  %v3741 = vunpack.c.l.b16 %v255
  %v3742 = vunpack.c.l.b16 %v256
  %v3743 = vunpack.c.l.b16 %v257
  %v3744 = vunpack.c.l.b16 %v258
  %v3745 = vunpack.c.l.b16 %v259
  %v3746 = vunpack.c.l.b16 %v260
  %v3747 = vunpack.c.l.b16 %v261
  %v3748 = vunpack.c.l.b16 %v262
  %v3749 = vunpack.c.l.b16 %v263
  %v3750 = vunpack.c.l.b16 %v264
  %v3751 = vunpack.c.l.b16 %v265
  %v3752 = vunpack.c.l.b16 %v266
  %v3753 = vunpack.c.l.b16 %v267
  %v3754 = vunpack.c.l.b16 %v268
  %v3755 = vunpack.c.l.b16 %v269
  %v3756 = vunpack.c.l.b16 %v270
  %v3757 = vunpack.c.l.b16 %v271
  %v3758 = vunpack.c.l.b16 %v272
  %v3759 = vunpack.c.l.b16 %v273
  %v3760 = vunpack.c.l.b16 %v274
  %v3761 = vunpack.c.l.b16 %v275
  %v3762 = vunpack.c.l.b16 %v276
  %v3763 = vunpack.c.l.b16 %v277
  %v3764 = vunpack.c.l.b16 %v278
  %v3765 = vunpack.c.l.b16 %v279
  %v3766 = vunpack.c.l.b16 %v280
  %v3767 = vunpack.c.l.b16 %v281
  %v3768 = vunpack.c.l.b16 %v282
  %v3769 = vunpack.c.l.b16 %v283
  %v3770 = vunpack.c.l.b16 %v284
  %v3771 = vunpack.c.l.b16 %v285
  %v3772 = vunpack.c.l.b16 %v286
  %v3773 = vunpack.c.l.b16 %v287
  %v3774 = vunpack.c.l.b16 %v288
  %v3775 = vunpack.c.l.b16 %v289
  %v3776 = vunpack.c.l.b16 %v290
  %v3777 = vunpack.c.l.b16 %v291
  %v3778 = vunpack.c.l.b16 %v292
  %v3779 = vunpack.c.l.b16 %v293
  %v3780 = vunpack.c.l.b16 %v294
  %v3781 = vunpack.c.l.b16 %v295
  %v3782 = vunpack.c.l.b16 %v296
  %v3783 = vunpack.c.l.b16 %v297
  %v3784 = vunpack.c.l.b16 %v298
  %v3785 = vunpack.c.l.b16 %v299
  %v3786 = vunpack.c.l.b16 %v300
  %v3787 = vunpack.c.l.b16 %v301
  %v3788 = vunpack.c.l.b16 %v302
  %v3789 = vunpack.c.l.b16 %v303
  %v3790 = vunpack.c.l.b16 %v304
  %v3791 = vunpack.c.l.b16 %v305
  %v3792 = vunpack.c.l.b16 %v306
  %v3793 = vunpack.c.l.b16 %v307
  %v3794 = vunpack.c.l.b16 %v308
  %v3795 = vunpack.c.l.b16 %v309
  %v3796 = vunpack.c.l.b16 %v310
  %v3797 = vunpack.c.l.b16 %v311
  %v3798 = vunpack.c.l.b16 %v312
  %v3799 = vunpack.c.l.b16 %v313
  %v3800 = vunpack.c.l.b16 %v314
  %v3801 = vunpack.c.l.b16 %v315
  %v3802 = vunpack.c.l.b16 %v316
  %v3803 = vunpack.c.l.b16 %v317
  %v3804 = vunpack.c.l.b16 %v318
  %v3805 = vunpack.c.l.b16 %v319
  %v3806 = vunpack.c.l.b16 %v320
  %v3807 = vunpack.c.l.b16 %v321
  %v3808 = vunpack.c.l.b16 %v322
  %v3809 = vunpack.c.l.b16 %v323
  %v3810 = vunpack.c.l.b16 %v324
  %v3811 = vunpack.c.l.b16 %v325
  %v3812 = vunpack.c.l.b16 %v326
  %v3813 = vunpack.c.l.b16 %v327
  %v3814 = vunpack.c.l.b16 %v328
  %v3815 = vunpack.c.l.b16 %v329
  %v3816 = vunpack.c.l.b16 %v330
  %v3817 = vunpack.c.l.b16 %v331
  %v3818 = vunpack.c.l.b16 %v332
  %v3819 = vunpack.c.l.b16 %v333
  %v3820 = vunpack.c.l.b16 %v334
  %v3821 = vunpack.c.l.b16 %v335
  %v3822 = vunpack.c.l.b16 %v336
  %v3823 = vunpack.c.l.b16 %v337
  %v3824 = vunpack.c.l.b16 %v338
  %v3825 = vunpack.c.l.b16 %v339
  %v3826 = vunpack.c.l.b16 %v340
  %v3827 = vunpack.c.l.b16 %v341
  %v3828 = vunpack.c.l.b16 %v342
  %v3829 = vunpack.c.l.b16 %v343
  %v3830 = vunpack.c.l.b16 %v344
  %v3831 = vunpack.c.l.b16 %v345
  %v3832 = vunpack.c.l.b16 %v346
  %v3833 = vunpack.c.l.b16 %v347
  %v3834 = vunpack.c.l.b16 %v348
  %v3835 = vunpack.c.l.b16 %v349
  %v3836 = vunpack.c.l.b16 %v350
  %v3837 = vunpack.c.l.b16 %v351
  %v3838 = vunpack.c.l.b16 %v352
  %v3839 = vunpack.c.l.b16 %v353
  %v3840 = vunpack.c.l.b16 %v354
  %v3841 = vunpack.c.l.b16 %v355
  %v3842 = vunpack.c.l.b16 %v356
  %v3843 = vunpack.c.l.b16 %v357
  %v3844 = vunpack.c.l.b16 %v358
  %v3845 = vunpack.c.l.b16 %v359
  %v3846 = vunpack.c.l.b16 %v360
  %v3847 = vunpack.c.l.b16 %v361
  %v3848 = vunpack.c.l.b16 %v362
  %v3849 = vunpack.c.l.b16 %v363
  %v3850 = vunpack.c.l.b16 %v364
  %v3851 = vunpack.c.l.b16 %v365
  %v3852 = vunpack.c.l.b16 %v366
  %v3853 = vunpack.c.l.b16 %v367
  %v3854 = vunpack.c.l.b16 %v368
  %v3855 = vunpack.c.l.b16 %v369
  %v3856 = vunpack.c.l.b16 %v370
  %v3857 = vunpack.c.l.b16 %v371
  %v3858 = vunpack.c.l.b16 %v372
  %v3859 = vunpack.c.l.b16 %v373
  %v3860 = vunpack.c.l.b16 %v374
  %v3861 = vunpack.c.l.b16 %v375
  %v3862 = vunpack.c.l.b16 %v376
  %v3863 = vunpack.c.l.b16 %v377
  %v3864 = vunpack.c.l.b16 %v378
  %v3865 = vunpack.c.l.b16 %v379
  %v3866 = vunpack.c.l.b16 %v380
  %v3867 = vunpack.c.l.b16 %v381
  %v3868 = vunpack.c.l.b16 %v382
  %v3869 = vunpack.c.l.b16 %v383
  %v3870 = vunpack.c.l.b16 %v384
  %v3871 = vunpack.c.l.b16 %v385
  %v3872 = vunpack.c.l.b16 %v386
  %v3873 = vunpack.c.l.b16 %v387
  %v3874 = vunpack.c.l.b16 %v388
  %v3875 = vunpack.c.l.b16 %v389
  %v3876 = vunpack.c.l.b16 %v390
  %v3877 = vunpack.c.l.b16 %v391
  %v3878 = vunpack.c.l.b16 %v392
  %v3879 = vunpack.c.l.b16 %v393
  %v3880 = vunpack.c.l.b16 %v394
  %v3881 = vunpack.c.l.b16 %v395
  %v3882 = vunpack.c.l.b16 %v396
  %v3883 = vunpack.c.l.b16 %v397
  %v3884 = vunpack.c.l.b16 %v398
  %v3885 = vunpack.c.l.b16 %v399
  %v3886 = vunpack.c.l.b16 %v400
  %v3887 = vunpack.c.l.b16 %v401
  %v3888 = vunpack.c.l.b16 %v402
  %v3889 = vunpack.c.l.b16 %v403
  %v3890 = vunpack.c.l.b16 %v404
  %v3891 = vunpack.c.l.b16 %v405
  %v3892 = vunpack.c.l.b16 %v406
  %v3893 = vunpack.c.l.b16 %v407
  %v3894 = vunpack.c.l.b16 %v408
  %v3895 = vunpack.c.l.b16 %v409
  %v3896 = vunpack.c.l.b16 %v410
  %v3897 = vunpack.c.l.b16 %v411
  %v3898 = vunpack.c.l.b16 %v412
  %v3899 = vunpack.c.l.b16 %v413
  %v3900 = vunpack.c.l.b16 %v414
  %v3901 = vunpack.c.l.b16 %v415
  %v3902 = vunpack.c.l.b16 %v416
  %v3903 = vunpack.c.l.b16 %v417
  %v3904 = vunpack.c.l.b16 %v418
  %v3905 = vunpack.c.l.b16 %v419
  %v3906 = vunpack.c.l.b16 %v420
  %v3907 = vunpack.c.l.b16 %v421
  %v3908 = vunpack.c.l.b16 %v422
  %v3909 = vunpack.c.l.b16 %v423
  %v3910 = vunpack.c.l.b16 %v424
  %v3911 = vunpack.c.l.b16 %v425
  %v3912 = vunpack.c.l.b16 %v426
  %v3913 = vunpack.c.l.b16 %v427
  %v3914 = vunpack.c.l.b16 %v428
  %v3915 = vunpack.c.l.b16 %v429
  %v3916 = vunpack.c.l.b16 %v430
  %v3917 = vunpack.c.l.b16 %v431
  %v3918 = vunpack.c.l.b16 %v432
  %v3919 = vunpack.c.l.b16 %v433
  %v3920 = vunpack.c.l.b16 %v434
  %v3921 = vunpack.c.l.b16 %v435
  %v3922 = vunpack.c.l.b16 %v436
  %v3923 = vunpack.c.l.b16 %v437
  %v3924 = vunpack.c.l.b16 %v438
  %v3925 = vunpack.c.l.b16 %v439
  %v3926 = vunpack.c.l.b16 %v440
  %v3927 = vunpack.c.l.b16 %v441
  %v3928 = vunpack.c.l.b16 %v442
  %v3929 = vunpack.c.l.b16 %v443
  %v3930 = vunpack.c.l.b16 %v444
  %v3931 = vunpack.c.l.b16 %v445
  %v3932 = vunpack.c.l.b16 %v446
  %v3933 = vunpack.c.l.b16 %v447
  %v3934 = vunpack.c.l.b16 %v448
  %v3935 = vunpack.c.l.b16 %v449
  %v3936 = vunpack.c.l.b16 %v450
  %v3937 = vunpack.c.l.b16 %v451
  %v3938 = vunpack.c.l.b16 %v452
  %v3939 = vunpack.c.l.b16 %v453
  %v3940 = vunpack.c.l.b16 %v454
  %v3941 = vunpack.c.l.b16 %v455
  %v3942 = vunpack.c.l.b16 %v456
  %v3943 = vunpack.c.l.b16 %v457
  %v3944 = vunpack.c.l.b16 %v458
  %v3945 = vunpack.c.l.b16 %v459
  %v3946 = vunpack.c.l.b16 %v460
  %v3947 = vunpack.c.l.b16 %v461
  %v3948 = vunpack.c.l.b16 %v462
  %v3949 = vunpack.c.l.b16 %v463
  %v3950 = vunpack.c.l.b16 %v464
  %v3951 = vunpack.c.l.b16 %v465
  %v3952 = vunpack.c.l.b16 %v466
  %v3953 = vunpack.c.l.b16 %v467
  %v3954 = vunpack.c.l.b16 %v468
  %v3955 = vunpack.c.l.b16 %v469
  %v3956 = vunpack.c.l.b16 %v470
  %v3957 = vunpack.c.l.b16 %v471
  %v3958 = vunpack.c.l.b16 %v472
  %v3959 = vunpack.c.l.b16 %v473
  %v3960 = vunpack.c.l.b16 %v474
  %v3961 = vunpack.c.l.b16 %v475
  %v3962 = vunpack.c.l.b16 %v476
  %v3963 = vunpack.c.l.b16 %v477
  %v3964 = vunpack.c.l.b16 %v478
  %v3965 = vunpack.c.l.b16 %v479
  %v3966 = vunpack.c.l.b16 %v480
  %v3967 = vunpack.c.l.b16 %v481
  %v3968 = vunpack.c.l.b16 %v482
  %v3969 = vunpack.c.l.b16 %v483
  %v3970 = vunpack.c.l.b16 %v484
  %v3971 = vunpack.c.l.b16 %v485
  %v3972 = vunpack.c.l.b16 %v486
  %v3973 = vunpack.c.l.b16 %v487
  %v3974 = vunpack.c.l.b16 %v488
  %v3975 = vunpack.c.l.b16 %v489
  %v3976 = vunpack.c.l.b16 %v490
  %v3977 = vunpack.c.l.b16 %v491
  %v3978 = vunpack.c.l.b16 %v492
  %v3979 = vunpack.c.l.b16 %v493
  %v3980 = vunpack.c.l.b16 %v494
  %v3981 = vunpack.c.l.b16 %v495
  %v3982 = vunpack.c.l.b16 %v496
  %v3983 = vunpack.c.l.b16 %v497
  %v3984 = vunpack.c.l.b16 %v498
  %v3985 = vunpack.c.l.b16 %v499
  %v3986 = vunpack.c.l.b16 %v500
  %v3987 = vunpack.c.l.b16 %v501
  %v3988 = vunpack.c.l.b16 %v502
  %v3989 = vunpack.c.l.b16 %v503
  %v3990 = vunpack.c.l.b16 %v504
  %v3991 = vunpack.c.l.b16 %v505
  %v3992 = vunpack.c.l.b16 %v506
  %v3993 = vunpack.c.l.b16 %v507
  %v3994 = vunpack.c.l.b16 %v508
  %v3995 = vunpack.c.l.b16 %v509
  %v3996 = vunpack.c.l.b16 %v510
  %v3997 = vunpack.c.l.b16 %v511
  %v3998 = vunpack.c.l.b16 %v512
  %v3999 = vunpack.c.l.b16 %v513
  %v4000 = vunpack.c.l.b16 %v514
  %v4001 = vunpack.c.l.b16 %v515
  %v4002 = vunpack.c.l.b16 %v516
  %v4003 = vunpack.c.l.b16 %v517
  %v4004 = vunpack.c.l.b16 %v518
  %v4005 = vunpack.c.l.b16 %v519
  %v4006 = vunpack.c.l.b16 %v520
  %v4007 = vunpack.c.l.b16 %v521
  %v4008 = vunpack.c.l.b16 %v522
  %v4009 = vunpack.c.l.b16 %v523
  %v4010 = vunpack.c.l.b16 %v524
  %v4011 = vunpack.c.l.b16 %v525
  %v4012 = vunpack.c.l.b16 %v526
  %v4013 = vunpack.c.l.b16 %v527
  %v4014 = vunpack.c.l.b16 %v528
  %v4015 = vunpack.c.l.b16 %v529
  %v4016 = vunpack.c.l.b16 %v530
  %v4017 = vunpack.c.l.b16 %v531
  %v4018 = vunpack.c.l.b16 %v532
  %v4019 = vunpack.c.l.b16 %v533
  %v4020 = vunpack.c.l.b16 %v534
  %v4021 = vunpack.c.l.b16 %v535
  %v4022 = vunpack.c.l.b16 %v536
  %v4023 = vunpack.c.l.b16 %v537
  %v4024 = vunpack.c.l.b16 %v538
  %v4025 = vunpack.c.l.b16 %v539
  %v4026 = vunpack.c.l.b16 %v540
  %v4027 = vunpack.c.l.b16 %v541
  %v4028 = vunpack.c.l.b16 %v542
  %v4029 = vunpack.c.l.b16 %v543
  %v4030 = vunpack.c.l.b16 %v544
  %v4031 = vunpack.c.l.b16 %v545
  %v4032 = vunpack.c.l.b16 %v546
  %v4033 = vunpack.c.l.b16 %v547
  %v4034 = vunpack.c.l.b16 %v548
  %v4035 = vunpack.c.l.b16 %v549
  %v4036 = vunpack.c.l.b16 %v550
  %v4037 = vunpack.c.l.b16 %v551
  %v4038 = vunpack.c.l.b16 %v552
  %v4039 = vunpack.c.l.b16 %v553
  %v4040 = vunpack.c.l.b16 %v554
  %v4041 = vunpack.c.l.b16 %v555
  %v4042 = vunpack.c.l.b16 %v556
  %v4043 = vunpack.c.l.b16 %v557
  %v4044 = vunpack.c.l.b16 %v558
  %v4045 = vunpack.c.l.b16 %v559
  %v4046 = vunpack.c.l.b16 %v560
  %v4047 = vunpack.c.l.b16 %v561
  %v4048 = vunpack.c.l.b16 %v562
  %v4049 = vunpack.c.l.b16 %v563
  %v4050 = vunpack.c.l.b16 %v564
  %v4051 = vunpack.c.l.b16 %v565
  %v4052 = vunpack.c.l.b16 %v566
  %v4053 = vunpack.c.l.b16 %v567
  %v4054 = vunpack.c.l.b16 %v568
  %v4055 = vunpack.c.l.b16 %v569
  %v4056 = vunpack.c.l.b16 %v570
  %v4057 = vunpack.c.l.b16 %v571
  %v4058 = vunpack.c.l.b16 %v572
  %v4059 = vunpack.c.l.b16 %v573
  %v4060 = vunpack.c.l.b16 %v574
  %v4061 = vunpack.c.l.b16 %v575
  %v4062 = vunpack.c.l.b16 %v576
  %v4063 = vunpack.c.l.b16 %v577
  %v4064 = vunpack.c.l.b16 %v578
  %v4065 = vunpack.c.l.b16 %v579
  %v4066 = vunpack.c.l.b16 %v580
  %v4067 = vunpack.c.l.b16 %v581
  %v4068 = vunpack.c.l.b16 %v582
  %v4069 = vunpack.c.l.b16 %v583
  %v4070 = vunpack.c.l.b16 %v584
  %v4071 = vunpack.c.l.b16 %v585
  %v4072 = vunpack.c.l.b16 %v586
  %v4073 = vunpack.c.l.b16 %v587
  %v4074 = vunpack.c.l.b16 %v588
  %v4075 = vunpack.c.l.b16 %v589
  %v4076 = vunpack.c.l.b16 %v590
  %v4077 = vunpack.c.l.b16 %v591
  %v4078 = vunpack.c.l.b16 %v592
  %v4079 = vunpack.c.l.b16 %v593
  %v4080 = vunpack.c.l.b16 %v594
  %v4081 = vunpack.c.l.b16 %v595
  %v4082 = vunpack.c.l.b16 %v596
  %v4083 = vunpack.c.l.b16 %v597
  %v4084 = vunpack.c.l.b16 %v598
  %v4085 = vunpack.c.l.b16 %v599
  %v4086 = vunpack.c.l.b16 %v600
  %v4087 = vunpack.c.l.b16 %v601
  %v4088 = vunpack.c.l.b16 %v602
  %v4089 = vunpack.c.l.b16 %v603
  %v4090 = vunpack.c.l.b16 %v604
  %v4091 = vunpack.c.l.b16 %v605
  %v4092 = vunpack.c.l.b16 %v606
  %v4093 = vunpack.c.l.b16 %v607
  %v4094 = vunpack.c.l.b16 %v608
  %v4095 = vunpack.c.l.b16 %v609
  %v4096 = vunpack.c.l.b16 %v610
  %v4097 = vunpack.c.l.b16 %v611
  %v4098 = vunpack.c.l.b16 %v612
  %v4099 = vunpack.c.l.b16 %v613
  %v4100 = vunpack.c.l.b16 %v614
  %v4101 = vunpack.c.l.b16 %v615
  %v4102 = vunpack.c.l.b16 %v616
  %v4103 = vunpack.c.l.b16 %v617
  %v4104 = vunpack.c.l.b16 %v618
  %v4105 = vunpack.c.l.b16 %v619
  %v4106 = vunpack.c.l.b16 %v620
  %v4107 = vunpack.c.l.b16 %v621
  %v4108 = vunpack.c.l.b16 %v622
  %v4109 = vunpack.c.l.b16 %v623
  %v4110 = vunpack.c.l.b16 %v624
  %v4111 = vunpack.c.l.b16 %v625
  %v4112 = vunpack.c.l.b16 %v626
  %v4113 = vunpack.c.l.b16 %v627
  %v4114 = vunpack.c.l.b16 %v628
  %v4115 = vunpack.c.l.b16 %v629
  %v4116 = vunpack.c.l.b16 %v630
  %v4117 = vunpack.c.l.b16 %v631
  %v4118 = vunpack.c.l.b16 %v632
  %v4119 = vunpack.c.l.b16 %v633
  %v4120 = vunpack.c.l.b16 %v634
  %v4121 = vunpack.c.l.b16 %v635
  %v4122 = vunpack.c.l.b16 %v636
  %v4123 = vunpack.c.l.b16 %v637
  %v4124 = vunpack.c.l.b16 %v638
  %v4125 = vunpack.c.l.b16 %v639
  %v4126 = vunpack.c.l.b16 %v640
  %v4127 = vunpack.c.l.b16 %v641
  %v4128 = vunpack.c.l.b16 %v642
  %v4129 = vunpack.c.l.b16 %v643
  %v4130 = vunpack.c.l.b16 %v644
  %v4131 = vunpack.c.l.b16 %v645
  %v4132 = vunpack.c.l.b16 %v646
  %v4133 = vunpack.c.l.b16 %v647
  %v4134 = vunpack.c.l.b16 %v648
  %v4135 = vunpack.c.l.b16 %v649
  %v4136 = vunpack.c.l.b16 %v650
  %v4137 = vunpack.c.l.b16 %v651
  %v4138 = vunpack.c.l.b16 %v652
  %v4139 = vunpack.c.l.b16 %v653
  %v4140 = vunpack.c.l.b16 %v654
  %v4141 = vunpack.c.l.b16 %v655
  %v4142 = vunpack.c.l.b16 %v656
  %v4143 = vunpack.c.l.b16 %v657
  %v4144 = vunpack.c.l.b16 %v658
  %v4145 = vunpack.c.l.b16 %v659
  %v4146 = vunpack.c.l.b16 %v660
  %v4147 = vunpack.c.l.b16 %v661
  %v4148 = vunpack.c.l.b16 %v662
  %v4149 = vunpack.c.l.b16 %v663
  %v4150 = vunpack.c.l.b16 %v664
  %v4151 = vunpack.c.l.b16 %v665
  %v4152 = vunpack.c.l.b16 %v666
  %v4153 = vunpack.c.l.b16 %v667
  %v4154 = vunpack.c.l.b16 %v668
  %v4155 = vunpack.c.l.b16 %v669
  %v4156 = vunpack.c.l.b16 %v670
  %v4157 = vunpack.c.l.b16 %v671
  %v4158 = vunpack.c.l.b16 %v672
  %v4159 = vunpack.c.l.b16 %v673
  %v4160 = vunpack.c.l.b16 %v674
  %v4161 = vunpack.c.l.b16 %v675
  %v4162 = vunpack.c.l.b16 %v676
  %v4163 = vunpack.c.l.b16 %v677
  %v4164 = vunpack.c.l.b16 %v678
  %v4165 = vunpack.c.l.b16 %v679
  %v4166 = vunpack.c.l.b16 %v680
  %v4167 = vunpack.c.l.b16 %v681
  %v4168 = vunpack.c.l.b16 %v682
  %v4169 = vunpack.c.l.b16 %v683
  %v4170 = vunpack.c.l.b16 %v684
  %v4171 = vunpack.c.l.b16 %v685
  %v4172 = vunpack.c.l.b16 %v686
  %v4173 = vunpack.c.l.b16 %v687
  %v4174 = vunpack.c.l.b16 %v688
  %v4175 = vunpack.c.l.b16 %v689
  %v4176 = vunpack.c.l.b16 %v690
  %v4177 = vunpack.c.l.b16 %v691
  %v4178 = vunpack.c.l.b16 %v692
  %v4179 = vunpack.c.l.b16 %v693
  %v4180 = vunpack.c.l.b16 %v694
  %v4181 = vunpack.c.l.b16 %v695
  %v4182 = vunpack.c.l.b16 %v696
  %v4183 = vunpack.c.l.b16 %v697
  %v4184 = vunpack.c.l.b16 %v698
  %v4185 = vunpack.c.l.b16 %v699
  %v4186 = vunpack.c.l.b16 %v700
  %v4187 = vunpack.c.l.b16 %v701
  %v4188 = vunpack.c.l.b16 %v702
  %v4189 = vunpack.c.l.b16 %v703
  %v4190 = vunpack.c.l.b16 %v704
  %v4191 = vunpack.c.l.b16 %v705
  %v4192 = vunpack.c.l.b16 %v706
  %v4193 = vunpack.c.l.b16 %v707
  %v4194 = vunpack.c.l.b16 %v708
  %v4195 = vunpack.c.l.b16 %v709
  %v4196 = vunpack.c.l.b16 %v710
  %v4197 = vunpack.c.l.b16 %v711
  %v4198 = vunpack.c.l.b16 %v712
  %v4199 = vunpack.c.l.b16 %v713
  %v4200 = vunpack.c.l.b16 %v714
  %v4201 = vunpack.c.l.b16 %v715
  %v4202 = vunpack.c.l.b16 %v716
  %v4203 = vunpack.c.l.b16 %v717
  %v4204 = vunpack.c.l.b16 %v718
  %v4205 = vunpack.c.l.b16 %v719
  %v4206 = vunpack.c.l.b16 %v720
  %v4207 = vunpack.c.l.b16 %v721
  %v4208 = vunpack.c.l.b16 %v722
  %v4209 = vunpack.c.l.b16 %v723
  %v4210 = vunpack.c.l.b16 %v724
  %v4211 = vunpack.c.l.b16 %v725
  %v4212 = vunpack.c.l.b16 %v726
  %v4213 = vunpack.c.l.b16 %v727
  %v4214 = vunpack.c.l.b16 %v728
  %v4215 = vunpack.c.l.b16 %v729
  %v4216 = vunpack.c.l.b16 %v730
  %v4217 = vunpack.c.l.b16 %v731
  %v4218 = vunpack.c.l.b16 %v732
  %v4219 = vunpack.c.l.b16 %v733
  %v4220 = vunpack.c.l.b16 %v734
  %v4221 = vunpack.c.l.b16 %v735
  %v4222 = vunpack.c.l.b16 %v736
  %v4223 = vunpack.c.l.b16 %v737
  %v4224 = vunpack.c.l.b16 %v738
  %v4225 = vunpack.c.l.b16 %v739
  %v4226 = vunpack.c.l.b16 %v740
  %v4227 = vunpack.c.l.b16 %v741
  %v4228 = vunpack.c.l.b16 %v742
  %v4229 = vunpack.c.l.b16 %v743
  %v4230 = vunpack.c.l.b16 %v744
  %v4231 = vunpack.c.l.b16 %v745
  %v4232 = vunpack.c.l.b16 %v746
  %v4233 = vunpack.c.l.b16 %v747
  %v4234 = vunpack.c.l.b16 %v748
  %v4235 = vunpack.c.l.b16 %v749
  %v4236 = vunpack.c.l.b16 %v750
  %v4237 = vunpack.c.l.b16 %v751
  %v4238 = vunpack.c.l.b16 %v752
  %v4239 = vunpack.c.l.b16 %v753
  %v4240 = vunpack.c.l.b16 %v754
  %v4241 = vunpack.c.l.b16 %v755
  %v4242 = vunpack.c.l.b16 %v756
  %v4243 = vunpack.c.l.b16 %v757
  %v4244 = vunpack.c.l.b16 %v758
  %v4245 = vunpack.c.l.b16 %v759
  %v4246 = vunpack.c.l.b16 %v760
  %v4247 = vunpack.c.l.b16 %v761
  %v4248 = vunpack.c.l.b16 %v762
  %v4249 = vunpack.c.l.b16 %v763
  %v4250 = vunpack.c.l.b16 %v764
  %v4251 = vunpack.c.l.b16 %v765
  %v4252 = vunpack.c.l.b16 %v766
  %v4253 = vunpack.c.l.b16 %v767
  %v4254 = vunpack.c.l.b16 %v768
  %v4255 = vunpack.c.l.b16 %v769
  %v4256 = vunpack.c.l.b16 %v770
  %v4257 = vunpack.c.l.b16 %v771
  %v4258 = vunpack.c.l.b16 %v772
  %v4259 = vunpack.c.l.b16 %v773
  %v4260 = vunpack.c.l.b16 %v774
  %v4261 = vunpack.c.l.b16 %v775
  %v4262 = vunpack.c.l.b16 %v776
  %v4263 = vunpack.c.l.b16 %v777
  %v4264 = vunpack.c.l.b16 %v778
  %v4265 = vunpack.c.l.b16 %v779
  %v4266 = vunpack.c.l.b16 %v780
  %v4267 = vunpack.c.l.b16 %v781
  %v4268 = vunpack.c.l.b16 %v782
  %v4269 = vunpack.c.l.b16 %v783
  %v4270 = vunpack.c.l.b16 %v784
  %v4271 = vunpack.c.l.b16 %v785
  %v4272 = vunpack.c.l.b16 %v786
  %v4273 = vunpack.c.l.b16 %v787
  %v4274 = vunpack.c.l.b16 %v788
  %v4275 = vunpack.c.l.b16 %v789
  %v4276 = vunpack.c.l.b16 %v790
  %v4277 = vunpack.c.l.b16 %v791
  %v4278 = vunpack.c.l.b16 %v792
  %v4279 = vunpack.c.l.b16 %v793
  %v4280 = vunpack.c.l.b16 %v794
  %v4281 = vunpack.c.l.b16 %v795
  %v4282 = vunpack.c.l.b16 %v796
  %v4283 = vunpack.c.l.b16 %v797
  %v4284 = vunpack.c.l.b16 %v798
  %v4285 = vunpack.c.l.b16 %v799
  %v4286 = vunpack.c.l.b16 %v800
  %v4287 = vunpack.c.l.b16 %v801
  %v4288 = vunpack.c.l.b16 %v802
  %v4289 = vunpack.c.l.b16 %v803
  %v4290 = vunpack.c.l.b16 %v804
  %v4291 = vunpack.c.l.b16 %v805
  %v4292 = vunpack.c.l.b16 %v806
  %v4293 = vunpack.c.l.b16 %v807
  %v4294 = vunpack.c.l.b16 %v808
  %v4295 = vunpack.c.l.b16 %v809
  %v4296 = vunpack.c.l.b16 %v810
  %v4297 = vunpack.c.l.b16 %v811
  %v4298 = vunpack.c.l.b16 %v812
  %v4299 = vunpack.c.l.b16 %v813
  %v4300 = vunpack.c.l.b16 %v814
  %v4301 = vunpack.c.l.b16 %v815
  %v4302 = vunpack.c.l.b16 %v816
  %v4303 = vunpack.c.l.b16 %v817
  %v4304 = vunpack.c.l.b16 %v818
  %v4305 = vunpack.c.l.b16 %v819
  %v4306 = vunpack.c.l.b16 %v820
  %v4307 = vunpack.c.l.b16 %v821
  %v4308 = vunpack.c.l.b16 %v822
  %v4309 = vunpack.c.l.b16 %v823
  %v4310 = vunpack.c.l.b16 %v824
  %v4311 = vunpack.c.l.b16 %v825
  %v4312 = vunpack.c.l.b16 %v826
  %v4313 = vunpack.c.l.b16 %v827
  %v4314 = vunpack.c.l.b16 %v828
  %v4315 = vunpack.c.l.b16 %v829
  %v4316 = vunpack.c.l.b16 %v830
  %v4317 = vunpack.c.l.b16 %v831
  %v4318 = vunpack.c.l.b16 %v832
  %v4319 = vunpack.c.l.b16 %v833
  %v4320 = vunpack.c.l.b16 %v834
  %v4321 = vunpack.c.l.b16 %v835
  %v4322 = vunpack.c.l.b16 %v836
  %v4323 = vunpack.c.l.b16 %v837
  %v4324 = vunpack.c.l.b16 %v838
  %v4325 = vunpack.c.l.b16 %v839
  %v4326 = vunpack.c.l.b16 %v840
  %v4327 = vunpack.c.l.b16 %v841
  %v4328 = vunpack.c.l.b16 %v842
  %v4329 = vunpack.c.l.b16 %v843
  %v4330 = vunpack.c.l.b16 %v844
  %v4331 = vunpack.c.l.b16 %v845
  %v4332 = vunpack.c.l.b16 %v846
  %v4333 = vunpack.c.l.b16 %v847
  %v4334 = vunpack.c.l.b16 %v848
  %v4335 = vunpack.c.l.b16 %v849
  %v4336 = vunpack.c.l.b16 %v850
  %v4337 = vunpack.c.l.b16 %v851
  %v4338 = vunpack.c.l.b16 %v852
  %v4339 = vunpack.c.l.b16 %v853
  %v4340 = vunpack.c.l.b16 %v854
  %v4341 = vunpack.c.l.b16 %v855
  %v4342 = vunpack.c.l.b16 %v856
  %v4343 = vunpack.c.l.b16 %v857
  %v4344 = vunpack.c.l.b16 %v858
  %v4345 = vunpack.c.l.b16 %v859
  %v4346 = vunpack.c.l.b16 %v860
  %v4347 = vunpack.c.l.b16 %v861
  %v4348 = vunpack.c.l.b16 %v862
  %v4349 = vunpack.c.l.b16 %v863
  %v4350 = vunpack.c.l.b16 %v864
  %v4351 = vunpack.c.l.b16 %v865
  %v4352 = vunpack.c.l.b16 %v866
  %v4353 = vunpack.c.l.b16 %v867
  %v4354 = vunpack.c.l.b16 %v868
  %v4355 = vunpack.c.l.b16 %v869
  %v4356 = vunpack.c.l.b16 %v870
  %v4357 = vunpack.c.l.b16 %v871
  %v4358 = vunpack.c.l.b16 %v872
  %v4359 = vunpack.c.l.b16 %v873
  %v4360 = vunpack.c.l.b16 %v874
  %v4361 = vunpack.c.l.b16 %v875
  %v4362 = vunpack.c.l.b16 %v876
  %v4363 = vunpack.c.l.b16 %v877
  %v4364 = vunpack.c.l.b16 %v878
  %v4365 = vunpack.c.l.b16 %v879
  %v4366 = vunpack.c.l.b16 %v880
  %v4367 = vunpack.c.l.b16 %v881
  %v4368 = vunpack.c.l.b16 %v882
  %v4369 = vunpack.c.l.b16 %v883
  %v4370 = vunpack.c.l.b16 %v884
  %v4371 = vunpack.c.l.b16 %v885
  %v4372 = vunpack.c.l.b16 %v886
  %v4373 = vunpack.c.l.b16 %v887
  %v4374 = vunpack.c.l.b16 %v888
  %v4375 = vunpack.c.l.b16 %v889
  %v4376 = vunpack.c.l.b16 %v890
  %v4377 = vunpack.c.l.b16 %v891
  %v4378 = vunpack.c.l.b16 %v892
  %v4379 = vunpack.c.l.b16 %v893
  %v4380 = vunpack.c.l.b16 %v894
  %v4381 = vunpack.c.l.b16 %v895
  %v4382 = vunpack.c.l.b16 %v896
  %v4383 = vunpack.c.l.b16 %v897
  %v4384 = vunpack.c.l.b16 %v898
  %v4385 = vunpack.c.l.b16 %v899
  %v4386 = vunpack.c.l.b16 %v900
  %v4387 = vunpack.c.l.b16 %v901
  %v4388 = vunpack.c.l.b16 %v902
  %v4389 = vunpack.c.l.b16 %v903
  %v4390 = vunpack.c.l.b16 %v904
  %v4391 = vunpack.c.l.b16 %v905
  %v4392 = vunpack.c.l.b16 %v906
  %v4393 = vunpack.c.l.b16 %v907
  %v4394 = vunpack.c.l.b16 %v908
  %v4395 = vunpack.c.l.b16 %v909
  %v4396 = vunpack.c.l.b16 %v910
  %v4397 = vunpack.c.l.b16 %v911
  %v4398 = vunpack.c.l.b16 %v912
  %v4399 = vunpack.c.l.b16 %v913
  %v4400 = vunpack.c.l.b16 %v914
  %v4401 = vunpack.c.l.b16 %v915
  %v4402 = vunpack.c.l.b16 %v916
  %v4403 = vunpack.c.l.b16 %v917
  %v4404 = vunpack.c.l.b16 %v918
  %v4405 = vunpack.c.l.b16 %v919
  %v4406 = vunpack.c.l.b16 %v920
  %v4407 = vunpack.c.l.b16 %v921
  %v4408 = vunpack.c.l.b16 %v922
  %v4409 = vunpack.c.l.b16 %v923
  %v4410 = vunpack.c.l.b16 %v924
  %v4411 = vunpack.c.l.b16 %v925
  %v4412 = vunpack.c.l.b16 %v926
  %v4413 = vunpack.c.l.b16 %v927
  %v4414 = vunpack.c.l.b16 %v928
  %v4415 = vunpack.c.l.b16 %v929
  %v4416 = vunpack.c.l.b16 %v930
  %v4417 = vunpack.c.l.b16 %v931
  %v4418 = vunpack.c.l.b16 %v932
  %v4419 = vunpack.c.l.b16 %v933
  %v4420 = vunpack.c.l.b16 %v934
  %v4421 = vunpack.c.l.b16 %v935
  %v4422 = vunpack.c.l.b16 %v936
  %v4423 = vunpack.c.l.b16 %v937
  %v4424 = vunpack.c.l.b16 %v938
  %v4425 = vunpack.c.l.b16 %v939
  %v4426 = vunpack.c.l.b16 %v940
  %v4427 = vunpack.c.l.b16 %v941
  %v4428 = vunpack.c.l.b16 %v942
  %v4429 = vunpack.c.l.b16 %v943
  %v4430 = vunpack.c.l.b16 %v944
  %v4431 = vunpack.c.l.b16 %v945
  %v4432 = vunpack.c.l.b16 %v946
  %v4433 = vunpack.c.l.b16 %v947
  %v4434 = vunpack.c.l.b16 %v948
  %v4435 = vunpack.c.l.b16 %v949
  %v4436 = vunpack.c.l.b16 %v950
  %v4437 = vunpack.c.l.b16 %v951
  %v4438 = vunpack.c.l.b16 %v952
  %v4439 = vunpack.c.l.b16 %v953
  %v4440 = vunpack.c.l.b16 %v954
  %v4441 = vunpack.c.l.b16 %v955
  %v4442 = vunpack.c.l.b16 %v956
  %v4443 = vunpack.c.l.b16 %v957
  %v4444 = vunpack.c.l.b16 %v958
  %v4445 = vunpack.c.l.b16 %v959
  %v4446 = vunpack.c.l.b16 %v960
  %v4447 = vunpack.c.l.b16 %v961
  %v4448 = vunpack.c.l.b16 %v962
  %v4449 = vunpack.c.l.b16 %v963
  %v4450 = vunpack.c.l.b16 %v964
  %v4451 = vunpack.c.l.b16 %v965
  %v4452 = vunpack.c.l.b16 %v966
  %v4453 = vunpack.c.l.b16 %v967
  %v4454 = vunpack.c.l.b16 %v968
  %v4455 = vunpack.c.l.b16 %v969
  %v4456 = vunpack.c.l.b16 %v970
  %v4457 = vunpack.c.l.b16 %v971
  %v4458 = vunpack.c.l.b16 %v972
  %v4459 = vunpack.c.l.b16 %v973
  %v4460 = vunpack.c.l.b16 %v974
  %v4461 = vunpack.c.l.b16 %v975
  %v4462 = vunpack.c.l.b16 %v976
  %v4463 = vunpack.c.l.b16 %v977
  %v4464 = vunpack.c.l.b16 %v978
  %v4465 = vunpack.c.l.b16 %v979
  %v4466 = vunpack.c.l.b16 %v980
  %v4467 = vunpack.c.l.b16 %v981
  %v4468 = vunpack.c.l.b16 %v982
  %v4469 = vunpack.c.l.b16 %v983
  %v4470 = vunpack.c.l.b16 %v984
  %v4471 = vunpack.c.l.b16 %v985
  %v4472 = vunpack.c.l.b16 %v986
  %v4473 = vunpack.c.l.b16 %v987
  %v4474 = vunpack.c.l.b16 %v988
  %v4475 = vunpack.c.l.b16 %v989
  %v4476 = vunpack.c.l.b16 %v990
  %v4477 = vunpack.c.l.b16 %v991
  %v4478 = vunpack.c.l.b16 %v992
  %v4479 = vunpack.c.l.b16 %v993
  %v4480 = vunpack.c.l.b16 %v994
  %v4481 = vunpack.c.l.b16 %v995
  %v4482 = vunpack.c.l.b16 %v996
  %v4483 = vunpack.c.l.b16 %v997
  %v4484 = vunpack.c.l.b16 %v998
  %v4485 = vunpack.c.l.b16 %v999
  %v4486 = vunpack.c.l.b16 %v1000
  %v4487 = vunpack.c.l.b16 %v1001
  %v4488 = vunpack.c.l.b16 %v1002
  %v4489 = vunpack.c.l.b16 %v1003
  %v4490 = vunpack.c.l.b16 %v1004
  %v4491 = vunpack.c.l.b16 %v1005
  %v4492 = vunpack.c.l.b16 %v1006
  %v4493 = vunpack.c.l.b16 %v1007
  %v4494 = vunpack.c.l.b16 %v1008
  %v4495 = vunpack.c.l.b16 %v1009
  %v4496 = vunpack.c.l.b16 %v1010
  %v4497 = vunpack.c.l.b16 %v1011
  %v4498 = vunpack.c.l.b16 %v1012
  %v4499 = vunpack.c.l.b16 %v1013
  %v4500 = vunpack.c.l.b16 %v1014
  %v4501 = vunpack.c.l.b16 %v1015
  %v4502 = vunpack.c.l.b16 %v1016
  %v4503 = vunpack.c.l.b16 %v1017
  %v4504 = vunpack.c.l.b16 %v1018
  %v4505 = vunpack.c.l.b16 %v1019
  %v4506 = vunpack.c.l.b16 %v1020
  %v4507 = vunpack.c.l.b16 %v1021
  %v4508 = vunpack.c.l.b16 %v1022
  %v4509 = vunpack.c.l.b16 %v1023
  %v4510 = vunpack.c.l.b16 %v1024
  %v4511 = vunpack.c.l.b16 %v1025
  %v4512 = vunpack.c.l.b16 %v1026
  %v4513 = vunpack.c.l.b16 %v1027
  %v4514 = vunpack.c.l.b16 %v1028
  %v4515 = vunpack.c.l.b16 %v1029
  %v4516 = vunpack.c.l.b16 %v1030
  %v4517 = vunpack.c.l.b16 %v1031
  %v4518 = vunpack.c.l.b16 %v1032
  %v4519 = vunpack.c.l.b16 %v1033
  %v4520 = vunpack.c.l.b16 %v1034
  %v4521 = vunpack.c.l.b16 %v1035
  %v4522 = vunpack.c.l.b16 %v1036
  %v4523 = vunpack.c.l.b16 %v1037
  %v4524 = vunpack.c.l.b16 %v1038
  %v4525 = vunpack.c.l.b16 %v1039
  %v4526 = vunpack.c.l.b16 %v1040
  %v4527 = vunpack.c.l.b16 %v1041
  %v4528 = vunpack.c.l.b16 %v1042
  %v4529 = vunpack.c.l.b16 %v1043
  %v4530 = vunpack.c.l.b16 %v1044
  %v4531 = vunpack.c.l.b16 %v1045
  %v4532 = vunpack.c.l.b16 %v1046
  %v4533 = vunpack.c.l.b16 %v1047
  %v4534 = vunpack.c.l.b16 %v1048
  %v4535 = vunpack.c.l.b16 %v1049
  %v4536 = vunpack.c.l.b16 %v1050
  %v4537 = vunpack.c.l.b16 %v1051
  %v4538 = vunpack.c.l.b16 %v1052
  %v4539 = vunpack.c.l.b16 %v1053
  %v4540 = vunpack.c.l.b16 %v1054
  %v4541 = vunpack.c.l.b16 %v1055
  %v4542 = vunpack.c.l.b16 %v1056
  %v4543 = vunpack.c.l.b16 %v1057
  %v4544 = vunpack.c.l.b16 %v1058
  %v4545 = vunpack.c.l.b16 %v1059
  %v4546 = vunpack.c.l.b16 %v1060
  %v4547 = vunpack.c.l.b16 %v1061
  %v4548 = vunpack.c.l.b16 %v1062
  %v4549 = vunpack.c.l.b16 %v1063
  %v4550 = vunpack.c.l.b16 %v1064
  %v4551 = vunpack.c.l.b16 %v1065
  %v4552 = vunpack.c.l.b16 %v1066
  %v4553 = vunpack.c.l.b16 %v1067
  %v4554 = vunpack.c.l.b16 %v1068
  %v4555 = vunpack.c.l.b16 %v1069
  %v4556 = vunpack.c.l.b16 %v1070
  %v4557 = vunpack.c.l.b16 %v1071
  %v4558 = vunpack.c.l.b16 %v1072
  %v4559 = vunpack.c.l.b16 %v1073
  %v4560 = vunpack.c.l.b16 %v1074
  %v4561 = vunpack.c.l.b16 %v1075
  %v4562 = vunpack.c.l.b16 %v1076
  %v4563 = vunpack.c.l.b16 %v1077
  %v4564 = vunpack.c.l.b16 %v1078
  %v4565 = vunpack.c.l.b16 %v1079
  %v4566 = vunpack.c.l.b16 %v1080
  %v4567 = vunpack.c.l.b16 %v1081
  %v4568 = vunpack.c.l.b16 %v1082
  %v4569 = vunpack.c.l.b16 %v1083
  %v4570 = vunpack.c.l.b16 %v1084
  %v4571 = vunpack.c.l.b16 %v1085
  %v4572 = vunpack.c.l.b16 %v1086
  %v4573 = vunpack.c.l.b16 %v1087
  %v4574 = vunpack.c.l.b16 %v1088
  %v4575 = vunpack.c.l.b16 %v1089
  %v4576 = vunpack.c.l.b16 %v1090
  %v4577 = vunpack.c.l.b16 %v1091
  %v4578 = vunpack.c.l.b16 %v1092
  %v4579 = vunpack.c.l.b16 %v1093
  %v4580 = vunpack.c.l.b16 %v1094
  %v4581 = vunpack.c.l.b16 %v1095
  %v4582 = vunpack.c.l.b16 %v1096
  %v4583 = vunpack.c.l.b16 %v1097
  %v4584 = vunpack.c.l.b16 %v1098
  %v4585 = vunpack.c.l.b16 %v1099
  %v4586 = vunpack.c.l.b16 %v1100
  %v4587 = vunpack.c.l.b16 %v1101
  %v4588 = vunpack.c.l.b16 %v1102
  %v4589 = vunpack.c.l.b16 %v1103
  %v4590 = vunpack.c.l.b16 %v1104
  %v4591 = vunpack.c.l.b16 %v1105
  %v4592 = vunpack.c.l.b16 %v1106
  %v4593 = vunpack.c.l.b16 %v1107
  %v4594 = vunpack.c.l.b16 %v1108
  %v4595 = vunpack.c.l.b16 %v1109
  %v4596 = vunpack.c.l.b16 %v1110
  %v4597 = vunpack.c.l.b16 %v1111
  %v4598 = vunpack.c.l.b16 %v1112
  %v4599 = vunpack.c.l.b16 %v1113
  %v4600 = vunpack.c.l.b16 %v1114
  %v4601 = vunpack.c.l.b16 %v1115
  %v4602 = vunpack.c.l.b16 %v1116
  %v4603 = vunpack.c.l.b16 %v1117
  %v4604 = vunpack.c.l.b16 %v1118
  %v4605 = vunpack.c.l.b16 %v1119
  %v4606 = vunpack.c.l.b16 %v1120
  %v4607 = vunpack.c.l.b16 %v1121
  %v4608 = vunpack.c.l.b16 %v1122
  %v4609 = vunpack.c.l.b16 %v1123
  %v4610 = vunpack.c.l.b16 %v1124
  %v4611 = vunpack.c.l.b16 %v1125
  %v4612 = vunpack.c.l.b16 %v1126
  %v4613 = vunpack.c.l.b16 %v1127
  %v4614 = vunpack.c.l.b16 %v1128
  %v4615 = vunpack.c.l.b16 %v1129
  %v4616 = vunpack.c.l.b16 %v1130
  %v4617 = vunpack.c.l.b16 %v1131
  %v4618 = vunpack.c.l.b16 %v1132
  %v4619 = vunpack.c.l.b16 %v1133
  %v4620 = vunpack.c.l.b16 %v1134
  %v4621 = vunpack.c.l.b16 %v1135
  %v4622 = vunpack.c.l.b16 %v1136
  %v4623 = vunpack.c.l.b16 %v1137
  %v4624 = vunpack.c.l.b16 %v1138
  %v4625 = vunpack.c.l.b16 %v1139
  %v4626 = vunpack.c.l.b16 %v1140
  %v4627 = vunpack.c.l.b16 %v1141
  %v4628 = vunpack.c.l.b16 %v1142
  %v4629 = vunpack.c.l.b16 %v1143
  %v4630 = vunpack.c.l.b16 %v1144
  %v4631 = vunpack.c.l.b16 %v1145
  %v4632 = vunpack.c.l.b16 %v1146
  %v4633 = vunpack.c.l.b16 %v1147
  %v4634 = vunpack.c.l.b16 %v1148
  %v4635 = vunpack.c.l.b16 %v1149
  %v4636 = vunpack.c.l.b16 %v1150
  %v4637 = vunpack.c.l.b16 %v1151
  %v4638 = vunpack.c.l.b16 %v1152
  %v4639 = vunpack.c.l.b16 %v1153
  %v4640 = vunpack.c.l.b16 %v1154
  %v4641 = vunpack.c.l.b16 %v1155
  %v4642 = vunpack.c.l.b16 %v1156
  %v4643 = vunpack.c.l.b16 %v1157
  %v4644 = vunpack.c.l.b16 %v1158
  %v4645 = vunpack.c.l.b16 %v1159
  %v4646 = vunpack.c.l.b16 %v1160
  %v4647 = vunpack.c.l.b16 %v1161
  %v4648 = vunpack.c.l.b16 %v1162
  %v4649 = vunpack.c.l.b16 %v1163
  %v4650 = vunpack.c.l.b16 %v1164
  %v4651 = vunpack.c.l.b16 %v1165
  %v4652 = vunpack.c.l.b16 %v1166
  %v4653 = vunpack.c.l.b16 %v1167
  %v4654 = vunpack.c.l.b16 %v1168
  %v4655 = vunpack.c.l.b16 %v1169
  %v4656 = vunpack.c.l.b16 %v1170
  %v4657 = vunpack.c.l.b16 %v1171
  %v4658 = vunpack.c.l.b16 %v1172
  %v4659 = vunpack.c.l.b16 %v1173
  %v4660 = vunpack.c.l.b16 %v1174
  %v4661 = vunpack.c.l.b16 %v1175
  %v4662 = vunpack.c.l.b16 %v1176
  %v4663 = vunpack.c.l.b16 %v1177
  %v4664 = vunpack.c.l.b16 %v1178
  %v4665 = vunpack.c.l.b16 %v1179
  %v4666 = vunpack.c.l.b16 %v1180
  %v4667 = vunpack.c.l.b16 %v1181
  %v4668 = vunpack.c.l.b16 %v1182
  %v4669 = vunpack.c.l.b16 %v1183
  %v4670 = vunpack.c.l.b16 %v1184
  %v4671 = vunpack.c.l.b16 %v1185
  %v4672 = vunpack.c.l.b16 %v1186
  %v4673 = vunpack.c.l.b16 %v1187
  %v4674 = vunpack.c.l.b16 %v1188
  %v4675 = vunpack.c.l.b16 %v1189
  %v4676 = vunpack.c.l.b16 %v1190
  %v4677 = vunpack.c.l.b16 %v1191
  %v4678 = vunpack.c.l.b16 %v1192
  %v4679 = vunpack.c.l.b16 %v1193
  %v4680 = vunpack.c.l.b16 %v1194
  %v4681 = vunpack.c.l.b16 %v1195
  %v4682 = vunpack.c.l.b16 %v1196
  %v4683 = vunpack.c.l.b16 %v1197
  %v4684 = vunpack.c.l.b16 %v1198
  %v4685 = vunpack.c.l.b16 %v1199
  %v4686 = vunpack.c.l.b16 %v1200
  %v4687 = vunpack.c.l.b16 %v1201
  %v4688 = vunpack.c.l.b16 %v1202
  %v4689 = vunpack.c.l.b16 %v1203
  %v4690 = vunpack.c.l.b16 %v1204
  %v4691 = vunpack.c.l.b16 %v1205
  %v4692 = vunpack.c.l.b16 %v1206
  %v4693 = vunpack.c.l.b16 %v1207
  %v4694 = vunpack.c.l.b16 %v1208
  %v4695 = vunpack.c.l.b16 %v1209
  %v4696 = vunpack.c.l.b16 %v1210
  %v4697 = vunpack.c.l.b16 %v1211
  %v4698 = vunpack.c.l.b16 %v1212
  %v4699 = vunpack.c.l.b16 %v1213
  %v4700 = vunpack.c.l.b16 %v1214
  %v4701 = vunpack.c.l.b16 %v1215
  %v4702 = vunpack.c.l.b16 %v1216
  %v4703 = vunpack.c.l.b16 %v1217
  %v4704 = vunpack.c.l.b16 %v1218
  %v4705 = vunpack.c.l.b16 %v1219
  %v4706 = vunpack.c.l.b16 %v1220
  %v4707 = vunpack.c.l.b16 %v1221
  %v4708 = vunpack.c.l.b16 %v1222
  %v4709 = vunpack.c.l.b16 %v1223
  %v4710 = vunpack.c.l.b16 %v1224
  %v4711 = vunpack.c.l.b16 %v1225
  %v4712 = vunpack.c.l.b16 %v1226
  %v4713 = vunpack.c.l.b16 %v1227
  %v4714 = vunpack.c.l.b16 %v1228
  %v4715 = vunpack.c.l.b16 %v1229
  %v4716 = vunpack.c.l.b16 %v1230
  %v4717 = vunpack.c.l.b16 %v1231
  %v4718 = vunpack.c.l.b16 %v1232
  %v4719 = vunpack.c.l.b16 %v1233
  %v4720 = vunpack.c.l.b16 %v1234
  %v4721 = vunpack.c.l.b16 %v1235
  %v4722 = vunpack.c.l.b16 %v1236
  %v4723 = vunpack.c.l.b16 %v1237
  %v4724 = vunpack.c.l.b16 %v1238
  %v4725 = vunpack.c.l.b16 %v1239
  %v4726 = vunpack.c.l.b16 %v1240
  %v4727 = vunpack.c.l.b16 %v1241
  %v4728 = vunpack.c.l.b16 %v1242
  %v4729 = vunpack.c.l.b16 %v1243
  %v4730 = vunpack.c.l.b16 %v1244
  %v4731 = vunpack.c.l.b16 %v1245
  %v4732 = vunpack.c.l.b16 %v1246
  %v4733 = vunpack.c.l.b16 %v1247
  %v4734 = vunpack.c.l.b16 %v1248
  %v4735 = vunpack.c.l.b16 %v1249
  %v4736 = vunpack.c.l.b16 %v1250
  %v4737 = vunpack.c.l.b16 %v1251
  %v4738 = vunpack.c.l.b16 %v1252
  %v4739 = vunpack.c.l.b16 %v1253
  %v4740 = vunpack.c.l.b16 %v1254
  %v4741 = vunpack.c.l.b16 %v1255
  %v4742 = vunpack.c.l.b16 %v1256
  %v4743 = vunpack.c.l.b16 %v1257
  %v4744 = vunpack.c.l.b16 %v1258
  %v4745 = vunpack.c.l.b16 %v1259
  %v4746 = vunpack.c.l.b16 %v1260
  %v4747 = vunpack.c.l.b16 %v1261
  %v4748 = vunpack.c.l.b16 %v1262
  %v4749 = vunpack.c.l.b16 %v1263
  %v4750 = vunpack.c.l.b16 %v1264
  %v4751 = vunpack.c.l.b16 %v1265
  %v4752 = vunpack.c.l.b16 %v1266
  %v4753 = vunpack.c.l.b16 %v1267
  %v4754 = vunpack.c.l.b16 %v1268
  %v4755 = vunpack.c.l.b16 %v1269
  %v4756 = vunpack.c.l.b16 %v1270
  %v4757 = vunpack.c.l.b16 %v1271
  %v4758 = vunpack.c.l.b16 %v1272
  %v4759 = vunpack.c.l.b16 %v1273
  %v4760 = vunpack.c.l.b16 %v1274
  %v4761 = vunpack.c.l.b16 %v1275
  %v4762 = vunpack.c.l.b16 %v1276
  %v4763 = vunpack.c.l.b16 %v1277
  %v4764 = vunpack.c.l.b16 %v1278
  %v4765 = vunpack.c.l.b16 %v1279
  %v4766 = vunpack.c.l.b16 %v1280
  %v4767 = vunpack.c.l.b16 %v1281
  %v4768 = vunpack.c.l.b16 %v1282
  %v4769 = vunpack.c.l.b16 %v1283
  %v4770 = vunpack.c.l.b16 %v1284
  %v4771 = vunpack.c.l.b16 %v1285
  %v4772 = vunpack.c.l.b16 %v1286
  %v4773 = vunpack.c.l.b16 %v1287
  %v4774 = vunpack.c.l.b16 %v1288
  %v4775 = vunpack.c.l.b16 %v1289
  %v4776 = vunpack.c.l.b16 %v1290
  %v4777 = vunpack.c.l.b16 %v1291
  %v4778 = vunpack.c.l.b16 %v1292
  %v4779 = vunpack.c.l.b16 %v1293
  %v4780 = vunpack.c.l.b16 %v1294
  %v4781 = vunpack.c.l.b16 %v1295
  %v4782 = vunpack.c.l.b16 %v1296
  %v4783 = vunpack.c.l.b16 %v1297
  %v4784 = vunpack.c.l.b16 %v1298
  %v4785 = vunpack.c.l.b16 %v1299
  %v4786 = vunpack.c.l.b16 %v1300
  %v4787 = vunpack.c.l.b16 %v1301
  %v4788 = vunpack.c.l.b16 %v1302
  %v4789 = vunpack.c.l.b16 %v1303
  %v4790 = vunpack.c.l.b16 %v1304
  %v4791 = vunpack.c.l.b16 %v1305
  %v4792 = vunpack.c.l.b16 %v1306
  %v4793 = vunpack.c.l.b16 %v1307
  %v4794 = vunpack.c.l.b16 %v1308
  %v4795 = vunpack.c.l.b16 %v1309
  %v4796 = vunpack.c.l.b16 %v1310
  %v4797 = vunpack.c.l.b16 %v1311
  %v4798 = vunpack.c.l.b16 %v1312
  %v4799 = vunpack.c.l.b16 %v1313
  %v4800 = vunpack.c.l.b16 %v1314
  %v4801 = vunpack.c.l.b16 %v1315
  %v4802 = vunpack.c.l.b16 %v1316
  %v4803 = vunpack.c.l.b16 %v1317
  %v4804 = vunpack.c.l.b16 %v1318
  %v4805 = vunpack.c.l.b16 %v1319
  %v4806 = vunpack.c.l.b16 %v1320
  %v4807 = vunpack.c.l.b16 %v1321
  %v4808 = vunpack.c.l.b16 %v1322
  %v4809 = vunpack.c.l.b16 %v1323
  %v4810 = vunpack.c.l.b16 %v1324
  %v4811 = vunpack.c.l.b16 %v1325
  %v4812 = vunpack.c.l.b16 %v1326
  %v4813 = vunpack.c.l.b16 %v1327
  %v4814 = vunpack.c.l.b16 %v1328
  %v4815 = vunpack.c.l.b16 %v1329
  %v4816 = vunpack.c.l.b16 %v1330
  %v4817 = vunpack.c.l.b16 %v1331
  %v4818 = vunpack.c.l.b16 %v1332
  %v4819 = vunpack.c.l.b16 %v1333
  %v4820 = vunpack.c.l.b16 %v1334
  %v4821 = vunpack.c.l.b16 %v1335
  %v4822 = vunpack.c.l.b16 %v1336
  %v4823 = vunpack.c.l.b16 %v1337
  %v4824 = vunpack.c.l.b16 %v1338
  %v4825 = vunpack.c.l.b16 %v1339
  %v4826 = vunpack.c.l.b16 %v1340
  %v4827 = vunpack.c.l.b16 %v1341
  %v4828 = vunpack.c.l.b16 %v1342
  %v4829 = vunpack.c.l.b16 %v1343
  %v4830 = vunpack.c.l.b16 %v1344
  %v4831 = vunpack.c.l.b16 %v1345
  %v4832 = vunpack.c.l.b16 %v1346
  %v4833 = vunpack.c.l.b16 %v1347
  %v4834 = vunpack.c.l.b16 %v1348
  %v4835 = vunpack.c.l.b16 %v1349
  %v4836 = vunpack.c.l.b16 %v1350
  %v4837 = vunpack.c.l.b16 %v1351
  %v4838 = vunpack.c.l.b16 %v1352
  %v4839 = vunpack.c.l.b16 %v1353
  %v4840 = vunpack.c.l.b16 %v1354
  %v4841 = vunpack.c.l.b16 %v1355
  %v4842 = vunpack.c.l.b16 %v1356
  %v4843 = vunpack.c.l.b16 %v1357
  %v4844 = vunpack.c.l.b16 %v1358
  %v4845 = vunpack.c.l.b16 %v1359
  %v4846 = vunpack.c.l.b16 %v1360
  %v4847 = vunpack.c.l.b16 %v1361
  %v4848 = vunpack.c.l.b16 %v1362
  %v4849 = vunpack.c.l.b16 %v1363
  %v4850 = vunpack.c.l.b16 %v1364
  %v4851 = vunpack.c.l.b16 %v1365
  %v4852 = vunpack.c.l.b16 %v1366
  %v4853 = vunpack.c.l.b16 %v1367
  %v4854 = vunpack.c.l.b16 %v1368
  %v4855 = vunpack.c.l.b16 %v1369
  %v4856 = vunpack.c.l.b16 %v1370
  %v4857 = vunpack.c.l.b16 %v1371
  %v4858 = vunpack.c.l.b16 %v1372
  %v4859 = vunpack.c.l.b16 %v1373
  %v4860 = vunpack.c.l.b16 %v1374
  %v4861 = vunpack.c.l.b16 %v1375
  %v4862 = vunpack.c.l.b16 %v1376
  %v4863 = vunpack.c.l.b16 %v1377
  %v4864 = vunpack.c.l.b16 %v1378
  %v4865 = vunpack.c.l.b16 %v1379
  %v4866 = vunpack.c.l.b16 %v1380
  %v4867 = vunpack.c.l.b16 %v1381
  %v4868 = vunpack.c.l.b16 %v1382
  %v4869 = vunpack.c.l.b16 %v1383
  %v4870 = vunpack.c.l.b16 %v1384
  %v4871 = vunpack.c.l.b16 %v1385
  %v4872 = vunpack.c.l.b16 %v1386
  %v4873 = vunpack.c.l.b16 %v1387
  %v4874 = vunpack.c.l.b16 %v1388
  %v4875 = vunpack.c.l.b16 %v1389
  %v4876 = vunpack.c.l.b16 %v1390
  %v4877 = vunpack.c.l.b16 %v1391
  %v4878 = vunpack.c.l.b16 %v1392
  %v4879 = vunpack.c.l.b16 %v1393
  %v4880 = vunpack.c.l.b16 %v1394
  %v4881 = vunpack.c.l.b16 %v1395
  %v4882 = vunpack.c.l.b16 %v1396
  %v4883 = vunpack.c.l.b16 %v1397
  %v4884 = vunpack.c.l.b16 %v1398
  %v4885 = vunpack.c.l.b16 %v1399
  %v4886 = vunpack.c.l.b16 %v1400
  %v4887 = vunpack.c.l.b16 %v1401
  %v4888 = vunpack.c.l.b16 %v1402
  %v4889 = vunpack.c.l.b16 %v1403
  %v4890 = vunpack.c.l.b16 %v1404
  %v4891 = vunpack.c.l.b16 %v1405
  %v4892 = vunpack.c.l.b16 %v1406
  %v4893 = vunpack.c.l.b16 %v1407
  %v4894 = vunpack.c.l.b16 %v1408
  %v4895 = vunpack.c.l.b16 %v1409
  %v4896 = vunpack.c.l.b16 %v1410
  %v4897 = vunpack.c.l.b16 %v1411
  %v4898 = vunpack.c.l.b16 %v1412
  %v4899 = vunpack.c.l.b16 %v1413
  %v4900 = vunpack.c.l.b16 %v1414
  %v4901 = vunpack.c.l.b16 %v1415
  %v4902 = vunpack.c.l.b16 %v1416
  %v4903 = vunpack.c.l.b16 %v1417
  %v4904 = vunpack.c.l.b16 %v1418
  %v4905 = vunpack.c.l.b16 %v1419
  %v4906 = vunpack.c.l.b16 %v1420
  %v4907 = vunpack.c.l.b16 %v1421
  %v4908 = vunpack.c.l.b16 %v1422
  %v4909 = vunpack.c.l.b16 %v1423
  %v4910 = vunpack.c.l.b16 %v1424
  %v4911 = vunpack.c.l.b16 %v1425
  %v4912 = vunpack.c.l.b16 %v1426
  %v4913 = vunpack.c.l.b16 %v1427
  %v4914 = vunpack.c.l.b16 %v1428
  %v4915 = vunpack.c.l.b16 %v1429
  %v4916 = vunpack.c.l.b16 %v1430
  %v4917 = vunpack.c.l.b16 %v1431
  %v4918 = vunpack.c.l.b16 %v1432
  %v4919 = vunpack.c.l.b16 %v1433
  %v4920 = vunpack.c.l.b16 %v1434
  %v4921 = vunpack.c.l.b16 %v1435
  %v4922 = vunpack.c.l.b16 %v1436
  %v4923 = vunpack.c.l.b16 %v1437
  %v4924 = vunpack.c.l.b16 %v1438
  %v4925 = vunpack.c.l.b16 %v1439
  %v4926 = vunpack.c.l.b16 %v1440
  %v4927 = vunpack.c.l.b16 %v1441
  %v4928 = vunpack.c.l.b16 %v1442
  %v4929 = vunpack.c.l.b16 %v1443
  %v4930 = vunpack.c.l.b16 %v1444
  %v4931 = vunpack.c.l.b16 %v1445
  %v4932 = vunpack.c.l.b16 %v1446
  %v4933 = vunpack.c.l.b16 %v1447
  %v4934 = vunpack.c.l.b16 %v1448
  %v4935 = vunpack.c.l.b16 %v1449
  %v4936 = vunpack.c.l.b16 %v1450
  %v4937 = vunpack.c.l.b16 %v1451
  %v4938 = vunpack.c.l.b16 %v1452
  %v4939 = vunpack.c.l.b16 %v1453
  %v4940 = vunpack.c.l.b16 %v1454
  %v4941 = vunpack.c.l.b16 %v1455
  %v4942 = vunpack.c.l.b16 %v1456
  %v4943 = vunpack.c.l.b16 %v1457
  %v4944 = vunpack.c.l.b16 %v1458
  %v4945 = vunpack.c.l.b16 %v1459
  %v4946 = vunpack.c.l.b16 %v1460
  %v4947 = vunpack.c.l.b16 %v1461
  %v4948 = vunpack.c.l.b16 %v1462
  %v4949 = vunpack.c.l.b16 %v1463
  %v4950 = vunpack.c.l.b16 %v1464
  %v4951 = vunpack.c.l.b16 %v1465
  %v4952 = vunpack.c.l.b16 %v1466
  %v4953 = vunpack.c.l.b16 %v1467
  %v4954 = vunpack.c.l.b16 %v1468
  %v4955 = vunpack.c.l.b16 %v1469
  %v4956 = vunpack.c.l.b16 %v1470
  %v4957 = vunpack.c.l.b16 %v1471
  %v4958 = vunpack.c.l.b16 %v1472
  %v4959 = vunpack.c.l.b16 %v1473
  %v4960 = vunpack.c.l.b16 %v1474
  %v4961 = vunpack.c.l.b16 %v1475
  %v4962 = vunpack.c.l.b16 %v1476
  %v4963 = vunpack.c.l.b16 %v1477
  %v4964 = vunpack.c.l.b16 %v1478
  %v4965 = vunpack.c.l.b16 %v1479
  %v4966 = vunpack.c.l.b16 %v1480
  %v4967 = vunpack.c.l.b16 %v1481
  %v4968 = vunpack.c.l.b16 %v1482
  %v4969 = vunpack.c.l.b16 %v1483
  %v4970 = vunpack.c.l.b16 %v1484
  %v4971 = vunpack.c.l.b16 %v1485
  %v4972 = vunpack.c.l.b16 %v1486
  %v4973 = vunpack.c.l.b16 %v1487
  %v4974 = vunpack.c.l.b16 %v1488
  %v4975 = vunpack.c.l.b16 %v1489
  %v4976 = vunpack.c.l.b16 %v1490
  %v4977 = vunpack.c.l.b16 %v1491
  %v4978 = vunpack.c.l.b16 %v1492
  %v4979 = vunpack.c.l.b16 %v1493
  %v4980 = vunpack.c.l.b16 %v1494
  %v4981 = vunpack.c.l.b16 %v1495
  %v4982 = vunpack.c.l.b16 %v1496
  %v4983 = vunpack.c.l.b16 %v1497
  %v4984 = vunpack.c.l.b16 %v1498
  %v4985 = vunpack.c.l.b16 %v1499
  %v4986 = vunpack.c.l.b16 %v1500
  %v4987 = vunpack.c.l.b16 %v1501
  %v4988 = vunpack.c.l.b16 %v1502
  %v4989 = vunpack.c.l.b16 %v1503
  %v4990 = vunpack.c.l.b16 %v1504
  %v4991 = vunpack.c.l.b16 %v1505
  %v4992 = vunpack.c.l.b16 %v1506
  %v4993 = vunpack.c.l.b16 %v1507
  %v4994 = vunpack.c.l.b16 %v1508
  %v4995 = vunpack.c.l.b16 %v1509
  %v4996 = vunpack.c.l.b16 %v1510
  %v4997 = vunpack.c.l.b16 %v1511
  %v4998 = vunpack.c.l.b16 %v1512
  %v4999 = vunpack.c.l.b16 %v1513
  %v5000 = vunpack.c.l.b16 %v1514
  %v5001 = vunpack.c.l.b16 %v1515
  %v5002 = vunpack.c.l.b16 %v1516
  %v5003 = vunpack.c.l.b16 %v1517
  %v5004 = vunpack.c.l.b16 %v1518
  %v5005 = vunpack.c.l.b16 %v1519
  %v5006 = vunpack.c.l.b16 %v1520
  %v5007 = vunpack.c.l.b16 %v1521
  %v5008 = vunpack.c.l.b16 %v1522
  %v5009 = vunpack.c.l.b16 %v1523
  %v5010 = vunpack.c.l.b16 %v1524
  %v5011 = vunpack.c.l.b16 %v1525
  %v5012 = vunpack.c.l.b16 %v1526
  %v5013 = vunpack.c.l.b16 %v1527
  %v5014 = vunpack.c.l.b16 %v1528
  %v5015 = vunpack.c.l.b16 %v1529
  %v5016 = vunpack.c.l.b16 %v1530
  %v5017 = vunpack.c.l.b16 %v1531
  %v5018 = vunpack.c.l.b16 %v1532
  %v5019 = vunpack.c.l.b16 %v1533
  %v5020 = vunpack.c.l.b16 %v1534
  %v5021 = vunpack.c.l.b16 %v1535
  %v5022 = vunpack.c.l.b16 %v1536
  %v5023 = vunpack.c.l.b16 %v1537
  %v5024 = vunpack.c.l.b16 %v1538
  %v5025 = vunpack.c.l.b16 %v1539
  %v5026 = vunpack.c.l.b16 %v1540
  %v5027 = vunpack.c.l.b16 %v1541
  %v5028 = vunpack.c.l.b16 %v1542
  %v5029 = vunpack.c.l.b16 %v1543
  %v5030 = vunpack.c.l.b16 %v1544
  %v5031 = vunpack.c.l.b16 %v1545
  %v5032 = vunpack.c.l.b16 %v1546
  %v5033 = vunpack.c.l.b16 %v1547
  %v5034 = vunpack.c.l.b16 %v1548
  %v5035 = vunpack.c.l.b16 %v1549
  %v5036 = vunpack.c.l.b16 %v1550
  %v5037 = vunpack.c.l.b16 %v1551
  %v5038 = vunpack.c.l.b16 %v1552
  %v5039 = vunpack.c.l.b16 %v1553
  %v5040 = vunpack.c.l.b16 %v1554
  %v5041 = vunpack.c.l.b16 %v1555
  %v5042 = vunpack.c.l.b16 %v1556
  %v5043 = vunpack.c.l.b16 %v1557
  %v5044 = vunpack.c.l.b16 %v1558
  %v5045 = vunpack.c.l.b16 %v1559
  %v5046 = vunpack.c.l.b16 %v1560
  %v5047 = vunpack.c.l.b16 %v1561
  %v5048 = vunpack.c.l.b16 %v1562
  %v5049 = vunpack.c.l.b16 %v1563
  %v5050 = vunpack.c.l.b16 %v1564
  %v5051 = vunpack.c.l.b16 %v1565
  %v5052 = vunpack.c.l.b16 %v1566
  %v5053 = vunpack.c.l.b16 %v1567
  %v5054 = vunpack.c.l.b16 %v1568
  %v5055 = vunpack.c.l.b16 %v1569
  %v5056 = vunpack.c.l.b16 %v1570
  %v5057 = vunpack.c.l.b16 %v1571
  %v5058 = vunpack.c.l.b16 %v1572
  %v5059 = vunpack.c.l.b16 %v1573
  %v5060 = vunpack.c.l.b16 %v1574
  %v5061 = vunpack.c.l.b16 %v1575
  %v5062 = vunpack.c.l.b16 %v1576
  %v5063 = vunpack.c.l.b16 %v1577
  %v5064 = vunpack.c.l.b16 %v1578
  %v5065 = vunpack.c.l.b16 %v1579
  %v5066 = vunpack.c.l.b16 %v1580
  %v5067 = vunpack.c.l.b16 %v1581
  %v5068 = vunpack.c.l.b16 %v1582
  %v5069 = vunpack.c.l.b16 %v1583
  %v5070 = vunpack.c.l.b16 %v1584
  %v5071 = vunpack.c.l.b16 %v1585
  %v5072 = vunpack.c.l.b16 %v1586
  %v5073 = vunpack.c.l.b16 %v1587
  %v5074 = vunpack.c.l.b16 %v1588
  %v5075 = vunpack.c.l.b16 %v1589
  %v5076 = vunpack.c.l.b16 %v1590
  %v5077 = vunpack.c.l.b16 %v1591
  %v5078 = vunpack.c.l.b16 %v1592
  %v5079 = vunpack.c.l.b16 %v1593
  %v5080 = vunpack.c.l.b16 %v1594
  %v5081 = vunpack.c.l.b16 %v1595
  %v5082 = vunpack.c.l.b16 %v1596
  %v5083 = vunpack.c.l.b16 %v1597
  %v5084 = vunpack.c.l.b16 %v1598
  %v5085 = vunpack.c.l.b16 %v1599
  %v5086 = vunpack.c.l.b16 %v1600
  %v5087 = vunpack.c.l.b16 %v1601
  %v5088 = vunpack.c.l.b16 %v1602
  %v5089 = vunpack.c.l.b16 %v1603
  %v5090 = vunpack.c.l.b16 %v1604
  %v5091 = vunpack.c.l.b16 %v1605
  %v5092 = vunpack.c.l.b16 %v1606
  %v5093 = vunpack.c.l.b16 %v1607
  %v5094 = vunpack.c.l.b16 %v1608
  %v5095 = vunpack.c.l.b16 %v1609
  %v5096 = vunpack.c.l.b16 %v1610
  %v5097 = vunpack.c.l.b16 %v1611
  %v5098 = vunpack.c.l.b16 %v1612
  %v5099 = vunpack.c.l.b16 %v1613
  %v5100 = vunpack.c.l.b16 %v1614
  %v5101 = vunpack.c.l.b16 %v1615
  %v5102 = vunpack.c.l.b16 %v1616
  %v5103 = vunpack.c.l.b16 %v1617
  %v5104 = vunpack.c.l.b16 %v1618
  %v5105 = vunpack.c.l.b16 %v1619
  %v5106 = vunpack.c.l.b16 %v1620
  %v5107 = vunpack.c.l.b16 %v1621
  %v5108 = vunpack.c.l.b16 %v1622
  %v5109 = vunpack.c.l.b16 %v1623
  %v5110 = vunpack.c.l.b16 %v1624
  %v5111 = vunpack.c.l.b16 %v1625
  %v5112 = vunpack.c.l.b16 %v1626
  %v5113 = vunpack.c.l.b16 %v1627
  %v5114 = vunpack.c.l.b16 %v1628
  %v5115 = vunpack.c.l.b16 %v1629
  %v5116 = vunpack.c.l.b16 %v1630
  %v5117 = vunpack.c.l.b16 %v1631
  %v5118 = vunpack.c.l.b16 %v1632
  %v5119 = vunpack.c.l.b16 %v1633
  %v5120 = vunpack.c.l.b16 %v1634
  %v5121 = vunpack.c.l.b16 %v1635
  %v5122 = vunpack.c.l.b16 %v1636
  %v5123 = vunpack.c.l.b16 %v1637
  %v5124 = vpack.c.b16 %v3557, %v3556
  %v5125 = vpack.c.b16 %v3559, %v3558
  %v5126 = vpack.c.b16 %v3561, %v3560
  %v5127 = vpack.c.b16 %v3563, %v3562
  %v5128 = vpack.c.b16 %v3565, %v3564
  %v5129 = vpack.c.b16 %v3567, %v3566
  %v5130 = vpack.c.b16 %v3569, %v3568
  %v5131 = vpack.c.b16 %v3571, %v3570
  %v5132 = vpack.c.b16 %v3573, %v3572
  %v5133 = vpack.c.b16 %v3575, %v3574
  %v5134 = vpack.c.b16 %v3577, %v3576
  %v5135 = vpack.c.b16 %v3579, %v3578
  %v5136 = vpack.c.b16 %v3581, %v3580
  %v5137 = vpack.c.b16 %v3583, %v3582
  %v5138 = vpack.c.b16 %v3585, %v3584
  %v5139 = vpack.c.b16 %v3587, %v3586
  %v5140 = vpack.c.b16 %v3589, %v3588
  %v5141 = vpack.c.b16 %v3591, %v3590
  %v5142 = vpack.c.b16 %v3593, %v3592
  %v5143 = vpack.c.b16 %v3595, %v3594
  %v5144 = vpack.c.b16 %v3597, %v3596
  %v5145 = vpack.c.b16 %v3599, %v3598
  %v5146 = vpack.c.b16 %v3601, %v3600
  %v5147 = vpack.c.b16 %v3603, %v3602
  %v5148 = vpack.c.b16 %v3605, %v3604
  %v5149 = vpack.c.b16 %v3607, %v3606
  %v5150 = vpack.c.b16 %v3609, %v3608
  %v5151 = vpack.c.b16 %v3611, %v3610
  %v5152 = vpack.c.b16 %v3613, %v3612
  %v5153 = vpack.c.b16 %v3615, %v3614
  %v5154 = vpack.c.b16 %v3617, %v3616
  %v5155 = vpack.c.b16 %v3619, %v3618
  %v5156 = vpack.c.b16 %v3621, %v3620
  %v5157 = vpack.c.b16 %v3623, %v3622
  %v5158 = vpack.c.b16 %v3625, %v3624
  %v5159 = vpack.c.b16 %v3627, %v3626
  %v5160 = vpack.c.b16 %v3629, %v3628
  %v5161 = vpack.c.b16 %v3631, %v3630
  %v5162 = vpack.c.b16 %v3633, %v3632
  %v5163 = vpack.c.b16 %v3635, %v3634
  %v5164 = vpack.c.b16 %v3637, %v3636
  %v5165 = vpack.c.b16 %v3639, %v3638
  %v5166 = vpack.c.b16 %v3641, %v3640
  %v5167 = vpack.c.b16 %v3643, %v3642
  %v5168 = vpack.c.b16 %v3645, %v3644
  %v5169 = vpack.c.b16 %v3647, %v3646
  %v5170 = vpack.c.b16 %v3649, %v3648
  %v5171 = vpack.c.b16 %v3651, %v3650
  %v5172 = vpack.c.b16 %v3653, %v3652
  %v5173 = vpack.c.b16 %v3655, %v3654
  %v5174 = vpack.c.b16 %v3657, %v3656
  %v5175 = vpack.c.b16 %v3659, %v3658
  %v5176 = vpack.c.b16 %v3661, %v3660
  %v5177 = vpack.c.b16 %v3663, %v3662
  %v5178 = vpack.c.b16 %v3665, %v3664
  %v5179 = vpack.c.b16 %v3667, %v3666
  %v5180 = vpack.c.b16 %v3669, %v3668
  %v5181 = vpack.c.b16 %v3671, %v3670
  %v5182 = vpack.c.b16 %v3673, %v3672
  %v5183 = vpack.c.b16 %v3675, %v3674
  %v5184 = vpack.c.b16 %v3677, %v3676
  %v5185 = vpack.c.b16 %v3679, %v3678
  %v5186 = vpack.c.b16 %v3681, %v3680
  %v5187 = vpack.c.b16 %v3683, %v3682
  %v5188 = vpack.c.b16 %v3685, %v3684
  %v5189 = vpack.c.b16 %v3687, %v3686
  %v5190 = vpack.c.b16 %v3689, %v3688
  %v5191 = vpack.c.b16 %v3691, %v3690
  %v5192 = vpack.c.b16 %v3693, %v3692
  %v5193 = vpack.c.b16 %v3695, %v3694
  %v5194 = vpack.c.b16 %v3697, %v3696
  %v5195 = vpack.c.b16 %v3699, %v3698
  %v5196 = vpack.c.b16 %v3701, %v3700
  %v5197 = vpack.c.b16 %v3703, %v3702
  %v5198 = vpack.c.b16 %v3705, %v3704
  %v5199 = vpack.c.b16 %v3707, %v3706
  %v5200 = vpack.c.b16 %v3709, %v3708
  %v5201 = vpack.c.b16 %v3711, %v3710
  %v5202 = vpack.c.b16 %v3713, %v3712
  %v5203 = vpack.c.b16 %v3715, %v3714
  %v5204 = vpack.c.b16 %v3717, %v3716
  %v5205 = vpack.c.b16 %v3719, %v3718
  %v5206 = vpack.c.b16 %v3721, %v3720
  %v5207 = vpack.c.b16 %v3723, %v3722
  %v5208 = vpack.c.b16 %v3725, %v3724
  %v5209 = vpack.c.b16 %v3727, %v3726
  %v5210 = vpack.c.b16 %v3729, %v3728
  %v5211 = vpack.c.b16 %v3731, %v3730
  %v5212 = vpack.c.b16 %v3733, %v3732
  %v5213 = vpack.c.b16 %v3735, %v3734
  %v5214 = vpack.c.b16 %v3737, %v3736
  %v5215 = vpack.c.b16 %v3739, %v3738
  %v5216 = vpack.c.b16 %v3741, %v3740
  %v5217 = vpack.c.b16 %v3743, %v3742
  %v5218 = vpack.c.b16 %v3745, %v3744
  %v5219 = vpack.c.b16 %v3747, %v3746
  %v5220 = vpack.c.b16 %v3749, %v3748
  %v5221 = vpack.c.b16 %v3751, %v3750
  %v5222 = vpack.c.b16 %v3753, %v3752
  %v5223 = vpack.c.b16 %v3755, %v3754
  %v5224 = vpack.c.b16 %v3757, %v3756
  %v5225 = vpack.c.b16 %v3759, %v3758
  %v5226 = vpack.c.b16 %v3761, %v3760
  %v5227 = vpack.c.b16 %v3763, %v3762
  %v5228 = vpack.c.b16 %v3765, %v3764
  %v5229 = vpack.c.b16 %v3767, %v3766
  %v5230 = vpack.c.b16 %v3769, %v3768
  %v5231 = vpack.c.b16 %v3771, %v3770
  %v5232 = vpack.c.b16 %v3773, %v3772
  %v5233 = vpack.c.b16 %v3775, %v3774
  %v5234 = vpack.c.b16 %v3777, %v3776
  %v5235 = vpack.c.b16 %v3779, %v3778
  %v5236 = vpack.c.b16 %v3781, %v3780
  %v5237 = vpack.c.b16 %v3783, %v3782
  %v5238 = vpack.c.b16 %v3785, %v3784
  %v5239 = vpack.c.b16 %v3787, %v3786
  %v5240 = vpack.c.b16 %v3789, %v3788
  %v5241 = vpack.c.b16 %v3791, %v3790
  %v5242 = vpack.c.b16 %v3793, %v3792
  %v5243 = vpack.c.b16 %v3795, %v3794
  %v5244 = vpack.c.b16 %v3797, %v3796
  %v5245 = vpack.c.b16 %v3799, %v3798
  %v5246 = vpack.c.b16 %v3801, %v3800
  %v5247 = vpack.c.b16 %v3803, %v3802
  %v5248 = vpack.c.b16 %v3805, %v3804
  %v5249 = vpack.c.b16 %v3807, %v3806
  %v5250 = vpack.c.b16 %v3809, %v3808
  %v5251 = vpack.c.b16 %v3811, %v3810
  %v5252 = vpack.c.b16 %v3813, %v3812
  %v5253 = vpack.c.b16 %v3815, %v3814
  %v5254 = vpack.c.b16 %v3817, %v3816
  %v5255 = vpack.c.b16 %v3819, %v3818
  %v5256 = vpack.c.b16 %v3821, %v3820
  %v5257 = vpack.c.b16 %v3823, %v3822
  %v5258 = vpack.c.b16 %v3825, %v3824
  %v5259 = vpack.c.b16 %v3827, %v3826
  %v5260 = vpack.c.b16 %v3829, %v3828
  %v5261 = vpack.c.b16 %v3831, %v3830
  %v5262 = vpack.c.b16 %v3833, %v3832
  %v5263 = vpack.c.b16 %v3835, %v3834
  %v5264 = vpack.c.b16 %v3837, %v3836
  %v5265 = vpack.c.b16 %v3839, %v3838
  %v5266 = vpack.c.b16 %v3841, %v3840
  %v5267 = vpack.c.b16 %v3843, %v3842
  %v5268 = vpack.c.b16 %v3845, %v3844
  %v5269 = vpack.c.b16 %v3847, %v3846
  %v5270 = vpack.c.b16 %v3849, %v3848
  %v5271 = vpack.c.b16 %v3851, %v3850
  %v5272 = vpack.c.b16 %v3853, %v3852
  %v5273 = vpack.c.b16 %v3855, %v3854
  %v5274 = vpack.c.b16 %v3857, %v3856
  %v5275 = vpack.c.b16 %v3859, %v3858
  %v5276 = vpack.c.b16 %v3861, %v3860
  %v5277 = vpack.c.b16 %v3863, %v3862
  %v5278 = vpack.c.b16 %v3865, %v3864
  %v5279 = vpack.c.b16 %v3867, %v3866
  %v5280 = vpack.c.b16 %v3869, %v3868
  %v5281 = vpack.c.b16 %v3871, %v3870
  %v5282 = vpack.c.b16 %v3873, %v3872
  %v5283 = vpack.c.b16 %v3875, %v3874
  %v5284 = vpack.c.b16 %v3877, %v3876
  %v5285 = vpack.c.b16 %v3879, %v3878
  %v5286 = vpack.c.b16 %v3881, %v3880
  %v5287 = vpack.c.b16 %v3883, %v3882
  %v5288 = vpack.c.b16 %v3885, %v3884
  %v5289 = vpack.c.b16 %v3887, %v3886
  %v5290 = vpack.c.b16 %v3889, %v3888
  %v5291 = vpack.c.b16 %v3891, %v3890
  %v5292 = vpack.c.b16 %v3893, %v3892
  %v5293 = vpack.c.b16 %v3895, %v3894
  %v5294 = vpack.c.b16 %v3897, %v3896
  %v5295 = vpack.c.b16 %v3899, %v3898
  %v5296 = vpack.c.b16 %v3901, %v3900
  %v5297 = vpack.c.b16 %v3903, %v3902
  %v5298 = vpack.c.b16 %v3905, %v3904
  %v5299 = vpack.c.b16 %v3907, %v3906
  %v5300 = vpack.c.b16 %v3909, %v3908
  %v5301 = vpack.c.b16 %v3911, %v3910
  %v5302 = vpack.c.b16 %v3913, %v3912
  %v5303 = vpack.c.b16 %v3915, %v3914
  %v5304 = vpack.c.b16 %v3917, %v3916
  %v5305 = vpack.c.b16 %v3919, %v3918
  %v5306 = vpack.c.b16 %v3921, %v3920
  %v5307 = vpack.c.b16 %v3923, %v3922
  %v5308 = vpack.c.b16 %v3925, %v3924
  %v5309 = vpack.c.b16 %v3927, %v3926
  %v5310 = vpack.c.b16 %v3929, %v3928
  %v5311 = vpack.c.b16 %v3931, %v3930
  %v5312 = vpack.c.b16 %v3933, %v3932
  %v5313 = vpack.c.b16 %v3935, %v3934
  %v5314 = vpack.c.b16 %v3937, %v3936
  %v5315 = vpack.c.b16 %v3939, %v3938
  %v5316 = vpack.c.b16 %v3941, %v3940
  %v5317 = vpack.c.b16 %v3943, %v3942
  %v5318 = vpack.c.b16 %v3945, %v3944
  %v5319 = vpack.c.b16 %v3947, %v3946
  %v5320 = vpack.c.b16 %v3949, %v3948
  %v5321 = vpack.c.b16 %v3951, %v3950
  %v5322 = vpack.c.b16 %v3953, %v3952
  %v5323 = vpack.c.b16 %v3955, %v3954
  %v5324 = vpack.c.b16 %v3957, %v3956
  %v5325 = vpack.c.b16 %v3959, %v3958
  %v5326 = vpack.c.b16 %v3961, %v3960
  %v5327 = vpack.c.b16 %v3963, %v3962
  %v5328 = vpack.c.b16 %v3965, %v3964
  %v5329 = vpack.c.b16 %v3967, %v3966
  %v5330 = vpack.c.b16 %v3969, %v3968
  %v5331 = vpack.c.b16 %v3971, %v3970
  %v5332 = vpack.c.b16 %v3973, %v3972
  %v5333 = vpack.c.b16 %v3975, %v3974
  %v5334 = vpack.c.b16 %v3977, %v3976
  %v5335 = vpack.c.b16 %v3979, %v3978
  %v5336 = vpack.c.b16 %v3981, %v3980
  %v5337 = vpack.c.b16 %v3983, %v3982
  %v5338 = vpack.c.b16 %v3985, %v3984
  %v5339 = vpack.c.b16 %v3987, %v3986
  %v5340 = vpack.c.b16 %v3989, %v3988
  %v5341 = vpack.c.b16 %v3991, %v3990
  %v5342 = vpack.c.b16 %v3993, %v3992
  %v5343 = vpack.c.b16 %v3995, %v3994
  %v5344 = vpack.c.b16 %v3997, %v3996
  %v5345 = vpack.c.b16 %v3999, %v3998
  %v5346 = vpack.c.b16 %v4001, %v4000
  %v5347 = vpack.c.b16 %v4003, %v4002
  %v5348 = vpack.c.b16 %v4005, %v4004
  %v5349 = vpack.c.b16 %v4007, %v4006
  %v5350 = vpack.c.b16 %v4009, %v4008
  %v5351 = vpack.c.b16 %v4011, %v4010
  %v5352 = vpack.c.b16 %v4013, %v4012
  %v5353 = vpack.c.b16 %v4015, %v4014
  %v5354 = vpack.c.b16 %v4017, %v4016
  %v5355 = vpack.c.b16 %v4019, %v4018
  %v5356 = vpack.c.b16 %v4021, %v4020
  %v5357 = vpack.c.b16 %v4023, %v4022
  %v5358 = vpack.c.b16 %v4025, %v4024
  %v5359 = vpack.c.b16 %v4027, %v4026
  %v5360 = vpack.c.b16 %v4029, %v4028
  %v5361 = vpack.c.b16 %v4031, %v4030
  %v5362 = vpack.c.b16 %v4033, %v4032
  %v5363 = vpack.c.b16 %v4035, %v4034
  %v5364 = vpack.c.b16 %v4037, %v4036
  %v5365 = vpack.c.b16 %v4039, %v4038
  %v5366 = vpack.c.b16 %v4041, %v4040
  %v5367 = vpack.c.b16 %v4043, %v4042
  %v5368 = vpack.c.b16 %v4045, %v4044
  %v5369 = vpack.c.b16 %v4047, %v4046
  %v5370 = vpack.c.b16 %v4049, %v4048
  %v5371 = vpack.c.b16 %v4051, %v4050
  %v5372 = vpack.c.b16 %v4053, %v4052
  %v5373 = vpack.c.b16 %v4055, %v4054
  %v5374 = vpack.c.b16 %v4057, %v4056
  %v5375 = vpack.c.b16 %v4059, %v4058
  %v5376 = vpack.c.b16 %v4061, %v4060
  %v5377 = vpack.c.b16 %v4063, %v4062
  %v5378 = vpack.c.b16 %v4065, %v4064
  %v5379 = vpack.c.b16 %v4067, %v4066
  %v5380 = vpack.c.b16 %v4069, %v4068
  %v5381 = vpack.c.b16 %v4071, %v4070
  %v5382 = vpack.c.b16 %v4073, %v4072
  %v5383 = vpack.c.b16 %v4075, %v4074
  %v5384 = vpack.c.b16 %v4077, %v4076
  %v5385 = vpack.c.b16 %v4079, %v4078
  %v5386 = vpack.c.b16 %v4081, %v4080
  %v5387 = vpack.c.b16 %v4083, %v4082
  %v5388 = vpack.c.b16 %v4085, %v4084
  %v5389 = vpack.c.b16 %v4087, %v4086
  %v5390 = vpack.c.b16 %v4089, %v4088
  %v5391 = vpack.c.b16 %v4091, %v4090
  %v5392 = vpack.c.b16 %v4093, %v4092
  %v5393 = vpack.c.b16 %v4095, %v4094
  %v5394 = vpack.c.b16 %v4097, %v4096
  %v5395 = vpack.c.b16 %v4099, %v4098
  %v5396 = vpack.c.b16 %v4101, %v4100
  %v5397 = vpack.c.b16 %v4103, %v4102
  %v5398 = vpack.c.b16 %v4105, %v4104
  %v5399 = vpack.c.b16 %v4107, %v4106
  %v5400 = vpack.c.b16 %v4109, %v4108
  %v5401 = vpack.c.b16 %v4111, %v4110
  %v5402 = vpack.c.b16 %v4113, %v4112
  %v5403 = vpack.c.b16 %v4115, %v4114
  %v5404 = vpack.c.b16 %v4117, %v4116
  %v5405 = vpack.c.b16 %v4119, %v4118
  %v5406 = vpack.c.b16 %v4121, %v4120
  %v5407 = vpack.c.b16 %v4123, %v4122
  %v5408 = vpack.c.b16 %v4125, %v4124
  %v5409 = vpack.c.b16 %v4127, %v4126
  %v5410 = vpack.c.b16 %v4129, %v4128
  %v5411 = vpack.c.b16 %v4131, %v4130
  %v5412 = vpack.c.b16 %v4133, %v4132
  %v5413 = vpack.c.b16 %v4135, %v4134
  %v5414 = vpack.c.b16 %v4137, %v4136
  %v5415 = vpack.c.b16 %v4139, %v4138
  %v5416 = vpack.c.b16 %v4141, %v4140
  %v5417 = vpack.c.b16 %v4143, %v4142
  %v5418 = vpack.c.b16 %v4145, %v4144
  %v5419 = vpack.c.b16 %v4147, %v4146
  %v5420 = vpack.c.b16 %v4149, %v4148
  %v5421 = vpack.c.b16 %v4151, %v4150
  %v5422 = vpack.c.b16 %v4153, %v4152
  %v5423 = vpack.c.b16 %v4155, %v4154
  %v5424 = vpack.c.b16 %v4157, %v4156
  %v5425 = vpack.c.b16 %v4159, %v4158
  %v5426 = vpack.c.b16 %v4161, %v4160
  %v5427 = vpack.c.b16 %v4163, %v4162
  %v5428 = vpack.c.b16 %v4165, %v4164
  %v5429 = vpack.c.b16 %v4167, %v4166
  %v5430 = vpack.c.b16 %v4169, %v4168
  %v5431 = vpack.c.b16 %v4171, %v4170
  %v5432 = vpack.c.b16 %v4173, %v4172
  %v5433 = vpack.c.b16 %v4175, %v4174
  %v5434 = vpack.c.b16 %v4177, %v4176
  %v5435 = vpack.c.b16 %v4179, %v4178
  %v5436 = vpack.c.b16 %v4181, %v4180
  %v5437 = vpack.c.b16 %v4183, %v4182
  %v5438 = vpack.c.b16 %v4185, %v4184
  %v5439 = vpack.c.b16 %v4187, %v4186
  %v5440 = vpack.c.b16 %v4189, %v4188
  %v5441 = vpack.c.b16 %v4191, %v4190
  %v5442 = vpack.c.b16 %v4193, %v4192
  %v5443 = vpack.c.b16 %v4195, %v4194
  %v5444 = vpack.c.b16 %v4197, %v4196
  %v5445 = vpack.c.b16 %v4199, %v4198
  %v5446 = vpack.c.b16 %v4201, %v4200
  %v5447 = vpack.c.b16 %v4203, %v4202
  %v5448 = vpack.c.b16 %v4205, %v4204
  %v5449 = vpack.c.b16 %v4207, %v4206
  %v5450 = vpack.c.b16 %v4209, %v4208
  %v5451 = vpack.c.b16 %v4211, %v4210
  %v5452 = vpack.c.b16 %v4213, %v4212
  %v5453 = vpack.c.b16 %v4215, %v4214
  %v5454 = vpack.c.b16 %v4217, %v4216
  %v5455 = vpack.c.b16 %v4219, %v4218
  %v5456 = vpack.c.b16 %v4221, %v4220
  %v5457 = vpack.c.b16 %v4223, %v4222
  %v5458 = vpack.c.b16 %v4225, %v4224
  %v5459 = vpack.c.b16 %v4227, %v4226
  %v5460 = vpack.c.b16 %v4229, %v4228
  %v5461 = vpack.c.b16 %v4231, %v4230
  %v5462 = vpack.c.b16 %v4233, %v4232
  %v5463 = vpack.c.b16 %v4235, %v4234
  %v5464 = vpack.c.b16 %v4237, %v4236
  %v5465 = vpack.c.b16 %v4239, %v4238
  %v5466 = vpack.c.b16 %v4241, %v4240
  %v5467 = vpack.c.b16 %v4243, %v4242
  %v5468 = vpack.c.b16 %v4245, %v4244
  %v5469 = vpack.c.b16 %v4247, %v4246
  %v5470 = vpack.c.b16 %v4249, %v4248
  %v5471 = vpack.c.b16 %v4251, %v4250
  %v5472 = vpack.c.b16 %v4253, %v4252
  %v5473 = vpack.c.b16 %v4255, %v4254
  %v5474 = vpack.c.b16 %v4257, %v4256
  %v5475 = vpack.c.b16 %v4259, %v4258
  %v5476 = vpack.c.b16 %v4261, %v4260
  %v5477 = vpack.c.b16 %v4263, %v4262
  %v5478 = vpack.c.b16 %v4265, %v4264
  %v5479 = vpack.c.b16 %v4267, %v4266
  %v5480 = vpack.c.b16 %v4269, %v4268
  %v5481 = vpack.c.b16 %v4271, %v4270
  %v5482 = vpack.c.b16 %v4273, %v4272
  %v5483 = vpack.c.b16 %v4275, %v4274
  %v5484 = vpack.c.b16 %v4277, %v4276
  %v5485 = vpack.c.b16 %v4279, %v4278
  %v5486 = vpack.c.b16 %v4281, %v4280
  %v5487 = vpack.c.b16 %v4283, %v4282
  %v5488 = vpack.c.b16 %v4285, %v4284
  %v5489 = vpack.c.b16 %v4287, %v4286
  %v5490 = vpack.c.b16 %v4289, %v4288
  %v5491 = vpack.c.b16 %v4291, %v4290
  %v5492 = vpack.c.b16 %v4293, %v4292
  %v5493 = vpack.c.b16 %v4295, %v4294
  %v5494 = vpack.c.b16 %v4297, %v4296
  %v5495 = vpack.c.b16 %v4299, %v4298
  %v5496 = vpack.c.b16 %v4301, %v4300
  %v5497 = vpack.c.b16 %v4303, %v4302
  %v5498 = vpack.c.b16 %v4305, %v4304
  %v5499 = vpack.c.b16 %v4307, %v4306
  %v5500 = vpack.c.b16 %v4309, %v4308
  %v5501 = vpack.c.b16 %v4311, %v4310
  %v5502 = vpack.c.b16 %v4313, %v4312
  %v5503 = vpack.c.b16 %v4315, %v4314
  %v5504 = vpack.c.b16 %v4317, %v4316
  %v5505 = vpack.c.b16 %v4319, %v4318
  %v5506 = vpack.c.b16 %v4321, %v4320
  %v5507 = vpack.c.b16 %v4323, %v4322
  %v5508 = vpack.c.b16 %v4325, %v4324
  %v5509 = vpack.c.b16 %v4327, %v4326
  %v5510 = vpack.c.b16 %v4329, %v4328
  %v5511 = vpack.c.b16 %v4331, %v4330
  %v5512 = vpack.c.b16 %v4333, %v4332
  %v5513 = vpack.c.b16 %v4335, %v4334
  %v5514 = vpack.c.b16 %v4337, %v4336
  %v5515 = vpack.c.b16 %v4339, %v4338
  %v5516 = vpack.c.b16 %v4341, %v4340
  %v5517 = vpack.c.b16 %v4343, %v4342
  %v5518 = vpack.c.b16 %v4345, %v4344
  %v5519 = vpack.c.b16 %v4347, %v4346
  %v5520 = vpack.c.b16 %v4349, %v4348
  %v5521 = vpack.c.b16 %v4351, %v4350
  %v5522 = vpack.c.b16 %v4353, %v4352
  %v5523 = vpack.c.b16 %v4355, %v4354
  %v5524 = vpack.c.b16 %v4357, %v4356
  %v5525 = vpack.c.b16 %v4359, %v4358
  %v5526 = vpack.c.b16 %v4361, %v4360
  %v5527 = vpack.c.b16 %v4363, %v4362
  %v5528 = vpack.c.b16 %v4365, %v4364
  %v5529 = vpack.c.b16 %v4367, %v4366
  %v5530 = vpack.c.b16 %v4369, %v4368
  %v5531 = vpack.c.b16 %v4371, %v4370
  %v5532 = vpack.c.b16 %v4373, %v4372
  %v5533 = vpack.c.b16 %v4375, %v4374
  %v5534 = vpack.c.b16 %v4377, %v4376
  %v5535 = vpack.c.b16 %v4379, %v4378
  %v5536 = vpack.c.b16 %v4381, %v4380
  %v5537 = vpack.c.b16 %v4383, %v4382
  %v5538 = vpack.c.b16 %v4385, %v4384
  %v5539 = vpack.c.b16 %v4387, %v4386
  %v5540 = vpack.c.b16 %v4389, %v4388
  %v5541 = vpack.c.b16 %v4391, %v4390
  %v5542 = vpack.c.b16 %v4393, %v4392
  %v5543 = vpack.c.b16 %v4395, %v4394
  %v5544 = vpack.c.b16 %v4397, %v4396
  %v5545 = vpack.c.b16 %v4399, %v4398
  %v5546 = vpack.c.b16 %v4401, %v4400
  %v5547 = vpack.c.b16 %v4403, %v4402
  %v5548 = vpack.c.b16 %v4405, %v4404
  %v5549 = vpack.c.b16 %v4407, %v4406
  %v5550 = vpack.c.b16 %v4409, %v4408
  %v5551 = vpack.c.b16 %v4411, %v4410
  %v5552 = vpack.c.b16 %v4413, %v4412
  %v5553 = vpack.c.b16 %v4415, %v4414
  %v5554 = vpack.c.b16 %v4417, %v4416
  %v5555 = vpack.c.b16 %v4419, %v4418
  %v5556 = vpack.c.b16 %v4421, %v4420
  %v5557 = vpack.c.b16 %v4423, %v4422
  %v5558 = vpack.c.b16 %v4425, %v4424
  %v5559 = vpack.c.b16 %v4427, %v4426
  %v5560 = vpack.c.b16 %v4429, %v4428
  %v5561 = vpack.c.b16 %v4431, %v4430
  %v5562 = vpack.c.b16 %v4433, %v4432
  %v5563 = vpack.c.b16 %v4435, %v4434
  %v5564 = vpack.c.b16 %v4437, %v4436
  %v5565 = vpack.c.b16 %v4439, %v4438
  %v5566 = vpack.c.b16 %v4441, %v4440
  %v5567 = vpack.c.b16 %v4443, %v4442
  %v5568 = vpack.c.b16 %v4445, %v4444
  %v5569 = vpack.c.b16 %v4447, %v4446
  %v5570 = vpack.c.b16 %v4449, %v4448
  %v5571 = vpack.c.b16 %v4451, %v4450
  %v5572 = vpack.c.b16 %v4453, %v4452
  %v5573 = vpack.c.b16 %v4455, %v4454
  %v5574 = vpack.c.b16 %v4457, %v4456
  %v5575 = vpack.c.b16 %v4459, %v4458
  %v5576 = vpack.c.b16 %v4461, %v4460
  %v5577 = vpack.c.b16 %v4463, %v4462
  %v5578 = vpack.c.b16 %v4465, %v4464
  %v5579 = vpack.c.b16 %v4467, %v4466
  %v5580 = vpack.c.b16 %v4469, %v4468
  %v5581 = vpack.c.b16 %v4471, %v4470
  %v5582 = vpack.c.b16 %v4473, %v4472
  %v5583 = vpack.c.b16 %v4475, %v4474
  %v5584 = vpack.c.b16 %v4477, %v4476
  %v5585 = vpack.c.b16 %v4479, %v4478
  %v5586 = vpack.c.b16 %v4481, %v4480
  %v5587 = vpack.c.b16 %v4483, %v4482
  %v5588 = vpack.c.b16 %v4485, %v4484
  %v5589 = vpack.c.b16 %v4487, %v4486
  %v5590 = vpack.c.b16 %v4489, %v4488
  %v5591 = vpack.c.b16 %v4491, %v4490
  %v5592 = vpack.c.b16 %v4493, %v4492
  %v5593 = vpack.c.b16 %v4495, %v4494
  %v5594 = vpack.c.b16 %v4497, %v4496
  %v5595 = vpack.c.b16 %v4499, %v4498
  %v5596 = vpack.c.b16 %v4501, %v4500
  %v5597 = vpack.c.b16 %v4503, %v4502
  %v5598 = vpack.c.b16 %v4505, %v4504
  %v5599 = vpack.c.b16 %v4507, %v4506
  %v5600 = vpack.c.b16 %v4509, %v4508
  %v5601 = vpack.c.b16 %v4511, %v4510
  %v5602 = vpack.c.b16 %v4513, %v4512
  %v5603 = vpack.c.b16 %v4515, %v4514
  %v5604 = vpack.c.b16 %v4517, %v4516
  %v5605 = vpack.c.b16 %v4519, %v4518
  %v5606 = vpack.c.b16 %v4521, %v4520
  %v5607 = vpack.c.b16 %v4523, %v4522
  %v5608 = vpack.c.b16 %v4525, %v4524
  %v5609 = vpack.c.b16 %v4527, %v4526
  %v5610 = vpack.c.b16 %v4529, %v4528
  %v5611 = vpack.c.b16 %v4531, %v4530
  %v5612 = vpack.c.b16 %v4533, %v4532
  %v5613 = vpack.c.b16 %v4535, %v4534
  %v5614 = vpack.c.b16 %v4537, %v4536
  %v5615 = vpack.c.b16 %v4539, %v4538
  %v5616 = vpack.c.b16 %v4541, %v4540
  %v5617 = vpack.c.b16 %v4543, %v4542
  %v5618 = vpack.c.b16 %v4545, %v4544
  %v5619 = vpack.c.b16 %v4547, %v4546
  %v5620 = vpack.c.b16 %v4549, %v4548
  %v5621 = vpack.c.b16 %v4551, %v4550
  %v5622 = vpack.c.b16 %v4553, %v4552
  %v5623 = vpack.c.b16 %v4555, %v4554
  %v5624 = vpack.c.b16 %v4557, %v4556
  %v5625 = vpack.c.b16 %v4559, %v4558
  %v5626 = vpack.c.b16 %v4561, %v4560
  %v5627 = vpack.c.b16 %v4563, %v4562
  %v5628 = vpack.c.b16 %v4565, %v4564
  %v5629 = vpack.c.b16 %v4567, %v4566
  %v5630 = vpack.c.b16 %v4569, %v4568
  %v5631 = vpack.c.b16 %v4571, %v4570
  %v5632 = vpack.c.b16 %v4573, %v4572
  %v5633 = vpack.c.b16 %v4575, %v4574
  %v5634 = vpack.c.b16 %v4577, %v4576
  %v5635 = vpack.c.b16 %v4579, %v4578
  %v5636 = vpack.c.b16 %v4581, %v4580
  %v5637 = vpack.c.b16 %v4583, %v4582
  %v5638 = vpack.c.b16 %v4585, %v4584
  %v5639 = vpack.c.b16 %v4587, %v4586
  %v5640 = vpack.c.b16 %v4589, %v4588
  %v5641 = vpack.c.b16 %v4591, %v4590
  %v5642 = vpack.c.b16 %v4593, %v4592
  %v5643 = vpack.c.b16 %v4595, %v4594
  %v5644 = vpack.c.b16 %v4597, %v4596
  %v5645 = vpack.c.b16 %v4599, %v4598
  %v5646 = vpack.c.b16 %v4601, %v4600
  %v5647 = vpack.c.b16 %v4603, %v4602
  %v5648 = vpack.c.b16 %v4605, %v4604
  %v5649 = vpack.c.b16 %v4607, %v4606
  %v5650 = vpack.c.b16 %v4609, %v4608
  %v5651 = vpack.c.b16 %v4611, %v4610
  %v5652 = vpack.c.b16 %v4613, %v4612
  %v5653 = vpack.c.b16 %v4615, %v4614
  %v5654 = vpack.c.b16 %v4617, %v4616
  %v5655 = vpack.c.b16 %v4619, %v4618
  %v5656 = vpack.c.b16 %v4621, %v4620
  %v5657 = vpack.c.b16 %v4623, %v4622
  %v5658 = vpack.c.b16 %v4625, %v4624
  %v5659 = vpack.c.b16 %v4627, %v4626
  %v5660 = vpack.c.b16 %v4629, %v4628
  %v5661 = vpack.c.b16 %v4631, %v4630
  %v5662 = vpack.c.b16 %v4633, %v4632
  %v5663 = vpack.c.b16 %v4635, %v4634
  %v5664 = vpack.c.b16 %v4637, %v4636
  %v5665 = vpack.c.b16 %v4639, %v4638
  %v5666 = vpack.c.b16 %v4641, %v4640
  %v5667 = vpack.c.b16 %v4643, %v4642
  %v5668 = vpack.c.b16 %v4645, %v4644
  %v5669 = vpack.c.b16 %v4647, %v4646
  %v5670 = vpack.c.b16 %v4649, %v4648
  %v5671 = vpack.c.b16 %v4651, %v4650
  %v5672 = vpack.c.b16 %v4653, %v4652
  %v5673 = vpack.c.b16 %v4655, %v4654
  %v5674 = vpack.c.b16 %v4657, %v4656
  %v5675 = vpack.c.b16 %v4659, %v4658
  %v5676 = vpack.c.b16 %v4661, %v4660
  %v5677 = vpack.c.b16 %v4663, %v4662
  %v5678 = vpack.c.b16 %v4665, %v4664
  %v5679 = vpack.c.b16 %v4667, %v4666
  %v5680 = vpack.c.b16 %v4669, %v4668
  %v5681 = vpack.c.b16 %v4671, %v4670
  %v5682 = vpack.c.b16 %v4673, %v4672
  %v5683 = vpack.c.b16 %v4675, %v4674
  %v5684 = vpack.c.b16 %v4677, %v4676
  %v5685 = vpack.c.b16 %v4679, %v4678
  %v5686 = vpack.c.b16 %v4681, %v4680
  %v5687 = vpack.c.b16 %v4683, %v4682
  %v5688 = vpack.c.b16 %v4685, %v4684
  %v5689 = vpack.c.b16 %v4687, %v4686
  %v5690 = vpack.c.b16 %v4689, %v4688
  %v5691 = vpack.c.b16 %v4691, %v4690
  %v5692 = vpack.c.b16 %v4693, %v4692
  %v5693 = vpack.c.b16 %v4695, %v4694
  %v5694 = vpack.c.b16 %v4697, %v4696
  %v5695 = vpack.c.b16 %v4699, %v4698
  %v5696 = vpack.c.b16 %v4701, %v4700
  %v5697 = vpack.c.b16 %v4703, %v4702
  %v5698 = vpack.c.b16 %v4705, %v4704
  %v5699 = vpack.c.b16 %v4707, %v4706
  %v5700 = vpack.c.b16 %v4709, %v4708
  %v5701 = vpack.c.b16 %v4711, %v4710
  %v5702 = vpack.c.b16 %v4713, %v4712
  %v5703 = vpack.c.b16 %v4715, %v4714
  %v5704 = vpack.c.b16 %v4717, %v4716
  %v5705 = vpack.c.b16 %v4719, %v4718
  %v5706 = vpack.c.b16 %v4721, %v4720
  %v5707 = vpack.c.b16 %v4723, %v4722
  %v5708 = vpack.c.b16 %v4725, %v4724
  %v5709 = vpack.c.b16 %v4727, %v4726
  %v5710 = vpack.c.b16 %v4729, %v4728
  %v5711 = vpack.c.b16 %v4731, %v4730
  %v5712 = vpack.c.b16 %v4733, %v4732
  %v5713 = vpack.c.b16 %v4735, %v4734
  %v5714 = vpack.c.b16 %v4737, %v4736
  %v5715 = vpack.c.b16 %v4739, %v4738
  %v5716 = vpack.c.b16 %v4741, %v4740
  %v5717 = vpack.c.b16 %v4743, %v4742
  %v5718 = vpack.c.b16 %v4745, %v4744
  %v5719 = vpack.c.b16 %v4747, %v4746
  %v5720 = vpack.c.b16 %v4749, %v4748
  %v5721 = vpack.c.b16 %v4751, %v4750
  %v5722 = vpack.c.b16 %v4753, %v4752
  %v5723 = vpack.c.b16 %v4755, %v4754
  %v5724 = vpack.c.b16 %v4757, %v4756
  %v5725 = vpack.c.b16 %v4759, %v4758
  %v5726 = vpack.c.b16 %v4761, %v4760
  %v5727 = vpack.c.b16 %v4763, %v4762
  %v5728 = vpack.c.b16 %v4765, %v4764
  %v5729 = vpack.c.b16 %v4767, %v4766
  %v5730 = vpack.c.b16 %v4769, %v4768
  %v5731 = vpack.c.b16 %v4771, %v4770
  %v5732 = vpack.c.b16 %v4773, %v4772
  %v5733 = vpack.c.b16 %v4775, %v4774
  %v5734 = vpack.c.b16 %v4777, %v4776
  %v5735 = vpack.c.b16 %v4779, %v4778
  %v5736 = vpack.c.b16 %v4781, %v4780
  %v5737 = vpack.c.b16 %v4783, %v4782
  %v5738 = vpack.c.b16 %v4785, %v4784
  %v5739 = vpack.c.b16 %v4787, %v4786
  %v5740 = vpack.c.b16 %v4789, %v4788
  %v5741 = vpack.c.b16 %v4791, %v4790
  %v5742 = vpack.c.b16 %v4793, %v4792
  %v5743 = vpack.c.b16 %v4795, %v4794
  %v5744 = vpack.c.b16 %v4797, %v4796
  %v5745 = vpack.c.b16 %v4799, %v4798
  %v5746 = vpack.c.b16 %v4801, %v4800
  %v5747 = vpack.c.b16 %v4803, %v4802
  %v5748 = vpack.c.b16 %v4805, %v4804
  %v5749 = vpack.c.b16 %v4807, %v4806
  %v5750 = vpack.c.b16 %v4809, %v4808
  %v5751 = vpack.c.b16 %v4811, %v4810
  %v5752 = vpack.c.b16 %v4813, %v4812
  %v5753 = vpack.c.b16 %v4815, %v4814
  %v5754 = vpack.c.b16 %v4817, %v4816
  %v5755 = vpack.c.b16 %v4819, %v4818
  %v5756 = vpack.c.b16 %v4821, %v4820
  %v5757 = vpack.c.b16 %v4823, %v4822
  %v5758 = vpack.c.b16 %v4825, %v4824
  %v5759 = vpack.c.b16 %v4827, %v4826
  %v5760 = vpack.c.b16 %v4829, %v4828
  %v5761 = vpack.c.b16 %v4831, %v4830
  %v5762 = vpack.c.b16 %v4833, %v4832
  %v5763 = vpack.c.b16 %v4835, %v4834
  %v5764 = vpack.c.b16 %v4837, %v4836
  %v5765 = vpack.c.b16 %v4839, %v4838
  %v5766 = vpack.c.b16 %v4841, %v4840
  %v5767 = vpack.c.b16 %v4843, %v4842
  %v5768 = vpack.c.b16 %v4845, %v4844
  %v5769 = vpack.c.b16 %v4847, %v4846
  %v5770 = vpack.c.b16 %v4849, %v4848
  %v5771 = vpack.c.b16 %v4851, %v4850
  %v5772 = vpack.c.b16 %v4853, %v4852
  %v5773 = vpack.c.b16 %v4855, %v4854
  %v5774 = vpack.c.b16 %v4857, %v4856
  %v5775 = vpack.c.b16 %v4859, %v4858
  %v5776 = vpack.c.b16 %v4861, %v4860
  %v5777 = vpack.c.b16 %v4863, %v4862
  %v5778 = vpack.c.b16 %v4865, %v4864
  %v5779 = vpack.c.b16 %v4867, %v4866
  %v5780 = vpack.c.b16 %v4869, %v4868
  %v5781 = vpack.c.b16 %v4871, %v4870
  %v5782 = vpack.c.b16 %v4873, %v4872
  %v5783 = vpack.c.b16 %v4875, %v4874
  %v5784 = vpack.c.b16 %v4877, %v4876
  %v5785 = vpack.c.b16 %v4879, %v4878
  %v5786 = vpack.c.b16 %v4881, %v4880
  %v5787 = vpack.c.b16 %v4883, %v4882
  %v5788 = vpack.c.b16 %v4885, %v4884
  %v5789 = vpack.c.b16 %v4887, %v4886
  %v5790 = vpack.c.b16 %v4889, %v4888
  %v5791 = vpack.c.b16 %v4891, %v4890
  %v5792 = vpack.c.b16 %v4893, %v4892
  %v5793 = vpack.c.b16 %v4895, %v4894
  %v5794 = vpack.c.b16 %v4897, %v4896
  %v5795 = vpack.c.b16 %v4899, %v4898
  %v5796 = vpack.c.b16 %v4901, %v4900
  %v5797 = vpack.c.b16 %v4903, %v4902
  %v5798 = vpack.c.b16 %v4905, %v4904
  %v5799 = vpack.c.b16 %v4907, %v4906
  %v5800 = vpack.c.b16 %v4909, %v4908
  %v5801 = vpack.c.b16 %v4911, %v4910
  %v5802 = vpack.c.b16 %v4913, %v4912
  %v5803 = vpack.c.b16 %v4915, %v4914
  %v5804 = vpack.c.b16 %v4917, %v4916
  %v5805 = vpack.c.b16 %v4919, %v4918
  %v5806 = vpack.c.b16 %v4921, %v4920
  %v5807 = vpack.c.b16 %v4923, %v4922
  %v5808 = vpack.c.b16 %v4925, %v4924
  %v5809 = vpack.c.b16 %v4927, %v4926
  %v5810 = vpack.c.b16 %v4929, %v4928
  %v5811 = vpack.c.b16 %v4931, %v4930
  %v5812 = vpack.c.b16 %v4933, %v4932
  %v5813 = vpack.c.b16 %v4935, %v4934
  %v5814 = vpack.c.b16 %v4937, %v4936
  %v5815 = vpack.c.b16 %v4939, %v4938
  %v5816 = vpack.c.b16 %v4941, %v4940
  %v5817 = vpack.c.b16 %v4943, %v4942
  %v5818 = vpack.c.b16 %v4945, %v4944
  %v5819 = vpack.c.b16 %v4947, %v4946
  %v5820 = vpack.c.b16 %v4949, %v4948
  %v5821 = vpack.c.b16 %v4951, %v4950
  %v5822 = vpack.c.b16 %v4953, %v4952
  %v5823 = vpack.c.b16 %v4955, %v4954
  %v5824 = vpack.c.b16 %v4957, %v4956
  %v5825 = vpack.c.b16 %v4959, %v4958
  %v5826 = vpack.c.b16 %v4961, %v4960
  %v5827 = vpack.c.b16 %v4963, %v4962
  %v5828 = vpack.c.b16 %v4965, %v4964
  %v5829 = vpack.c.b16 %v4967, %v4966
  %v5830 = vpack.c.b16 %v4969, %v4968
  %v5831 = vpack.c.b16 %v4971, %v4970
  %v5832 = vpack.c.b16 %v4973, %v4972
  %v5833 = vpack.c.b16 %v4975, %v4974
  %v5834 = vpack.c.b16 %v4977, %v4976
  %v5835 = vpack.c.b16 %v4979, %v4978
  %v5836 = vpack.c.b16 %v4981, %v4980
  %v5837 = vpack.c.b16 %v4983, %v4982
  %v5838 = vpack.c.b16 %v4985, %v4984
  %v5839 = vpack.c.b16 %v4987, %v4986
  %v5840 = vpack.c.b16 %v4989, %v4988
  %v5841 = vpack.c.b16 %v4991, %v4990
  %v5842 = vpack.c.b16 %v4993, %v4992
  %v5843 = vpack.c.b16 %v4995, %v4994
  %v5844 = vpack.c.b16 %v4997, %v4996
  %v5845 = vpack.c.b16 %v4999, %v4998
  %v5846 = vpack.c.b16 %v5001, %v5000
  %v5847 = vpack.c.b16 %v5003, %v5002
  %v5848 = vpack.c.b16 %v5005, %v5004
  %v5849 = vpack.c.b16 %v5007, %v5006
  %v5850 = vpack.c.b16 %v5009, %v5008
  %v5851 = vpack.c.b16 %v5011, %v5010
  %v5852 = vpack.c.b16 %v5013, %v5012
  %v5853 = vpack.c.b16 %v5015, %v5014
  %v5854 = vpack.c.b16 %v5017, %v5016
  %v5855 = vpack.c.b16 %v5019, %v5018
  %v5856 = vpack.c.b16 %v5021, %v5020
  %v5857 = vpack.c.b16 %v5023, %v5022
  %v5858 = vpack.c.b16 %v5025, %v5024
  %v5859 = vpack.c.b16 %v5027, %v5026
  %v5860 = vpack.c.b16 %v5029, %v5028
  %v5861 = vpack.c.b16 %v5031, %v5030
  %v5862 = vpack.c.b16 %v5033, %v5032
  %v5863 = vpack.c.b16 %v5035, %v5034
  %v5864 = vpack.c.b16 %v5037, %v5036
  %v5865 = vpack.c.b16 %v5039, %v5038
  %v5866 = vpack.c.b16 %v5041, %v5040
  %v5867 = vpack.c.b16 %v5043, %v5042
  %v5868 = vpack.c.b16 %v5045, %v5044
  %v5869 = vpack.c.b16 %v5047, %v5046
  %v5870 = vpack.c.b16 %v5049, %v5048
  %v5871 = vpack.c.b16 %v5051, %v5050
  %v5872 = vpack.c.b16 %v5053, %v5052
  %v5873 = vpack.c.b16 %v5055, %v5054
  %v5874 = vpack.c.b16 %v5057, %v5056
  %v5875 = vpack.c.b16 %v5059, %v5058
  %v5876 = vpack.c.b16 %v5061, %v5060
  %v5877 = vpack.c.b16 %v5063, %v5062
  %v5878 = vpack.c.b16 %v5065, %v5064
  %v5879 = vpack.c.b16 %v5067, %v5066
  %v5880 = vpack.c.b16 %v5069, %v5068
  %v5881 = vpack.c.b16 %v5071, %v5070
  %v5882 = vpack.c.b16 %v5073, %v5072
  %v5883 = vpack.c.b16 %v5075, %v5074
  %v5884 = vpack.c.b16 %v5077, %v5076
  %v5885 = vpack.c.b16 %v5079, %v5078
  %v5886 = vpack.c.b16 %v5081, %v5080
  %v5887 = vpack.c.b16 %v5083, %v5082
  %v5888 = vpack.c.b16 %v5085, %v5084
  %v5889 = vpack.c.b16 %v5087, %v5086
  %v5890 = vpack.c.b16 %v5089, %v5088
  %v5891 = vpack.c.b16 %v5091, %v5090
  %v5892 = vpack.c.b16 %v5093, %v5092
  %v5893 = vpack.c.b16 %v5095, %v5094
  %v5894 = vpack.c.b16 %v5097, %v5096
  %v5895 = vpack.c.b16 %v5099, %v5098
  %v5896 = vpack.c.b16 %v5101, %v5100
  %v5897 = vpack.c.b16 %v5103, %v5102
  %v5898 = vpack.c.b16 %v5105, %v5104
  %v5899 = vpack.c.b16 %v5107, %v5106
  %v5900 = vpack.c.b16 %v5109, %v5108
  %v5901 = vpack.c.b16 %v5111, %v5110
  %v5902 = vpack.c.b16 %v5113, %v5112
  %v5903 = vpack.c.b16 %v5115, %v5114
  %v5904 = vpack.c.b16 %v5117, %v5116
  %v5905 = vpack.c.b16 %v5119, %v5118
  %v5906 = vpack.c.b16 %v5121, %v5120
  %v5907 = vpack.c.b16 %v5123, %v5122
  %6692 = vmatprep.subr.bf16.mxu0 0
  %6693 = vmatpush1.bf16.msra.mxu0 %v5124
  %6694 = vmatprep.subr.bf16.mxu0 0
  %6695 = vmatpush1.bf16.msra.mxu0 %v5125
  %6696 = vmatprep.subr.bf16.mxu0 0
  %6697 = vmatpush1.bf16.msra.mxu0 %v5126
  %6698 = vmatprep.subr.bf16.mxu0 0
  %6699 = vmatpush1.bf16.msra.mxu0 %v5127
  %6700 = vmatprep.subr.bf16.mxu0 0
  %6701 = vmatpush1.bf16.msra.mxu0 %v5128
  %6702 = vmatprep.subr.bf16.mxu0 0
  %6703 = vmatpush1.bf16.msra.mxu0 %v5129
  %6704 = vmatprep.subr.bf16.mxu0 0
  %6705 = vmatpush1.bf16.msra.mxu0 %v5130
  %6706 = vmatprep.subr.bf16.mxu0 0
  %6707 = vmatpush1.bf16.msra.mxu0 %v5131
  %6708 = vmatprep.subr.bf16.mxu0 0
  %6709 = vmatpush1.bf16.msra.mxu0 %v5132
  %6710 = vmatprep.subr.bf16.mxu0 0
  %6711 = vmatpush1.bf16.msra.mxu0 %v5133
  %6712 = vmatprep.subr.bf16.mxu0 0
  %6713 = vmatpush1.bf16.msra.mxu0 %v5134
  %6714 = vmatprep.subr.bf16.mxu0 0
  %6715 = vmatpush1.bf16.msra.mxu0 %v5135
  %6716 = vmatprep.subr.bf16.mxu0 0
  %6717 = vmatpush1.bf16.msra.mxu0 %v5136
  %6718 = vmatprep.subr.bf16.mxu0 0
  %6719 = vmatpush1.bf16.msra.mxu0 %v5137
  %6720 = vmatprep.subr.bf16.mxu0 0
  %6721 = vmatpush1.bf16.msra.mxu0 %v5138
  %6722 = vmatprep.subr.bf16.mxu0 0
  %6723 = vmatpush1.bf16.msra.mxu0 %v5139
  %6724 = vmatprep.mubr.bf16.mxu0 %v1793
  %6725 = vmatmul.mubr.bf16.gmra.mrb[0].mxu0 %v1792
  %v6726 = vpop.f32.mrb[0].mxu0
  %v6727 = vadd.f32 %v1643, %v6726
  %v6728 = vpop.f32.mrb[0].mxu0
  %v6729 = vpop.f32.mrb[0].mxu0
  %v6730 = vpop.f32.mrb[0].mxu0
  %6731 = vdwg.mxu0
  %6732 = vmatprep.subr.bf16.mxu0 0
  %6733 = vmatpush1.bf16.msra.mxu0 %v5140
  %6734 = vmatprep.subr.bf16.mxu0 0
  %6735 = vmatpush1.bf16.msra.mxu0 %v5141
  %6736 = vmatprep.subr.bf16.mxu0 0
  %6737 = vmatpush1.bf16.msra.mxu0 %v5142
  %6738 = vmatprep.subr.bf16.mxu0 0
  %6739 = vmatpush1.bf16.msra.mxu0 %v5143
  %6740 = vmatprep.subr.bf16.mxu0 0
  %6741 = vmatpush1.bf16.msra.mxu0 %v5144
  %6742 = vmatprep.subr.bf16.mxu0 0
  %6743 = vmatpush1.bf16.msra.mxu0 %v5145
  %6744 = vmatprep.subr.bf16.mxu0 0
  %6745 = vmatpush1.bf16.msra.mxu0 %v5146
  %6746 = vmatprep.subr.bf16.mxu0 0
  %6747 = vmatpush1.bf16.msra.mxu0 %v5147
  %6748 = vmatprep.subr.bf16.mxu0 0
  %6749 = vmatpush1.bf16.msra.mxu0 %v5148
  %6750 = vmatprep.subr.bf16.mxu0 0
  %6751 = vmatpush1.bf16.msra.mxu0 %v5149
  %6752 = vmatprep.subr.bf16.mxu0 0
  %6753 = vmatpush1.bf16.msra.mxu0 %v5150
  %6754 = vmatprep.subr.bf16.mxu0 0
  %6755 = vmatpush1.bf16.msra.mxu0 %v5151
  %6756 = vmatprep.subr.bf16.mxu0 0
  %6757 = vmatpush1.bf16.msra.mxu0 %v5152
  %6758 = vmatprep.subr.bf16.mxu0 0
  %6759 = vmatpush1.bf16.msra.mxu0 %v5153
  %6760 = vmatprep.subr.bf16.mxu0 0
  %6761 = vmatpush1.bf16.msra.mxu0 %v5154
  %6762 = vmatprep.subr.bf16.mxu0 0
  %6763 = vmatpush1.bf16.msra.mxu0 %v5155
  %6764 = vmatprep.mubr.bf16.mxu0 %v1795
  %6765 = vmatmul.mubr.bf16.gmra.mrb[0].mxu0 %v1794
  %v6766 = vpop.f32.mrb[0].mxu0
  %v6767 = vadd.f32 %v6727, %v6766
  %v6768 = vpop.f32.mrb[0].mxu0
  %v6769 = vpop.f32.mrb[0].mxu0
  %v6770 = vpop.f32.mrb[0].mxu0
  %6771 = vdwg.mxu0
  %6772 = vmatprep.subr.bf16.mxu0 0
  %6773 = vmatpush1.bf16.msra.mxu0 %v5156
  %6774 = vmatprep.subr.bf16.mxu0 0
  %6775 = vmatpush1.bf16.msra.mxu0 %v5157
  %6776 = vmatprep.subr.bf16.mxu0 0
  %6777 = vmatpush1.bf16.msra.mxu0 %v5158
  %6778 = vmatprep.subr.bf16.mxu0 0
  %6779 = vmatpush1.bf16.msra.mxu0 %v5159
  %6780 = vmatprep.subr.bf16.mxu0 0
  %6781 = vmatpush1.bf16.msra.mxu0 %v5160
  %6782 = vmatprep.subr.bf16.mxu0 0
  %6783 = vmatpush1.bf16.msra.mxu0 %v5161
  %6784 = vmatprep.subr.bf16.mxu0 0
  %6785 = vmatpush1.bf16.msra.mxu0 %v5162
  %6786 = vmatprep.subr.bf16.mxu0 0
  %6787 = vmatpush1.bf16.msra.mxu0 %v5163
  %6788 = vmatprep.subr.bf16.mxu0 0
  %6789 = vmatpush1.bf16.msra.mxu0 %v5164
  %6790 = vmatprep.subr.bf16.mxu0 0
  %6791 = vmatpush1.bf16.msra.mxu0 %v5165
  %6792 = vmatprep.subr.bf16.mxu0 0
  %6793 = vmatpush1.bf16.msra.mxu0 %v5166
  %6794 = vmatprep.subr.bf16.mxu0 0
  %6795 = vmatpush1.bf16.msra.mxu0 %v5167
  %6796 = vmatprep.subr.bf16.mxu0 0
  %6797 = vmatpush1.bf16.msra.mxu0 %v5168
  %6798 = vmatprep.subr.bf16.mxu0 0
  %6799 = vmatpush1.bf16.msra.mxu0 %v5169
  %6800 = vmatprep.subr.bf16.mxu0 0
  %6801 = vmatpush1.bf16.msra.mxu0 %v5170
  %6802 = vmatprep.subr.bf16.mxu0 0
  %6803 = vmatpush1.bf16.msra.mxu0 %v5171
  %6804 = vmatprep.mubr.bf16.mxu0 %v1797
  %6805 = vmatmul.mubr.bf16.gmra.mrb[0].mxu0 %v1796
  %v6806 = vpop.f32.mrb[0].mxu0
  %v6807 = vadd.f32 %v6767, %v6806
  %v6808 = vpop.f32.mrb[0].mxu0
  %v6809 = vpop.f32.mrb[0].mxu0
  %v6810 = vpop.f32.mrb[0].mxu0
  %6811 = vdwg.mxu0
  %6812 = vmatprep.subr.bf16.mxu0 0
  %6813 = vmatpush1.bf16.msra.mxu0 %v5172
  %6814 = vmatprep.subr.bf16.mxu0 0
  %6815 = vmatpush1.bf16.msra.mxu0 %v5173
  %6816 = vmatprep.subr.bf16.mxu0 0
  %6817 = vmatpush1.bf16.msra.mxu0 %v5174
  %6818 = vmatprep.subr.bf16.mxu0 0
  %6819 = vmatpush1.bf16.msra.mxu0 %v5175
  %6820 = vmatprep.subr.bf16.mxu0 0
  %6821 = vmatpush1.bf16.msra.mxu0 %v5176
  %6822 = vmatprep.subr.bf16.mxu0 0
  %6823 = vmatpush1.bf16.msra.mxu0 %v5177
  %6824 = vmatprep.subr.bf16.mxu0 0
  %6825 = vmatpush1.bf16.msra.mxu0 %v5178
  %6826 = vmatprep.subr.bf16.mxu0 0
  %6827 = vmatpush1.bf16.msra.mxu0 %v5179
  %6828 = vmatprep.subr.bf16.mxu0 0
  %6829 = vmatpush1.bf16.msra.mxu0 %v5180
  %6830 = vmatprep.subr.bf16.mxu0 0
  %6831 = vmatpush1.bf16.msra.mxu0 %v5181
  %6832 = vmatprep.subr.bf16.mxu0 0
  %6833 = vmatpush1.bf16.msra.mxu0 %v5182
  %6834 = vmatprep.subr.bf16.mxu0 0
  %6835 = vmatpush1.bf16.msra.mxu0 %v5183
  %6836 = vmatprep.subr.bf16.mxu0 0
  %6837 = vmatpush1.bf16.msra.mxu0 %v5184
  %6838 = vmatprep.subr.bf16.mxu0 0
  %6839 = vmatpush1.bf16.msra.mxu0 %v5185
  %6840 = vmatprep.subr.bf16.mxu0 0
  %6841 = vmatpush1.bf16.msra.mxu0 %v5186
  %6842 = vmatprep.subr.bf16.mxu0 0
  %6843 = vmatpush1.bf16.msra.mxu0 %v5187
  %6844 = vmatprep.mubr.bf16.mxu0 %v1799
  %6845 = vmatmul.mubr.bf16.gmra.mrb[0].mxu0 %v1798
  %v6846 = vpop.f32.mrb[0].mxu0
  %v6847 = vadd.f32 %v6807, %v6846
  %v6848 = vpop.f32.mrb[0].mxu0
  %v6849 = vpop.f32.mrb[0].mxu0
  %v6850 = vpop.f32.mrb[0].mxu0
  %6851 = vdwg.mxu0
  %6852 = vmatprep.subr.bf16.mxu0 0
  %6853 = vmatpush1.bf16.msra.mxu0 %v5188
  %6854 = vmatprep.subr.bf16.mxu0 0
  %6855 = vmatpush1.bf16.msra.mxu0 %v5189
  %6856 = vmatprep.subr.bf16.mxu0 0
  %6857 = vmatpush1.bf16.msra.mxu0 %v5190
  %6858 = vmatprep.subr.bf16.mxu0 0
  %6859 = vmatpush1.bf16.msra.mxu0 %v5191
  %6860 = vmatprep.subr.bf16.mxu0 0
  %6861 = vmatpush1.bf16.msra.mxu0 %v5192
  %6862 = vmatprep.subr.bf16.mxu0 0
  %6863 = vmatpush1.bf16.msra.mxu0 %v5193
  %6864 = vmatprep.subr.bf16.mxu0 0
  %6865 = vmatpush1.bf16.msra.mxu0 %v5194
  %6866 = vmatprep.subr.bf16.mxu0 0
  %6867 = vmatpush1.bf16.msra.mxu0 %v5195
  %6868 = vmatprep.subr.bf16.mxu0 0
  %6869 = vmatpush1.bf16.msra.mxu0 %v5196
  %6870 = vmatprep.subr.bf16.mxu0 0
  %6871 = vmatpush1.bf16.msra.mxu0 %v5197
  %6872 = vmatprep.subr.bf16.mxu0 0
  %6873 = vmatpush1.bf16.msra.mxu0 %v5198
  %6874 = vmatprep.subr.bf16.mxu0 0
  %6875 = vmatpush1.bf16.msra.mxu0 %v5199
  %6876 = vmatprep.subr.bf16.mxu0 0
  %6877 = vmatpush1.bf16.msra.mxu0 %v5200
  %6878 = vmatprep.subr.bf16.mxu0 0
  %6879 = vmatpush1.bf16.msra.mxu0 %v5201
  %6880 = vmatprep.subr.bf16.mxu0 0
  %6881 = vmatpush1.bf16.msra.mxu0 %v5202
  %6882 = vmatprep.subr.bf16.mxu0 0
  %6883 = vmatpush1.bf16.msra.mxu0 %v5203
  %6884 = vmatprep.mubr.bf16.mxu0 %v1801
  %6885 = vmatmul.mubr.bf16.gmra.mrb[0].mxu0 %v1800
  %v6886 = vpop.f32.mrb[0].mxu0
  %v6887 = vadd.f32 %v6847, %v6886
  %v6888 = vpop.f32.mrb[0].mxu0
  %v6889 = vpop.f32.mrb[0].mxu0
  %v6890 = vpop.f32.mrb[0].mxu0
  %6891 = vdwg.mxu0
  %6892 = vmatprep.subr.bf16.mxu0 0
  %6893 = vmatpush1.bf16.msra.mxu0 %v5204
  %6894 = vmatprep.subr.bf16.mxu0 0
  %6895 = vmatpush1.bf16.msra.mxu0 %v5205
  %6896 = vmatprep.subr.bf16.mxu0 0
  %6897 = vmatpush1.bf16.msra.mxu0 %v5206
  %6898 = vmatprep.subr.bf16.mxu0 0
  %6899 = vmatpush1.bf16.msra.mxu0 %v5207
  %6900 = vmatprep.subr.bf16.mxu0 0
  %6901 = vmatpush1.bf16.msra.mxu0 %v5208
  %6902 = vmatprep.subr.bf16.mxu0 0
  %6903 = vmatpush1.bf16.msra.mxu0 %v5209
  %6904 = vmatprep.subr.bf16.mxu0 0
  %6905 = vmatpush1.bf16.msra.mxu0 %v5210
  %6906 = vmatprep.subr.bf16.mxu0 0
  %6907 = vmatpush1.bf16.msra.mxu0 %v5211
  %6908 = vmatprep.subr.bf16.mxu0 0
  %6909 = vmatpush1.bf16.msra.mxu0 %v5212
  %6910 = vmatprep.subr.bf16.mxu0 0
  %6911 = vmatpush1.bf16.msra.mxu0 %v5213
  %6912 = vmatprep.subr.bf16.mxu0 0
  %6913 = vmatpush1.bf16.msra.mxu0 %v5214
  %6914 = vmatprep.subr.bf16.mxu0 0
  %6915 = vmatpush1.bf16.msra.mxu0 %v5215
  %6916 = vmatprep.subr.bf16.mxu0 0
  %6917 = vmatpush1.bf16.msra.mxu0 %v5216
  %6918 = vmatprep.subr.bf16.mxu0 0
  %6919 = vmatpush1.bf16.msra.mxu0 %v5217
  %6920 = vmatprep.subr.bf16.mxu0 0
  %6921 = vmatpush1.bf16.msra.mxu0 %v5218
  %6922 = vmatprep.subr.bf16.mxu0 0
  %6923 = vmatpush1.bf16.msra.mxu0 %v5219
  %6924 = vmatprep.mubr.bf16.mxu0 %v1803
  %6925 = vmatmul.mubr.bf16.gmra.mrb[0].mxu0 %v1802
  %v6926 = vpop.f32.mrb[0].mxu0
  %v6927 = vadd.f32 %v6887, %v6926
  %v6928 = vpop.f32.mrb[0].mxu0
  %v6929 = vpop.f32.mrb[0].mxu0
  %v6930 = vpop.f32.mrb[0].mxu0
  %6931 = vdwg.mxu0
  %6932 = vmatprep.subr.bf16.mxu0 0
  %6933 = vmatpush1.bf16.msra.mxu0 %v5220
  %6934 = vmatprep.subr.bf16.mxu0 0
  %6935 = vmatpush1.bf16.msra.mxu0 %v5221
  %6936 = vmatprep.subr.bf16.mxu0 0
  %6937 = vmatpush1.bf16.msra.mxu0 %v5222
  %6938 = vmatprep.subr.bf16.mxu0 0
  %6939 = vmatpush1.bf16.msra.mxu0 %v5223
  %6940 = vmatprep.subr.bf16.mxu0 0
  %6941 = vmatpush1.bf16.msra.mxu0 %v5224
  %6942 = vmatprep.subr.bf16.mxu0 0
  %6943 = vmatpush1.bf16.msra.mxu0 %v5225
  %6944 = vmatprep.subr.bf16.mxu0 0
  %6945 = vmatpush1.bf16.msra.mxu0 %v5226
  %6946 = vmatprep.subr.bf16.mxu0 0
  %6947 = vmatpush1.bf16.msra.mxu0 %v5227
  %6948 = vmatprep.subr.bf16.mxu0 0
  %6949 = vmatpush1.bf16.msra.mxu0 %v5228
  %6950 = vmatprep.subr.bf16.mxu0 0
  %6951 = vmatpush1.bf16.msra.mxu0 %v5229
  %6952 = vmatprep.subr.bf16.mxu0 0
  %6953 = vmatpush1.bf16.msra.mxu0 %v5230
  %6954 = vmatprep.subr.bf16.mxu0 0
  %6955 = vmatpush1.bf16.msra.mxu0 %v5231
  %6956 = vmatprep.subr.bf16.mxu0 0
  %6957 = vmatpush1.bf16.msra.mxu0 %v5232
  %6958 = vmatprep.subr.bf16.mxu0 0
  %6959 = vmatpush1.bf16.msra.mxu0 %v5233
  %6960 = vmatprep.subr.bf16.mxu0 0
  %6961 = vmatpush1.bf16.msra.mxu0 %v5234
  %6962 = vmatprep.subr.bf16.mxu0 0
  %6963 = vmatpush1.bf16.msra.mxu0 %v5235
  %6964 = vmatprep.mubr.bf16.mxu0 %v1805
  %6965 = vmatmul.mubr.bf16.gmra.mrb[0].mxu0 %v1804
  %v6966 = vpop.f32.mrb[0].mxu0
  %v6967 = vadd.f32 %v6927, %v6966
  %v6968 = vpop.f32.mrb[0].mxu0
  %v6969 = vpop.f32.mrb[0].mxu0
  %v6970 = vpop.f32.mrb[0].mxu0
  %6971 = vdwg.mxu0
  %6972 = vmatprep.subr.bf16.mxu0 0
  %6973 = vmatpush1.bf16.msra.mxu0 %v5236
  %6974 = vmatprep.subr.bf16.mxu0 0
  %6975 = vmatpush1.bf16.msra.mxu0 %v5237
  %6976 = vmatprep.subr.bf16.mxu0 0
  %6977 = vmatpush1.bf16.msra.mxu0 %v5238
  %6978 = vmatprep.subr.bf16.mxu0 0
  %6979 = vmatpush1.bf16.msra.mxu0 %v5239
  %6980 = vmatprep.subr.bf16.mxu0 0
  %6981 = vmatpush1.bf16.msra.mxu0 %v5240
  %6982 = vmatprep.subr.bf16.mxu0 0
  %6983 = vmatpush1.bf16.msra.mxu0 %v5241
  %6984 = vmatprep.subr.bf16.mxu0 0
  %6985 = vmatpush1.bf16.msra.mxu0 %v5242
  %6986 = vmatprep.subr.bf16.mxu0 0
  %6987 = vmatpush1.bf16.msra.mxu0 %v5243
  %6988 = vmatprep.subr.bf16.mxu0 0
  %6989 = vmatpush1.bf16.msra.mxu0 %v5244
  %6990 = vmatprep.subr.bf16.mxu0 0
  %6991 = vmatpush1.bf16.msra.mxu0 %v5245
  %6992 = vmatprep.subr.bf16.mxu0 0
  %6993 = vmatpush1.bf16.msra.mxu0 %v5246
  %6994 = vmatprep.subr.bf16.mxu0 0
  %6995 = vmatpush1.bf16.msra.mxu0 %v5247
  %6996 = vmatprep.subr.bf16.mxu0 0
  %6997 = vmatpush1.bf16.msra.mxu0 %v5248
  %6998 = vmatprep.subr.bf16.mxu0 0
  %6999 = vmatpush1.bf16.msra.mxu0 %v5249
  %7000 = vmatprep.subr.bf16.mxu0 0
  %7001 = vmatpush1.bf16.msra.mxu0 %v5250
  %7002 = vmatprep.subr.bf16.mxu0 0
  %7003 = vmatpush1.bf16.msra.mxu0 %v5251
  %7004 = vmatprep.mubr.bf16.mxu0 %v1807
  %7005 = vmatmul.mubr.bf16.gmra.mrb[0].mxu0 %v1806
  %v7006 = vpop.f32.mrb[0].mxu0
  %v7007 = vadd.f32 %v6967, %v7006
  %v7008 = vpop.f32.mrb[0].mxu0
  %v7009 = vpop.f32.mrb[0].mxu0
  %v7010 = vpop.f32.mrb[0].mxu0
  %7011 = vdwg.mxu0
  %7012 = vmatprep.subr.bf16.mxu0 0
  %7013 = vmatpush1.bf16.msra.mxu0 %v5252
  %7014 = vmatprep.subr.bf16.mxu0 0
  %7015 = vmatpush1.bf16.msra.mxu0 %v5253
  %7016 = vmatprep.subr.bf16.mxu0 0
  %7017 = vmatpush1.bf16.msra.mxu0 %v5254
  %7018 = vmatprep.subr.bf16.mxu0 0
  %7019 = vmatpush1.bf16.msra.mxu0 %v5255
  %7020 = vmatprep.subr.bf16.mxu0 0
  %7021 = vmatpush1.bf16.msra.mxu0 %v5256
  %7022 = vmatprep.subr.bf16.mxu0 0
  %7023 = vmatpush1.bf16.msra.mxu0 %v5257
  %7024 = vmatprep.subr.bf16.mxu0 0
  %7025 = vmatpush1.bf16.msra.mxu0 %v5258
  %7026 = vmatprep.subr.bf16.mxu0 0
  %7027 = vmatpush1.bf16.msra.mxu0 %v5259
  %7028 = vmatprep.subr.bf16.mxu0 0
  %7029 = vmatpush1.bf16.msra.mxu0 %v5260
  %7030 = vmatprep.subr.bf16.mxu0 0
  %7031 = vmatpush1.bf16.msra.mxu0 %v5261
  %7032 = vmatprep.subr.bf16.mxu0 0
  %7033 = vmatpush1.bf16.msra.mxu0 %v5262
  %7034 = vmatprep.subr.bf16.mxu0 0
  %7035 = vmatpush1.bf16.msra.mxu0 %v5263
  %7036 = vmatprep.subr.bf16.mxu0 0
  %7037 = vmatpush1.bf16.msra.mxu0 %v5264
  %7038 = vmatprep.subr.bf16.mxu0 0
  %7039 = vmatpush1.bf16.msra.mxu0 %v5265
  %7040 = vmatprep.subr.bf16.mxu0 0
  %7041 = vmatpush1.bf16.msra.mxu0 %v5266
  %7042 = vmatprep.subr.bf16.mxu0 0
  %7043 = vmatpush1.bf16.msra.mxu0 %v5267
  %7044 = vmatprep.mubr.bf16.mxu0 %v1809
  %7045 = vmatmul.mubr.bf16.gmra.mrb[0].mxu0 %v1808
  %v7046 = vpop.f32.mrb[0].mxu0
  %v7047 = vadd.f32 %v7007, %v7046
  %v7048 = vpop.f32.mrb[0].mxu0
  %v7049 = vpop.f32.mrb[0].mxu0
  %v7050 = vpop.f32.mrb[0].mxu0
  %7051 = vdwg.mxu0
  %7052 = vmatprep.subr.bf16.mxu0 0
  %7053 = vmatpush1.bf16.msra.mxu0 %v5268
  %7054 = vmatprep.subr.bf16.mxu0 0
  %7055 = vmatpush1.bf16.msra.mxu0 %v5269
  %7056 = vmatprep.subr.bf16.mxu0 0
  %7057 = vmatpush1.bf16.msra.mxu0 %v5270
  %7058 = vmatprep.subr.bf16.mxu0 0
  %7059 = vmatpush1.bf16.msra.mxu0 %v5271
  %7060 = vmatprep.subr.bf16.mxu0 0
  %7061 = vmatpush1.bf16.msra.mxu0 %v5272
  %7062 = vmatprep.subr.bf16.mxu0 0
  %7063 = vmatpush1.bf16.msra.mxu0 %v5273
  %7064 = vmatprep.subr.bf16.mxu0 0
  %7065 = vmatpush1.bf16.msra.mxu0 %v5274
  %7066 = vmatprep.subr.bf16.mxu0 0
  %7067 = vmatpush1.bf16.msra.mxu0 %v5275
  %7068 = vmatprep.subr.bf16.mxu0 0
  %7069 = vmatpush1.bf16.msra.mxu0 %v5276
  %7070 = vmatprep.subr.bf16.mxu0 0
  %7071 = vmatpush1.bf16.msra.mxu0 %v5277
  %7072 = vmatprep.subr.bf16.mxu0 0
  %7073 = vmatpush1.bf16.msra.mxu0 %v5278
  %7074 = vmatprep.subr.bf16.mxu0 0
  %7075 = vmatpush1.bf16.msra.mxu0 %v5279
  %7076 = vmatprep.subr.bf16.mxu0 0
  %7077 = vmatpush1.bf16.msra.mxu0 %v5280
  %7078 = vmatprep.subr.bf16.mxu0 0
  %7079 = vmatpush1.bf16.msra.mxu0 %v5281
  %7080 = vmatprep.subr.bf16.mxu0 0
  %7081 = vmatpush1.bf16.msra.mxu0 %v5282
  %7082 = vmatprep.subr.bf16.mxu0 0
  %7083 = vmatpush1.bf16.msra.mxu0 %v5283
  %7084 = vmatprep.mubr.bf16.mxu0 %v1811
  %7085 = vmatmul.mubr.bf16.gmra.mrb[0].mxu0 %v1810
  %v7086 = vpop.f32.mrb[0].mxu0
  %v7087 = vadd.f32 %v7047, %v7086
  %v7088 = vpop.f32.mrb[0].mxu0
  %v7089 = vpop.f32.mrb[0].mxu0
  %v7090 = vpop.f32.mrb[0].mxu0
  %7091 = vdwg.mxu0
  %7092 = vmatprep.subr.bf16.mxu0 0
  %7093 = vmatpush1.bf16.msra.mxu0 %v5284
  %7094 = vmatprep.subr.bf16.mxu0 0
  %7095 = vmatpush1.bf16.msra.mxu0 %v5285
  %7096 = vmatprep.subr.bf16.mxu0 0
  %7097 = vmatpush1.bf16.msra.mxu0 %v5286
  %7098 = vmatprep.subr.bf16.mxu0 0
  %7099 = vmatpush1.bf16.msra.mxu0 %v5287
  %7100 = vmatprep.subr.bf16.mxu0 0
  %7101 = vmatpush1.bf16.msra.mxu0 %v5288
  %7102 = vmatprep.subr.bf16.mxu0 0
  %7103 = vmatpush1.bf16.msra.mxu0 %v5289
  %7104 = vmatprep.subr.bf16.mxu0 0
  %7105 = vmatpush1.bf16.msra.mxu0 %v5290
  %7106 = vmatprep.subr.bf16.mxu0 0
  %7107 = vmatpush1.bf16.msra.mxu0 %v5291
  %7108 = vmatprep.subr.bf16.mxu0 0
  %7109 = vmatpush1.bf16.msra.mxu0 %v5292
  %7110 = vmatprep.subr.bf16.mxu0 0
  %7111 = vmatpush1.bf16.msra.mxu0 %v5293
  %7112 = vmatprep.subr.bf16.mxu0 0
  %7113 = vmatpush1.bf16.msra.mxu0 %v5294
  %7114 = vmatprep.subr.bf16.mxu0 0
  %7115 = vmatpush1.bf16.msra.mxu0 %v5295
  %7116 = vmatprep.subr.bf16.mxu0 0
  %7117 = vmatpush1.bf16.msra.mxu0 %v5296
  %7118 = vmatprep.subr.bf16.mxu0 0
  %7119 = vmatpush1.bf16.msra.mxu0 %v5297
  %7120 = vmatprep.subr.bf16.mxu0 0
  %7121 = vmatpush1.bf16.msra.mxu0 %v5298
  %7122 = vmatprep.subr.bf16.mxu0 0
  %7123 = vmatpush1.bf16.msra.mxu0 %v5299
  %7124 = vmatprep.mubr.bf16.mxu0 %v1813
  %7125 = vmatmul.mubr.bf16.gmra.mrb[0].mxu0 %v1812
  %v7126 = vpop.f32.mrb[0].mxu0
  %v7127 = vadd.f32 %v7087, %v7126
  %v7128 = vpop.f32.mrb[0].mxu0
  %v7129 = vpop.f32.mrb[0].mxu0
  %v7130 = vpop.f32.mrb[0].mxu0
  %7131 = vdwg.mxu0
  %7132 = vmatprep.subr.bf16.mxu0 0
  %7133 = vmatpush1.bf16.msra.mxu0 %v5300
  %7134 = vmatprep.subr.bf16.mxu0 0
  %7135 = vmatpush1.bf16.msra.mxu0 %v5301
  %7136 = vmatprep.subr.bf16.mxu0 0
  %7137 = vmatpush1.bf16.msra.mxu0 %v5302
  %7138 = vmatprep.subr.bf16.mxu0 0
  %7139 = vmatpush1.bf16.msra.mxu0 %v5303
  %7140 = vmatprep.subr.bf16.mxu0 0
  %7141 = vmatpush1.bf16.msra.mxu0 %v5304
  %7142 = vmatprep.subr.bf16.mxu0 0
  %7143 = vmatpush1.bf16.msra.mxu0 %v5305
  %7144 = vmatprep.subr.bf16.mxu0 0
  %7145 = vmatpush1.bf16.msra.mxu0 %v5306
  %7146 = vmatprep.subr.bf16.mxu0 0
  %7147 = vmatpush1.bf16.msra.mxu0 %v5307
  %7148 = vmatprep.subr.bf16.mxu0 0
  %7149 = vmatpush1.bf16.msra.mxu0 %v5308
  %7150 = vmatprep.subr.bf16.mxu0 0
  %7151 = vmatpush1.bf16.msra.mxu0 %v5309
  %7152 = vmatprep.subr.bf16.mxu0 0
  %7153 = vmatpush1.bf16.msra.mxu0 %v5310
  %7154 = vmatprep.subr.bf16.mxu0 0
  %7155 = vmatpush1.bf16.msra.mxu0 %v5311
  %7156 = vmatprep.subr.bf16.mxu0 0
  %7157 = vmatpush1.bf16.msra.mxu0 %v5312
  %7158 = vmatprep.subr.bf16.mxu0 0
  %7159 = vmatpush1.bf16.msra.mxu0 %v5313
  %7160 = vmatprep.subr.bf16.mxu0 0
  %7161 = vmatpush1.bf16.msra.mxu0 %v5314
  %7162 = vmatprep.subr.bf16.mxu0 0
  %7163 = vmatpush1.bf16.msra.mxu0 %v5315
  %7164 = vmatprep.mubr.bf16.mxu0 %v1815
  %7165 = vmatmul.mubr.bf16.gmra.mrb[0].mxu0 %v1814
  %v7166 = vpop.f32.mrb[0].mxu0
  %v7167 = vadd.f32 %v7127, %v7166
  %v7168 = vpop.f32.mrb[0].mxu0
  %v7169 = vpop.f32.mrb[0].mxu0
  %v7170 = vpop.f32.mrb[0].mxu0
  %7171 = vdwg.mxu0
  %7172 = vmatprep.subr.bf16.mxu0 0
  %7173 = vmatpush1.bf16.msra.mxu0 %v5316
  %7174 = vmatprep.subr.bf16.mxu0 0
  %7175 = vmatpush1.bf16.msra.mxu0 %v5317
  %7176 = vmatprep.subr.bf16.mxu0 0
  %7177 = vmatpush1.bf16.msra.mxu0 %v5318
  %7178 = vmatprep.subr.bf16.mxu0 0
  %7179 = vmatpush1.bf16.msra.mxu0 %v5319
  %7180 = vmatprep.subr.bf16.mxu0 0
  %7181 = vmatpush1.bf16.msra.mxu0 %v5320
  %7182 = vmatprep.subr.bf16.mxu0 0
  %7183 = vmatpush1.bf16.msra.mxu0 %v5321
  %7184 = vmatprep.subr.bf16.mxu0 0
  %7185 = vmatpush1.bf16.msra.mxu0 %v5322
  %7186 = vmatprep.subr.bf16.mxu0 0
  %7187 = vmatpush1.bf16.msra.mxu0 %v5323
  %7188 = vmatprep.subr.bf16.mxu0 0
  %7189 = vmatpush1.bf16.msra.mxu0 %v5324
  %7190 = vmatprep.subr.bf16.mxu0 0
  %7191 = vmatpush1.bf16.msra.mxu0 %v5325
  %7192 = vmatprep.subr.bf16.mxu0 0
  %7193 = vmatpush1.bf16.msra.mxu0 %v5326
  %7194 = vmatprep.subr.bf16.mxu0 0
  %7195 = vmatpush1.bf16.msra.mxu0 %v5327
  %7196 = vmatprep.subr.bf16.mxu0 0
  %7197 = vmatpush1.bf16.msra.mxu0 %v5328
  %7198 = vmatprep.subr.bf16.mxu0 0
  %7199 = vmatpush1.bf16.msra.mxu0 %v5329
  %7200 = vmatprep.subr.bf16.mxu0 0
  %7201 = vmatpush1.bf16.msra.mxu0 %v5330
  %7202 = vmatprep.subr.bf16.mxu0 0
  %7203 = vmatpush1.bf16.msra.mxu0 %v5331
  %7204 = vmatprep.mubr.bf16.mxu0 %v1817
  %7205 = vmatmul.mubr.bf16.gmra.mrb[0].mxu0 %v1816
  %v7206 = vpop.f32.mrb[0].mxu0
  %v7207 = vadd.f32 %v7167, %v7206
  %v7208 = vpop.f32.mrb[0].mxu0
  %v7209 = vpop.f32.mrb[0].mxu0
  %v7210 = vpop.f32.mrb[0].mxu0
  %7211 = vdwg.mxu0
  %7212 = vmatprep.subr.bf16.mxu0 0
  %7213 = vmatpush1.bf16.msra.mxu0 %v5332
  %7214 = vmatprep.subr.bf16.mxu0 0
  %7215 = vmatpush1.bf16.msra.mxu0 %v5333
  %7216 = vmatprep.subr.bf16.mxu0 0
  %7217 = vmatpush1.bf16.msra.mxu0 %v5334
  %7218 = vmatprep.subr.bf16.mxu0 0
  %7219 = vmatpush1.bf16.msra.mxu0 %v5335
  %7220 = vmatprep.subr.bf16.mxu0 0
  %7221 = vmatpush1.bf16.msra.mxu0 %v5336
  %7222 = vmatprep.subr.bf16.mxu0 0
  %7223 = vmatpush1.bf16.msra.mxu0 %v5337
  %7224 = vmatprep.subr.bf16.mxu0 0
  %7225 = vmatpush1.bf16.msra.mxu0 %v5338
  %7226 = vmatprep.subr.bf16.mxu0 0
  %7227 = vmatpush1.bf16.msra.mxu0 %v5339
  %7228 = vmatprep.subr.bf16.mxu0 0
  %7229 = vmatpush1.bf16.msra.mxu0 %v5340
  %7230 = vmatprep.subr.bf16.mxu0 0
  %7231 = vmatpush1.bf16.msra.mxu0 %v5341
  %7232 = vmatprep.subr.bf16.mxu0 0
  %7233 = vmatpush1.bf16.msra.mxu0 %v5342
  %7234 = vmatprep.subr.bf16.mxu0 0
  %7235 = vmatpush1.bf16.msra.mxu0 %v5343
  %7236 = vmatprep.subr.bf16.mxu0 0
  %7237 = vmatpush1.bf16.msra.mxu0 %v5344
  %7238 = vmatprep.subr.bf16.mxu0 0
  %7239 = vmatpush1.bf16.msra.mxu0 %v5345
  %7240 = vmatprep.subr.bf16.mxu0 0
  %7241 = vmatpush1.bf16.msra.mxu0 %v5346
  %7242 = vmatprep.subr.bf16.mxu0 0
  %7243 = vmatpush1.bf16.msra.mxu0 %v5347
  %7244 = vmatprep.mubr.bf16.mxu0 %v1819
  %7245 = vmatmul.mubr.bf16.gmra.mrb[0].mxu0 %v1818
  %v7246 = vpop.f32.mrb[0].mxu0
  %v7247 = vadd.f32 %v7207, %v7246
  %v7248 = vpop.f32.mrb[0].mxu0
  %v7249 = vpop.f32.mrb[0].mxu0
  %v7250 = vpop.f32.mrb[0].mxu0
  %7251 = vdwg.mxu0
  %7252 = vmatprep.subr.bf16.mxu0 0
  %7253 = vmatpush1.bf16.msra.mxu0 %v5348
  %7254 = vmatprep.subr.bf16.mxu0 0
  %7255 = vmatpush1.bf16.msra.mxu0 %v5349
  %7256 = vmatprep.subr.bf16.mxu0 0
  %7257 = vmatpush1.bf16.msra.mxu0 %v5350
  %7258 = vmatprep.subr.bf16.mxu0 0
  %7259 = vmatpush1.bf16.msra.mxu0 %v5351
  %7260 = vmatprep.subr.bf16.mxu0 0
  %7261 = vmatpush1.bf16.msra.mxu0 %v5352
  %7262 = vmatprep.subr.bf16.mxu0 0
  %7263 = vmatpush1.bf16.msra.mxu0 %v5353
  %7264 = vmatprep.subr.bf16.mxu0 0
  %7265 = vmatpush1.bf16.msra.mxu0 %v5354
  %7266 = vmatprep.subr.bf16.mxu0 0
  %7267 = vmatpush1.bf16.msra.mxu0 %v5355
  %7268 = vmatprep.subr.bf16.mxu0 0
  %7269 = vmatpush1.bf16.msra.mxu0 %v5356
  %7270 = vmatprep.subr.bf16.mxu0 0
  %7271 = vmatpush1.bf16.msra.mxu0 %v5357
  %7272 = vmatprep.subr.bf16.mxu0 0
  %7273 = vmatpush1.bf16.msra.mxu0 %v5358
  %7274 = vmatprep.subr.bf16.mxu0 0
  %7275 = vmatpush1.bf16.msra.mxu0 %v5359
  %7276 = vmatprep.subr.bf16.mxu0 0
  %7277 = vmatpush1.bf16.msra.mxu0 %v5360
  %7278 = vmatprep.subr.bf16.mxu0 0
  %7279 = vmatpush1.bf16.msra.mxu0 %v5361
  %7280 = vmatprep.subr.bf16.mxu0 0
  %7281 = vmatpush1.bf16.msra.mxu0 %v5362
  %7282 = vmatprep.subr.bf16.mxu0 0
  %7283 = vmatpush1.bf16.msra.mxu0 %v5363
  %7284 = vmatprep.mubr.bf16.mxu0 %v1821
  %7285 = vmatmul.mubr.bf16.gmra.mrb[0].mxu0 %v1820
  %v7286 = vpop.f32.mrb[0].mxu0
  %v7287 = vadd.f32 %v7247, %v7286
  %v7288 = vpop.f32.mrb[0].mxu0
  %v7289 = vpop.f32.mrb[0].mxu0
  %v7290 = vpop.f32.mrb[0].mxu0
  %7291 = vdwg.mxu0
  %7292 = vmatprep.subr.bf16.mxu0 0
  %7293 = vmatpush1.bf16.msra.mxu0 %v5364
  %7294 = vmatprep.subr.bf16.mxu0 0
  %7295 = vmatpush1.bf16.msra.mxu0 %v5365
  %7296 = vmatprep.subr.bf16.mxu0 0
  %7297 = vmatpush1.bf16.msra.mxu0 %v5366
  %7298 = vmatprep.subr.bf16.mxu0 0
  %7299 = vmatpush1.bf16.msra.mxu0 %v5367
  %7300 = vmatprep.subr.bf16.mxu0 0
  %7301 = vmatpush1.bf16.msra.mxu0 %v5368
  %7302 = vmatprep.subr.bf16.mxu0 0
  %7303 = vmatpush1.bf16.msra.mxu0 %v5369
  %7304 = vmatprep.subr.bf16.mxu0 0
  %7305 = vmatpush1.bf16.msra.mxu0 %v5370
  %7306 = vmatprep.subr.bf16.mxu0 0
  %7307 = vmatpush1.bf16.msra.mxu0 %v5371
  %7308 = vmatprep.subr.bf16.mxu0 0
  %7309 = vmatpush1.bf16.msra.mxu0 %v5372
  %7310 = vmatprep.subr.bf16.mxu0 0
  %7311 = vmatpush1.bf16.msra.mxu0 %v5373
  %7312 = vmatprep.subr.bf16.mxu0 0
  %7313 = vmatpush1.bf16.msra.mxu0 %v5374
  %7314 = vmatprep.subr.bf16.mxu0 0
  %7315 = vmatpush1.bf16.msra.mxu0 %v5375
  %7316 = vmatprep.subr.bf16.mxu0 0
  %7317 = vmatpush1.bf16.msra.mxu0 %v5376
  %7318 = vmatprep.subr.bf16.mxu0 0
  %7319 = vmatpush1.bf16.msra.mxu0 %v5377
  %7320 = vmatprep.subr.bf16.mxu0 0
  %7321 = vmatpush1.bf16.msra.mxu0 %v5378
  %7322 = vmatprep.subr.bf16.mxu0 0
  %7323 = vmatpush1.bf16.msra.mxu0 %v5379
  %7324 = vmatprep.mubr.bf16.mxu0 %v1823
  %7325 = vmatmul.mubr.bf16.gmra.mrb[0].mxu0 %v1822
  %v7326 = vpop.f32.mrb[0].mxu0
  %v7327 = vadd.f32 %v7287, %v7326
  %v7328 = vpop.f32.mrb[0].mxu0
  %v7329 = vpop.f32.mrb[0].mxu0
  %v7330 = vpop.f32.mrb[0].mxu0
  %7331 = vdwg.mxu0
  %7332 = vmatprep.subr.bf16.mxu0 0
  %7333 = vmatpush1.bf16.msra.mxu0 %v5380
  %7334 = vmatprep.subr.bf16.mxu0 0
  %7335 = vmatpush1.bf16.msra.mxu0 %v5381
  %7336 = vmatprep.subr.bf16.mxu0 0
  %7337 = vmatpush1.bf16.msra.mxu0 %v5382
  %7338 = vmatprep.subr.bf16.mxu0 0
  %7339 = vmatpush1.bf16.msra.mxu0 %v5383
  %7340 = vmatprep.subr.bf16.mxu0 0
  %7341 = vmatpush1.bf16.msra.mxu0 %v5384
  %7342 = vmatprep.subr.bf16.mxu0 0
  %7343 = vmatpush1.bf16.msra.mxu0 %v5385
  %7344 = vmatprep.subr.bf16.mxu0 0
  %7345 = vmatpush1.bf16.msra.mxu0 %v5386
  %7346 = vmatprep.subr.bf16.mxu0 0
  %7347 = vmatpush1.bf16.msra.mxu0 %v5387
  %7348 = vmatprep.subr.bf16.mxu0 0
  %7349 = vmatpush1.bf16.msra.mxu0 %v5388
  %7350 = vmatprep.subr.bf16.mxu0 0
  %7351 = vmatpush1.bf16.msra.mxu0 %v5389
  %7352 = vmatprep.subr.bf16.mxu0 0
  %7353 = vmatpush1.bf16.msra.mxu0 %v5390
  %7354 = vmatprep.subr.bf16.mxu0 0
  %7355 = vmatpush1.bf16.msra.mxu0 %v5391
  %7356 = vmatprep.subr.bf16.mxu0 0
  %7357 = vmatpush1.bf16.msra.mxu0 %v5392
  %7358 = vmatprep.subr.bf16.mxu0 0
  %7359 = vmatpush1.bf16.msra.mxu0 %v5393
  %7360 = vmatprep.subr.bf16.mxu0 0
  %7361 = vmatpush1.bf16.msra.mxu0 %v5394
  %7362 = vmatprep.subr.bf16.mxu0 0
  %7363 = vmatpush1.bf16.msra.mxu0 %v5395
  %7364 = vmatprep.mubr.bf16.mxu0 %v1825
  %7365 = vmatmul.mubr.bf16.gmra.mrb[0].mxu0 %v1824
  %v7366 = vpop.f32.mrb[0].mxu0
  %v7367 = vadd.f32 %v7327, %v7366
  %v7368 = vpop.f32.mrb[0].mxu0
  %v7369 = vpop.f32.mrb[0].mxu0
  %v7370 = vpop.f32.mrb[0].mxu0
  %7371 = vdwg.mxu0
  %7372 = vmatprep.subr.bf16.mxu0 0
  %7373 = vmatpush1.bf16.msra.mxu0 %v5396
  %7374 = vmatprep.subr.bf16.mxu0 0
  %7375 = vmatpush1.bf16.msra.mxu0 %v5397
  %7376 = vmatprep.subr.bf16.mxu0 0
  %7377 = vmatpush1.bf16.msra.mxu0 %v5398
  %7378 = vmatprep.subr.bf16.mxu0 0
  %7379 = vmatpush1.bf16.msra.mxu0 %v5399
  %7380 = vmatprep.subr.bf16.mxu0 0
  %7381 = vmatpush1.bf16.msra.mxu0 %v5400
  %7382 = vmatprep.subr.bf16.mxu0 0
  %7383 = vmatpush1.bf16.msra.mxu0 %v5401
  %7384 = vmatprep.subr.bf16.mxu0 0
  %7385 = vmatpush1.bf16.msra.mxu0 %v5402
  %7386 = vmatprep.subr.bf16.mxu0 0
  %7387 = vmatpush1.bf16.msra.mxu0 %v5403
  %7388 = vmatprep.subr.bf16.mxu0 0
  %7389 = vmatpush1.bf16.msra.mxu0 %v5404
  %7390 = vmatprep.subr.bf16.mxu0 0
  %7391 = vmatpush1.bf16.msra.mxu0 %v5405
  %7392 = vmatprep.subr.bf16.mxu0 0
  %7393 = vmatpush1.bf16.msra.mxu0 %v5406
  %7394 = vmatprep.subr.bf16.mxu0 0
  %7395 = vmatpush1.bf16.msra.mxu0 %v5407
  %7396 = vmatprep.subr.bf16.mxu0 0
  %7397 = vmatpush1.bf16.msra.mxu0 %v5408
  %7398 = vmatprep.subr.bf16.mxu0 0
  %7399 = vmatpush1.bf16.msra.mxu0 %v5409
  %7400 = vmatprep.subr.bf16.mxu0 0
  %7401 = vmatpush1.bf16.msra.mxu0 %v5410
  %7402 = vmatprep.subr.bf16.mxu0 0
  %7403 = vmatpush1.bf16.msra.mxu0 %v5411
  %7404 = vmatprep.mubr.bf16.mxu0 %v1827
  %7405 = vmatmul.mubr.bf16.gmra.mrb[0].mxu0 %v1826
  %v7406 = vpop.f32.mrb[0].mxu0
  %v7407 = vadd.f32 %v7367, %v7406
  %v7408 = vpop.f32.mrb[0].mxu0
  %v7409 = vpop.f32.mrb[0].mxu0
  %v7410 = vpop.f32.mrb[0].mxu0
  %7411 = vdwg.mxu0
  %7412 = vmatprep.subr.bf16.mxu0 0
  %7413 = vmatpush1.bf16.msra.mxu0 %v5412
  %7414 = vmatprep.subr.bf16.mxu0 0
  %7415 = vmatpush1.bf16.msra.mxu0 %v5413
  %7416 = vmatprep.subr.bf16.mxu0 0
  %7417 = vmatpush1.bf16.msra.mxu0 %v5414
  %7418 = vmatprep.subr.bf16.mxu0 0
  %7419 = vmatpush1.bf16.msra.mxu0 %v5415
  %7420 = vmatprep.subr.bf16.mxu0 0
  %7421 = vmatpush1.bf16.msra.mxu0 %v5416
  %7422 = vmatprep.subr.bf16.mxu0 0
  %7423 = vmatpush1.bf16.msra.mxu0 %v5417
  %7424 = vmatprep.subr.bf16.mxu0 0
  %7425 = vmatpush1.bf16.msra.mxu0 %v5418
  %7426 = vmatprep.subr.bf16.mxu0 0
  %7427 = vmatpush1.bf16.msra.mxu0 %v5419
  %7428 = vmatprep.subr.bf16.mxu0 0
  %7429 = vmatpush1.bf16.msra.mxu0 %v5420
  %7430 = vmatprep.subr.bf16.mxu0 0
  %7431 = vmatpush1.bf16.msra.mxu0 %v5421
  %7432 = vmatprep.subr.bf16.mxu0 0
  %7433 = vmatpush1.bf16.msra.mxu0 %v5422
  %7434 = vmatprep.subr.bf16.mxu0 0
  %7435 = vmatpush1.bf16.msra.mxu0 %v5423
  %7436 = vmatprep.subr.bf16.mxu0 0
  %7437 = vmatpush1.bf16.msra.mxu0 %v5424
  %7438 = vmatprep.subr.bf16.mxu0 0
  %7439 = vmatpush1.bf16.msra.mxu0 %v5425
  %7440 = vmatprep.subr.bf16.mxu0 0
  %7441 = vmatpush1.bf16.msra.mxu0 %v5426
  %7442 = vmatprep.subr.bf16.mxu0 0
  %7443 = vmatpush1.bf16.msra.mxu0 %v5427
  %7444 = vmatprep.mubr.bf16.mxu0 %v1829
  %7445 = vmatmul.mubr.bf16.gmra.mrb[0].mxu0 %v1828
  %v7446 = vpop.f32.mrb[0].mxu0
  %v7447 = vadd.f32 %v7407, %v7446
  %v7448 = vpop.f32.mrb[0].mxu0
  %v7449 = vpop.f32.mrb[0].mxu0
  %v7450 = vpop.f32.mrb[0].mxu0
  %7451 = vdwg.mxu0
  %7452 = vmatprep.subr.bf16.mxu0 0
  %7453 = vmatpush1.bf16.msra.mxu0 %v5428
  %7454 = vmatprep.subr.bf16.mxu0 0
  %7455 = vmatpush1.bf16.msra.mxu0 %v5429
  %7456 = vmatprep.subr.bf16.mxu0 0
  %7457 = vmatpush1.bf16.msra.mxu0 %v5430
  %7458 = vmatprep.subr.bf16.mxu0 0
  %7459 = vmatpush1.bf16.msra.mxu0 %v5431
  %7460 = vmatprep.subr.bf16.mxu0 0
  %7461 = vmatpush1.bf16.msra.mxu0 %v5432
  %7462 = vmatprep.subr.bf16.mxu0 0
  %7463 = vmatpush1.bf16.msra.mxu0 %v5433
  %7464 = vmatprep.subr.bf16.mxu0 0
  %7465 = vmatpush1.bf16.msra.mxu0 %v5434
  %7466 = vmatprep.subr.bf16.mxu0 0
  %7467 = vmatpush1.bf16.msra.mxu0 %v5435
  %7468 = vmatprep.subr.bf16.mxu0 0
  %7469 = vmatpush1.bf16.msra.mxu0 %v5436
  %7470 = vmatprep.subr.bf16.mxu0 0
  %7471 = vmatpush1.bf16.msra.mxu0 %v5437
  %7472 = vmatprep.subr.bf16.mxu0 0
  %7473 = vmatpush1.bf16.msra.mxu0 %v5438
  %7474 = vmatprep.subr.bf16.mxu0 0
  %7475 = vmatpush1.bf16.msra.mxu0 %v5439
  %7476 = vmatprep.subr.bf16.mxu0 0
  %7477 = vmatpush1.bf16.msra.mxu0 %v5440
  %7478 = vmatprep.subr.bf16.mxu0 0
  %7479 = vmatpush1.bf16.msra.mxu0 %v5441
  %7480 = vmatprep.subr.bf16.mxu0 0
  %7481 = vmatpush1.bf16.msra.mxu0 %v5442
  %7482 = vmatprep.subr.bf16.mxu0 0
  %7483 = vmatpush1.bf16.msra.mxu0 %v5443
  %7484 = vmatprep.mubr.bf16.mxu0 %v1831
  %7485 = vmatmul.mubr.bf16.gmra.mrb[0].mxu0 %v1830
  %v7486 = vpop.f32.mrb[0].mxu0
  %v7487 = vadd.f32 %v7447, %v7486
  %v7488 = vpop.f32.mrb[0].mxu0
  %v7489 = vpop.f32.mrb[0].mxu0
  %v7490 = vpop.f32.mrb[0].mxu0
  %7491 = vdwg.mxu0
  %7492 = vmatprep.subr.bf16.mxu0 0
  %7493 = vmatpush1.bf16.msra.mxu0 %v5444
  %7494 = vmatprep.subr.bf16.mxu0 0
  %7495 = vmatpush1.bf16.msra.mxu0 %v5445
  %7496 = vmatprep.subr.bf16.mxu0 0
  %7497 = vmatpush1.bf16.msra.mxu0 %v5446
  %7498 = vmatprep.subr.bf16.mxu0 0
  %7499 = vmatpush1.bf16.msra.mxu0 %v5447
  %7500 = vmatprep.subr.bf16.mxu0 0
  %7501 = vmatpush1.bf16.msra.mxu0 %v5448
  %7502 = vmatprep.subr.bf16.mxu0 0
  %7503 = vmatpush1.bf16.msra.mxu0 %v5449
  %7504 = vmatprep.subr.bf16.mxu0 0
  %7505 = vmatpush1.bf16.msra.mxu0 %v5450
  %7506 = vmatprep.subr.bf16.mxu0 0
  %7507 = vmatpush1.bf16.msra.mxu0 %v5451
  %7508 = vmatprep.subr.bf16.mxu0 0
  %7509 = vmatpush1.bf16.msra.mxu0 %v5452
  %7510 = vmatprep.subr.bf16.mxu0 0
  %7511 = vmatpush1.bf16.msra.mxu0 %v5453
  %7512 = vmatprep.subr.bf16.mxu0 0
  %7513 = vmatpush1.bf16.msra.mxu0 %v5454
  %7514 = vmatprep.subr.bf16.mxu0 0
  %7515 = vmatpush1.bf16.msra.mxu0 %v5455
  %7516 = vmatprep.subr.bf16.mxu0 0
  %7517 = vmatpush1.bf16.msra.mxu0 %v5456
  %7518 = vmatprep.subr.bf16.mxu0 0
  %7519 = vmatpush1.bf16.msra.mxu0 %v5457
  %7520 = vmatprep.subr.bf16.mxu0 0
  %7521 = vmatpush1.bf16.msra.mxu0 %v5458
  %7522 = vmatprep.subr.bf16.mxu0 0
  %7523 = vmatpush1.bf16.msra.mxu0 %v5459
  %7524 = vmatprep.mubr.bf16.mxu0 %v1833
  %7525 = vmatmul.mubr.bf16.gmra.mrb[0].mxu0 %v1832
  %v7526 = vpop.f32.mrb[0].mxu0
  %v7527 = vadd.f32 %v7487, %v7526
  %v7528 = vpop.f32.mrb[0].mxu0
  %v7529 = vpop.f32.mrb[0].mxu0
  %v7530 = vpop.f32.mrb[0].mxu0
  %7531 = vdwg.mxu0
  %7532 = vmatprep.subr.bf16.mxu0 0
  %7533 = vmatpush1.bf16.msra.mxu0 %v5460
  %7534 = vmatprep.subr.bf16.mxu0 0
  %7535 = vmatpush1.bf16.msra.mxu0 %v5461
  %7536 = vmatprep.subr.bf16.mxu0 0
  %7537 = vmatpush1.bf16.msra.mxu0 %v5462
  %7538 = vmatprep.subr.bf16.mxu0 0
  %7539 = vmatpush1.bf16.msra.mxu0 %v5463
  %7540 = vmatprep.subr.bf16.mxu0 0
  %7541 = vmatpush1.bf16.msra.mxu0 %v5464
  %7542 = vmatprep.subr.bf16.mxu0 0
  %7543 = vmatpush1.bf16.msra.mxu0 %v5465
  %7544 = vmatprep.subr.bf16.mxu0 0
  %7545 = vmatpush1.bf16.msra.mxu0 %v5466
  %7546 = vmatprep.subr.bf16.mxu0 0
  %7547 = vmatpush1.bf16.msra.mxu0 %v5467
  %7548 = vmatprep.subr.bf16.mxu0 0
  %7549 = vmatpush1.bf16.msra.mxu0 %v5468
  %7550 = vmatprep.subr.bf16.mxu0 0
  %7551 = vmatpush1.bf16.msra.mxu0 %v5469
  %7552 = vmatprep.subr.bf16.mxu0 0
  %7553 = vmatpush1.bf16.msra.mxu0 %v5470
  %7554 = vmatprep.subr.bf16.mxu0 0
  %7555 = vmatpush1.bf16.msra.mxu0 %v5471
  %7556 = vmatprep.subr.bf16.mxu0 0
  %7557 = vmatpush1.bf16.msra.mxu0 %v5472
  %7558 = vmatprep.subr.bf16.mxu0 0
  %7559 = vmatpush1.bf16.msra.mxu0 %v5473
  %7560 = vmatprep.subr.bf16.mxu0 0
  %7561 = vmatpush1.bf16.msra.mxu0 %v5474
  %7562 = vmatprep.subr.bf16.mxu0 0
  %7563 = vmatpush1.bf16.msra.mxu0 %v5475
  %7564 = vmatprep.mubr.bf16.mxu0 %v1835
  %7565 = vmatmul.mubr.bf16.gmra.mrb[0].mxu0 %v1834
  %v7566 = vpop.f32.mrb[0].mxu0
  %v7567 = vadd.f32 %v7527, %v7566
  %v7568 = vpop.f32.mrb[0].mxu0
  %v7569 = vpop.f32.mrb[0].mxu0
  %v7570 = vpop.f32.mrb[0].mxu0
  %7571 = vdwg.mxu0
  %7572 = vmatprep.subr.bf16.mxu0 0
  %7573 = vmatpush1.bf16.msra.mxu0 %v5476
  %7574 = vmatprep.subr.bf16.mxu0 0
  %7575 = vmatpush1.bf16.msra.mxu0 %v5477
  %7576 = vmatprep.subr.bf16.mxu0 0
  %7577 = vmatpush1.bf16.msra.mxu0 %v5478
  %7578 = vmatprep.subr.bf16.mxu0 0
  %7579 = vmatpush1.bf16.msra.mxu0 %v5479
  %7580 = vmatprep.subr.bf16.mxu0 0
  %7581 = vmatpush1.bf16.msra.mxu0 %v5480
  %7582 = vmatprep.subr.bf16.mxu0 0
  %7583 = vmatpush1.bf16.msra.mxu0 %v5481
  %7584 = vmatprep.subr.bf16.mxu0 0
  %7585 = vmatpush1.bf16.msra.mxu0 %v5482
  %7586 = vmatprep.subr.bf16.mxu0 0
  %7587 = vmatpush1.bf16.msra.mxu0 %v5483
  %7588 = vmatprep.subr.bf16.mxu0 0
  %7589 = vmatpush1.bf16.msra.mxu0 %v5484
  %7590 = vmatprep.subr.bf16.mxu0 0
  %7591 = vmatpush1.bf16.msra.mxu0 %v5485
  %7592 = vmatprep.subr.bf16.mxu0 0
  %7593 = vmatpush1.bf16.msra.mxu0 %v5486
  %7594 = vmatprep.subr.bf16.mxu0 0
  %7595 = vmatpush1.bf16.msra.mxu0 %v5487
  %7596 = vmatprep.subr.bf16.mxu0 0
  %7597 = vmatpush1.bf16.msra.mxu0 %v5488
  %7598 = vmatprep.subr.bf16.mxu0 0
  %7599 = vmatpush1.bf16.msra.mxu0 %v5489
  %7600 = vmatprep.subr.bf16.mxu0 0
  %7601 = vmatpush1.bf16.msra.mxu0 %v5490
  %7602 = vmatprep.subr.bf16.mxu0 0
  %7603 = vmatpush1.bf16.msra.mxu0 %v5491
  %7604 = vmatprep.mubr.bf16.mxu0 %v1837
  %7605 = vmatmul.mubr.bf16.gmra.mrb[0].mxu0 %v1836
  %v7606 = vpop.f32.mrb[0].mxu0
  %v7607 = vadd.f32 %v7567, %v7606
  %v7608 = vpop.f32.mrb[0].mxu0
  %v7609 = vpop.f32.mrb[0].mxu0
  %v7610 = vpop.f32.mrb[0].mxu0
  %7611 = vdwg.mxu0
  %7612 = vmatprep.subr.bf16.mxu0 0
  %7613 = vmatpush1.bf16.msra.mxu0 %v5492
  %7614 = vmatprep.subr.bf16.mxu0 0
  %7615 = vmatpush1.bf16.msra.mxu0 %v5493
  %7616 = vmatprep.subr.bf16.mxu0 0
  %7617 = vmatpush1.bf16.msra.mxu0 %v5494
  %7618 = vmatprep.subr.bf16.mxu0 0
  %7619 = vmatpush1.bf16.msra.mxu0 %v5495
  %7620 = vmatprep.subr.bf16.mxu0 0
  %7621 = vmatpush1.bf16.msra.mxu0 %v5496
  %7622 = vmatprep.subr.bf16.mxu0 0
  %7623 = vmatpush1.bf16.msra.mxu0 %v5497
  %7624 = vmatprep.subr.bf16.mxu0 0
  %7625 = vmatpush1.bf16.msra.mxu0 %v5498
  %7626 = vmatprep.subr.bf16.mxu0 0
  %7627 = vmatpush1.bf16.msra.mxu0 %v5499
  %7628 = vmatprep.subr.bf16.mxu0 0
  %7629 = vmatpush1.bf16.msra.mxu0 %v5500
  %7630 = vmatprep.subr.bf16.mxu0 0
  %7631 = vmatpush1.bf16.msra.mxu0 %v5501
  %7632 = vmatprep.subr.bf16.mxu0 0
  %7633 = vmatpush1.bf16.msra.mxu0 %v5502
  %7634 = vmatprep.subr.bf16.mxu0 0
  %7635 = vmatpush1.bf16.msra.mxu0 %v5503
  %7636 = vmatprep.subr.bf16.mxu0 0
  %7637 = vmatpush1.bf16.msra.mxu0 %v5504
  %7638 = vmatprep.subr.bf16.mxu0 0
  %7639 = vmatpush1.bf16.msra.mxu0 %v5505
  %7640 = vmatprep.subr.bf16.mxu0 0
  %7641 = vmatpush1.bf16.msra.mxu0 %v5506
  %7642 = vmatprep.subr.bf16.mxu0 0
  %7643 = vmatpush1.bf16.msra.mxu0 %v5507
  %7644 = vmatprep.mubr.bf16.mxu0 %v1839
  %7645 = vmatmul.mubr.bf16.gmra.mrb[0].mxu0 %v1838
  %v7646 = vpop.f32.mrb[0].mxu0
  %v7647 = vadd.f32 %v7607, %v7646
  %v7648 = vpop.f32.mrb[0].mxu0
  %v7649 = vpop.f32.mrb[0].mxu0
  %v7650 = vpop.f32.mrb[0].mxu0
  %7651 = vdwg.mxu0
  %7652 = vmatprep.subr.bf16.mxu0 0
  %7653 = vmatpush1.bf16.msra.mxu0 %v5508
  %7654 = vmatprep.subr.bf16.mxu0 0
  %7655 = vmatpush1.bf16.msra.mxu0 %v5509
  %7656 = vmatprep.subr.bf16.mxu0 0
  %7657 = vmatpush1.bf16.msra.mxu0 %v5510
  %7658 = vmatprep.subr.bf16.mxu0 0
  %7659 = vmatpush1.bf16.msra.mxu0 %v5511
  %7660 = vmatprep.subr.bf16.mxu0 0
  %7661 = vmatpush1.bf16.msra.mxu0 %v5512
  %7662 = vmatprep.subr.bf16.mxu0 0
  %7663 = vmatpush1.bf16.msra.mxu0 %v5513
  %7664 = vmatprep.subr.bf16.mxu0 0
  %7665 = vmatpush1.bf16.msra.mxu0 %v5514
  %7666 = vmatprep.subr.bf16.mxu0 0
  %7667 = vmatpush1.bf16.msra.mxu0 %v5515
  %7668 = vmatprep.subr.bf16.mxu0 0
  %7669 = vmatpush1.bf16.msra.mxu0 %v5516
  %7670 = vmatprep.subr.bf16.mxu0 0
  %7671 = vmatpush1.bf16.msra.mxu0 %v5517
  %7672 = vmatprep.subr.bf16.mxu0 0
  %7673 = vmatpush1.bf16.msra.mxu0 %v5518
  %7674 = vmatprep.subr.bf16.mxu0 0
  %7675 = vmatpush1.bf16.msra.mxu0 %v5519
  %7676 = vmatprep.subr.bf16.mxu0 0
  %7677 = vmatpush1.bf16.msra.mxu0 %v5520
  %7678 = vmatprep.subr.bf16.mxu0 0
  %7679 = vmatpush1.bf16.msra.mxu0 %v5521
  %7680 = vmatprep.subr.bf16.mxu0 0
  %7681 = vmatpush1.bf16.msra.mxu0 %v5522
  %7682 = vmatprep.subr.bf16.mxu0 0
  %7683 = vmatpush1.bf16.msra.mxu0 %v5523
  %7684 = vmatprep.mubr.bf16.mxu0 %v1841
  %7685 = vmatmul.mubr.bf16.gmra.mrb[0].mxu0 %v1840
  %v7686 = vpop.f32.mrb[0].mxu0
  %v7687 = vadd.f32 %v7647, %v7686
  %v7688 = vpop.f32.mrb[0].mxu0
  %v7689 = vpop.f32.mrb[0].mxu0
  %v7690 = vpop.f32.mrb[0].mxu0
  %7691 = vdwg.mxu0
  %7692 = vmatprep.subr.bf16.mxu0 0
  %7693 = vmatpush1.bf16.msra.mxu0 %v5524
  %7694 = vmatprep.subr.bf16.mxu0 0
  %7695 = vmatpush1.bf16.msra.mxu0 %v5525
  %7696 = vmatprep.subr.bf16.mxu0 0
  %7697 = vmatpush1.bf16.msra.mxu0 %v5526
  %7698 = vmatprep.subr.bf16.mxu0 0
  %7699 = vmatpush1.bf16.msra.mxu0 %v5527
  %7700 = vmatprep.subr.bf16.mxu0 0
  %7701 = vmatpush1.bf16.msra.mxu0 %v5528
  %7702 = vmatprep.subr.bf16.mxu0 0
  %7703 = vmatpush1.bf16.msra.mxu0 %v5529
  %7704 = vmatprep.subr.bf16.mxu0 0
  %7705 = vmatpush1.bf16.msra.mxu0 %v5530
  %7706 = vmatprep.subr.bf16.mxu0 0
  %7707 = vmatpush1.bf16.msra.mxu0 %v5531
  %7708 = vmatprep.subr.bf16.mxu0 0
  %7709 = vmatpush1.bf16.msra.mxu0 %v5532
  %7710 = vmatprep.subr.bf16.mxu0 0
  %7711 = vmatpush1.bf16.msra.mxu0 %v5533
  %7712 = vmatprep.subr.bf16.mxu0 0
  %7713 = vmatpush1.bf16.msra.mxu0 %v5534
  %7714 = vmatprep.subr.bf16.mxu0 0
  %7715 = vmatpush1.bf16.msra.mxu0 %v5535
  %7716 = vmatprep.subr.bf16.mxu0 0
  %7717 = vmatpush1.bf16.msra.mxu0 %v5536
  %7718 = vmatprep.subr.bf16.mxu0 0
  %7719 = vmatpush1.bf16.msra.mxu0 %v5537
  %7720 = vmatprep.subr.bf16.mxu0 0
  %7721 = vmatpush1.bf16.msra.mxu0 %v5538
  %7722 = vmatprep.subr.bf16.mxu0 0
  %7723 = vmatpush1.bf16.msra.mxu0 %v5539
  %7724 = vmatprep.mubr.bf16.mxu0 %v1843
  %7725 = vmatmul.mubr.bf16.gmra.mrb[0].mxu0 %v1842
  %v7726 = vpop.f32.mrb[0].mxu0
  %v7727 = vadd.f32 %v7687, %v7726
  %v7728 = vpop.f32.mrb[0].mxu0
  %v7729 = vpop.f32.mrb[0].mxu0
  %v7730 = vpop.f32.mrb[0].mxu0
  %7731 = vdwg.mxu0
  %7732 = vmatprep.subr.bf16.mxu0 0
  %7733 = vmatpush1.bf16.msra.mxu0 %v5540
  %7734 = vmatprep.subr.bf16.mxu0 0
  %7735 = vmatpush1.bf16.msra.mxu0 %v5541
  %7736 = vmatprep.subr.bf16.mxu0 0
  %7737 = vmatpush1.bf16.msra.mxu0 %v5542
  %7738 = vmatprep.subr.bf16.mxu0 0
  %7739 = vmatpush1.bf16.msra.mxu0 %v5543
  %7740 = vmatprep.subr.bf16.mxu0 0
  %7741 = vmatpush1.bf16.msra.mxu0 %v5544
  %7742 = vmatprep.subr.bf16.mxu0 0
  %7743 = vmatpush1.bf16.msra.mxu0 %v5545
  %7744 = vmatprep.subr.bf16.mxu0 0
  %7745 = vmatpush1.bf16.msra.mxu0 %v5546
  %7746 = vmatprep.subr.bf16.mxu0 0
  %7747 = vmatpush1.bf16.msra.mxu0 %v5547
  %7748 = vmatprep.subr.bf16.mxu0 0
  %7749 = vmatpush1.bf16.msra.mxu0 %v5548
  %7750 = vmatprep.subr.bf16.mxu0 0
  %7751 = vmatpush1.bf16.msra.mxu0 %v5549
  %7752 = vmatprep.subr.bf16.mxu0 0
  %7753 = vmatpush1.bf16.msra.mxu0 %v5550
  %7754 = vmatprep.subr.bf16.mxu0 0
  %7755 = vmatpush1.bf16.msra.mxu0 %v5551
  %7756 = vmatprep.subr.bf16.mxu0 0
  %7757 = vmatpush1.bf16.msra.mxu0 %v5552
  %7758 = vmatprep.subr.bf16.mxu0 0
  %7759 = vmatpush1.bf16.msra.mxu0 %v5553
  %7760 = vmatprep.subr.bf16.mxu0 0
  %7761 = vmatpush1.bf16.msra.mxu0 %v5554
  %7762 = vmatprep.subr.bf16.mxu0 0
  %7763 = vmatpush1.bf16.msra.mxu0 %v5555
  %7764 = vmatprep.mubr.bf16.mxu0 %v1845
  %7765 = vmatmul.mubr.bf16.gmra.mrb[0].mxu0 %v1844
  %v7766 = vpop.f32.mrb[0].mxu0
  %v7767 = vadd.f32 %v7727, %v7766
  %v7768 = vpop.f32.mrb[0].mxu0
  %v7769 = vpop.f32.mrb[0].mxu0
  %v7770 = vpop.f32.mrb[0].mxu0
  %7771 = vdwg.mxu0
  %7772 = vmatprep.subr.bf16.mxu0 0
  %7773 = vmatpush1.bf16.msra.mxu0 %v5556
  %7774 = vmatprep.subr.bf16.mxu0 0
  %7775 = vmatpush1.bf16.msra.mxu0 %v5557
  %7776 = vmatprep.subr.bf16.mxu0 0
  %7777 = vmatpush1.bf16.msra.mxu0 %v5558
  %7778 = vmatprep.subr.bf16.mxu0 0
  %7779 = vmatpush1.bf16.msra.mxu0 %v5559
  %7780 = vmatprep.subr.bf16.mxu0 0
  %7781 = vmatpush1.bf16.msra.mxu0 %v5560
  %7782 = vmatprep.subr.bf16.mxu0 0
  %7783 = vmatpush1.bf16.msra.mxu0 %v5561
  %7784 = vmatprep.subr.bf16.mxu0 0
  %7785 = vmatpush1.bf16.msra.mxu0 %v5562
  %7786 = vmatprep.subr.bf16.mxu0 0
  %7787 = vmatpush1.bf16.msra.mxu0 %v5563
  %7788 = vmatprep.subr.bf16.mxu0 0
  %7789 = vmatpush1.bf16.msra.mxu0 %v5564
  %7790 = vmatprep.subr.bf16.mxu0 0
  %7791 = vmatpush1.bf16.msra.mxu0 %v5565
  %7792 = vmatprep.subr.bf16.mxu0 0
  %7793 = vmatpush1.bf16.msra.mxu0 %v5566
  %7794 = vmatprep.subr.bf16.mxu0 0
  %7795 = vmatpush1.bf16.msra.mxu0 %v5567
  %7796 = vmatprep.subr.bf16.mxu0 0
  %7797 = vmatpush1.bf16.msra.mxu0 %v5568
  %7798 = vmatprep.subr.bf16.mxu0 0
  %7799 = vmatpush1.bf16.msra.mxu0 %v5569
  %7800 = vmatprep.subr.bf16.mxu0 0
  %7801 = vmatpush1.bf16.msra.mxu0 %v5570
  %7802 = vmatprep.subr.bf16.mxu0 0
  %7803 = vmatpush1.bf16.msra.mxu0 %v5571
  %7804 = vmatprep.mubr.bf16.mxu0 %v1847
  %7805 = vmatmul.mubr.bf16.gmra.mrb[0].mxu0 %v1846
  %v7806 = vpop.f32.mrb[0].mxu0
  %v7807 = vadd.f32 %v7767, %v7806
  %v7808 = vpop.f32.mrb[0].mxu0
  %v7809 = vpop.f32.mrb[0].mxu0
  %v7810 = vpop.f32.mrb[0].mxu0
  %7811 = vdwg.mxu0
  %7812 = vmatprep.subr.bf16.mxu0 0
  %7813 = vmatpush1.bf16.msra.mxu0 %v5572
  %7814 = vmatprep.subr.bf16.mxu0 0
  %7815 = vmatpush1.bf16.msra.mxu0 %v5573
  %7816 = vmatprep.subr.bf16.mxu0 0
  %7817 = vmatpush1.bf16.msra.mxu0 %v5574
  %7818 = vmatprep.subr.bf16.mxu0 0
  %7819 = vmatpush1.bf16.msra.mxu0 %v5575
  %7820 = vmatprep.subr.bf16.mxu0 0
  %7821 = vmatpush1.bf16.msra.mxu0 %v5576
  %7822 = vmatprep.subr.bf16.mxu0 0
  %7823 = vmatpush1.bf16.msra.mxu0 %v5577
  %7824 = vmatprep.subr.bf16.mxu0 0
  %7825 = vmatpush1.bf16.msra.mxu0 %v5578
  %7826 = vmatprep.subr.bf16.mxu0 0
  %7827 = vmatpush1.bf16.msra.mxu0 %v5579
  %7828 = vmatprep.subr.bf16.mxu0 0
  %7829 = vmatpush1.bf16.msra.mxu0 %v5580
  %7830 = vmatprep.subr.bf16.mxu0 0
  %7831 = vmatpush1.bf16.msra.mxu0 %v5581
  %7832 = vmatprep.subr.bf16.mxu0 0
  %7833 = vmatpush1.bf16.msra.mxu0 %v5582
  %7834 = vmatprep.subr.bf16.mxu0 0
  %7835 = vmatpush1.bf16.msra.mxu0 %v5583
  %7836 = vmatprep.subr.bf16.mxu0 0
  %7837 = vmatpush1.bf16.msra.mxu0 %v5584
  %7838 = vmatprep.subr.bf16.mxu0 0
  %7839 = vmatpush1.bf16.msra.mxu0 %v5585
  %7840 = vmatprep.subr.bf16.mxu0 0
  %7841 = vmatpush1.bf16.msra.mxu0 %v5586
  %7842 = vmatprep.subr.bf16.mxu0 0
  %7843 = vmatpush1.bf16.msra.mxu0 %v5587
  %7844 = vmatprep.mubr.bf16.mxu0 %v1849
  %7845 = vmatmul.mubr.bf16.gmra.mrb[0].mxu0 %v1848
  %v7846 = vpop.f32.mrb[0].mxu0
  %v7847 = vadd.f32 %v7807, %v7846
  %v7848 = vpop.f32.mrb[0].mxu0
  %v7849 = vpop.f32.mrb[0].mxu0
  %v7850 = vpop.f32.mrb[0].mxu0
  %7851 = vdwg.mxu0
  %7852 = vmatprep.subr.bf16.mxu0 0
  %7853 = vmatpush1.bf16.msra.mxu0 %v5588
  %7854 = vmatprep.subr.bf16.mxu0 0
  %7855 = vmatpush1.bf16.msra.mxu0 %v5589
  %7856 = vmatprep.subr.bf16.mxu0 0
  %7857 = vmatpush1.bf16.msra.mxu0 %v5590
  %7858 = vmatprep.subr.bf16.mxu0 0
  %7859 = vmatpush1.bf16.msra.mxu0 %v5591
  %7860 = vmatprep.subr.bf16.mxu0 0
  %7861 = vmatpush1.bf16.msra.mxu0 %v5592
  %7862 = vmatprep.subr.bf16.mxu0 0
  %7863 = vmatpush1.bf16.msra.mxu0 %v5593
  %7864 = vmatprep.subr.bf16.mxu0 0
  %7865 = vmatpush1.bf16.msra.mxu0 %v5594
  %7866 = vmatprep.subr.bf16.mxu0 0
  %7867 = vmatpush1.bf16.msra.mxu0 %v5595
  %7868 = vmatprep.subr.bf16.mxu0 0
  %7869 = vmatpush1.bf16.msra.mxu0 %v5596
  %7870 = vmatprep.subr.bf16.mxu0 0
  %7871 = vmatpush1.bf16.msra.mxu0 %v5597
  %7872 = vmatprep.subr.bf16.mxu0 0
  %7873 = vmatpush1.bf16.msra.mxu0 %v5598
  %7874 = vmatprep.subr.bf16.mxu0 0
  %7875 = vmatpush1.bf16.msra.mxu0 %v5599
  %7876 = vmatprep.subr.bf16.mxu0 0
  %7877 = vmatpush1.bf16.msra.mxu0 %v5600
  %7878 = vmatprep.subr.bf16.mxu0 0
  %7879 = vmatpush1.bf16.msra.mxu0 %v5601
  %7880 = vmatprep.subr.bf16.mxu0 0
  %7881 = vmatpush1.bf16.msra.mxu0 %v5602
  %7882 = vmatprep.subr.bf16.mxu0 0
  %7883 = vmatpush1.bf16.msra.mxu0 %v5603
  %7884 = vmatprep.mubr.bf16.mxu0 %v1851
  %7885 = vmatmul.mubr.bf16.gmra.mrb[0].mxu0 %v1850
  %v7886 = vpop.f32.mrb[0].mxu0
  %v7887 = vadd.f32 %v7847, %v7886
  %v7888 = vpop.f32.mrb[0].mxu0
  %v7889 = vpop.f32.mrb[0].mxu0
  %v7890 = vpop.f32.mrb[0].mxu0
  %7891 = vdwg.mxu0
  %7892 = vmatprep.subr.bf16.mxu0 0
  %7893 = vmatpush1.bf16.msra.mxu0 %v5604
  %7894 = vmatprep.subr.bf16.mxu0 0
  %7895 = vmatpush1.bf16.msra.mxu0 %v5605
  %7896 = vmatprep.subr.bf16.mxu0 0
  %7897 = vmatpush1.bf16.msra.mxu0 %v5606
  %7898 = vmatprep.subr.bf16.mxu0 0
  %7899 = vmatpush1.bf16.msra.mxu0 %v5607
  %7900 = vmatprep.subr.bf16.mxu0 0
  %7901 = vmatpush1.bf16.msra.mxu0 %v5608
  %7902 = vmatprep.subr.bf16.mxu0 0
  %7903 = vmatpush1.bf16.msra.mxu0 %v5609
  %7904 = vmatprep.subr.bf16.mxu0 0
  %7905 = vmatpush1.bf16.msra.mxu0 %v5610
  %7906 = vmatprep.subr.bf16.mxu0 0
  %7907 = vmatpush1.bf16.msra.mxu0 %v5611
  %7908 = vmatprep.subr.bf16.mxu0 0
  %7909 = vmatpush1.bf16.msra.mxu0 %v5612
  %7910 = vmatprep.subr.bf16.mxu0 0
  %7911 = vmatpush1.bf16.msra.mxu0 %v5613
  %7912 = vmatprep.subr.bf16.mxu0 0
  %7913 = vmatpush1.bf16.msra.mxu0 %v5614
  %7914 = vmatprep.subr.bf16.mxu0 0
  %7915 = vmatpush1.bf16.msra.mxu0 %v5615
  %7916 = vmatprep.subr.bf16.mxu0 0
  %7917 = vmatpush1.bf16.msra.mxu0 %v5616
  %7918 = vmatprep.subr.bf16.mxu0 0
  %7919 = vmatpush1.bf16.msra.mxu0 %v5617
  %7920 = vmatprep.subr.bf16.mxu0 0
  %7921 = vmatpush1.bf16.msra.mxu0 %v5618
  %7922 = vmatprep.subr.bf16.mxu0 0
  %7923 = vmatpush1.bf16.msra.mxu0 %v5619
  %7924 = vmatprep.mubr.bf16.mxu0 %v1853
  %7925 = vmatmul.mubr.bf16.gmra.mrb[0].mxu0 %v1852
  %v7926 = vpop.f32.mrb[0].mxu0
  %v7927 = vadd.f32 %v7887, %v7926
  %v7928 = vpop.f32.mrb[0].mxu0
  %v7929 = vpop.f32.mrb[0].mxu0
  %v7930 = vpop.f32.mrb[0].mxu0
  %7931 = vdwg.mxu0
  %7932 = vmatprep.subr.bf16.mxu0 0
  %7933 = vmatpush1.bf16.msra.mxu0 %v5620
  %7934 = vmatprep.subr.bf16.mxu0 0
  %7935 = vmatpush1.bf16.msra.mxu0 %v5621
  %7936 = vmatprep.subr.bf16.mxu0 0
  %7937 = vmatpush1.bf16.msra.mxu0 %v5622
  %7938 = vmatprep.subr.bf16.mxu0 0
  %7939 = vmatpush1.bf16.msra.mxu0 %v5623
  %7940 = vmatprep.subr.bf16.mxu0 0
  %7941 = vmatpush1.bf16.msra.mxu0 %v5624
  %7942 = vmatprep.subr.bf16.mxu0 0
  %7943 = vmatpush1.bf16.msra.mxu0 %v5625
  %7944 = vmatprep.subr.bf16.mxu0 0
  %7945 = vmatpush1.bf16.msra.mxu0 %v5626
  %7946 = vmatprep.subr.bf16.mxu0 0
  %7947 = vmatpush1.bf16.msra.mxu0 %v5627
  %7948 = vmatprep.subr.bf16.mxu0 0
  %7949 = vmatpush1.bf16.msra.mxu0 %v5628
  %7950 = vmatprep.subr.bf16.mxu0 0
  %7951 = vmatpush1.bf16.msra.mxu0 %v5629
  %7952 = vmatprep.subr.bf16.mxu0 0
  %7953 = vmatpush1.bf16.msra.mxu0 %v5630
  %7954 = vmatprep.subr.bf16.mxu0 0
  %7955 = vmatpush1.bf16.msra.mxu0 %v5631
  %7956 = vmatprep.subr.bf16.mxu0 0
  %7957 = vmatpush1.bf16.msra.mxu0 %v5632
  %7958 = vmatprep.subr.bf16.mxu0 0
  %7959 = vmatpush1.bf16.msra.mxu0 %v5633
  %7960 = vmatprep.subr.bf16.mxu0 0
  %7961 = vmatpush1.bf16.msra.mxu0 %v5634
  %7962 = vmatprep.subr.bf16.mxu0 0
  %7963 = vmatpush1.bf16.msra.mxu0 %v5635
  %7964 = vmatprep.mubr.bf16.mxu0 %v1855
  %7965 = vmatmul.mubr.bf16.gmra.mrb[0].mxu0 %v1854
  %v7966 = vpop.f32.mrb[0].mxu0
  %v7967 = vadd.f32 %v7927, %v7966
  %v7968 = vpop.f32.mrb[0].mxu0
  %v7969 = vpop.f32.mrb[0].mxu0
  %v7970 = vpop.f32.mrb[0].mxu0
  %7971 = vdwg.mxu0
  %7972 = vmatprep.subr.bf16.mxu0 0
  %7973 = vmatpush1.bf16.msra.mxu0 %v5636
  %7974 = vmatprep.subr.bf16.mxu0 0
  %7975 = vmatpush1.bf16.msra.mxu0 %v5637
  %7976 = vmatprep.subr.bf16.mxu0 0
  %7977 = vmatpush1.bf16.msra.mxu0 %v5638
  %7978 = vmatprep.subr.bf16.mxu0 0
  %7979 = vmatpush1.bf16.msra.mxu0 %v5639
  %7980 = vmatprep.subr.bf16.mxu0 0
  %7981 = vmatpush1.bf16.msra.mxu0 %v5640
  %7982 = vmatprep.subr.bf16.mxu0 0
  %7983 = vmatpush1.bf16.msra.mxu0 %v5641
  %7984 = vmatprep.subr.bf16.mxu0 0
  %7985 = vmatpush1.bf16.msra.mxu0 %v5642
  %7986 = vmatprep.subr.bf16.mxu0 0
  %7987 = vmatpush1.bf16.msra.mxu0 %v5643
  %7988 = vmatprep.subr.bf16.mxu0 0
  %7989 = vmatpush1.bf16.msra.mxu0 %v5644
  %7990 = vmatprep.subr.bf16.mxu0 0
  %7991 = vmatpush1.bf16.msra.mxu0 %v5645
  %7992 = vmatprep.subr.bf16.mxu0 0
  %7993 = vmatpush1.bf16.msra.mxu0 %v5646
  %7994 = vmatprep.subr.bf16.mxu0 0
  %7995 = vmatpush1.bf16.msra.mxu0 %v5647
  %7996 = vmatprep.subr.bf16.mxu0 0
  %7997 = vmatpush1.bf16.msra.mxu0 %v5648
  %7998 = vmatprep.subr.bf16.mxu0 0
  %7999 = vmatpush1.bf16.msra.mxu0 %v5649
  %8000 = vmatprep.subr.bf16.mxu0 0
  %8001 = vmatpush1.bf16.msra.mxu0 %v5650
  %8002 = vmatprep.subr.bf16.mxu0 0
  %8003 = vmatpush1.bf16.msra.mxu0 %v5651
  %8004 = vmatprep.mubr.bf16.mxu0 %v1857
  %8005 = vmatmul.mubr.bf16.gmra.mrb[0].mxu0 %v1856
  %v8006 = vpop.f32.mrb[0].mxu0
  %v8007 = vadd.f32 %v7967, %v8006
  %v8008 = vpop.f32.mrb[0].mxu0
  %v8009 = vpop.f32.mrb[0].mxu0
  %v8010 = vpop.f32.mrb[0].mxu0
  %8011 = vdwg.mxu0
  %8012 = vmatprep.subr.bf16.mxu0 0
  %8013 = vmatpush1.bf16.msra.mxu0 %v5652
  %8014 = vmatprep.subr.bf16.mxu0 0
  %8015 = vmatpush1.bf16.msra.mxu0 %v5653
  %8016 = vmatprep.subr.bf16.mxu0 0
  %8017 = vmatpush1.bf16.msra.mxu0 %v5654
  %8018 = vmatprep.subr.bf16.mxu0 0
  %8019 = vmatpush1.bf16.msra.mxu0 %v5655
  %8020 = vmatprep.subr.bf16.mxu0 0
  %8021 = vmatpush1.bf16.msra.mxu0 %v5656
  %8022 = vmatprep.subr.bf16.mxu0 0
  %8023 = vmatpush1.bf16.msra.mxu0 %v5657
  %8024 = vmatprep.subr.bf16.mxu0 0
  %8025 = vmatpush1.bf16.msra.mxu0 %v5658
  %8026 = vmatprep.subr.bf16.mxu0 0
  %8027 = vmatpush1.bf16.msra.mxu0 %v5659
  %8028 = vmatprep.subr.bf16.mxu0 0
  %8029 = vmatpush1.bf16.msra.mxu0 %v5660
  %8030 = vmatprep.subr.bf16.mxu0 0
  %8031 = vmatpush1.bf16.msra.mxu0 %v5661
  %8032 = vmatprep.subr.bf16.mxu0 0
  %8033 = vmatpush1.bf16.msra.mxu0 %v5662
  %8034 = vmatprep.subr.bf16.mxu0 0
  %8035 = vmatpush1.bf16.msra.mxu0 %v5663
  %8036 = vmatprep.subr.bf16.mxu0 0
  %8037 = vmatpush1.bf16.msra.mxu0 %v5664
  %8038 = vmatprep.subr.bf16.mxu0 0
  %8039 = vmatpush1.bf16.msra.mxu0 %v5665
  %8040 = vmatprep.subr.bf16.mxu0 0
  %8041 = vmatpush1.bf16.msra.mxu0 %v5666
  %8042 = vmatprep.subr.bf16.mxu0 0
  %8043 = vmatpush1.bf16.msra.mxu0 %v5667
  %8044 = vmatprep.mubr.bf16.mxu0 %v1859
  %8045 = vmatmul.mubr.bf16.gmra.mrb[0].mxu0 %v1858
  %v8046 = vpop.f32.mrb[0].mxu0
  %v8047 = vadd.f32 %v8007, %v8046
  %v8048 = vpop.f32.mrb[0].mxu0
  %v8049 = vpop.f32.mrb[0].mxu0
  %v8050 = vpop.f32.mrb[0].mxu0
  %8051 = vdwg.mxu0
  %8052 = vmatprep.subr.bf16.mxu0 0
  %8053 = vmatpush1.bf16.msra.mxu0 %v5668
  %8054 = vmatprep.subr.bf16.mxu0 0
  %8055 = vmatpush1.bf16.msra.mxu0 %v5669
  %8056 = vmatprep.subr.bf16.mxu0 0
  %8057 = vmatpush1.bf16.msra.mxu0 %v5670
  %8058 = vmatprep.subr.bf16.mxu0 0
  %8059 = vmatpush1.bf16.msra.mxu0 %v5671
  %8060 = vmatprep.subr.bf16.mxu0 0
  %8061 = vmatpush1.bf16.msra.mxu0 %v5672
  %8062 = vmatprep.subr.bf16.mxu0 0
  %8063 = vmatpush1.bf16.msra.mxu0 %v5673
  %8064 = vmatprep.subr.bf16.mxu0 0
  %8065 = vmatpush1.bf16.msra.mxu0 %v5674
  %8066 = vmatprep.subr.bf16.mxu0 0
  %8067 = vmatpush1.bf16.msra.mxu0 %v5675
  %8068 = vmatprep.subr.bf16.mxu0 0
  %8069 = vmatpush1.bf16.msra.mxu0 %v5676
  %8070 = vmatprep.subr.bf16.mxu0 0
  %8071 = vmatpush1.bf16.msra.mxu0 %v5677
  %8072 = vmatprep.subr.bf16.mxu0 0
  %8073 = vmatpush1.bf16.msra.mxu0 %v5678
  %8074 = vmatprep.subr.bf16.mxu0 0
  %8075 = vmatpush1.bf16.msra.mxu0 %v5679
  %8076 = vmatprep.subr.bf16.mxu0 0
  %8077 = vmatpush1.bf16.msra.mxu0 %v5680
  %8078 = vmatprep.subr.bf16.mxu0 0
  %8079 = vmatpush1.bf16.msra.mxu0 %v5681
  %8080 = vmatprep.subr.bf16.mxu0 0
  %8081 = vmatpush1.bf16.msra.mxu0 %v5682
  %8082 = vmatprep.subr.bf16.mxu0 0
  %8083 = vmatpush1.bf16.msra.mxu0 %v5683
  %8084 = vmatprep.mubr.bf16.mxu0 %v1861
  %8085 = vmatmul.mubr.bf16.gmra.mrb[0].mxu0 %v1860
  %v8086 = vpop.f32.mrb[0].mxu0
  %v8087 = vadd.f32 %v8047, %v8086
  %v8088 = vpop.f32.mrb[0].mxu0
  %v8089 = vpop.f32.mrb[0].mxu0
  %v8090 = vpop.f32.mrb[0].mxu0
  %8091 = vdwg.mxu0
  %8092 = vmatprep.subr.bf16.mxu0 0
  %8093 = vmatpush1.bf16.msra.mxu0 %v5684
  %8094 = vmatprep.subr.bf16.mxu0 0
  %8095 = vmatpush1.bf16.msra.mxu0 %v5685
  %8096 = vmatprep.subr.bf16.mxu0 0
  %8097 = vmatpush1.bf16.msra.mxu0 %v5686
  %8098 = vmatprep.subr.bf16.mxu0 0
  %8099 = vmatpush1.bf16.msra.mxu0 %v5687
  %8100 = vmatprep.subr.bf16.mxu0 0
  %8101 = vmatpush1.bf16.msra.mxu0 %v5688
  %8102 = vmatprep.subr.bf16.mxu0 0
  %8103 = vmatpush1.bf16.msra.mxu0 %v5689
  %8104 = vmatprep.subr.bf16.mxu0 0
  %8105 = vmatpush1.bf16.msra.mxu0 %v5690
  %8106 = vmatprep.subr.bf16.mxu0 0
  %8107 = vmatpush1.bf16.msra.mxu0 %v5691
  %8108 = vmatprep.subr.bf16.mxu0 0
  %8109 = vmatpush1.bf16.msra.mxu0 %v5692
  %8110 = vmatprep.subr.bf16.mxu0 0
  %8111 = vmatpush1.bf16.msra.mxu0 %v5693
  %8112 = vmatprep.subr.bf16.mxu0 0
  %8113 = vmatpush1.bf16.msra.mxu0 %v5694
  %8114 = vmatprep.subr.bf16.mxu0 0
  %8115 = vmatpush1.bf16.msra.mxu0 %v5695
  %8116 = vmatprep.subr.bf16.mxu0 0
  %8117 = vmatpush1.bf16.msra.mxu0 %v5696
  %8118 = vmatprep.subr.bf16.mxu0 0
  %8119 = vmatpush1.bf16.msra.mxu0 %v5697
  %8120 = vmatprep.subr.bf16.mxu0 0
  %8121 = vmatpush1.bf16.msra.mxu0 %v5698
  %8122 = vmatprep.subr.bf16.mxu0 0
  %8123 = vmatpush1.bf16.msra.mxu0 %v5699
  %8124 = vmatprep.mubr.bf16.mxu0 %v1863
  %8125 = vmatmul.mubr.bf16.gmra.mrb[0].mxu0 %v1862
  %v8126 = vpop.f32.mrb[0].mxu0
  %v8127 = vadd.f32 %v8087, %v8126
  %v8128 = vpop.f32.mrb[0].mxu0
  %v8129 = vpop.f32.mrb[0].mxu0
  %v8130 = vpop.f32.mrb[0].mxu0
  %8131 = vdwg.mxu0
  %8132 = vmatprep.subr.bf16.mxu0 0
  %8133 = vmatpush1.bf16.msra.mxu0 %v5700
  %8134 = vmatprep.subr.bf16.mxu0 0
  %8135 = vmatpush1.bf16.msra.mxu0 %v5701
  %8136 = vmatprep.subr.bf16.mxu0 0
  %8137 = vmatpush1.bf16.msra.mxu0 %v5702
  %8138 = vmatprep.subr.bf16.mxu0 0
  %8139 = vmatpush1.bf16.msra.mxu0 %v5703
  %8140 = vmatprep.subr.bf16.mxu0 0
  %8141 = vmatpush1.bf16.msra.mxu0 %v5704
  %8142 = vmatprep.subr.bf16.mxu0 0
  %8143 = vmatpush1.bf16.msra.mxu0 %v5705
  %8144 = vmatprep.subr.bf16.mxu0 0
  %8145 = vmatpush1.bf16.msra.mxu0 %v5706
  %8146 = vmatprep.subr.bf16.mxu0 0
  %8147 = vmatpush1.bf16.msra.mxu0 %v5707
  %8148 = vmatprep.subr.bf16.mxu0 0
  %8149 = vmatpush1.bf16.msra.mxu0 %v5708
  %8150 = vmatprep.subr.bf16.mxu0 0
  %8151 = vmatpush1.bf16.msra.mxu0 %v5709
  %8152 = vmatprep.subr.bf16.mxu0 0
  %8153 = vmatpush1.bf16.msra.mxu0 %v5710
  %8154 = vmatprep.subr.bf16.mxu0 0
  %8155 = vmatpush1.bf16.msra.mxu0 %v5711
  %8156 = vmatprep.subr.bf16.mxu0 0
  %8157 = vmatpush1.bf16.msra.mxu0 %v5712
  %8158 = vmatprep.subr.bf16.mxu0 0
  %8159 = vmatpush1.bf16.msra.mxu0 %v5713
  %8160 = vmatprep.subr.bf16.mxu0 0
  %8161 = vmatpush1.bf16.msra.mxu0 %v5714
  %8162 = vmatprep.subr.bf16.mxu0 0
  %8163 = vmatpush1.bf16.msra.mxu0 %v5715
  %8164 = vmatprep.mubr.bf16.mxu0 %v1865
  %8165 = vmatmul.mubr.bf16.gmra.mrb[0].mxu0 %v1864
  %v8166 = vpop.f32.mrb[0].mxu0
  %v8167 = vadd.f32 %v8127, %v8166
  %v8168 = vpop.f32.mrb[0].mxu0
  %v8169 = vpop.f32.mrb[0].mxu0
  %v8170 = vpop.f32.mrb[0].mxu0
  %8171 = vdwg.mxu0
  %8172 = vmatprep.subr.bf16.mxu0 0
  %8173 = vmatpush1.bf16.msra.mxu0 %v5716
  %8174 = vmatprep.subr.bf16.mxu0 0
  %8175 = vmatpush1.bf16.msra.mxu0 %v5717
  %8176 = vmatprep.subr.bf16.mxu0 0
  %8177 = vmatpush1.bf16.msra.mxu0 %v5718
  %8178 = vmatprep.subr.bf16.mxu0 0
  %8179 = vmatpush1.bf16.msra.mxu0 %v5719
  %8180 = vmatprep.subr.bf16.mxu0 0
  %8181 = vmatpush1.bf16.msra.mxu0 %v5720
  %8182 = vmatprep.subr.bf16.mxu0 0
  %8183 = vmatpush1.bf16.msra.mxu0 %v5721
  %8184 = vmatprep.subr.bf16.mxu0 0
  %8185 = vmatpush1.bf16.msra.mxu0 %v5722
  %8186 = vmatprep.subr.bf16.mxu0 0
  %8187 = vmatpush1.bf16.msra.mxu0 %v5723
  %8188 = vmatprep.subr.bf16.mxu0 0
  %8189 = vmatpush1.bf16.msra.mxu0 %v5724
  %8190 = vmatprep.subr.bf16.mxu0 0
  %8191 = vmatpush1.bf16.msra.mxu0 %v5725
  %8192 = vmatprep.subr.bf16.mxu0 0
  %8193 = vmatpush1.bf16.msra.mxu0 %v5726
  %8194 = vmatprep.subr.bf16.mxu0 0
  %8195 = vmatpush1.bf16.msra.mxu0 %v5727
  %8196 = vmatprep.subr.bf16.mxu0 0
  %8197 = vmatpush1.bf16.msra.mxu0 %v5728
  %8198 = vmatprep.subr.bf16.mxu0 0
  %8199 = vmatpush1.bf16.msra.mxu0 %v5729
  %8200 = vmatprep.subr.bf16.mxu0 0
  %8201 = vmatpush1.bf16.msra.mxu0 %v5730
  %8202 = vmatprep.subr.bf16.mxu0 0
  %8203 = vmatpush1.bf16.msra.mxu0 %v5731
  %8204 = vmatprep.mubr.bf16.mxu0 %v1867
  %8205 = vmatmul.mubr.bf16.gmra.mrb[0].mxu0 %v1866
  %v8206 = vpop.f32.mrb[0].mxu0
  %v8207 = vadd.f32 %v8167, %v8206
  %v8208 = vpop.f32.mrb[0].mxu0
  %v8209 = vpop.f32.mrb[0].mxu0
  %v8210 = vpop.f32.mrb[0].mxu0
  %8211 = vdwg.mxu0
  %8212 = vmatprep.subr.bf16.mxu0 0
  %8213 = vmatpush1.bf16.msra.mxu0 %v5732
  %8214 = vmatprep.subr.bf16.mxu0 0
  %8215 = vmatpush1.bf16.msra.mxu0 %v5733
  %8216 = vmatprep.subr.bf16.mxu0 0
  %8217 = vmatpush1.bf16.msra.mxu0 %v5734
  %8218 = vmatprep.subr.bf16.mxu0 0
  %8219 = vmatpush1.bf16.msra.mxu0 %v5735
  %8220 = vmatprep.subr.bf16.mxu0 0
  %8221 = vmatpush1.bf16.msra.mxu0 %v5736
  %8222 = vmatprep.subr.bf16.mxu0 0
  %8223 = vmatpush1.bf16.msra.mxu0 %v5737
  %8224 = vmatprep.subr.bf16.mxu0 0
  %8225 = vmatpush1.bf16.msra.mxu0 %v5738
  %8226 = vmatprep.subr.bf16.mxu0 0
  %8227 = vmatpush1.bf16.msra.mxu0 %v5739
  %8228 = vmatprep.subr.bf16.mxu0 0
  %8229 = vmatpush1.bf16.msra.mxu0 %v5740
  %8230 = vmatprep.subr.bf16.mxu0 0
  %8231 = vmatpush1.bf16.msra.mxu0 %v5741
  %8232 = vmatprep.subr.bf16.mxu0 0
  %8233 = vmatpush1.bf16.msra.mxu0 %v5742
  %8234 = vmatprep.subr.bf16.mxu0 0
  %8235 = vmatpush1.bf16.msra.mxu0 %v5743
  %8236 = vmatprep.subr.bf16.mxu0 0
  %8237 = vmatpush1.bf16.msra.mxu0 %v5744
  %8238 = vmatprep.subr.bf16.mxu0 0
  %8239 = vmatpush1.bf16.msra.mxu0 %v5745
  %8240 = vmatprep.subr.bf16.mxu0 0
  %8241 = vmatpush1.bf16.msra.mxu0 %v5746
  %8242 = vmatprep.subr.bf16.mxu0 0
  %8243 = vmatpush1.bf16.msra.mxu0 %v5747
  %8244 = vmatprep.mubr.bf16.mxu0 %v1869
  %8245 = vmatmul.mubr.bf16.gmra.mrb[0].mxu0 %v1868
  %v8246 = vpop.f32.mrb[0].mxu0
  %v8247 = vadd.f32 %v8207, %v8246
  %v8248 = vpop.f32.mrb[0].mxu0
  %v8249 = vpop.f32.mrb[0].mxu0
  %v8250 = vpop.f32.mrb[0].mxu0
  %8251 = vdwg.mxu0
  %8252 = vmatprep.subr.bf16.mxu0 0
  %8253 = vmatpush1.bf16.msra.mxu0 %v5748
  %8254 = vmatprep.subr.bf16.mxu0 0
  %8255 = vmatpush1.bf16.msra.mxu0 %v5749
  %8256 = vmatprep.subr.bf16.mxu0 0
  %8257 = vmatpush1.bf16.msra.mxu0 %v5750
  %8258 = vmatprep.subr.bf16.mxu0 0
  %8259 = vmatpush1.bf16.msra.mxu0 %v5751
  %8260 = vmatprep.subr.bf16.mxu0 0
  %8261 = vmatpush1.bf16.msra.mxu0 %v5752
  %8262 = vmatprep.subr.bf16.mxu0 0
  %8263 = vmatpush1.bf16.msra.mxu0 %v5753
  %8264 = vmatprep.subr.bf16.mxu0 0
  %8265 = vmatpush1.bf16.msra.mxu0 %v5754
  %8266 = vmatprep.subr.bf16.mxu0 0
  %8267 = vmatpush1.bf16.msra.mxu0 %v5755
  %8268 = vmatprep.subr.bf16.mxu0 0
  %8269 = vmatpush1.bf16.msra.mxu0 %v5756
  %8270 = vmatprep.subr.bf16.mxu0 0
  %8271 = vmatpush1.bf16.msra.mxu0 %v5757
  %8272 = vmatprep.subr.bf16.mxu0 0
  %8273 = vmatpush1.bf16.msra.mxu0 %v5758
  %8274 = vmatprep.subr.bf16.mxu0 0
  %8275 = vmatpush1.bf16.msra.mxu0 %v5759
  %8276 = vmatprep.subr.bf16.mxu0 0
  %8277 = vmatpush1.bf16.msra.mxu0 %v5760
  %8278 = vmatprep.subr.bf16.mxu0 0
  %8279 = vmatpush1.bf16.msra.mxu0 %v5761
  %8280 = vmatprep.subr.bf16.mxu0 0
  %8281 = vmatpush1.bf16.msra.mxu0 %v5762
  %8282 = vmatprep.subr.bf16.mxu0 0
  %8283 = vmatpush1.bf16.msra.mxu0 %v5763
  %8284 = vmatprep.mubr.bf16.mxu0 %v1871
  %8285 = vmatmul.mubr.bf16.gmra.mrb[0].mxu0 %v1870
  %v8286 = vpop.f32.mrb[0].mxu0
  %v8287 = vadd.f32 %v8247, %v8286
  %v8288 = vpop.f32.mrb[0].mxu0
  %v8289 = vpop.f32.mrb[0].mxu0
  %v8290 = vpop.f32.mrb[0].mxu0
  %8291 = vdwg.mxu0
  %8292 = vmatprep.subr.bf16.mxu0 0
  %8293 = vmatpush1.bf16.msra.mxu0 %v5764
  %8294 = vmatprep.subr.bf16.mxu0 0
  %8295 = vmatpush1.bf16.msra.mxu0 %v5765
  %8296 = vmatprep.subr.bf16.mxu0 0
  %8297 = vmatpush1.bf16.msra.mxu0 %v5766
  %8298 = vmatprep.subr.bf16.mxu0 0
  %8299 = vmatpush1.bf16.msra.mxu0 %v5767
  %8300 = vmatprep.subr.bf16.mxu0 0
  %8301 = vmatpush1.bf16.msra.mxu0 %v5768
  %8302 = vmatprep.subr.bf16.mxu0 0
  %8303 = vmatpush1.bf16.msra.mxu0 %v5769
  %8304 = vmatprep.subr.bf16.mxu0 0
  %8305 = vmatpush1.bf16.msra.mxu0 %v5770
  %8306 = vmatprep.subr.bf16.mxu0 0
  %8307 = vmatpush1.bf16.msra.mxu0 %v5771
  %8308 = vmatprep.subr.bf16.mxu0 0
  %8309 = vmatpush1.bf16.msra.mxu0 %v5772
  %8310 = vmatprep.subr.bf16.mxu0 0
  %8311 = vmatpush1.bf16.msra.mxu0 %v5773
  %8312 = vmatprep.subr.bf16.mxu0 0
  %8313 = vmatpush1.bf16.msra.mxu0 %v5774
  %8314 = vmatprep.subr.bf16.mxu0 0
  %8315 = vmatpush1.bf16.msra.mxu0 %v5775
  %8316 = vmatprep.subr.bf16.mxu0 0
  %8317 = vmatpush1.bf16.msra.mxu0 %v5776
  %8318 = vmatprep.subr.bf16.mxu0 0
  %8319 = vmatpush1.bf16.msra.mxu0 %v5777
  %8320 = vmatprep.subr.bf16.mxu0 0
  %8321 = vmatpush1.bf16.msra.mxu0 %v5778
  %8322 = vmatprep.subr.bf16.mxu0 0
  %8323 = vmatpush1.bf16.msra.mxu0 %v5779
  %8324 = vmatprep.mubr.bf16.mxu0 %v1873
  %8325 = vmatmul.mubr.bf16.gmra.mrb[0].mxu0 %v1872
  %v8326 = vpop.f32.mrb[0].mxu0
  %v8327 = vadd.f32 %v8287, %v8326
  %v8328 = vpop.f32.mrb[0].mxu0
  %v8329 = vpop.f32.mrb[0].mxu0
  %v8330 = vpop.f32.mrb[0].mxu0
  %8331 = vdwg.mxu0
  %8332 = vmatprep.subr.bf16.mxu0 0
  %8333 = vmatpush1.bf16.msra.mxu0 %v5780
  %8334 = vmatprep.subr.bf16.mxu0 0
  %8335 = vmatpush1.bf16.msra.mxu0 %v5781
  %8336 = vmatprep.subr.bf16.mxu0 0
  %8337 = vmatpush1.bf16.msra.mxu0 %v5782
  %8338 = vmatprep.subr.bf16.mxu0 0
  %8339 = vmatpush1.bf16.msra.mxu0 %v5783
  %8340 = vmatprep.subr.bf16.mxu0 0
  %8341 = vmatpush1.bf16.msra.mxu0 %v5784
  %8342 = vmatprep.subr.bf16.mxu0 0
  %8343 = vmatpush1.bf16.msra.mxu0 %v5785
  %8344 = vmatprep.subr.bf16.mxu0 0
  %8345 = vmatpush1.bf16.msra.mxu0 %v5786
  %8346 = vmatprep.subr.bf16.mxu0 0
  %8347 = vmatpush1.bf16.msra.mxu0 %v5787
  %8348 = vmatprep.subr.bf16.mxu0 0
  %8349 = vmatpush1.bf16.msra.mxu0 %v5788
  %8350 = vmatprep.subr.bf16.mxu0 0
  %8351 = vmatpush1.bf16.msra.mxu0 %v5789
  %8352 = vmatprep.subr.bf16.mxu0 0
  %8353 = vmatpush1.bf16.msra.mxu0 %v5790
  %8354 = vmatprep.subr.bf16.mxu0 0
  %8355 = vmatpush1.bf16.msra.mxu0 %v5791
  %8356 = vmatprep.subr.bf16.mxu0 0
  %8357 = vmatpush1.bf16.msra.mxu0 %v5792
  %8358 = vmatprep.subr.bf16.mxu0 0
  %8359 = vmatpush1.bf16.msra.mxu0 %v5793
  %8360 = vmatprep.subr.bf16.mxu0 0
  %8361 = vmatpush1.bf16.msra.mxu0 %v5794
  %8362 = vmatprep.subr.bf16.mxu0 0
  %8363 = vmatpush1.bf16.msra.mxu0 %v5795
  %8364 = vmatprep.mubr.bf16.mxu0 %v1875
  %8365 = vmatmul.mubr.bf16.gmra.mrb[0].mxu0 %v1874
  %v8366 = vpop.f32.mrb[0].mxu0
  %v8367 = vadd.f32 %v8327, %v8366
  %v8368 = vpop.f32.mrb[0].mxu0
  %v8369 = vpop.f32.mrb[0].mxu0
  %v8370 = vpop.f32.mrb[0].mxu0
  %8371 = vdwg.mxu0
  %8372 = vmatprep.subr.bf16.mxu0 0
  %8373 = vmatpush1.bf16.msra.mxu0 %v5796
  %8374 = vmatprep.subr.bf16.mxu0 0
  %8375 = vmatpush1.bf16.msra.mxu0 %v5797
  %8376 = vmatprep.subr.bf16.mxu0 0
  %8377 = vmatpush1.bf16.msra.mxu0 %v5798
  %8378 = vmatprep.subr.bf16.mxu0 0
  %8379 = vmatpush1.bf16.msra.mxu0 %v5799
  %8380 = vmatprep.subr.bf16.mxu0 0
  %8381 = vmatpush1.bf16.msra.mxu0 %v5800
  %8382 = vmatprep.subr.bf16.mxu0 0
  %8383 = vmatpush1.bf16.msra.mxu0 %v5801
  %8384 = vmatprep.subr.bf16.mxu0 0
  %8385 = vmatpush1.bf16.msra.mxu0 %v5802
  %8386 = vmatprep.subr.bf16.mxu0 0
  %8387 = vmatpush1.bf16.msra.mxu0 %v5803
  %8388 = vmatprep.subr.bf16.mxu0 0
  %8389 = vmatpush1.bf16.msra.mxu0 %v5804
  %8390 = vmatprep.subr.bf16.mxu0 0
  %8391 = vmatpush1.bf16.msra.mxu0 %v5805
  %8392 = vmatprep.subr.bf16.mxu0 0
  %8393 = vmatpush1.bf16.msra.mxu0 %v5806
  %8394 = vmatprep.subr.bf16.mxu0 0
  %8395 = vmatpush1.bf16.msra.mxu0 %v5807
  %8396 = vmatprep.subr.bf16.mxu0 0
  %8397 = vmatpush1.bf16.msra.mxu0 %v5808
  %8398 = vmatprep.subr.bf16.mxu0 0
  %8399 = vmatpush1.bf16.msra.mxu0 %v5809
  %8400 = vmatprep.subr.bf16.mxu0 0
  %8401 = vmatpush1.bf16.msra.mxu0 %v5810
  %8402 = vmatprep.subr.bf16.mxu0 0
  %8403 = vmatpush1.bf16.msra.mxu0 %v5811
  %8404 = vmatprep.mubr.bf16.mxu0 %v1877
  %8405 = vmatmul.mubr.bf16.gmra.mrb[0].mxu0 %v1876
  %v8406 = vpop.f32.mrb[0].mxu0
  %v8407 = vadd.f32 %v8367, %v8406
  %v8408 = vpop.f32.mrb[0].mxu0
  %v8409 = vpop.f32.mrb[0].mxu0
  %v8410 = vpop.f32.mrb[0].mxu0
  %8411 = vdwg.mxu0
  %8412 = vmatprep.subr.bf16.mxu0 0
  %8413 = vmatpush1.bf16.msra.mxu0 %v5812
  %8414 = vmatprep.subr.bf16.mxu0 0
  %8415 = vmatpush1.bf16.msra.mxu0 %v5813
  %8416 = vmatprep.subr.bf16.mxu0 0
  %8417 = vmatpush1.bf16.msra.mxu0 %v5814
  %8418 = vmatprep.subr.bf16.mxu0 0
  %8419 = vmatpush1.bf16.msra.mxu0 %v5815
  %8420 = vmatprep.subr.bf16.mxu0 0
  %8421 = vmatpush1.bf16.msra.mxu0 %v5816
  %8422 = vmatprep.subr.bf16.mxu0 0
  %8423 = vmatpush1.bf16.msra.mxu0 %v5817
  %8424 = vmatprep.subr.bf16.mxu0 0
  %8425 = vmatpush1.bf16.msra.mxu0 %v5818
  %8426 = vmatprep.subr.bf16.mxu0 0
  %8427 = vmatpush1.bf16.msra.mxu0 %v5819
  %8428 = vmatprep.subr.bf16.mxu0 0
  %8429 = vmatpush1.bf16.msra.mxu0 %v5820
  %8430 = vmatprep.subr.bf16.mxu0 0
  %8431 = vmatpush1.bf16.msra.mxu0 %v5821
  %8432 = vmatprep.subr.bf16.mxu0 0
  %8433 = vmatpush1.bf16.msra.mxu0 %v5822
  %8434 = vmatprep.subr.bf16.mxu0 0
  %8435 = vmatpush1.bf16.msra.mxu0 %v5823
  %8436 = vmatprep.subr.bf16.mxu0 0
  %8437 = vmatpush1.bf16.msra.mxu0 %v5824
  %8438 = vmatprep.subr.bf16.mxu0 0
  %8439 = vmatpush1.bf16.msra.mxu0 %v5825
  %8440 = vmatprep.subr.bf16.mxu0 0
  %8441 = vmatpush1.bf16.msra.mxu0 %v5826
  %8442 = vmatprep.subr.bf16.mxu0 0
  %8443 = vmatpush1.bf16.msra.mxu0 %v5827
  %8444 = vmatprep.mubr.bf16.mxu0 %v1879
  %8445 = vmatmul.mubr.bf16.gmra.mrb[0].mxu0 %v1878
  %v8446 = vpop.f32.mrb[0].mxu0
  %v8447 = vadd.f32 %v8407, %v8446
  %v8448 = vpop.f32.mrb[0].mxu0
  %v8449 = vpop.f32.mrb[0].mxu0
  %v8450 = vpop.f32.mrb[0].mxu0
  %8451 = vdwg.mxu0
  %8452 = vmatprep.subr.bf16.mxu0 0
  %8453 = vmatpush1.bf16.msra.mxu0 %v5828
  %8454 = vmatprep.subr.bf16.mxu0 0
  %8455 = vmatpush1.bf16.msra.mxu0 %v5829
  %8456 = vmatprep.subr.bf16.mxu0 0
  %8457 = vmatpush1.bf16.msra.mxu0 %v5830
  %8458 = vmatprep.subr.bf16.mxu0 0
  %8459 = vmatpush1.bf16.msra.mxu0 %v5831
  %8460 = vmatprep.subr.bf16.mxu0 0
  %8461 = vmatpush1.bf16.msra.mxu0 %v5832
  %8462 = vmatprep.subr.bf16.mxu0 0
  %8463 = vmatpush1.bf16.msra.mxu0 %v5833
  %8464 = vmatprep.subr.bf16.mxu0 0
  %8465 = vmatpush1.bf16.msra.mxu0 %v5834
  %8466 = vmatprep.subr.bf16.mxu0 0
  %8467 = vmatpush1.bf16.msra.mxu0 %v5835
  %8468 = vmatprep.subr.bf16.mxu0 0
  %8469 = vmatpush1.bf16.msra.mxu0 %v5836
  %8470 = vmatprep.subr.bf16.mxu0 0
  %8471 = vmatpush1.bf16.msra.mxu0 %v5837
  %8472 = vmatprep.subr.bf16.mxu0 0
  %8473 = vmatpush1.bf16.msra.mxu0 %v5838
  %8474 = vmatprep.subr.bf16.mxu0 0
  %8475 = vmatpush1.bf16.msra.mxu0 %v5839
  %8476 = vmatprep.subr.bf16.mxu0 0
  %8477 = vmatpush1.bf16.msra.mxu0 %v5840
  %8478 = vmatprep.subr.bf16.mxu0 0
  %8479 = vmatpush1.bf16.msra.mxu0 %v5841
  %8480 = vmatprep.subr.bf16.mxu0 0
  %8481 = vmatpush1.bf16.msra.mxu0 %v5842
  %8482 = vmatprep.subr.bf16.mxu0 0
  %8483 = vmatpush1.bf16.msra.mxu0 %v5843
  %8484 = vmatprep.mubr.bf16.mxu0 %v1881
  %8485 = vmatmul.mubr.bf16.gmra.mrb[0].mxu0 %v1880
  %v8486 = vpop.f32.mrb[0].mxu0
  %v8487 = vadd.f32 %v8447, %v8486
  %v8488 = vpop.f32.mrb[0].mxu0
  %v8489 = vpop.f32.mrb[0].mxu0
  %v8490 = vpop.f32.mrb[0].mxu0
  %8491 = vdwg.mxu0
  %8492 = vmatprep.subr.bf16.mxu0 0
  %8493 = vmatpush1.bf16.msra.mxu0 %v5844
  %8494 = vmatprep.subr.bf16.mxu0 0
  %8495 = vmatpush1.bf16.msra.mxu0 %v5845
  %8496 = vmatprep.subr.bf16.mxu0 0
  %8497 = vmatpush1.bf16.msra.mxu0 %v5846
  %8498 = vmatprep.subr.bf16.mxu0 0
  %8499 = vmatpush1.bf16.msra.mxu0 %v5847
  %8500 = vmatprep.subr.bf16.mxu0 0
  %8501 = vmatpush1.bf16.msra.mxu0 %v5848
  %8502 = vmatprep.subr.bf16.mxu0 0
  %8503 = vmatpush1.bf16.msra.mxu0 %v5849
  %8504 = vmatprep.subr.bf16.mxu0 0
  %8505 = vmatpush1.bf16.msra.mxu0 %v5850
  %8506 = vmatprep.subr.bf16.mxu0 0
  %8507 = vmatpush1.bf16.msra.mxu0 %v5851
  %8508 = vmatprep.subr.bf16.mxu0 0
  %8509 = vmatpush1.bf16.msra.mxu0 %v5852
  %8510 = vmatprep.subr.bf16.mxu0 0
  %8511 = vmatpush1.bf16.msra.mxu0 %v5853
  %8512 = vmatprep.subr.bf16.mxu0 0
  %8513 = vmatpush1.bf16.msra.mxu0 %v5854
  %8514 = vmatprep.subr.bf16.mxu0 0
  %8515 = vmatpush1.bf16.msra.mxu0 %v5855
  %8516 = vmatprep.subr.bf16.mxu0 0
  %8517 = vmatpush1.bf16.msra.mxu0 %v5856
  %8518 = vmatprep.subr.bf16.mxu0 0
  %8519 = vmatpush1.bf16.msra.mxu0 %v5857
  %8520 = vmatprep.subr.bf16.mxu0 0
  %8521 = vmatpush1.bf16.msra.mxu0 %v5858
  %8522 = vmatprep.subr.bf16.mxu0 0
  %8523 = vmatpush1.bf16.msra.mxu0 %v5859
  %8524 = vmatprep.mubr.bf16.mxu0 %v1883
  %8525 = vmatmul.mubr.bf16.gmra.mrb[0].mxu0 %v1882
  %v8526 = vpop.f32.mrb[0].mxu0
  %v8527 = vadd.f32 %v8487, %v8526
  %v8528 = vpop.f32.mrb[0].mxu0
  %v8529 = vpop.f32.mrb[0].mxu0
  %v8530 = vpop.f32.mrb[0].mxu0
  %8531 = vdwg.mxu0
  %8532 = vmatprep.subr.bf16.mxu0 0
  %8533 = vmatpush1.bf16.msra.mxu0 %v5860
  %8534 = vmatprep.subr.bf16.mxu0 0
  %8535 = vmatpush1.bf16.msra.mxu0 %v5861
  %8536 = vmatprep.subr.bf16.mxu0 0
  %8537 = vmatpush1.bf16.msra.mxu0 %v5862
  %8538 = vmatprep.subr.bf16.mxu0 0
  %8539 = vmatpush1.bf16.msra.mxu0 %v5863
  %8540 = vmatprep.subr.bf16.mxu0 0
  %8541 = vmatpush1.bf16.msra.mxu0 %v5864
  %8542 = vmatprep.subr.bf16.mxu0 0
  %8543 = vmatpush1.bf16.msra.mxu0 %v5865
  %8544 = vmatprep.subr.bf16.mxu0 0
  %8545 = vmatpush1.bf16.msra.mxu0 %v5866
  %8546 = vmatprep.subr.bf16.mxu0 0
  %8547 = vmatpush1.bf16.msra.mxu0 %v5867
  %8548 = vmatprep.subr.bf16.mxu0 0
  %8549 = vmatpush1.bf16.msra.mxu0 %v5868
  %8550 = vmatprep.subr.bf16.mxu0 0
  %8551 = vmatpush1.bf16.msra.mxu0 %v5869
  %8552 = vmatprep.subr.bf16.mxu0 0
  %8553 = vmatpush1.bf16.msra.mxu0 %v5870
  %8554 = vmatprep.subr.bf16.mxu0 0
  %8555 = vmatpush1.bf16.msra.mxu0 %v5871
  %8556 = vmatprep.subr.bf16.mxu0 0
  %8557 = vmatpush1.bf16.msra.mxu0 %v5872
  %8558 = vmatprep.subr.bf16.mxu0 0
  %8559 = vmatpush1.bf16.msra.mxu0 %v5873
  %8560 = vmatprep.subr.bf16.mxu0 0
  %8561 = vmatpush1.bf16.msra.mxu0 %v5874
  %8562 = vmatprep.subr.bf16.mxu0 0
  %8563 = vmatpush1.bf16.msra.mxu0 %v5875
  %8564 = vmatprep.mubr.bf16.mxu0 %v1885
  %8565 = vmatmul.mubr.bf16.gmra.mrb[0].mxu0 %v1884
  %v8566 = vpop.f32.mrb[0].mxu0
  %v8567 = vadd.f32 %v8527, %v8566
  %v8568 = vpop.f32.mrb[0].mxu0
  %v8569 = vpop.f32.mrb[0].mxu0
  %v8570 = vpop.f32.mrb[0].mxu0
  %8571 = vdwg.mxu0
  %8572 = vmatprep.subr.bf16.mxu0 0
  %8573 = vmatpush1.bf16.msra.mxu0 %v5876
  %8574 = vmatprep.subr.bf16.mxu0 0
  %8575 = vmatpush1.bf16.msra.mxu0 %v5877
  %8576 = vmatprep.subr.bf16.mxu0 0
  %8577 = vmatpush1.bf16.msra.mxu0 %v5878
  %8578 = vmatprep.subr.bf16.mxu0 0
  %8579 = vmatpush1.bf16.msra.mxu0 %v5879
  %8580 = vmatprep.subr.bf16.mxu0 0
  %8581 = vmatpush1.bf16.msra.mxu0 %v5880
  %8582 = vmatprep.subr.bf16.mxu0 0
  %8583 = vmatpush1.bf16.msra.mxu0 %v5881
  %8584 = vmatprep.subr.bf16.mxu0 0
  %8585 = vmatpush1.bf16.msra.mxu0 %v5882
  %8586 = vmatprep.subr.bf16.mxu0 0
  %8587 = vmatpush1.bf16.msra.mxu0 %v5883
  %8588 = vmatprep.subr.bf16.mxu0 0
  %8589 = vmatpush1.bf16.msra.mxu0 %v5884
  %8590 = vmatprep.subr.bf16.mxu0 0
  %8591 = vmatpush1.bf16.msra.mxu0 %v5885
  %8592 = vmatprep.subr.bf16.mxu0 0
  %8593 = vmatpush1.bf16.msra.mxu0 %v5886
  %8594 = vmatprep.subr.bf16.mxu0 0
  %8595 = vmatpush1.bf16.msra.mxu0 %v5887
  %8596 = vmatprep.subr.bf16.mxu0 0
  %8597 = vmatpush1.bf16.msra.mxu0 %v5888
  %8598 = vmatprep.subr.bf16.mxu0 0
  %8599 = vmatpush1.bf16.msra.mxu0 %v5889
  %8600 = vmatprep.subr.bf16.mxu0 0
  %8601 = vmatpush1.bf16.msra.mxu0 %v5890
  %8602 = vmatprep.subr.bf16.mxu0 0
  %8603 = vmatpush1.bf16.msra.mxu0 %v5891
  %8604 = vmatprep.mubr.bf16.mxu0 %v1887
  %8605 = vmatmul.mubr.bf16.gmra.mrb[0].mxu0 %v1886
  %v8606 = vpop.f32.mrb[0].mxu0
  %v8607 = vadd.f32 %v8567, %v8606
  %v8608 = vpop.f32.mrb[0].mxu0
  %v8609 = vpop.f32.mrb[0].mxu0
  %v8610 = vpop.f32.mrb[0].mxu0
  %8611 = vdwg.mxu0
  %8612 = vmatprep.subr.bf16.mxu0 0
  %8613 = vmatpush1.bf16.msra.mxu0 %v5892
  %8614 = vmatprep.subr.bf16.mxu0 0
  %8615 = vmatpush1.bf16.msra.mxu0 %v5893
  %8616 = vmatprep.subr.bf16.mxu0 0
  %8617 = vmatpush1.bf16.msra.mxu0 %v5894
  %8618 = vmatprep.subr.bf16.mxu0 0
  %8619 = vmatpush1.bf16.msra.mxu0 %v5895
  %8620 = vmatprep.subr.bf16.mxu0 0
  %8621 = vmatpush1.bf16.msra.mxu0 %v5896
  %8622 = vmatprep.subr.bf16.mxu0 0
  %8623 = vmatpush1.bf16.msra.mxu0 %v5897
  %8624 = vmatprep.subr.bf16.mxu0 0
  %8625 = vmatpush1.bf16.msra.mxu0 %v5898
  %8626 = vmatprep.subr.bf16.mxu0 0
  %8627 = vmatpush1.bf16.msra.mxu0 %v5899
  %8628 = vmatprep.subr.bf16.mxu0 0
  %8629 = vmatpush1.bf16.msra.mxu0 %v5900
  %8630 = vmatprep.subr.bf16.mxu0 0
  %8631 = vmatpush1.bf16.msra.mxu0 %v5901
  %8632 = vmatprep.subr.bf16.mxu0 0
  %8633 = vmatpush1.bf16.msra.mxu0 %v5902
  %8634 = vmatprep.subr.bf16.mxu0 0
  %8635 = vmatpush1.bf16.msra.mxu0 %v5903
  %8636 = vmatprep.subr.bf16.mxu0 0
  %8637 = vmatpush1.bf16.msra.mxu0 %v5904
  %8638 = vmatprep.subr.bf16.mxu0 0
  %8639 = vmatpush1.bf16.msra.mxu0 %v5905
  %8640 = vmatprep.subr.bf16.mxu0 0
  %8641 = vmatpush1.bf16.msra.mxu0 %v5906
  %8642 = vmatprep.subr.bf16.mxu0 0
  %8643 = vmatpush1.bf16.msra.mxu0 %v5907
  %8644 = vmatprep.mubr.bf16.mxu0 %v1889
  %8645 = vmatmul.mubr.bf16.gmra.mrb[0].mxu0 %v1888
  %v8646 = vpop.f32.mrb[0].mxu0
  %v8647 = vadd.f32 %v8607, %v8646
  %v8648 = vpop.f32.mrb[0].mxu0
  %v8649 = vpop.f32.mrb[0].mxu0
  %v8650 = vpop.f32.mrb[0].mxu0
  %8651 = vdwg.mxu0
  %v8652 = vmax.f32 %v8647, 0.0
  %v8653 = vpack.c.bf16 %v8652, %v8652
  %v8654 = vld [vmem:[%s3] sm:$0xf]
  %v8655 = vld [vmem:[%s3 + $0x4] sm:$0xf]
  %v8656 = vld [vmem:[%s3 + $0x8] sm:$0xf]
  %v8657 = vld [vmem:[%s3 + $0xc] sm:$0xf]
  %v8658 = vld [vmem:[%s3 + $0x10] sm:$0xf]
  %v8659 = vld [vmem:[%s3 + $0x14] sm:$0xf]
  %v8660 = vld [vmem:[%s3 + $0x18] sm:$0xf]
  %v8661 = vld [vmem:[%s3 + $0x1c] sm:$0xf]
  %v8662 = vld [vmem:[%s3 + $0x20] sm:$0xf]
  %v8663 = vld [vmem:[%s3 + $0x24] sm:$0xf]
  %v8664 = vld [vmem:[%s3 + $0x28] sm:$0xf]
  %v8665 = vld [vmem:[%s3 + $0x2c] sm:$0xf]
  %v8666 = vld [vmem:[%s3 + $0x30] sm:$0xf]
  %v8667 = vld [vmem:[%s3 + $0x34] sm:$0xf]
  %v8668 = vld [vmem:[%s3 + $0x38] sm:$0xf]
  %v8669 = vld [vmem:[%s3 + $0x3c] sm:$0xf]
  %v8670 = vld [vmem:[%s4] sm:$0x1]
  %v8672 = vlaneseq
  %v8673 = vshrl.u32 %v8672, 7
  %v8674 = vsub.s32 0, %v8673
  %v8675 = vrot.slane %v8670, %v8674
  %v8693 = vunpack.c.l.b16 %v8654
  %v8694 = vunpack.c.l.b16 %v8655
  %v8695 = vunpack.c.l.b16 %v8656
  %v8696 = vunpack.c.l.b16 %v8657
  %v8697 = vunpack.c.l.b16 %v8658
  %v8698 = vunpack.c.l.b16 %v8659
  %v8699 = vunpack.c.l.b16 %v8660
  %v8700 = vunpack.c.l.b16 %v8661
  %v8701 = vunpack.c.l.b16 %v8662
  %v8702 = vunpack.c.l.b16 %v8663
  %v8703 = vunpack.c.l.b16 %v8664
  %v8704 = vunpack.c.l.b16 %v8665
  %v8705 = vunpack.c.l.b16 %v8666
  %v8706 = vunpack.c.l.b16 %v8667
  %v8707 = vunpack.c.l.b16 %v8668
  %v8708 = vunpack.c.l.b16 %v8669
  %v8709 = vpack.c.b16 %v8694, %v8693
  %v8710 = vpack.c.b16 %v8696, %v8695
  %v8711 = vpack.c.b16 %v8698, %v8697
  %v8712 = vpack.c.b16 %v8700, %v8699
  %v8713 = vpack.c.b16 %v8702, %v8701
  %v8714 = vpack.c.b16 %v8704, %v8703
  %v8715 = vpack.c.b16 %v8706, %v8705
  %v8716 = vpack.c.b16 %v8708, %v8707
  %8725 = vmatprep.subr.bf16.mxu0 0
  %8726 = vmatpush1.bf16.msra.mxu0 %v8709
  %8727 = vmatprep.subr.bf16.mxu0 0
  %8728 = vmatpush1.bf16.msra.mxu0 %v8710
  %8729 = vmatprep.subr.bf16.mxu0 0
  %8730 = vmatpush1.bf16.msra.mxu0 %v8711
  %8731 = vmatprep.subr.bf16.mxu0 0
  %8732 = vmatpush1.bf16.msra.mxu0 %v8712
  %8733 = vmatprep.subr.bf16.mxu0 0
  %8734 = vmatpush1.bf16.msra.mxu0 %v8713
  %8735 = vmatprep.subr.bf16.mxu0 0
  %8736 = vmatpush1.bf16.msra.mxu0 %v8714
  %8737 = vmatprep.subr.bf16.mxu0 0
  %8738 = vmatpush1.bf16.msra.mxu0 %v8715
  %8739 = vmatprep.subr.bf16.mxu0 0
  %8740 = vmatpush1.bf16.msra.mxu0 %v8716
  %8741 = vmatprep.subr.bf16.mxu0 0
  %8742 = vmatpush1.bf16.msra.mxu0 0
  %8743 = vmatprep.subr.bf16.mxu0 0
  %8744 = vmatpush1.bf16.msra.mxu0 0
  %8745 = vmatprep.subr.bf16.mxu0 0
  %8746 = vmatpush1.bf16.msra.mxu0 0
  %8747 = vmatprep.subr.bf16.mxu0 0
  %8748 = vmatpush1.bf16.msra.mxu0 0
  %8749 = vmatprep.subr.bf16.mxu0 0
  %8750 = vmatpush1.bf16.msra.mxu0 0
  %8751 = vmatprep.subr.bf16.mxu0 0
  %8752 = vmatpush1.bf16.msra.mxu0 0
  %8753 = vmatprep.subr.bf16.mxu0 0
  %8754 = vmatpush1.bf16.msra.mxu0 0
  %8755 = vmatprep.subr.bf16.mxu0 0
  %8756 = vmatpush1.bf16.msra.mxu0 0
  %8757 = vmatprep.mubr.bf16.mxu0 0
  %8758 = vmatmul.mubr.bf16.gmra.mrb[0].mxu0 %v8653
  %v8759 = vpop.f32.mrb[0].mxu0
  %v8760 = vadd.f32 %v8675, %v8759
  %v8761 = vpop.f32.mrb[0].mxu0
  %v8762 = vpop.f32.mrb[0].mxu0
  %v8763 = vpop.f32.mrb[0].mxu0
  %8764 = vdwg.mxu0
  %8765 = vst [vmem:[%s5] sm:$0xff] %v8760
  // Predicated region
  $region22: #{cnn_forward.5} parent=0 // pred_check
    _
  $region23: #{cnn_forward.5} parent=0 // pred_check_branch
    %8767 = sbr.rel (0) target = $region25
  $region24: #{cnn_forward.5} parent=0 // pred_region
    _
  $region25: #{cnn_forward.5} parent=0 // pred_fallthru
    _
  // Predicated region
  $region26: #{cnn_forward.5} parent=0 // pred_check
    _
  $region27: #{cnn_forward.5} parent=0 // pred_check_branch
    %8769 = sbr.rel (0) target = $region29
  $region28: #{cnn_forward.5} parent=0 // pred_region
    _
  $region29: #{cnn_forward.5} parent=0 // pred_fallthru
    _

</llo_original>
